<compile_context>
chip_gen: v6e
topology: v6e:2x2x1
jax: 0.10.0
libtpu: 0.0.40
codegen_flags: <defaults>
</compile_context>

<pallas_src>
import functools

import jax
import jax.numpy as jnp
from jax import lax
from jax.experimental import pallas as pl
from jax.experimental.pallas import tpu as pltpu

NEG_BIG = -1e9


# ----------------------------------------------------------------------------
# small in-kernel elementwise helpers
# ----------------------------------------------------------------------------
def _leaky_relu(x, alpha=0.2):
    return jnp.where(x > 0.0, x, alpha * x)


def _elu(x):
    return jnp.where(x > 0.0, x, jnp.exp(x) - 1.0)


def _batch_blocking(B):
    """Returns (padded batch size, batch block size).

    Keeps >=2 grid steps when cheaply possible (v7x megacore) and pads B to a
    multiple of 8 for larger batches so the block shape stays stable.
    """
    if B <= 8:
        Bt = B // 2 if (B % 2 == 0 and B >= 2) else B
        return B, Bt
    Bpad = ((B + 7) // 8) * 8
    return Bpad, 8


# ----------------------------------------------------------------------------
# single fused kernel: all DAN layers + global pooling + actor + critic
# ----------------------------------------------------------------------------
def _fused_forward_kernel(*refs, Bt, N, M, J, layer_meta):
    f32 = jnp.float32
    P = J * M
    R = Bt * N

    (fea_j_ref, op_bias_ref, fea_m_ref, mch_bias_ref, comp_ref,
     oh_ref, pairs_ref, pmask_ref) = refs[:8]
    idx = 8
    layer_refs = []
    for (_, _, _, _, _, concat) in layer_meta:
        cnt = 9 if concat else 11
        layer_refs.append(refs[idx:idx + cnt])
        idx += cnt
    (w1j_ref, w1m_ref, w1g_ref, w1p_ref, b1_ref,
     w2_ref, b2_ref, w3_ref, b3_ref) = refs[idx:idx + 9]
    idx += 9
    (cw1_ref, cb1_ref, cw2_ref, cb2_ref, cw3_ref, cb3_ref) = refs[idx:idx + 6]
    idx += 6
    pi_ref, v_ref = refs[idx], refs[idx + 1]

    oh = oh_ref[...]                                           # (Bt, J, N) candidate one-hot
    op_bias = op_bias_ref[...].reshape(R, 3)                   # additive -1e9 biases
    mch_bias = mch_bias_ref[...].reshape(Bt * M, M, 1)
    comp3 = comp_ref[...]                                      # (Bt, M*M, J)

    fea_j = fea_j_ref[...].reshape(R, fea_j_ref.shape[-1])     # (Bt*N, Dj0)
    fea_m = fea_m_ref[...].reshape(Bt * M, fea_m_ref.shape[-1])  # (Bt*M, Dm0)

    for li, lref in enumerate(layer_refs):
        dj, dm, Ho, Hm, Do, concat = layer_meta[li]
        if concat:
            (w_op_r, a_src_o_r, a_dst_o_r, exp_o_r,
             w_m_r, a_src_m_r, a_dst_m_r, ve_r, exp_m_r) = lref
            mean_o_r = mean_m_r = None
        else:
            (w_op_r, a_src_o_r, a_dst_o_r, exp_o_r, mean_o_r,
             w_m_r, a_src_m_r, a_dst_m_r, ve_r, exp_m_r, mean_m_r) = lref

        # ---- candidate gather for this layer (batched one-hot matmul) ----
        fea_j3 = fea_j.reshape(Bt, N, dj)
        fea_j_jc = lax.dot_general(oh, fea_j3, (((2,), (1,)), ((0,), (0,))),
                                   preferred_element_type=f32)          # (Bt, J, dj)

        # ================= operation attention =================
        Wh = jnp.dot(fea_j, w_op_r[...], preferred_element_type=f32)    # (R, Ho*Do)
        e_src = jnp.dot(Wh, a_src_o_r[...], preferred_element_type=f32)  # (R, Ho)
        e_dst = jnp.dot(Wh, a_dst_o_r[...], preferred_element_type=f32)  # (R, Ho)

        Wh_pred = pltpu.roll(Wh, shift=1, axis=0)
        Wh_succ = pltpu.roll(Wh, shift=R - 1, axis=0)
        ed_pred = pltpu.roll(e_dst, shift=1, axis=0)
        ed_succ = pltpu.roll(e_dst, shift=R - 1, axis=0)

        e_pred = _leaky_relu(e_src + ed_pred) + op_bias[:, 0:1]
        e_self = _leaky_relu(e_src + e_dst) + op_bias[:, 1:2]
        e_succ = _leaky_relu(e_src + ed_succ) + op_bias[:, 2:3]
        mx = jnp.maximum(jnp.maximum(e_pred, e_self), e_succ)
        p_pred = jnp.exp(e_pred - mx)
        p_self = jnp.exp(e_self - mx)
        p_succ = jnp.exp(e_succ - mx)
        inv = pl.reciprocal(p_pred + p_self + p_succ, approx=True)      # (R, Ho)

        # head -> head*Do expansion via a tiny 0/1 MXU matmul (no lane slices)
        E = exp_o_r[...]                                                 # (Ho, Ho*Do)
        w_p = jnp.dot(p_pred * inv, E, preferred_element_type=f32)
        w_s = jnp.dot(p_self * inv, E, preferred_element_type=f32)
        w_n = jnp.dot(p_succ * inv, E, preferred_element_type=f32)
        out_j = w_p * Wh_pred + w_s * Wh + w_n * Wh_succ                 # (R, Ho*Do)
        if not concat:
            out_j = jnp.dot(out_j, mean_o_r[...], preferred_element_type=f32)
        new_fea_j = _elu(out_j)

        # ================= machine attention =================
        Whm = jnp.dot(fea_m, w_m_r[...], preferred_element_type=f32)     # (Bt*M, Hm*Do)
        e_src_m = jnp.dot(Whm, a_src_m_r[...], preferred_element_type=f32)  # (Bt*M, Hm)
        e_dst_m = jnp.dot(Whm, a_dst_m_r[...], preferred_element_type=f32)  # (Bt*M, Hm)

        # fused comp_val: w_rows[b,j,h] = fea_j_jc[b,j,:] . (We[h]^T a_edge[h])
        w_rows = jnp.dot(fea_j_jc.reshape(Bt * J, dj), ve_r[...],
                         preferred_element_type=f32).reshape(Bt, J, Hm)
        e_edge = lax.dot_general(comp3, w_rows, (((2,), (1,)), ((0,), (0,))),
                                 preferred_element_type=f32)             # (Bt, M*M, Hm)
        e_edge = e_edge.reshape(Bt * M, M, Hm)

        e_dst_b = jnp.broadcast_to(e_dst_m.reshape(Bt, 1, M, Hm),
                                   (Bt, M, M, Hm)).reshape(Bt * M, M, Hm)
        e = _leaky_relu(e_src_m.reshape(Bt * M, 1, Hm) + e_dst_b + e_edge) + mch_bias
        mmax = jnp.max(e, axis=1, keepdims=True)
        pme = jnp.exp(e - mmax)
        inv_m = pl.reciprocal(jnp.sum(pme, axis=1, keepdims=True), approx=True)
        alpha = pme * inv_m                                              # (Bt*M, M, Hm)

        # head-expanded attention weights + single broadcast-multiply-reduce
        alpha_exp = jnp.dot(alpha.reshape(Bt * M * M, Hm), exp_m_r[...],
                            preferred_element_type=f32).reshape(Bt * M, M, Hm * Do)
        Whm_b = jnp.broadcast_to(Whm.reshape(Bt, 1, M, Hm * Do),
                                 (Bt, M, M, Hm * Do)).reshape(Bt * M, M, Hm * Do)
        out_m = jnp.sum(alpha_exp * Whm_b, axis=1)                       # (Bt*M, Hm*Do)
        if not concat:
            out_m = jnp.dot(out_m, mean_m_r[...], preferred_element_type=f32)
        new_fea_m = _elu(out_m)

        fea_j = new_fea_j
        fea_m = new_fea_m

    d = fea_j.shape[-1]

    # ================= global pooling (nonzero averaging) =================
    # TODO(synk): exact source of nonzero_averaging not provided; averaging
    # over rows that contain any nonzero entry (all-zero rows = padding).
    fj3 = fea_j.reshape(Bt, N, d)
    fm3 = fea_m.reshape(Bt, M, d)
    nz_j = (jnp.sum(jnp.abs(fj3), axis=2, keepdims=True) > 0.0).astype(jnp.float32)
    nz_m = (jnp.sum(jnp.abs(fm3), axis=2, keepdims=True) > 0.0).astype(jnp.float32)
    glob_j = jnp.sum(fj3 * nz_j, axis=1) / jnp.maximum(jnp.sum(nz_j, axis=1), 1.0)
    glob_m = jnp.sum(fm3 * nz_m, axis=1) / jnp.maximum(jnp.sum(nz_m, axis=1), 1.0)
    glob = jnp.concatenate([glob_j, glob_m], axis=-1)                    # (Bt, 2d)

    # ================= actor (candidate features composed on the fly) =====
    jc_fin = lax.dot_general(oh, fj3, (((2,), (1,)), ((0,), (0,))),
                             preferred_element_type=f32)                 # (Bt, J, d)
    H1 = b1_ref.shape[-1]
    Tj = jnp.dot(jc_fin.reshape(Bt * J, d), w1j_ref[...], preferred_element_type=f32)
    Tm = jnp.dot(fea_m, w1m_ref[...], preferred_element_type=f32)
    Tg = jnp.dot(glob, w1g_ref[...], preferred_element_type=f32)
    Tp = jnp.dot(pairs_ref[...].reshape(Bt * P, pairs_ref.shape[-1]),
                 w1p_ref[...], preferred_element_type=f32)

    Tj_s = jnp.broadcast_to(Tj.reshape(Bt * J, 1, H1),
                            (Bt * J, M, H1)).reshape(Bt * P, H1)
    Tm_s = jnp.broadcast_to(Tm.reshape(Bt, 1, M, H1),
                            (Bt, J, M, H1)).reshape(Bt * P, H1)
    Tg_s = jnp.broadcast_to(Tg.reshape(Bt, 1, H1),
                            (Bt, P, H1)).reshape(Bt * P, H1)

    h1 = jnp.tanh(Tj_s + Tm_s + Tg_s + Tp + b1_ref[...])
    h2 = jnp.tanh(jnp.dot(h1, w2_ref[...], preferred_element_type=f32) + b2_ref[...])
    s = jnp.dot(h2, w3_ref[...], preferred_element_type=f32) + b3_ref[...]  # (Bt*P, 1)

    # per-batch masked softmax over the P candidate pairs (exact division so
    # the policy sums to 1 to float precision)
    s3 = s.reshape(Bt, P, 1) + pmask_ref[...]
    smax = jnp.max(s3, axis=1, keepdims=True)
    pexp = jnp.exp(s3 - smax)
    pi_ref[...] = pexp / jnp.sum(pexp, axis=1, keepdims=True)

    # ================= critic =================
    c1 = jnp.tanh(jnp.dot(glob, cw1_ref[...], preferred_element_type=f32) + cb1_ref[...])
    c2 = jnp.tanh(jnp.dot(c1, cw2_ref[...], preferred_element_type=f32) + cb2_ref[...])
    v = jnp.dot(c2, cw3_ref[...], preferred_element_type=f32) + cb3_ref[...]    # (Bt, 1)
    v_ref[...] = v.reshape(Bt, 1, 1)


# ----------------------------------------------------------------------------
# wrapper: mask->bias conversion, parameter folding, single pallas_call
# ----------------------------------------------------------------------------
def meta_actor_daniel_forward(params, fea_j, op_mask, candidate, fea_m,
                              mch_mask, comp_idx, dynamic_pair_mask, fea_pairs):
    f32 = jnp.float32
    B, M, _, J = comp_idx.shape
    N = fea_j.shape[1]
    P = J * M

    # masks -> additive biases (op_mask: 1 = neighbour missing; mch_mask: 1 = valid)
    op_bias = op_mask.astype(f32) * jnp.asarray(NEG_BIG, f32)                # (B, N, 3)
    mch_bias = jnp.where(mch_mask > 0.5, 0.0, NEG_BIG).astype(f32)           # (B, M, M)
    comp3 = comp_idx.reshape(B, M * M, J).astype(f32)                        # (B, M*M, J)
    cand_oh = jax.nn.one_hot(candidate.astype(jnp.int32), N, dtype=f32)      # (B, J, N)
    pairs = fea_pairs.reshape(B, P, 8).astype(f32)                           # (B, P, 8)
    pmask = dynamic_pair_mask.reshape(B, P, 1).astype(f32) * jnp.asarray(NEG_BIG, f32)

    fea_j = fea_j.astype(f32)
    fea_m = fea_m.astype(f32)

    Bpad, Bt = _batch_blocking(B)
    data = [fea_j, op_bias, fea_m, mch_bias, comp3, cand_oh, pairs, pmask]
    if Bpad != B:
        data = [jnp.pad(x, ((0, Bpad - B),) + ((0, 0),) * (x.ndim - 1)) for x in data]

    # ---- fold / pre-layout parameters (block-diagonal attention vectors,
    #      head-expansion and head-mean matrices) ----
    n_layers = len(params["op_blocks"])
    dj = data[0].shape[-1]
    dm = data[2].shape[-1]
    layer_meta = []
    layer_args = []
    for layer in range(n_layers):
        ob = params["op_blocks"][layer]
        mb = params["mch_blocks"][layer]
        Ho, _, Do = ob["W"].shape
        Hm = mb["Wn"].shape[0]
        concat = layer < n_layers - 1

        eye_o = jnp.eye(Ho, dtype=f32)
        eye_m = jnp.eye(Hm, dtype=f32)
        w_op = jnp.transpose(ob["W"], (1, 0, 2)).reshape(dj, Ho * Do)
        a_src_o = jnp.einsum('hd,hk->hdk', ob["a_src"], eye_o).reshape(Ho * Do, Ho)
        a_dst_o = jnp.einsum('hd,hk->hdk', ob["a_dst"], eye_o).reshape(Ho * Do, Ho)
        exp_o = jnp.repeat(eye_o, Do, axis=1)                                # (Ho, Ho*Do)

        w_m = jnp.transpose(mb["Wn"], (1, 0, 2)).reshape(dm, Hm * Do)
        a_src_m = jnp.einsum('hd,hk->hdk', mb["a_src"], eye_m).reshape(Hm * Do, Hm)
        a_dst_m = jnp.einsum('hd,hk->hdk', mb["a_dst"], eye_m).reshape(Hm * Do, Hm)
        ve = jnp.einsum('hdo,ho->dh', mb["We"], mb["a_edge"])                # (dj, Hm)
        exp_m = jnp.repeat(eye_m, Do, axis=1)                                # (Hm, Hm*Do)

        args = [w_op, a_src_o, a_dst_o, exp_o]
        if not concat:
            args.append(jnp.tile(jnp.eye(Do, dtype=f32), (Ho, 1)) / Ho)      # head mean
        args += [w_m, a_src_m, a_dst_m, ve, exp_m]
        if not concat:
            args.append(jnp.tile(jnp.eye(Do, dtype=f32), (Hm, 1)) / Hm)
        layer_args += args
        layer_meta.append((dj, dm, Ho, Hm, Do, concat))
        dj = Ho * Do if concat else Do
        dm = Hm * Do if concat else Do

    d = dj
    ap, cp = params["actor"], params["critic"]
    W1 = ap["W1"]  # rows ordered as [Fea_j_JC | Fea_m | (Gj,Gm) | pair]
    actor_args = [W1[0:d], W1[d:2 * d], W1[2 * d:4 * d], W1[4 * d:],
                  ap["b1"], ap["W2"], ap["b2"], ap["W3"], ap["b3"]]
    critic_args = [cp["W1"], cp["b1"], cp["W2"], cp["b2"], cp["W3"], cp["b3"]]

    all_args = data + layer_args + actor_args + critic_args

    def batch_spec(x):
        return pl.BlockSpec((Bt,) + x.shape[1:],
                            lambda i: (i,) + (0,) * (x.ndim - 1))

    def full_spec(x):
        return pl.BlockSpec(x.shape, lambda i: (0,) * x.ndim)

    in_specs = ([batch_spec(x) for x in data]
                + [full_spec(x) for x in layer_args + actor_args + critic_args])

    kernel = functools.partial(_fused_forward_kernel, Bt=Bt, N=N, M=M, J=J,
                               layer_meta=tuple(layer_meta))
    # NOTE: working set is a few hundred KiB; default scoped VMEM limit is
    # ample on v5e/v6e/v7x.  Set vmem_limit_bytes here if B/M/J/N grow.
    pi3, v3 = pl.pallas_call(
        kernel,
        out_shape=(jax.ShapeDtypeStruct((Bpad, P, 1), f32),
                   jax.ShapeDtypeStruct((Bpad, 1, 1), f32)),
        grid=(Bpad // Bt,),
        in_specs=in_specs,
        out_specs=[pl.BlockSpec((Bt, P, 1), lambda i: (i, 0, 0)),
                   pl.BlockSpec((Bt, 1, 1), lambda i: (i, 0, 0))],
        compiler_params=pltpu.CompilerParams(dimension_semantics=("parallel",)),
    )(*all_args)

    pi = pi3[:B, :, 0]
    v = v3[:B, :, 0]
    return pi, v


# ----------------------------------------------------------------------------
# deterministic parameter initialisation (shapes from the module __init__)
# ----------------------------------------------------------------------------
def init_params(key, cfg):
    keys = iter(jax.random.split(key, 128))

    def init(shape, scale=0.3):
        return (scale * jax.random.normal(next(keys), shape)).astype(jnp.float32)

    n_layers = len(cfg["num_heads_OAB"])
    heads_oab_per = [1] + cfg["num_heads_OAB"]
    heads_mab_per = [1] + cfg["num_heads_MAB"]
    mid = cfg["layer_fea_output_dim"][:-1]
    j_in = [cfg["fea_j_input_dim"]] + mid
    m_in = [cfg["fea_m_input_dim"]] + mid

    op_blocks, mch_blocks = [], []
    for i in range(n_layers):
        din = heads_oab_per[i] * j_in[i]
        H = cfg["num_heads_OAB"][i]
        dout = cfg["layer_fea_output_dim"][i]
        op_blocks.append(dict(W=init((H, din, dout)),
                              a_src=init((H, dout)),
                              a_dst=init((H, dout))))
    for i in range(n_layers):
        dn = heads_mab_per[i] * m_in[i]
        de = heads_oab_per[i] * j_in[i]
        H = cfg["num_heads_MAB"][i]
        dout = cfg["layer_fea_output_dim"][i]
        mch_blocks.append(dict(Wn=init((H, dn, dout)),
                               We=init((H, de, dout)),
                               a_src=init((H, dout)),
                               a_dst=init((H, dout)),
                               a_edge=init((H, dout))))

    emb = cfg["layer_fea_output_dim"][-1]
    pair_input_dim = 8
    ha, hc = cfg["hidden_dim_actor"], cfg["hidden_dim_critic"]
    actor = dict(W1=init((4 * emb + pair_input_dim, ha)), b1=jnp.zeros((1, ha), jnp.float32),
                 W2=init((ha, ha)), b2=jnp.zeros((1, ha), jnp.float32),
                 W3=init((ha, 1)), b3=jnp.zeros((1, 1), jnp.float32))
    critic = dict(W1=init((2 * emb, hc)), b1=jnp.zeros((1, hc), jnp.float32),
                  W2=init((hc, hc)), b2=jnp.zeros((1, hc), jnp.float32),
                  W3=init((hc, 1)), b3=jnp.zeros((1, 1), jnp.float32))
    return dict(op_blocks=op_blocks, mch_blocks=mch_blocks, actor=actor, critic=critic)


# ----------------------------------------------------------------------------
# main
# ----------------------------------------------------------------------------
if __name__ == "__main__":
    cfg = dict(fea_j_input_dim=8, fea_m_input_dim=6,
               layer_fea_output_dim=[16, 8],
               num_heads_OAB=[2, 2], num_heads_MAB=[2, 2],
               hidden_dim_actor=32, hidden_dim_critic=32)

    B, N, J, M = 2, 16, 4, 4
    key = jax.random.PRNGKey(0)
    k = iter(jax.random.split(key, 16))

    fea_j = jax.random.normal(next(k), (B, N, cfg["fea_j_input_dim"]), jnp.float32)
    fea_m = jax.random.normal(next(k), (B, M, cfg["fea_m_input_dim"]), jnp.float32)

    # op_mask: [B, N, 3]; 1 => predecessor/self/successor does not exist
    op_mask = jnp.zeros((B, N, 3), jnp.float32)
    first_ops = jnp.array([0, 4, 8, 12])
    last_ops = jnp.array([3, 7, 11, 15])
    op_mask = op_mask.at[:, first_ops, 0].set(1.0)   # no predecessor for first op of a job
    op_mask = op_mask.at[:, last_ops, 2].set(1.0)    # no successor for last op of a job

    candidate = jnp.array([[0, 4, 8, 12], [1, 5, 9, 13]], dtype=jnp.int32)   # [B, J]
    mch_mask = jnp.ones((B, M, M), jnp.float32)                              # [B, M, M]
    comp_idx = jax.random.bernoulli(next(k), 0.5, (B, M, M, J)).astype(jnp.float32)

    dynamic_pair_mask = jax.random.bernoulli(next(k), 0.3, (B, J, M))
    dynamic_pair_mask = dynamic_pair_mask.at[:, 0, 0].set(False)             # keep >=1 valid pair
    fea_pairs = jax.random.normal(next(k), (B, J, M, 8), jnp.float32)

    params = init_params(jax.random.PRNGKey(42), cfg)

    fwd = jax.jit(meta_actor_daniel_forward)
    pi, v = fwd(params, fea_j, op_mask, candidate, fea_m,
                mch_mask, comp_idx, dynamic_pair_mask, fea_pairs)
    pi, v = jax.block_until_ready((pi, v))

    assert pi.shape == (B, J * M), pi.shape
    assert v.shape == (B, 1), v.shape
    assert bool(jnp.all(jnp.isfinite(pi))) and bool(jnp.all(jnp.isfinite(v)))
    assert bool(jnp.allclose(jnp.sum(pi, axis=-1), 1.0, atol=1e-4))
    print("KERNEL_OK")
</pallas_src>

<mosaic_0001>
module attributes {stable_mosaic.version = 11 : i64} {
  func.func @_fused_forward_kernel(%arg0: i32, %arg1: memref<1x16x8xf32, #tpu.memory_space<vmem>>, %arg2: memref<1x16x3xf32, #tpu.memory_space<vmem>>, %arg3: memref<1x4x6xf32, #tpu.memory_space<vmem>>, %arg4: memref<1x4x4xf32, #tpu.memory_space<vmem>>, %arg5: memref<1x16x4xf32, #tpu.memory_space<vmem>>, %arg6: memref<1x4x16xf32, #tpu.memory_space<vmem>>, %arg7: memref<1x16x8xf32, #tpu.memory_space<vmem>>, %arg8: memref<1x16x1xf32, #tpu.memory_space<vmem>>, %arg9: memref<8x32xf32, #tpu.memory_space<vmem>>, %arg10: memref<32x2xf32, #tpu.memory_space<vmem>>, %arg11: memref<32x2xf32, #tpu.memory_space<vmem>>, %arg12: memref<2x32xf32, #tpu.memory_space<vmem>>, %arg13: memref<6x32xf32, #tpu.memory_space<vmem>>, %arg14: memref<32x2xf32, #tpu.memory_space<vmem>>, %arg15: memref<32x2xf32, #tpu.memory_space<vmem>>, %arg16: memref<8x2xf32, #tpu.memory_space<vmem>>, %arg17: memref<2x32xf32, #tpu.memory_space<vmem>>, %arg18: memref<32x16xf32, #tpu.memory_space<vmem>>, %arg19: memref<16x2xf32, #tpu.memory_space<vmem>>, %arg20: memref<16x2xf32, #tpu.memory_space<vmem>>, %arg21: memref<2x16xf32, #tpu.memory_space<vmem>>, %arg22: memref<16x8xf32, #tpu.memory_space<vmem>>, %arg23: memref<32x16xf32, #tpu.memory_space<vmem>>, %arg24: memref<16x2xf32, #tpu.memory_space<vmem>>, %arg25: memref<16x2xf32, #tpu.memory_space<vmem>>, %arg26: memref<32x2xf32, #tpu.memory_space<vmem>>, %arg27: memref<2x16xf32, #tpu.memory_space<vmem>>, %arg28: memref<16x8xf32, #tpu.memory_space<vmem>>, %arg29: memref<8x32xf32, #tpu.memory_space<vmem>>, %arg30: memref<8x32xf32, #tpu.memory_space<vmem>>, %arg31: memref<16x32xf32, #tpu.memory_space<vmem>>, %arg32: memref<8x32xf32, #tpu.memory_space<vmem>>, %arg33: memref<1x32xf32, #tpu.memory_space<vmem>>, %arg34: memref<32x32xf32, #tpu.memory_space<vmem>>, %arg35: memref<1x32xf32, #tpu.memory_space<vmem>>, %arg36: memref<32x1xf32, #tpu.memory_space<vmem>>, %arg37: memref<1x1xf32, #tpu.memory_space<vmem>>, %arg38: memref<16x32xf32, #tpu.memory_space<vmem>>, %arg39: memref<1x32xf32, #tpu.memory_space<vmem>>, %arg40: memref<32x32xf32, #tpu.memory_space<vmem>>, %arg41: memref<1x32xf32, #tpu.memory_space<vmem>>, %arg42: memref<32x1xf32, #tpu.memory_space<vmem>>, %arg43: memref<1x1xf32, #tpu.memory_space<vmem>>, %arg44: memref<1x16x1xf32, #tpu.memory_space<vmem>>, %arg45: memref<1x1x1xf32, #tpu.memory_space<vmem>>) attributes {dimension_semantics = [#tpu.dimension_semantics<parallel>], iteration_bounds = array<i64: 2>, scalar_prefetch = 0 : i64, scratch_operands = 0 : i64, tpu.core_type = #tpu.core_type<tc>, window_params = [{transform_indices = @transform_0, window_bounds = array<i64: 1, 16, 8>}, {transform_indices = @transform_1, window_bounds = array<i64: 1, 16, 3>}, {transform_indices = @transform_2, window_bounds = array<i64: 1, 4, 6>}, {transform_indices = @transform_3, window_bounds = array<i64: 1, 4, 4>}, {transform_indices = @transform_4, window_bounds = array<i64: 1, 16, 4>}, {transform_indices = @transform_5, window_bounds = array<i64: 1, 4, 16>}, {transform_indices = @transform_6, window_bounds = array<i64: 1, 16, 8>}, {transform_indices = @transform_7, window_bounds = array<i64: 1, 16, 1>}, {pipeline_mode = #tpu.pipeline_mode<synchronous>, transform_indices = @transform_8, window_bounds = array<i64: 8, 32>}, {pipeline_mode = #tpu.pipeline_mode<synchronous>, transform_indices = @transform_9, window_bounds = array<i64: 32, 2>}, {pipeline_mode = #tpu.pipeline_mode<synchronous>, transform_indices = @transform_10, window_bounds = array<i64: 32, 2>}, {pipeline_mode = #tpu.pipeline_mode<synchronous>, transform_indices = @transform_11, window_bounds = array<i64: 2, 32>}, {pipeline_mode = #tpu.pipeline_mode<synchronous>, transform_indices = @transform_12, window_bounds = array<i64: 6, 32>}, {pipeline_mode = #tpu.pipeline_mode<synchronous>, transform_indices = @transform_13, window_bounds = array<i64: 32, 2>}, {pipeline_mode = #tpu.pipeline_mode<synchronous>, transform_indices = @transform_14, window_bounds = array<i64: 32, 2>}, {pipeline_mode = #tpu.pipeline_mode<synchronous>, transform_indices = @transform_15, window_bounds = array<i64: 8, 2>}, {pipeline_mode = #tpu.pipeline_mode<synchronous>, transform_indices = @transform_16, window_bounds = array<i64: 2, 32>}, {pipeline_mode = #tpu.pipeline_mode<synchronous>, transform_indices = @transform_17, window_bounds = array<i64: 32, 16>}, {pipeline_mode = #tpu.pipeline_mode<synchronous>, transform_indices = @transform_18, window_bounds = array<i64: 16, 2>}, {pipeline_mode = #tpu.pipeline_mode<synchronous>, transform_indices = @transform_19, window_bounds = array<i64: 16, 2>}, {pipeline_mode = #tpu.pipeline_mode<synchronous>, transform_indices = @transform_20, window_bounds = array<i64: 2, 16>}, {pipeline_mode = #tpu.pipeline_mode<synchronous>, transform_indices = @transform_21, window_bounds = array<i64: 16, 8>}, {pipeline_mode = #tpu.pipeline_mode<synchronous>, transform_indices = @transform_22, window_bounds = array<i64: 32, 16>}, {pipeline_mode = #tpu.pipeline_mode<synchronous>, transform_indices = @transform_23, window_bounds = array<i64: 16, 2>}, {pipeline_mode = #tpu.pipeline_mode<synchronous>, transform_indices = @transform_24, window_bounds = array<i64: 16, 2>}, {pipeline_mode = #tpu.pipeline_mode<synchronous>, transform_indices = @transform_25, window_bounds = array<i64: 32, 2>}, {pipeline_mode = #tpu.pipeline_mode<synchronous>, transform_indices = @transform_26, window_bounds = array<i64: 2, 16>}, {pipeline_mode = #tpu.pipeline_mode<synchronous>, transform_indices = @transform_27, window_bounds = array<i64: 16, 8>}, {pipeline_mode = #tpu.pipeline_mode<synchronous>, transform_indices = @transform_28, window_bounds = array<i64: 8, 32>}, {pipeline_mode = #tpu.pipeline_mode<synchronous>, transform_indices = @transform_29, window_bounds = array<i64: 8, 32>}, {pipeline_mode = #tpu.pipeline_mode<synchronous>, transform_indices = @transform_30, window_bounds = array<i64: 16, 32>}, {pipeline_mode = #tpu.pipeline_mode<synchronous>, transform_indices = @transform_31, window_bounds = array<i64: 8, 32>}, {pipeline_mode = #tpu.pipeline_mode<synchronous>, transform_indices = @transform_32, window_bounds = array<i64: 1, 32>}, {pipeline_mode = #tpu.pipeline_mode<synchronous>, transform_indices = @transform_33, window_bounds = array<i64: 32, 32>}, {pipeline_mode = #tpu.pipeline_mode<synchronous>, transform_indices = @transform_34, window_bounds = array<i64: 1, 32>}, {pipeline_mode = #tpu.pipeline_mode<synchronous>, transform_indices = @transform_35, window_bounds = array<i64: 32, 1>}, {pipeline_mode = #tpu.pipeline_mode<synchronous>, transform_indices = @transform_36, window_bounds = array<i64: 1, 1>}, {pipeline_mode = #tpu.pipeline_mode<synchronous>, transform_indices = @transform_37, window_bounds = array<i64: 16, 32>}, {pipeline_mode = #tpu.pipeline_mode<synchronous>, transform_indices = @transform_38, window_bounds = array<i64: 1, 32>}, {pipeline_mode = #tpu.pipeline_mode<synchronous>, transform_indices = @transform_39, window_bounds = array<i64: 32, 32>}, {pipeline_mode = #tpu.pipeline_mode<synchronous>, transform_indices = @transform_40, window_bounds = array<i64: 1, 32>}, {pipeline_mode = #tpu.pipeline_mode<synchronous>, transform_indices = @transform_41, window_bounds = array<i64: 32, 1>}, {pipeline_mode = #tpu.pipeline_mode<synchronous>, transform_indices = @transform_42, window_bounds = array<i64: 1, 1>}, {transform_indices = @transform_43, window_bounds = array<i64: 1, 16, 1>}, {transform_indices = @transform_44, window_bounds = array<i64: 1, 1, 1>}]} {
    %c0 = arith.constant 0 : index
    %c0_0 = arith.constant 0 : index
    %c0_1 = arith.constant 0 : index
    %0 = vector.load %arg6[%c0, %c0_0, %c0_1] : memref<1x4x16xf32, #tpu.memory_space<vmem>>, vector<1x4x16xf32>
    %c0_2 = arith.constant 0 : index
    %c0_3 = arith.constant 0 : index
    %c0_4 = arith.constant 0 : index
    %1 = vector.load %arg2[%c0_2, %c0_3, %c0_4] : memref<1x16x3xf32, #tpu.memory_space<vmem>>, vector<1x16x3xf32>
    %2 = vector.shape_cast %1 : vector<1x16x3xf32> to vector<16x3xf32>
    %c0_5 = arith.constant 0 : index
    %c0_6 = arith.constant 0 : index
    %c0_7 = arith.constant 0 : index
    %3 = vector.load %arg4[%c0_5, %c0_6, %c0_7] : memref<1x4x4xf32, #tpu.memory_space<vmem>>, vector<1x4x4xf32>
    %4 = vector.shape_cast %3 : vector<1x4x4xf32> to vector<4x4x1xf32>
    %c0_8 = arith.constant 0 : index
    %c0_9 = arith.constant 0 : index
    %c0_10 = arith.constant 0 : index
    %5 = vector.load %arg5[%c0_8, %c0_9, %c0_10] : memref<1x16x4xf32, #tpu.memory_space<vmem>>, vector<1x16x4xf32>
    %c0_11 = arith.constant 0 : index
    %c0_12 = arith.constant 0 : index
    %c0_13 = arith.constant 0 : index
    %6 = vector.load %arg1[%c0_11, %c0_12, %c0_13] : memref<1x16x8xf32, #tpu.memory_space<vmem>>, vector<1x16x8xf32>
    %7 = vector.shape_cast %6 : vector<1x16x8xf32> to vector<16x8xf32>
    %c0_14 = arith.constant 0 : index
    %c0_15 = arith.constant 0 : index
    %c0_16 = arith.constant 0 : index
    %8 = vector.load %arg3[%c0_14, %c0_15, %c0_16] : memref<1x4x6xf32, #tpu.memory_space<vmem>>, vector<1x4x6xf32>
    %9 = vector.shape_cast %8 : vector<1x4x6xf32> to vector<4x6xf32>
    %10 = vector.shape_cast %7 : vector<16x8xf32> to vector<1x16x8xf32>
    %cst = arith.constant dense<0.000000e+00> : vector<1x4x8xf32>
    %11 = tpu.matmul %0, %10, %cst {dimension_numbers = #tpu.dot_dimension_numbers<[2], [1], [1], [2], [0, 0, 0, 1, 1, 2], [0], [0]>} : vector<1x4x16xf32>, vector<1x16x8xf32>, vector<1x4x8xf32> -> vector<1x4x8xf32>
    %c0_17 = arith.constant 0 : index
    %c0_18 = arith.constant 0 : index
    %12 = vector.load %arg9[%c0_17, %c0_18] : memref<8x32xf32, #tpu.memory_space<vmem>>, vector<8x32xf32>
    %cst_19 = arith.constant dense<0.000000e+00> : vector<16x32xf32>
    %13 = tpu.matmul %7, %12, %cst_19 {dimension_numbers = #tpu.dot_dimension_numbers<[1], [0], [0], [1], [0, 0, 1, 1], [], []>} : vector<16x8xf32>, vector<8x32xf32>, vector<16x32xf32> -> vector<16x32xf32>
    %c0_20 = arith.constant 0 : index
    %c0_21 = arith.constant 0 : index
    %14 = vector.load %arg10[%c0_20, %c0_21] : memref<32x2xf32, #tpu.memory_space<vmem>>, vector<32x2xf32>
    %cst_22 = arith.constant dense<0.000000e+00> : vector<16x2xf32>
    %15 = tpu.matmul %13, %14, %cst_22 {dimension_numbers = #tpu.dot_dimension_numbers<[1], [0], [0], [1], [0, 0, 1, 1], [], []>} : vector<16x32xf32>, vector<32x2xf32>, vector<16x2xf32> -> vector<16x2xf32>
    %c0_23 = arith.constant 0 : index
    %c0_24 = arith.constant 0 : index
    %16 = vector.load %arg11[%c0_23, %c0_24] : memref<32x2xf32, #tpu.memory_space<vmem>>, vector<32x2xf32>
    %cst_25 = arith.constant dense<0.000000e+00> : vector<16x2xf32>
    %17 = tpu.matmul %13, %16, %cst_25 {dimension_numbers = #tpu.dot_dimension_numbers<[1], [0], [0], [1], [0, 0, 1, 1], [], []>} : vector<16x32xf32>, vector<32x2xf32>, vector<16x2xf32> -> vector<16x2xf32>
    %c1_i32 = arith.constant 1 : i32
    %18 = tpu.dynamic_rotate %13 by %c1_i32 dim 0 : vector<16x32xf32>, i32 -> vector<16x32xf32>
    %c15_i32 = arith.constant 15 : i32
    %19 = tpu.dynamic_rotate %13 by %c15_i32 dim 0 : vector<16x32xf32>, i32 -> vector<16x32xf32>
    %c1_i32_26 = arith.constant 1 : i32
    %20 = tpu.dynamic_rotate %17 by %c1_i32_26 dim 0 : vector<16x2xf32>, i32 -> vector<16x2xf32>
    %c15_i32_27 = arith.constant 15 : i32
    %21 = tpu.dynamic_rotate %17 by %c15_i32_27 dim 0 : vector<16x2xf32>, i32 -> vector<16x2xf32>
    %22 = arith.addf %15, %20 : vector<16x2xf32>
    %cst_28 = arith.constant 0.000000e+00 : f32
    %23 = vector.broadcast %cst_28 : f32 to vector<16x2xf32>
    %24 = arith.cmpf ogt, %22, %23 : vector<16x2xf32>
    %cst_29 = arith.constant 2.000000e-01 : f32
    %25 = vector.broadcast %cst_29 : f32 to vector<16x2xf32>
    %26 = arith.mulf %25, %22 : vector<16x2xf32>
    %27 = arith.select %24, %22, %26 : vector<16x2xi1>, vector<16x2xf32>
    %28 = vector.extract_strided_slice %2 {offsets = [0, 0], sizes = [16, 1], strides = [1, 1]} : vector<16x3xf32> to vector<16x1xf32>
    %29 = vector.broadcast %28 : vector<16x1xf32> to vector<16x2xf32>
    %30 = arith.addf %27, %29 : vector<16x2xf32>
    %31 = arith.addf %15, %17 : vector<16x2xf32>
    %cst_30 = arith.constant 0.000000e+00 : f32
    %32 = vector.broadcast %cst_30 : f32 to vector<16x2xf32>
    %33 = arith.cmpf ogt, %31, %32 : vector<16x2xf32>
    %cst_31 = arith.constant 2.000000e-01 : f32
    %34 = vector.broadcast %cst_31 : f32 to vector<16x2xf32>
    %35 = arith.mulf %34, %31 : vector<16x2xf32>
    %36 = arith.select %33, %31, %35 : vector<16x2xi1>, vector<16x2xf32>
    %37 = vector.extract_strided_slice %2 {offsets = [0, 1], sizes = [16, 1], strides = [1, 1]} : vector<16x3xf32> to vector<16x1xf32>
    %38 = vector.broadcast %37 : vector<16x1xf32> to vector<16x2xf32>
    %39 = arith.addf %36, %38 : vector<16x2xf32>
    %40 = arith.addf %15, %21 : vector<16x2xf32>
    %cst_32 = arith.constant 0.000000e+00 : f32
    %41 = vector.broadcast %cst_32 : f32 to vector<16x2xf32>
    %42 = arith.cmpf ogt, %40, %41 : vector<16x2xf32>
    %cst_33 = arith.constant 2.000000e-01 : f32
    %43 = vector.broadcast %cst_33 : f32 to vector<16x2xf32>
    %44 = arith.mulf %43, %40 : vector<16x2xf32>
    %45 = arith.select %42, %40, %44 : vector<16x2xi1>, vector<16x2xf32>
    %46 = vector.extract_strided_slice %2 {offsets = [0, 2], sizes = [16, 1], strides = [1, 1]} : vector<16x3xf32> to vector<16x1xf32>
    %47 = vector.broadcast %46 : vector<16x1xf32> to vector<16x2xf32>
    %48 = arith.addf %45, %47 : vector<16x2xf32>
    %49 = arith.maximumf %30, %39 : vector<16x2xf32>
    %50 = arith.maximumf %49, %48 : vector<16x2xf32>
    %51 = arith.subf %30, %50 : vector<16x2xf32>
    %52 = math.exp %51 : vector<16x2xf32>
    %53 = arith.subf %39, %50 : vector<16x2xf32>
    %54 = math.exp %53 : vector<16x2xf32>
    %55 = arith.subf %48, %50 : vector<16x2xf32>
    %56 = math.exp %55 : vector<16x2xf32>
    %57 = arith.addf %52, %54 : vector<16x2xf32>
    %58 = arith.addf %57, %56 : vector<16x2xf32>
    %59 = tpu.reciprocal %58 {approx = true} : vector<16x2xf32> -> vector<16x2xf32>
    %c0_34 = arith.constant 0 : index
    %c0_35 = arith.constant 0 : index
    %60 = vector.load %arg12[%c0_34, %c0_35] : memref<2x32xf32, #tpu.memory_space<vmem>>, vector<2x32xf32>
    %61 = arith.mulf %52, %59 : vector<16x2xf32>
    %cst_36 = arith.constant dense<0.000000e+00> : vector<16x32xf32>
    %62 = tpu.matmul %61, %60, %cst_36 {dimension_numbers = #tpu.dot_dimension_numbers<[1], [0], [0], [1], [0, 0, 1, 1], [], []>} : vector<16x2xf32>, vector<2x32xf32>, vector<16x32xf32> -> vector<16x32xf32>
    %63 = arith.mulf %54, %59 : vector<16x2xf32>
    %cst_37 = arith.constant dense<0.000000e+00> : vector<16x32xf32>
    %64 = tpu.matmul %63, %60, %cst_37 {dimension_numbers = #tpu.dot_dimension_numbers<[1], [0], [0], [1], [0, 0, 1, 1], [], []>} : vector<16x2xf32>, vector<2x32xf32>, vector<16x32xf32> -> vector<16x32xf32>
    %65 = arith.mulf %56, %59 : vector<16x2xf32>
    %cst_38 = arith.constant dense<0.000000e+00> : vector<16x32xf32>
    %66 = tpu.matmul %65, %60, %cst_38 {dimension_numbers = #tpu.dot_dimension_numbers<[1], [0], [0], [1], [0, 0, 1, 1], [], []>} : vector<16x2xf32>, vector<2x32xf32>, vector<16x32xf32> -> vector<16x32xf32>
    %67 = arith.mulf %62, %18 : vector<16x32xf32>
    %68 = arith.mulf %64, %13 : vector<16x32xf32>
    %69 = arith.addf %67, %68 : vector<16x32xf32>
    %70 = arith.mulf %66, %19 : vector<16x32xf32>
    %71 = arith.addf %69, %70 : vector<16x32xf32>
    %cst_39 = arith.constant 0.000000e+00 : f32
    %72 = vector.broadcast %cst_39 : f32 to vector<16x32xf32>
    %73 = arith.cmpf ogt, %71, %72 : vector<16x32xf32>
    %74 = math.exp %71 : vector<16x32xf32>
    %cst_40 = arith.constant 1.000000e+00 : f32
    %75 = vector.broadcast %cst_40 : f32 to vector<16x32xf32>
    %76 = arith.subf %74, %75 : vector<16x32xf32>
    %77 = arith.select %73, %71, %76 : vector<16x32xi1>, vector<16x32xf32>
    %c0_41 = arith.constant 0 : index
    %c0_42 = arith.constant 0 : index
    %78 = vector.load %arg13[%c0_41, %c0_42] : memref<6x32xf32, #tpu.memory_space<vmem>>, vector<6x32xf32>
    %cst_43 = arith.constant dense<0.000000e+00> : vector<4x32xf32>
    %79 = tpu.matmul %9, %78, %cst_43 {dimension_numbers = #tpu.dot_dimension_numbers<[1], [0], [0], [1], [0, 0, 1, 1], [], []>} : vector<4x6xf32>, vector<6x32xf32>, vector<4x32xf32> -> vector<4x32xf32>
    %c0_44 = arith.constant 0 : index
    %c0_45 = arith.constant 0 : index
    %80 = vector.load %arg14[%c0_44, %c0_45] : memref<32x2xf32, #tpu.memory_space<vmem>>, vector<32x2xf32>
    %cst_46 = arith.constant dense<0.000000e+00> : vector<4x2xf32>
    %81 = tpu.matmul %79, %80, %cst_46 {dimension_numbers = #tpu.dot_dimension_numbers<[1], [0], [0], [1], [0, 0, 1, 1], [], []>} : vector<4x32xf32>, vector<32x2xf32>, vector<4x2xf32> -> vector<4x2xf32>
    %c0_47 = arith.constant 0 : index
    %c0_48 = arith.constant 0 : index
    %82 = vector.load %arg15[%c0_47, %c0_48] : memref<32x2xf32, #tpu.memory_space<vmem>>, vector<32x2xf32>
    %cst_49 = arith.constant dense<0.000000e+00> : vector<4x2xf32>
    %83 = tpu.matmul %79, %82, %cst_49 {dimension_numbers = #tpu.dot_dimension_numbers<[1], [0], [0], [1], [0, 0, 1, 1], [], []>} : vector<4x32xf32>, vector<32x2xf32>, vector<4x2xf32> -> vector<4x2xf32>
    %84 = vector.shape_cast %11 : vector<1x4x8xf32> to vector<4x8xf32>
    %c0_50 = arith.constant 0 : index
    %c0_51 = arith.constant 0 : index
    %85 = vector.load %arg16[%c0_50, %c0_51] : memref<8x2xf32, #tpu.memory_space<vmem>>, vector<8x2xf32>
    %cst_52 = arith.constant dense<0.000000e+00> : vector<4x2xf32>
    %86 = tpu.matmul %84, %85, %cst_52 {dimension_numbers = #tpu.dot_dimension_numbers<[1], [0], [0], [1], [0, 0, 1, 1], [], []>} : vector<4x8xf32>, vector<8x2xf32>, vector<4x2xf32> -> vector<4x2xf32>
    %87 = vector.shape_cast %86 : vector<4x2xf32> to vector<1x4x2xf32>
    %cst_53 = arith.constant dense<0.000000e+00> : vector<1x16x2xf32>
    %88 = tpu.matmul %5, %87, %cst_53 {dimension_numbers = #tpu.dot_dimension_numbers<[2], [1], [1], [2], [0, 0, 0, 1, 1, 2], [0], [0]>} : vector<1x16x4xf32>, vector<1x4x2xf32>, vector<1x16x2xf32> -> vector<1x16x2xf32>
    %89 = vector.shape_cast %88 : vector<1x16x2xf32> to vector<4x4x2xf32>
    %90 = vector.shape_cast %83 : vector<4x2xf32> to vector<1x1x4x2xf32>
    %91 = vector.shape_cast %90 : vector<1x1x4x2xf32> to vector<1x1x4x2xf32>
    %92 = vector.broadcast %91 : vector<1x1x4x2xf32> to vector<1x4x4x2xf32>
    %93 = vector.shape_cast %92 : vector<1x4x4x2xf32> to vector<4x4x2xf32>
    %94 = vector.shape_cast %81 : vector<4x2xf32> to vector<4x1x2xf32>
    %95 = vector.broadcast %94 : vector<4x1x2xf32> to vector<4x4x2xf32>
    %96 = arith.addf %95, %93 : vector<4x4x2xf32>
    %97 = arith.addf %96, %89 : vector<4x4x2xf32>
    %cst_54 = arith.constant 0.000000e+00 : f32
    %98 = vector.broadcast %cst_54 : f32 to vector<4x4x2xf32>
    %99 = arith.cmpf ogt, %97, %98 : vector<4x4x2xf32>
    %cst_55 = arith.constant 2.000000e-01 : f32
    %100 = vector.broadcast %cst_55 : f32 to vector<4x4x2xf32>
    %101 = arith.mulf %100, %97 : vector<4x4x2xf32>
    %102 = arith.select %99, %97, %101 : vector<4x4x2xi1>, vector<4x4x2xf32>
    %103 = vector.broadcast %4 : vector<4x4x1xf32> to vector<4x4x2xf32>
    %104 = arith.addf %102, %103 : vector<4x4x2xf32>
    %cst_56 = arith.constant dense<0xFF800000> : vector<4x2xf32>
    %105 = vector.multi_reduction <maximumf>, %104, %cst_56 [1] : vector<4x4x2xf32> to vector<4x2xf32>
    %106 = vector.shape_cast %105 : vector<4x2xf32> to vector<4x1x2xf32>
    %107 = vector.broadcast %106 : vector<4x1x2xf32> to vector<4x4x2xf32>
    %108 = arith.subf %104, %107 : vector<4x4x2xf32>
    %109 = math.exp %108 : vector<4x4x2xf32>
    %cst_57 = arith.constant dense<0.000000e+00> : vector<4x2xf32>
    %110 = vector.multi_reduction <add>, %109, %cst_57 [1] : vector<4x4x2xf32> to vector<4x2xf32>
    %111 = vector.shape_cast %110 : vector<4x2xf32> to vector<4x1x2xf32>
    %112 = tpu.reciprocal %111 {approx = true} : vector<4x1x2xf32> -> vector<4x1x2xf32>
    %113 = vector.broadcast %112 : vector<4x1x2xf32> to vector<4x4x2xf32>
    %114 = arith.mulf %109, %113 : vector<4x4x2xf32>
    %115 = vector.shape_cast %114 : vector<4x4x2xf32> to vector<16x2xf32>
    %c0_58 = arith.constant 0 : index
    %c0_59 = arith.constant 0 : index
    %116 = vector.load %arg17[%c0_58, %c0_59] : memref<2x32xf32, #tpu.memory_space<vmem>>, vector<2x32xf32>
    %cst_60 = arith.constant dense<0.000000e+00> : vector<16x32xf32>
    %117 = tpu.matmul %115, %116, %cst_60 {dimension_numbers = #tpu.dot_dimension_numbers<[1], [0], [0], [1], [0, 0, 1, 1], [], []>} : vector<16x2xf32>, vector<2x32xf32>, vector<16x32xf32> -> vector<16x32xf32>
    %118 = vector.shape_cast %117 : vector<16x32xf32> to vector<4x4x32xf32>
    %119 = vector.shape_cast %79 : vector<4x32xf32> to vector<1x1x4x32xf32>
    %120 = vector.shape_cast %119 : vector<1x1x4x32xf32> to vector<1x1x4x32xf32>
    %121 = vector.broadcast %120 : vector<1x1x4x32xf32> to vector<1x4x4x32xf32>
    %122 = vector.shape_cast %121 : vector<1x4x4x32xf32> to vector<4x4x32xf32>
    %123 = arith.mulf %118, %122 : vector<4x4x32xf32>
    %cst_61 = arith.constant dense<0.000000e+00> : vector<4x32xf32>
    %124 = vector.multi_reduction <add>, %123, %cst_61 [1] : vector<4x4x32xf32> to vector<4x32xf32>
    %cst_62 = arith.constant 0.000000e+00 : f32
    %125 = vector.broadcast %cst_62 : f32 to vector<4x32xf32>
    %126 = arith.cmpf ogt, %124, %125 : vector<4x32xf32>
    %127 = math.exp %124 : vector<4x32xf32>
    %cst_63 = arith.constant 1.000000e+00 : f32
    %128 = vector.broadcast %cst_63 : f32 to vector<4x32xf32>
    %129 = arith.subf %127, %128 : vector<4x32xf32>
    %130 = arith.select %126, %124, %129 : vector<4x32xi1>, vector<4x32xf32>
    %131 = vector.shape_cast %77 : vector<16x32xf32> to vector<1x16x32xf32>
    %cst_64 = arith.constant dense<0.000000e+00> : vector<1x4x32xf32>
    %132 = tpu.matmul %0, %131, %cst_64 {dimension_numbers = #tpu.dot_dimension_numbers<[2], [1], [1], [2], [0, 0, 0, 1, 1, 2], [0], [0]>} : vector<1x4x16xf32>, vector<1x16x32xf32>, vector<1x4x32xf32> -> vector<1x4x32xf32>
    %c0_65 = arith.constant 0 : index
    %c0_66 = arith.constant 0 : index
    %133 = vector.load %arg18[%c0_65, %c0_66] : memref<32x16xf32, #tpu.memory_space<vmem>>, vector<32x16xf32>
    %cst_67 = arith.constant dense<0.000000e+00> : vector<16x16xf32>
    %134 = tpu.matmul %77, %133, %cst_67 {dimension_numbers = #tpu.dot_dimension_numbers<[1], [0], [0], [1], [0, 0, 1, 1], [], []>} : vector<16x32xf32>, vector<32x16xf32>, vector<16x16xf32> -> vector<16x16xf32>
    %c0_68 = arith.constant 0 : index
    %c0_69 = arith.constant 0 : index
    %135 = vector.load %arg19[%c0_68, %c0_69] : memref<16x2xf32, #tpu.memory_space<vmem>>, vector<16x2xf32>
    %cst_70 = arith.constant dense<0.000000e+00> : vector<16x2xf32>
    %136 = tpu.matmul %134, %135, %cst_70 {dimension_numbers = #tpu.dot_dimension_numbers<[1], [0], [0], [1], [0, 0, 1, 1], [], []>} : vector<16x16xf32>, vector<16x2xf32>, vector<16x2xf32> -> vector<16x2xf32>
    %c0_71 = arith.constant 0 : index
    %c0_72 = arith.constant 0 : index
    %137 = vector.load %arg20[%c0_71, %c0_72] : memref<16x2xf32, #tpu.memory_space<vmem>>, vector<16x2xf32>
    %cst_73 = arith.constant dense<0.000000e+00> : vector<16x2xf32>
    %138 = tpu.matmul %134, %137, %cst_73 {dimension_numbers = #tpu.dot_dimension_numbers<[1], [0], [0], [1], [0, 0, 1, 1], [], []>} : vector<16x16xf32>, vector<16x2xf32>, vector<16x2xf32> -> vector<16x2xf32>
    %c1_i32_74 = arith.constant 1 : i32
    %139 = tpu.dynamic_rotate %134 by %c1_i32_74 dim 0 : vector<16x16xf32>, i32 -> vector<16x16xf32>
    %c15_i32_75 = arith.constant 15 : i32
    %140 = tpu.dynamic_rotate %134 by %c15_i32_75 dim 0 : vector<16x16xf32>, i32 -> vector<16x16xf32>
    %c1_i32_76 = arith.constant 1 : i32
    %141 = tpu.dynamic_rotate %138 by %c1_i32_76 dim 0 : vector<16x2xf32>, i32 -> vector<16x2xf32>
    %c15_i32_77 = arith.constant 15 : i32
    %142 = tpu.dynamic_rotate %138 by %c15_i32_77 dim 0 : vector<16x2xf32>, i32 -> vector<16x2xf32>
    %143 = arith.addf %136, %141 : vector<16x2xf32>
    %cst_78 = arith.constant 0.000000e+00 : f32
    %144 = vector.broadcast %cst_78 : f32 to vector<16x2xf32>
    %145 = arith.cmpf ogt, %143, %144 : vector<16x2xf32>
    %cst_79 = arith.constant 2.000000e-01 : f32
    %146 = vector.broadcast %cst_79 : f32 to vector<16x2xf32>
    %147 = arith.mulf %146, %143 : vector<16x2xf32>
    %148 = arith.select %145, %143, %147 : vector<16x2xi1>, vector<16x2xf32>
    %149 = vector.extract_strided_slice %2 {offsets = [0, 0], sizes = [16, 1], strides = [1, 1]} : vector<16x3xf32> to vector<16x1xf32>
    %150 = vector.broadcast %149 : vector<16x1xf32> to vector<16x2xf32>
    %151 = arith.addf %148, %150 : vector<16x2xf32>
    %152 = arith.addf %136, %138 : vector<16x2xf32>
    %cst_80 = arith.constant 0.000000e+00 : f32
    %153 = vector.broadcast %cst_80 : f32 to vector<16x2xf32>
    %154 = arith.cmpf ogt, %152, %153 : vector<16x2xf32>
    %cst_81 = arith.constant 2.000000e-01 : f32
    %155 = vector.broadcast %cst_81 : f32 to vector<16x2xf32>
    %156 = arith.mulf %155, %152 : vector<16x2xf32>
    %157 = arith.select %154, %152, %156 : vector<16x2xi1>, vector<16x2xf32>
    %158 = vector.extract_strided_slice %2 {offsets = [0, 1], sizes = [16, 1], strides = [1, 1]} : vector<16x3xf32> to vector<16x1xf32>
    %159 = vector.broadcast %158 : vector<16x1xf32> to vector<16x2xf32>
    %160 = arith.addf %157, %159 : vector<16x2xf32>
    %161 = arith.addf %136, %142 : vector<16x2xf32>
    %cst_82 = arith.constant 0.000000e+00 : f32
    %162 = vector.broadcast %cst_82 : f32 to vector<16x2xf32>
    %163 = arith.cmpf ogt, %161, %162 : vector<16x2xf32>
    %cst_83 = arith.constant 2.000000e-01 : f32
    %164 = vector.broadcast %cst_83 : f32 to vector<16x2xf32>
    %165 = arith.mulf %164, %161 : vector<16x2xf32>
    %166 = arith.select %163, %161, %165 : vector<16x2xi1>, vector<16x2xf32>
    %167 = vector.extract_strided_slice %2 {offsets = [0, 2], sizes = [16, 1], strides = [1, 1]} : vector<16x3xf32> to vector<16x1xf32>
    %168 = vector.broadcast %167 : vector<16x1xf32> to vector<16x2xf32>
    %169 = arith.addf %166, %168 : vector<16x2xf32>
    %170 = arith.maximumf %151, %160 : vector<16x2xf32>
    %171 = arith.maximumf %170, %169 : vector<16x2xf32>
    %172 = arith.subf %151, %171 : vector<16x2xf32>
    %173 = math.exp %172 : vector<16x2xf32>
    %174 = arith.subf %160, %171 : vector<16x2xf32>
    %175 = math.exp %174 : vector<16x2xf32>
    %176 = arith.subf %169, %171 : vector<16x2xf32>
    %177 = math.exp %176 : vector<16x2xf32>
    %178 = arith.addf %173, %175 : vector<16x2xf32>
    %179 = arith.addf %178, %177 : vector<16x2xf32>
    %180 = tpu.reciprocal %179 {approx = true} : vector<16x2xf32> -> vector<16x2xf32>
    %c0_84 = arith.constant 0 : index
    %c0_85 = arith.constant 0 : index
    %181 = vector.load %arg21[%c0_84, %c0_85] : memref<2x16xf32, #tpu.memory_space<vmem>>, vector<2x16xf32>
    %182 = arith.mulf %173, %180 : vector<16x2xf32>
    %cst_86 = arith.constant dense<0.000000e+00> : vector<16x16xf32>
    %183 = tpu.matmul %182, %181, %cst_86 {dimension_numbers = #tpu.dot_dimension_numbers<[1], [0], [0], [1], [0, 0, 1, 1], [], []>} : vector<16x2xf32>, vector<2x16xf32>, vector<16x16xf32> -> vector<16x16xf32>
    %184 = arith.mulf %175, %180 : vector<16x2xf32>
    %cst_87 = arith.constant dense<0.000000e+00> : vector<16x16xf32>
    %185 = tpu.matmul %184, %181, %cst_87 {dimension_numbers = #tpu.dot_dimension_numbers<[1], [0], [0], [1], [0, 0, 1, 1], [], []>} : vector<16x2xf32>, vector<2x16xf32>, vector<16x16xf32> -> vector<16x16xf32>
    %186 = arith.mulf %177, %180 : vector<16x2xf32>
    %cst_88 = arith.constant dense<0.000000e+00> : vector<16x16xf32>
    %187 = tpu.matmul %186, %181, %cst_88 {dimension_numbers = #tpu.dot_dimension_numbers<[1], [0], [0], [1], [0, 0, 1, 1], [], []>} : vector<16x2xf32>, vector<2x16xf32>, vector<16x16xf32> -> vector<16x16xf32>
    %188 = arith.mulf %183, %139 : vector<16x16xf32>
    %189 = arith.mulf %185, %134 : vector<16x16xf32>
    %190 = arith.addf %188, %189 : vector<16x16xf32>
    %191 = arith.mulf %187, %140 : vector<16x16xf32>
    %192 = arith.addf %190, %191 : vector<16x16xf32>
    %c0_89 = arith.constant 0 : index
    %c0_90 = arith.constant 0 : index
    %193 = vector.load %arg22[%c0_89, %c0_90] : memref<16x8xf32, #tpu.memory_space<vmem>>, vector<16x8xf32>
    %cst_91 = arith.constant dense<0.000000e+00> : vector<16x8xf32>
    %194 = tpu.matmul %192, %193, %cst_91 {dimension_numbers = #tpu.dot_dimension_numbers<[1], [0], [0], [1], [0, 0, 1, 1], [], []>} : vector<16x16xf32>, vector<16x8xf32>, vector<16x8xf32> -> vector<16x8xf32>
    %cst_92 = arith.constant 0.000000e+00 : f32
    %195 = vector.broadcast %cst_92 : f32 to vector<16x8xf32>
    %196 = arith.cmpf ogt, %194, %195 : vector<16x8xf32>
    %197 = math.exp %194 : vector<16x8xf32>
    %cst_93 = arith.constant 1.000000e+00 : f32
    %198 = vector.broadcast %cst_93 : f32 to vector<16x8xf32>
    %199 = arith.subf %197, %198 : vector<16x8xf32>
    %200 = arith.select %196, %194, %199 : vector<16x8xi1>, vector<16x8xf32>
    %c0_94 = arith.constant 0 : index
    %c0_95 = arith.constant 0 : index
    %201 = vector.load %arg23[%c0_94, %c0_95] : memref<32x16xf32, #tpu.memory_space<vmem>>, vector<32x16xf32>
    %cst_96 = arith.constant dense<0.000000e+00> : vector<4x16xf32>
    %202 = tpu.matmul %130, %201, %cst_96 {dimension_numbers = #tpu.dot_dimension_numbers<[1], [0], [0], [1], [0, 0, 1, 1], [], []>} : vector<4x32xf32>, vector<32x16xf32>, vector<4x16xf32> -> vector<4x16xf32>
    %c0_97 = arith.constant 0 : index
    %c0_98 = arith.constant 0 : index
    %203 = vector.load %arg24[%c0_97, %c0_98] : memref<16x2xf32, #tpu.memory_space<vmem>>, vector<16x2xf32>
    %cst_99 = arith.constant dense<0.000000e+00> : vector<4x2xf32>
    %204 = tpu.matmul %202, %203, %cst_99 {dimension_numbers = #tpu.dot_dimension_numbers<[1], [0], [0], [1], [0, 0, 1, 1], [], []>} : vector<4x16xf32>, vector<16x2xf32>, vector<4x2xf32> -> vector<4x2xf32>
    %c0_100 = arith.constant 0 : index
    %c0_101 = arith.constant 0 : index
    %205 = vector.load %arg25[%c0_100, %c0_101] : memref<16x2xf32, #tpu.memory_space<vmem>>, vector<16x2xf32>
    %cst_102 = arith.constant dense<0.000000e+00> : vector<4x2xf32>
    %206 = tpu.matmul %202, %205, %cst_102 {dimension_numbers = #tpu.dot_dimension_numbers<[1], [0], [0], [1], [0, 0, 1, 1], [], []>} : vector<4x16xf32>, vector<16x2xf32>, vector<4x2xf32> -> vector<4x2xf32>
    %207 = vector.shape_cast %132 : vector<1x4x32xf32> to vector<4x32xf32>
    %c0_103 = arith.constant 0 : index
    %c0_104 = arith.constant 0 : index
    %208 = vector.load %arg26[%c0_103, %c0_104] : memref<32x2xf32, #tpu.memory_space<vmem>>, vector<32x2xf32>
    %cst_105 = arith.constant dense<0.000000e+00> : vector<4x2xf32>
    %209 = tpu.matmul %207, %208, %cst_105 {dimension_numbers = #tpu.dot_dimension_numbers<[1], [0], [0], [1], [0, 0, 1, 1], [], []>} : vector<4x32xf32>, vector<32x2xf32>, vector<4x2xf32> -> vector<4x2xf32>
    %210 = vector.shape_cast %209 : vector<4x2xf32> to vector<1x4x2xf32>
    %cst_106 = arith.constant dense<0.000000e+00> : vector<1x16x2xf32>
    %211 = tpu.matmul %5, %210, %cst_106 {dimension_numbers = #tpu.dot_dimension_numbers<[2], [1], [1], [2], [0, 0, 0, 1, 1, 2], [0], [0]>} : vector<1x16x4xf32>, vector<1x4x2xf32>, vector<1x16x2xf32> -> vector<1x16x2xf32>
    %212 = vector.shape_cast %211 : vector<1x16x2xf32> to vector<4x4x2xf32>
    %213 = vector.shape_cast %206 : vector<4x2xf32> to vector<1x1x4x2xf32>
    %214 = vector.shape_cast %213 : vector<1x1x4x2xf32> to vector<1x1x4x2xf32>
    %215 = vector.broadcast %214 : vector<1x1x4x2xf32> to vector<1x4x4x2xf32>
    %216 = vector.shape_cast %215 : vector<1x4x4x2xf32> to vector<4x4x2xf32>
    %217 = vector.shape_cast %204 : vector<4x2xf32> to vector<4x1x2xf32>
    %218 = vector.broadcast %217 : vector<4x1x2xf32> to vector<4x4x2xf32>
    %219 = arith.addf %218, %216 : vector<4x4x2xf32>
    %220 = arith.addf %219, %212 : vector<4x4x2xf32>
    %cst_107 = arith.constant 0.000000e+00 : f32
    %221 = vector.broadcast %cst_107 : f32 to vector<4x4x2xf32>
    %222 = arith.cmpf ogt, %220, %221 : vector<4x4x2xf32>
    %cst_108 = arith.constant 2.000000e-01 : f32
    %223 = vector.broadcast %cst_108 : f32 to vector<4x4x2xf32>
    %224 = arith.mulf %223, %220 : vector<4x4x2xf32>
    %225 = arith.select %222, %220, %224 : vector<4x4x2xi1>, vector<4x4x2xf32>
    %226 = vector.broadcast %4 : vector<4x4x1xf32> to vector<4x4x2xf32>
    %227 = arith.addf %225, %226 : vector<4x4x2xf32>
    %cst_109 = arith.constant dense<0xFF800000> : vector<4x2xf32>
    %228 = vector.multi_reduction <maximumf>, %227, %cst_109 [1] : vector<4x4x2xf32> to vector<4x2xf32>
    %229 = vector.shape_cast %228 : vector<4x2xf32> to vector<4x1x2xf32>
    %230 = vector.broadcast %229 : vector<4x1x2xf32> to vector<4x4x2xf32>
    %231 = arith.subf %227, %230 : vector<4x4x2xf32>
    %232 = math.exp %231 : vector<4x4x2xf32>
    %cst_110 = arith.constant dense<0.000000e+00> : vector<4x2xf32>
    %233 = vector.multi_reduction <add>, %232, %cst_110 [1] : vector<4x4x2xf32> to vector<4x2xf32>
    %234 = vector.shape_cast %233 : vector<4x2xf32> to vector<4x1x2xf32>
    %235 = tpu.reciprocal %234 {approx = true} : vector<4x1x2xf32> -> vector<4x1x2xf32>
    %236 = vector.broadcast %235 : vector<4x1x2xf32> to vector<4x4x2xf32>
    %237 = arith.mulf %232, %236 : vector<4x4x2xf32>
    %238 = vector.shape_cast %237 : vector<4x4x2xf32> to vector<16x2xf32>
    %c0_111 = arith.constant 0 : index
    %c0_112 = arith.constant 0 : index
    %239 = vector.load %arg27[%c0_111, %c0_112] : memref<2x16xf32, #tpu.memory_space<vmem>>, vector<2x16xf32>
    %cst_113 = arith.constant dense<0.000000e+00> : vector<16x16xf32>
    %240 = tpu.matmul %238, %239, %cst_113 {dimension_numbers = #tpu.dot_dimension_numbers<[1], [0], [0], [1], [0, 0, 1, 1], [], []>} : vector<16x2xf32>, vector<2x16xf32>, vector<16x16xf32> -> vector<16x16xf32>
    %241 = vector.shape_cast %240 : vector<16x16xf32> to vector<4x4x16xf32>
    %242 = vector.shape_cast %202 : vector<4x16xf32> to vector<1x1x4x16xf32>
    %243 = vector.shape_cast %242 : vector<1x1x4x16xf32> to vector<1x1x4x16xf32>
    %244 = vector.broadcast %243 : vector<1x1x4x16xf32> to vector<1x4x4x16xf32>
    %245 = vector.shape_cast %244 : vector<1x4x4x16xf32> to vector<4x4x16xf32>
    %246 = arith.mulf %241, %245 : vector<4x4x16xf32>
    %cst_114 = arith.constant dense<0.000000e+00> : vector<4x16xf32>
    %247 = vector.multi_reduction <add>, %246, %cst_114 [1] : vector<4x4x16xf32> to vector<4x16xf32>
    %c0_115 = arith.constant 0 : index
    %c0_116 = arith.constant 0 : index
    %248 = vector.load %arg28[%c0_115, %c0_116] : memref<16x8xf32, #tpu.memory_space<vmem>>, vector<16x8xf32>
    %cst_117 = arith.constant dense<0.000000e+00> : vector<4x8xf32>
    %249 = tpu.matmul %247, %248, %cst_117 {dimension_numbers = #tpu.dot_dimension_numbers<[1], [0], [0], [1], [0, 0, 1, 1], [], []>} : vector<4x16xf32>, vector<16x8xf32>, vector<4x8xf32> -> vector<4x8xf32>
    %cst_118 = arith.constant 0.000000e+00 : f32
    %250 = vector.broadcast %cst_118 : f32 to vector<4x8xf32>
    %251 = arith.cmpf ogt, %249, %250 : vector<4x8xf32>
    %252 = math.exp %249 : vector<4x8xf32>
    %cst_119 = arith.constant 1.000000e+00 : f32
    %253 = vector.broadcast %cst_119 : f32 to vector<4x8xf32>
    %254 = arith.subf %252, %253 : vector<4x8xf32>
    %255 = arith.select %251, %249, %254 : vector<4x8xi1>, vector<4x8xf32>
    %256 = vector.shape_cast %200 : vector<16x8xf32> to vector<1x16x8xf32>
    %257 = vector.shape_cast %255 : vector<4x8xf32> to vector<1x4x8xf32>
    %258 = math.absf %256 : vector<1x16x8xf32>
    %cst_120 = arith.constant dense<0.000000e+00> : vector<1x16xf32>
    %259 = vector.multi_reduction <add>, %258, %cst_120 [2] : vector<1x16x8xf32> to vector<1x16xf32>
    %260 = vector.shape_cast %259 : vector<1x16xf32> to vector<1x16x1xf32>
    %cst_121 = arith.constant 0.000000e+00 : f32
    %261 = vector.broadcast %cst_121 : f32 to vector<1x16x1xf32>
    %262 = arith.cmpf ogt, %260, %261 : vector<1x16x1xf32>
    %263 = arith.extui %262 : vector<1x16x1xi1> to vector<1x16x1xi32>
    %264 = arith.sitofp %263 : vector<1x16x1xi32> to vector<1x16x1xf32>
    %265 = math.absf %257 : vector<1x4x8xf32>
    %cst_122 = arith.constant dense<0.000000e+00> : vector<1x4xf32>
    %266 = vector.multi_reduction <add>, %265, %cst_122 [2] : vector<1x4x8xf32> to vector<1x4xf32>
    %267 = vector.shape_cast %266 : vector<1x4xf32> to vector<1x4x1xf32>
    %cst_123 = arith.constant 0.000000e+00 : f32
    %268 = vector.broadcast %cst_123 : f32 to vector<1x4x1xf32>
    %269 = arith.cmpf ogt, %267, %268 : vector<1x4x1xf32>
    %270 = arith.extui %269 : vector<1x4x1xi1> to vector<1x4x1xi32>
    %271 = arith.sitofp %270 : vector<1x4x1xi32> to vector<1x4x1xf32>
    %272 = vector.broadcast %264 : vector<1x16x1xf32> to vector<1x16x8xf32>
    %273 = arith.mulf %256, %272 : vector<1x16x8xf32>
    %cst_124 = arith.constant dense<0.000000e+00> : vector<1x8xf32>
    %274 = vector.multi_reduction <add>, %273, %cst_124 [1] : vector<1x16x8xf32> to vector<1x8xf32>
    %cst_125 = arith.constant dense<0.000000e+00> : vector<1x1xf32>
    %275 = vector.multi_reduction <add>, %264, %cst_125 [1] : vector<1x16x1xf32> to vector<1x1xf32>
    %cst_126 = arith.constant 1.000000e+00 : f32
    %276 = vector.broadcast %cst_126 : f32 to vector<1x1xf32>
    %277 = arith.maximumf %275, %276 : vector<1x1xf32>
    %278 = vector.broadcast %277 : vector<1x1xf32> to vector<1x8xf32>
    %279 = arith.divf %274, %278 : vector<1x8xf32>
    %280 = vector.broadcast %271 : vector<1x4x1xf32> to vector<1x4x8xf32>
    %281 = arith.mulf %257, %280 : vector<1x4x8xf32>
    %cst_127 = arith.constant dense<0.000000e+00> : vector<1x8xf32>
    %282 = vector.multi_reduction <add>, %281, %cst_127 [1] : vector<1x4x8xf32> to vector<1x8xf32>
    %cst_128 = arith.constant dense<0.000000e+00> : vector<1x1xf32>
    %283 = vector.multi_reduction <add>, %271, %cst_128 [1] : vector<1x4x1xf32> to vector<1x1xf32>
    %cst_129 = arith.constant 1.000000e+00 : f32
    %284 = vector.broadcast %cst_129 : f32 to vector<1x1xf32>
    %285 = arith.maximumf %283, %284 : vector<1x1xf32>
    %286 = vector.broadcast %285 : vector<1x1xf32> to vector<1x8xf32>
    %287 = arith.divf %282, %286 : vector<1x8xf32>
    %288 = tpu.concatenate %279, %287 in 1 : vector<1x8xf32>, vector<1x8xf32> -> vector<1x16xf32>
    %cst_130 = arith.constant dense<0.000000e+00> : vector<1x4x8xf32>
    %289 = tpu.matmul %0, %256, %cst_130 {dimension_numbers = #tpu.dot_dimension_numbers<[2], [1], [1], [2], [0, 0, 0, 1, 1, 2], [0], [0]>} : vector<1x4x16xf32>, vector<1x16x8xf32>, vector<1x4x8xf32> -> vector<1x4x8xf32>
    %290 = vector.shape_cast %289 : vector<1x4x8xf32> to vector<4x8xf32>
    %c0_131 = arith.constant 0 : index
    %c0_132 = arith.constant 0 : index
    %291 = vector.load %arg29[%c0_131, %c0_132] : memref<8x32xf32, #tpu.memory_space<vmem>>, vector<8x32xf32>
    %cst_133 = arith.constant dense<0.000000e+00> : vector<4x32xf32>
    %292 = tpu.matmul %290, %291, %cst_133 {dimension_numbers = #tpu.dot_dimension_numbers<[1], [0], [0], [1], [0, 0, 1, 1], [], []>} : vector<4x8xf32>, vector<8x32xf32>, vector<4x32xf32> -> vector<4x32xf32>
    %c0_134 = arith.constant 0 : index
    %c0_135 = arith.constant 0 : index
    %293 = vector.load %arg30[%c0_134, %c0_135] : memref<8x32xf32, #tpu.memory_space<vmem>>, vector<8x32xf32>
    %cst_136 = arith.constant dense<0.000000e+00> : vector<4x32xf32>
    %294 = tpu.matmul %255, %293, %cst_136 {dimension_numbers = #tpu.dot_dimension_numbers<[1], [0], [0], [1], [0, 0, 1, 1], [], []>} : vector<4x8xf32>, vector<8x32xf32>, vector<4x32xf32> -> vector<4x32xf32>
    %c0_137 = arith.constant 0 : index
    %c0_138 = arith.constant 0 : index
    %295 = vector.load %arg31[%c0_137, %c0_138] : memref<16x32xf32, #tpu.memory_space<vmem>>, vector<16x32xf32>
    %cst_139 = arith.constant dense<0.000000e+00> : vector<1x32xf32>
    %296 = tpu.matmul %288, %295, %cst_139 {dimension_numbers = #tpu.dot_dimension_numbers<[1], [0], [0], [1], [0, 0, 1, 1], [], []>} : vector<1x16xf32>, vector<16x32xf32>, vector<1x32xf32> -> vector<1x32xf32>
    %c0_140 = arith.constant 0 : index
    %c0_141 = arith.constant 0 : index
    %c0_142 = arith.constant 0 : index
    %297 = vector.load %arg7[%c0_140, %c0_141, %c0_142] : memref<1x16x8xf32, #tpu.memory_space<vmem>>, vector<1x16x8xf32>
    %298 = vector.shape_cast %297 : vector<1x16x8xf32> to vector<16x8xf32>
    %c0_143 = arith.constant 0 : index
    %c0_144 = arith.constant 0 : index
    %299 = vector.load %arg32[%c0_143, %c0_144] : memref<8x32xf32, #tpu.memory_space<vmem>>, vector<8x32xf32>
    %cst_145 = arith.constant dense<0.000000e+00> : vector<16x32xf32>
    %300 = tpu.matmul %298, %299, %cst_145 {dimension_numbers = #tpu.dot_dimension_numbers<[1], [0], [0], [1], [0, 0, 1, 1], [], []>} : vector<16x8xf32>, vector<8x32xf32>, vector<16x32xf32> -> vector<16x32xf32>
    %301 = vector.shape_cast %292 : vector<4x32xf32> to vector<4x1x32xf32>
    %302 = vector.shape_cast %301 : vector<4x1x32xf32> to vector<4x1x32xf32>
    %303 = vector.broadcast %302 : vector<4x1x32xf32> to vector<4x4x32xf32>
    %304 = vector.shape_cast %303 : vector<4x4x32xf32> to vector<16x32xf32>
    %305 = vector.shape_cast %294 : vector<4x32xf32> to vector<1x1x4x32xf32>
    %306 = vector.shape_cast %305 : vector<1x1x4x32xf32> to vector<1x1x4x32xf32>
    %307 = vector.broadcast %306 : vector<1x1x4x32xf32> to vector<1x4x4x32xf32>
    %308 = vector.shape_cast %307 : vector<1x4x4x32xf32> to vector<16x32xf32>
    %309 = vector.shape_cast %296 : vector<1x32xf32> to vector<1x1x32xf32>
    %310 = vector.shape_cast %309 : vector<1x1x32xf32> to vector<1x1x32xf32>
    %311 = vector.broadcast %310 : vector<1x1x32xf32> to vector<1x16x32xf32>
    %312 = vector.shape_cast %311 : vector<1x16x32xf32> to vector<16x32xf32>
    %313 = arith.addf %304, %308 : vector<16x32xf32>
    %314 = arith.addf %313, %312 : vector<16x32xf32>
    %315 = arith.addf %314, %300 : vector<16x32xf32>
    %c0_146 = arith.constant 0 : index
    %c0_147 = arith.constant 0 : index
    %316 = vector.load %arg33[%c0_146, %c0_147] : memref<1x32xf32, #tpu.memory_space<vmem>>, vector<1x32xf32>
    %317 = vector.broadcast %316 : vector<1x32xf32> to vector<16x32xf32>
    %318 = arith.addf %315, %317 : vector<16x32xf32>
    %319 = math.tanh %318 : vector<16x32xf32>
    %c0_148 = arith.constant 0 : index
    %c0_149 = arith.constant 0 : index
    %320 = vector.load %arg34[%c0_148, %c0_149] : memref<32x32xf32, #tpu.memory_space<vmem>>, vector<32x32xf32>
    %cst_150 = arith.constant dense<0.000000e+00> : vector<16x32xf32>
    %321 = tpu.matmul %319, %320, %cst_150 {dimension_numbers = #tpu.dot_dimension_numbers<[1], [0], [0], [1], [0, 0, 1, 1], [], []>} : vector<16x32xf32>, vector<32x32xf32>, vector<16x32xf32> -> vector<16x32xf32>
    %c0_151 = arith.constant 0 : index
    %c0_152 = arith.constant 0 : index
    %322 = vector.load %arg35[%c0_151, %c0_152] : memref<1x32xf32, #tpu.memory_space<vmem>>, vector<1x32xf32>
    %323 = vector.broadcast %322 : vector<1x32xf32> to vector<16x32xf32>
    %324 = arith.addf %321, %323 : vector<16x32xf32>
    %325 = math.tanh %324 : vector<16x32xf32>
    %c0_153 = arith.constant 0 : index
    %c0_154 = arith.constant 0 : index
    %326 = vector.load %arg36[%c0_153, %c0_154] : memref<32x1xf32, #tpu.memory_space<vmem>>, vector<32x1xf32>
    %cst_155 = arith.constant dense<0.000000e+00> : vector<16x1xf32>
    %327 = tpu.matmul %325, %326, %cst_155 {dimension_numbers = #tpu.dot_dimension_numbers<[1], [0], [0], [1], [0, 0, 1, 1], [], []>} : vector<16x32xf32>, vector<32x1xf32>, vector<16x1xf32> -> vector<16x1xf32>
    %c0_156 = arith.constant 0 : index
    %c0_157 = arith.constant 0 : index
    %328 = vector.load %arg37[%c0_156, %c0_157] : memref<1x1xf32, #tpu.memory_space<vmem>>, vector<1x1xf32>
    %329 = vector.broadcast %328 : vector<1x1xf32> to vector<16x1xf32>
    %330 = arith.addf %327, %329 : vector<16x1xf32>
    %331 = vector.shape_cast %330 : vector<16x1xf32> to vector<1x16x1xf32>
    %c0_158 = arith.constant 0 : index
    %c0_159 = arith.constant 0 : index
    %c0_160 = arith.constant 0 : index
    %332 = vector.load %arg8[%c0_158, %c0_159, %c0_160] : memref<1x16x1xf32, #tpu.memory_space<vmem>>, vector<1x16x1xf32>
    %333 = arith.addf %331, %332 : vector<1x16x1xf32>
    %cst_161 = arith.constant dense<0xFF800000> : vector<1x1xf32>
    %334 = vector.multi_reduction <maximumf>, %333, %cst_161 [1] : vector<1x16x1xf32> to vector<1x1xf32>
    %335 = vector.shape_cast %334 : vector<1x1xf32> to vector<1x1x1xf32>
    %336 = vector.broadcast %335 : vector<1x1x1xf32> to vector<1x16x1xf32>
    %337 = arith.subf %333, %336 : vector<1x16x1xf32>
    %338 = math.exp %337 : vector<1x16x1xf32>
    %cst_162 = arith.constant dense<0.000000e+00> : vector<1x1xf32>
    %339 = vector.multi_reduction <add>, %338, %cst_162 [1] : vector<1x16x1xf32> to vector<1x1xf32>
    %340 = vector.shape_cast %339 : vector<1x1xf32> to vector<1x1x1xf32>
    %341 = vector.broadcast %340 : vector<1x1x1xf32> to vector<1x16x1xf32>
    %342 = arith.divf %338, %341 : vector<1x16x1xf32>
    %c0_163 = arith.constant 0 : index
    %c0_164 = arith.constant 0 : index
    %c0_165 = arith.constant 0 : index
    %343 = vector.load %arg44[%c0_163, %c0_164, %c0_165] : memref<1x16x1xf32, #tpu.memory_space<vmem>>, vector<1x16x1xf32>
    tpu.vector_store %arg44[%c0_163, %c0_164, %c0_165], %342 {strides = array<i32>} : memref<1x16x1xf32, #tpu.memory_space<vmem>>, vector<1x16x1xf32>,
    %c0_166 = arith.constant 0 : index
    %c0_167 = arith.constant 0 : index
    %344 = vector.load %arg38[%c0_166, %c0_167] : memref<16x32xf32, #tpu.memory_space<vmem>>, vector<16x32xf32>
    %cst_168 = arith.constant dense<0.000000e+00> : vector<1x32xf32>
    %345 = tpu.matmul %288, %344, %cst_168 {dimension_numbers = #tpu.dot_dimension_numbers<[1], [0], [0], [1], [0, 0, 1, 1], [], []>} : vector<1x16xf32>, vector<16x32xf32>, vector<1x32xf32> -> vector<1x32xf32>
    %c0_169 = arith.constant 0 : index
    %c0_170 = arith.constant 0 : index
    %346 = vector.load %arg39[%c0_169, %c0_170] : memref<1x32xf32, #tpu.memory_space<vmem>>, vector<1x32xf32>
    %347 = arith.addf %345, %346 : vector<1x32xf32>
    %348 = math.tanh %347 : vector<1x32xf32>
    %c0_171 = arith.constant 0 : index
    %c0_172 = arith.constant 0 : index
    %349 = vector.load %arg40[%c0_171, %c0_172] : memref<32x32xf32, #tpu.memory_space<vmem>>, vector<32x32xf32>
    %cst_173 = arith.constant dense<0.000000e+00> : vector<1x32xf32>
    %350 = tpu.matmul %348, %349, %cst_173 {dimension_numbers = #tpu.dot_dimension_numbers<[1], [0], [0], [1], [0, 0, 1, 1], [], []>} : vector<1x32xf32>, vector<32x32xf32>, vector<1x32xf32> -> vector<1x32xf32>
    %c0_174 = arith.constant 0 : index
    %c0_175 = arith.constant 0 : index
    %351 = vector.load %arg41[%c0_174, %c0_175] : memref<1x32xf32, #tpu.memory_space<vmem>>, vector<1x32xf32>
    %352 = arith.addf %350, %351 : vector<1x32xf32>
    %353 = math.tanh %352 : vector<1x32xf32>
    %c0_176 = arith.constant 0 : index
    %c0_177 = arith.constant 0 : index
    %354 = vector.load %arg42[%c0_176, %c0_177] : memref<32x1xf32, #tpu.memory_space<vmem>>, vector<32x1xf32>
    %cst_178 = arith.constant dense<0.000000e+00> : vector<1x1xf32>
    %355 = tpu.matmul %353, %354, %cst_178 {dimension_numbers = #tpu.dot_dimension_numbers<[1], [0], [0], [1], [0, 0, 1, 1], [], []>} : vector<1x32xf32>, vector<32x1xf32>, vector<1x1xf32> -> vector<1x1xf32>
    %c0_179 = arith.constant 0 : index
    %c0_180 = arith.constant 0 : index
    %356 = vector.load %arg43[%c0_179, %c0_180] : memref<1x1xf32, #tpu.memory_space<vmem>>, vector<1x1xf32>
    %357 = arith.addf %355, %356 : vector<1x1xf32>
    %358 = vector.shape_cast %357 : vector<1x1xf32> to vector<1x1x1xf32>
    %c0_181 = arith.constant 0 : index
    %c0_182 = arith.constant 0 : index
    %c0_183 = arith.constant 0 : index
    %359 = vector.load %arg45[%c0_181, %c0_182, %c0_183] : memref<1x1x1xf32, #tpu.memory_space<vmem>>, vector<1x1x1xf32>
    tpu.vector_store %arg45[%c0_181, %c0_182, %c0_183], %358 {strides = array<i32>} : memref<1x1x1xf32, #tpu.memory_space<vmem>>, vector<1x1x1xf32>,
    return
  }
  func.func @transform_0(%arg0: i32) -> (i32, i32, i32) {
    %c0_i32 = arith.constant 0 : i32
    %c0_i32_0 = arith.constant 0 : i32
    %c0_i32_1 = arith.constant 0 : i32
    return %arg0, %c0_i32, %c0_i32_0 : i32, i32, i32
  }
  func.func @transform_1(%arg0: i32) -> (i32, i32, i32) {
    %c0_i32 = arith.constant 0 : i32
    %c0_i32_0 = arith.constant 0 : i32
    %c0_i32_1 = arith.constant 0 : i32
    return %arg0, %c0_i32, %c0_i32_0 : i32, i32, i32
  }
  func.func @transform_2(%arg0: i32) -> (i32, i32, i32) {
    %c0_i32 = arith.constant 0 : i32
    %c0_i32_0 = arith.constant 0 : i32
    %c0_i32_1 = arith.constant 0 : i32
    return %arg0, %c0_i32, %c0_i32_0 : i32, i32, i32
  }
  func.func @transform_3(%arg0: i32) -> (i32, i32, i32) {
    %c0_i32 = arith.constant 0 : i32
    %c0_i32_0 = arith.constant 0 : i32
    %c0_i32_1 = arith.constant 0 : i32
    return %arg0, %c0_i32, %c0_i32_0 : i32, i32, i32
  }
  func.func @transform_4(%arg0: i32) -> (i32, i32, i32) {
    %c0_i32 = arith.constant 0 : i32
    %c0_i32_0 = arith.constant 0 : i32
    %c0_i32_1 = arith.constant 0 : i32
    return %arg0, %c0_i32, %c0_i32_0 : i32, i32, i32
  }
  func.func @transform_5(%arg0: i32) -> (i32, i32, i32) {
    %c0_i32 = arith.constant 0 : i32
    %c0_i32_0 = arith.constant 0 : i32
    %c0_i32_1 = arith.constant 0 : i32
    return %arg0, %c0_i32, %c0_i32_0 : i32, i32, i32
  }
  func.func @transform_6(%arg0: i32) -> (i32, i32, i32) {
    %c0_i32 = arith.constant 0 : i32
    %c0_i32_0 = arith.constant 0 : i32
    %c0_i32_1 = arith.constant 0 : i32
    return %arg0, %c0_i32, %c0_i32_0 : i32, i32, i32
  }
  func.func @transform_7(%arg0: i32) -> (i32, i32, i32) {
    %c0_i32 = arith.constant 0 : i32
    %c0_i32_0 = arith.constant 0 : i32
    %c0_i32_1 = arith.constant 0 : i32
    return %arg0, %c0_i32, %c0_i32_0 : i32, i32, i32
  }
  func.func @transform_8(%arg0: i32) -> (i32, i32) {
    %c0_i32 = arith.constant 0 : i32
    %c0_i32_0 = arith.constant 0 : i32
    %c0_i32_1 = arith.constant 0 : i32
    return %c0_i32, %c0_i32_0 : i32, i32
  }
  func.func @transform_9(%arg0: i32) -> (i32, i32) {
    %c0_i32 = arith.constant 0 : i32
    %c0_i32_0 = arith.constant 0 : i32
    %c0_i32_1 = arith.constant 0 : i32
    return %c0_i32, %c0_i32_0 : i32, i32
  }
  func.func @transform_10(%arg0: i32) -> (i32, i32) {
    %c0_i32 = arith.constant 0 : i32
    %c0_i32_0 = arith.constant 0 : i32
    %c0_i32_1 = arith.constant 0 : i32
    return %c0_i32, %c0_i32_0 : i32, i32
  }
  func.func @transform_11(%arg0: i32) -> (i32, i32) {
    %c0_i32 = arith.constant 0 : i32
    %c0_i32_0 = arith.constant 0 : i32
    %c0_i32_1 = arith.constant 0 : i32
    return %c0_i32, %c0_i32_0 : i32, i32
  }
  func.func @transform_12(%arg0: i32) -> (i32, i32) {
    %c0_i32 = arith.constant 0 : i32
    %c0_i32_0 = arith.constant 0 : i32
    %c0_i32_1 = arith.constant 0 : i32
    return %c0_i32, %c0_i32_0 : i32, i32
  }
  func.func @transform_13(%arg0: i32) -> (i32, i32) {
    %c0_i32 = arith.constant 0 : i32
    %c0_i32_0 = arith.constant 0 : i32
    %c0_i32_1 = arith.constant 0 : i32
    return %c0_i32, %c0_i32_0 : i32, i32
  }
  func.func @transform_14(%arg0: i32) -> (i32, i32) {
    %c0_i32 = arith.constant 0 : i32
    %c0_i32_0 = arith.constant 0 : i32
    %c0_i32_1 = arith.constant 0 : i32
    return %c0_i32, %c0_i32_0 : i32, i32
  }
  func.func @transform_15(%arg0: i32) -> (i32, i32) {
    %c0_i32 = arith.constant 0 : i32
    %c0_i32_0 = arith.constant 0 : i32
    %c0_i32_1 = arith.constant 0 : i32
    return %c0_i32, %c0_i32_0 : i32, i32
  }
  func.func @transform_16(%arg0: i32) -> (i32, i32) {
    %c0_i32 = arith.constant 0 : i32
    %c0_i32_0 = arith.constant 0 : i32
    %c0_i32_1 = arith.constant 0 : i32
    return %c0_i32, %c0_i32_0 : i32, i32
  }
  func.func @transform_17(%arg0: i32) -> (i32, i32) {
    %c0_i32 = arith.constant 0 : i32
    %c0_i32_0 = arith.constant 0 : i32
    %c0_i32_1 = arith.constant 0 : i32
    return %c0_i32, %c0_i32_0 : i32, i32
  }
  func.func @transform_18(%arg0: i32) -> (i32, i32) {
    %c0_i32 = arith.constant 0 : i32
    %c0_i32_0 = arith.constant 0 : i32
    %c0_i32_1 = arith.constant 0 : i32
    return %c0_i32, %c0_i32_0 : i32, i32
  }
  func.func @transform_19(%arg0: i32) -> (i32, i32) {
    %c0_i32 = arith.constant 0 : i32
    %c0_i32_0 = arith.constant 0 : i32
    %c0_i32_1 = arith.constant 0 : i32
    return %c0_i32, %c0_i32_0 : i32, i32
  }
  func.func @transform_20(%arg0: i32) -> (i32, i32) {
    %c0_i32 = arith.constant 0 : i32
    %c0_i32_0 = arith.constant 0 : i32
    %c0_i32_1 = arith.constant 0 : i32
    return %c0_i32, %c0_i32_0 : i32, i32
  }
  func.func @transform_21(%arg0: i32) -> (i32, i32) {
    %c0_i32 = arith.constant 0 : i32
    %c0_i32_0 = arith.constant 0 : i32
    %c0_i32_1 = arith.constant 0 : i32
    return %c0_i32, %c0_i32_0 : i32, i32
  }
  func.func @transform_22(%arg0: i32) -> (i32, i32) {
    %c0_i32 = arith.constant 0 : i32
    %c0_i32_0 = arith.constant 0 : i32
    %c0_i32_1 = arith.constant 0 : i32
    return %c0_i32, %c0_i32_0 : i32, i32
  }
  func.func @transform_23(%arg0: i32) -> (i32, i32) {
    %c0_i32 = arith.constant 0 : i32
    %c0_i32_0 = arith.constant 0 : i32
    %c0_i32_1 = arith.constant 0 : i32
    return %c0_i32, %c0_i32_0 : i32, i32
  }
  func.func @transform_24(%arg0: i32) -> (i32, i32) {
    %c0_i32 = arith.constant 0 : i32
    %c0_i32_0 = arith.constant 0 : i32
    %c0_i32_1 = arith.constant 0 : i32
    return %c0_i32, %c0_i32_0 : i32, i32
  }
  func.func @transform_25(%arg0: i32) -> (i32, i32) {
    %c0_i32 = arith.constant 0 : i32
    %c0_i32_0 = arith.constant 0 : i32
    %c0_i32_1 = arith.constant 0 : i32
    return %c0_i32, %c0_i32_0 : i32, i32
  }
  func.func @transform_26(%arg0: i32) -> (i32, i32) {
    %c0_i32 = arith.constant 0 : i32
    %c0_i32_0 = arith.constant 0 : i32
    %c0_i32_1 = arith.constant 0 : i32
    return %c0_i32, %c0_i32_0 : i32, i32
  }
  func.func @transform_27(%arg0: i32) -> (i32, i32) {
    %c0_i32 = arith.constant 0 : i32
    %c0_i32_0 = arith.constant 0 : i32
    %c0_i32_1 = arith.constant 0 : i32
    return %c0_i32, %c0_i32_0 : i32, i32
  }
  func.func @transform_28(%arg0: i32) -> (i32, i32) {
    %c0_i32 = arith.constant 0 : i32
    %c0_i32_0 = arith.constant 0 : i32
    %c0_i32_1 = arith.constant 0 : i32
    return %c0_i32, %c0_i32_0 : i32, i32
  }
  func.func @transform_29(%arg0: i32) -> (i32, i32) {
    %c0_i32 = arith.constant 0 : i32
    %c0_i32_0 = arith.constant 0 : i32
    %c0_i32_1 = arith.constant 0 : i32
    return %c0_i32, %c0_i32_0 : i32, i32
  }
  func.func @transform_30(%arg0: i32) -> (i32, i32) {
    %c0_i32 = arith.constant 0 : i32
    %c0_i32_0 = arith.constant 0 : i32
    %c0_i32_1 = arith.constant 0 : i32
    return %c0_i32, %c0_i32_0 : i32, i32
  }
  func.func @transform_31(%arg0: i32) -> (i32, i32) {
    %c0_i32 = arith.constant 0 : i32
    %c0_i32_0 = arith.constant 0 : i32
    %c0_i32_1 = arith.constant 0 : i32
    return %c0_i32, %c0_i32_0 : i32, i32
  }
  func.func @transform_32(%arg0: i32) -> (i32, i32) {
    %c0_i32 = arith.constant 0 : i32
    %c0_i32_0 = arith.constant 0 : i32
    %c0_i32_1 = arith.constant 0 : i32
    return %c0_i32, %c0_i32_0 : i32, i32
  }
  func.func @transform_33(%arg0: i32) -> (i32, i32) {
    %c0_i32 = arith.constant 0 : i32
    %c0_i32_0 = arith.constant 0 : i32
    %c0_i32_1 = arith.constant 0 : i32
    return %c0_i32, %c0_i32_0 : i32, i32
  }
  func.func @transform_34(%arg0: i32) -> (i32, i32) {
    %c0_i32 = arith.constant 0 : i32
    %c0_i32_0 = arith.constant 0 : i32
    %c0_i32_1 = arith.constant 0 : i32
    return %c0_i32, %c0_i32_0 : i32, i32
  }
  func.func @transform_35(%arg0: i32) -> (i32, i32) {
    %c0_i32 = arith.constant 0 : i32
    %c0_i32_0 = arith.constant 0 : i32
    %c0_i32_1 = arith.constant 0 : i32
    return %c0_i32, %c0_i32_0 : i32, i32
  }
  func.func @transform_36(%arg0: i32) -> (i32, i32) {
    %c0_i32 = arith.constant 0 : i32
    %c0_i32_0 = arith.constant 0 : i32
    %c0_i32_1 = arith.constant 0 : i32
    return %c0_i32, %c0_i32_0 : i32, i32
  }
  func.func @transform_37(%arg0: i32) -> (i32, i32) {
    %c0_i32 = arith.constant 0 : i32
    %c0_i32_0 = arith.constant 0 : i32
    %c0_i32_1 = arith.constant 0 : i32
    return %c0_i32, %c0_i32_0 : i32, i32
  }
  func.func @transform_38(%arg0: i32) -> (i32, i32) {
    %c0_i32 = arith.constant 0 : i32
    %c0_i32_0 = arith.constant 0 : i32
    %c0_i32_1 = arith.constant 0 : i32
    return %c0_i32, %c0_i32_0 : i32, i32
  }
  func.func @transform_39(%arg0: i32) -> (i32, i32) {
    %c0_i32 = arith.constant 0 : i32
    %c0_i32_0 = arith.constant 0 : i32
    %c0_i32_1 = arith.constant 0 : i32
    return %c0_i32, %c0_i32_0 : i32, i32
  }
  func.func @transform_40(%arg0: i32) -> (i32, i32) {
    %c0_i32 = arith.constant 0 : i32
    %c0_i32_0 = arith.constant 0 : i32
    %c0_i32_1 = arith.constant 0 : i32
    return %c0_i32, %c0_i32_0 : i32, i32
  }
  func.func @transform_41(%arg0: i32) -> (i32, i32) {
    %c0_i32 = arith.constant 0 : i32
    %c0_i32_0 = arith.constant 0 : i32
    %c0_i32_1 = arith.constant 0 : i32
    return %c0_i32, %c0_i32_0 : i32, i32
  }
  func.func @transform_42(%arg0: i32) -> (i32, i32) {
    %c0_i32 = arith.constant 0 : i32
    %c0_i32_0 = arith.constant 0 : i32
    %c0_i32_1 = arith.constant 0 : i32
    return %c0_i32, %c0_i32_0 : i32, i32
  }
  func.func @transform_43(%arg0: i32) -> (i32, i32, i32) {
    %c0_i32 = arith.constant 0 : i32
    %c0_i32_0 = arith.constant 0 : i32
    %c0_i32_1 = arith.constant 0 : i32
    return %arg0, %c0_i32, %c0_i32_0 : i32, i32, i32
  }
  func.func @transform_44(%arg0: i32) -> (i32, i32, i32) {
    %c0_i32 = arith.constant 0 : i32
    %c0_i32_0 = arith.constant 0 : i32
    %c0_i32_1 = arith.constant 0 : i32
    return %arg0, %c0_i32, %c0_i32_0 : i32, i32, i32
  }
}

</mosaic_0001>

<llo_original>
// kernel: meta_actor_daniel_forward.1
$region0: #{meta_actor_daniel_forward.1}
  #allocation0 [shape = 'u32[]', space=smem, size = 0x4, offset = 0x4, fixed_abs, tag = 'smem constant byte address 0x4 - core index']
  #allocation1 [shape = 'u32[144,128]{1,0:T(1,128)}', space=vmem, size = 0x12000, scoped, tag = 'internal scratch']
  #allocation2 [shape = 'f32[1,1]{1,0:T(1,128)S(1)}', space=vmem, size = 0x200, scoped, tag = 'scoped memory for meta_actor_daniel_forward.1']
  #allocation3 [shape = 'f32[1,1]{1,0:T(1,128)S(1)}', space=vmem, size = 0x200, scoped, tag = 'scoped memory for meta_actor_daniel_forward.1']
  %s0 = inlined_call_operand.smem [shape: u32[45], index: -1, kind: input, shape index: {}]
  %s1 = sld [smem:[%s0]]
  %s2 = scalar_lea.smem %s0, 1
  %s3 = sld [smem:[%s2]]
  %s4 = scalar_lea.smem %s0, 2
  %s5 = sld [smem:[%s4]]
  %s6 = scalar_lea.smem %s0, 3
  %s7 = sld [smem:[%s6]]
  %s8 = scalar_lea.smem %s0, 4
  %s9 = sld [smem:[%s8]]
  %s10 = scalar_lea.smem %s0, 5
  %s11 = sld [smem:[%s10]]
  %s12 = scalar_lea.smem %s0, 6
  %s13 = sld [smem:[%s12]]
  %s14 = scalar_lea.smem %s0, 7
  %s15 = sld [smem:[%s14]]
  %s16 = scalar_lea.smem %s0, 8
  %s17 = sld [smem:[%s16]]
  %s18 = scalar_lea.smem %s0, 9
  %s19 = sld [smem:[%s18]]
  %s20 = scalar_lea.smem %s0, 10
  %s21 = sld [smem:[%s20]]
  %s22 = scalar_lea.smem %s0, 11
  %s23 = sld [smem:[%s22]]
  %s24 = scalar_lea.smem %s0, 12
  %s25 = sld [smem:[%s24]]
  %s26 = scalar_lea.smem %s0, 13
  %s27 = sld [smem:[%s26]]
  %s28 = scalar_lea.smem %s0, 14
  %s29 = sld [smem:[%s28]]
  %s30 = scalar_lea.smem %s0, 15
  %s31 = sld [smem:[%s30]]
  %s32 = scalar_lea.smem %s0, 16
  %s33 = sld [smem:[%s32]]
  %s34 = scalar_lea.smem %s0, 17
  %s35 = sld [smem:[%s34]]
  %s36 = scalar_lea.smem %s0, 18
  %s37 = sld [smem:[%s36]]
  %s38 = scalar_lea.smem %s0, 19
  %s39 = sld [smem:[%s38]]
  %s40 = scalar_lea.smem %s0, 20
  %s41 = sld [smem:[%s40]]
  %s42 = scalar_lea.smem %s0, 21
  %s43 = sld [smem:[%s42]]
  %s44 = scalar_lea.smem %s0, 22
  %s45 = sld [smem:[%s44]]
  %s46 = scalar_lea.smem %s0, 23
  %s47 = sld [smem:[%s46]]
  %s48 = scalar_lea.smem %s0, 24
  %s49 = sld [smem:[%s48]]
  %s50 = scalar_lea.smem %s0, 25
  %s51 = sld [smem:[%s50]]
  %s52 = scalar_lea.smem %s0, 26
  %s53 = sld [smem:[%s52]]
  %s54 = scalar_lea.smem %s0, 27
  %s55 = sld [smem:[%s54]]
  %s56 = scalar_lea.smem %s0, 28
  %s57 = sld [smem:[%s56]]
  %s58 = scalar_lea.smem %s0, 29
  %s59 = sld [smem:[%s58]]
  %s60 = scalar_lea.smem %s0, 30
  %s61 = sld [smem:[%s60]]
  %s62 = scalar_lea.smem %s0, 31
  %s63 = sld [smem:[%s62]]
  %s64 = scalar_lea.smem %s0, 32
  %s65 = sld [smem:[%s64]]
  %s66 = scalar_lea.smem %s0, 33
  %s67 = sld [smem:[%s66]]
  %s68 = scalar_lea.smem %s0, 34
  %s69 = sld [smem:[%s68]]
  %s70 = scalar_lea.smem %s0, 35
  %s71 = sld [smem:[%s70]]
  %s72 = scalar_lea.smem %s0, 36
  %s73 = sld [smem:[%s72]]
  %s74 = scalar_lea.smem %s0, 37
  %s75 = sld [smem:[%s74]]
  %s76 = scalar_lea.smem %s0, 38
  %s77 = sld [smem:[%s76]]
  %s78 = scalar_lea.smem %s0, 39
  %s79 = sld [smem:[%s78]]
  %s80 = scalar_lea.smem %s0, 40
  %s81 = sld [smem:[%s80]]
  %s82 = scalar_lea.smem %s0, 41
  %s83 = sld [smem:[%s82]]
  %s84 = scalar_lea.smem %s0, 42
  %s85 = sld [smem:[%s84]]
  %s86 = scalar_lea.smem %s0, 43
  %s87 = sld [smem:[%s86]]
  %s88 = scalar_lea.smem %s0, 44
  %s89 = sld [smem:[%s88]]
  %90 = xla_tuple %s87, %s89
  %s91 = sld [smem:[#allocation0]]
  $region213: #{meta_actor_daniel_forward.1} parent=0
    _
  %s93 = ssub.s32 1, %s91
  %s94 = scalar_select 0, %s93, %s91
  %v95 = vstv %s73
  %96 = vst [vmem:[#allocation2] sm:$0x1] %v95
  %v97 = vstv %s85
  %98 = vst [vmem:[#allocation3] sm:$0x1] %v97
  loop: start=0, step=1, limit=4
  $region2: #{meta_actor_daniel_forward.1} parent=0 // loop_pre_header
    _
  $region3: #{meta_actor_daniel_forward.1} parent=0 // loop_header
    %s100 = sphi 0, %s104
    %p101 = scmp.ge.s32.totalorder %s100, 4
    %s110 = sphi 0, %s112
    %s113 = sphi 0, %s110
    %s114 = sphi 0, %s113
    %s130 = sphi 0, %s114
    %s136 = sphi 0, %s138
    %s139 = sphi 0, %s136
    %s140 = sphi 0, %s139
    %s156 = sphi 0, %s140
    %s162 = sphi 0, %s164
    %s165 = sphi 0, %s162
    %s166 = sphi 0, %s165
    %s182 = sphi 0, %s166
    %s188 = sphi 0, %s190
    %s191 = sphi 0, %s188
    %s192 = sphi 0, %s191
    %s208 = sphi 0, %s192
    %s214 = sphi 0, %s216
    %s217 = sphi 0, %s214
    %s218 = sphi 0, %s217
    %s234 = sphi 0, %s218
    %s240 = sphi 0, %s242
    %s243 = sphi 0, %s240
    %s244 = sphi 0, %s243
    %s260 = sphi 0, %s244
    %s266 = sphi 0, %s268
    %s269 = sphi 0, %s266
    %s270 = sphi 0, %s269
    %s286 = sphi 0, %s270
    %s292 = sphi 0, %s294
    %s295 = sphi 0, %s292
    %s296 = sphi 0, %s295
    %s312 = sphi 0, %s296
    %s316 = sphi 0, %s316
    %s318 = sphi 0, %s316
    %s319 = sphi 0, %s318
    %s333 = sphi 0, %s319
    %s337 = sphi 0, %s337
    %s339 = sphi 0, %s337
    %s340 = sphi 0, %s339
    %s354 = sphi 0, %s340
    %s358 = sphi 0, %s358
    %s360 = sphi 0, %s358
    %s361 = sphi 0, %s360
    %s375 = sphi 0, %s361
    %s379 = sphi 0, %s379
    %s381 = sphi 0, %s379
    %s382 = sphi 0, %s381
    %s396 = sphi 0, %s382
    %s400 = sphi 0, %s400
    %s402 = sphi 0, %s400
    %s403 = sphi 0, %s402
    %s417 = sphi 0, %s403
    %s421 = sphi 0, %s421
    %s423 = sphi 0, %s421
    %s424 = sphi 0, %s423
    %s438 = sphi 0, %s424
    %s442 = sphi 0, %s442
    %s444 = sphi 0, %s442
    %s445 = sphi 0, %s444
    %s459 = sphi 0, %s445
    %s463 = sphi 0, %s463
    %s465 = sphi 0, %s463
    %s466 = sphi 0, %s465
    %s480 = sphi 0, %s466
    %s484 = sphi 0, %s484
    %s486 = sphi 0, %s484
    %s487 = sphi 0, %s486
    %s501 = sphi 0, %s487
    %s505 = sphi 0, %s505
    %s507 = sphi 0, %s505
    %s508 = sphi 0, %s507
    %s522 = sphi 0, %s508
    %s526 = sphi 0, %s526
    %s528 = sphi 0, %s526
    %s529 = sphi 0, %s528
    %s543 = sphi 0, %s529
    %s547 = sphi 0, %s547
    %s549 = sphi 0, %s547
    %s550 = sphi 0, %s549
    %s564 = sphi 0, %s550
    %s568 = sphi 0, %s568
    %s570 = sphi 0, %s568
    %s571 = sphi 0, %s570
    %s585 = sphi 0, %s571
    %s589 = sphi 0, %s589
    %s591 = sphi 0, %s589
    %s592 = sphi 0, %s591
    %s606 = sphi 0, %s592
    %s610 = sphi 0, %s610
    %s612 = sphi 0, %s610
    %s613 = sphi 0, %s612
    %s627 = sphi 0, %s613
    %s631 = sphi 0, %s631
    %s633 = sphi 0, %s631
    %s634 = sphi 0, %s633
    %s648 = sphi 0, %s634
    %s652 = sphi 0, %s652
    %s654 = sphi 0, %s652
    %s655 = sphi 0, %s654
    %s669 = sphi 0, %s655
    %s673 = sphi 0, %s673
    %s675 = sphi 0, %s673
    %s676 = sphi 0, %s675
    %s690 = sphi 0, %s676
    %s694 = sphi 0, %s694
    %s696 = sphi 0, %s694
    %s697 = sphi 0, %s696
    %s711 = sphi 0, %s697
    %s715 = sphi 0, %s715
    %s717 = sphi 0, %s715
    %s718 = sphi 0, %s717
    %s732 = sphi 0, %s718
    %s736 = sphi 0, %s736
    %s738 = sphi 0, %s736
    %s739 = sphi 0, %s738
    %s753 = sphi 0, %s739
    %s757 = sphi 0, %s757
    %s759 = sphi 0, %s757
    %s760 = sphi 0, %s759
    %s774 = sphi 0, %s760
    %s778 = sphi 0, %s778
    %s780 = sphi 0, %s778
    %s781 = sphi 0, %s780
    %s795 = sphi 0, %s781
    %s799 = sphi 0, %s799
    %s801 = sphi 0, %s799
    %s802 = sphi 0, %s801
    %s816 = sphi 0, %s802
    %s820 = sphi 0, %s820
    %s822 = sphi 0, %s820
    %s823 = sphi 0, %s822
    %s837 = sphi 0, %s823
    %s841 = sphi 0, %s841
    %s843 = sphi 0, %s841
    %s844 = sphi 0, %s843
    %s858 = sphi 0, %s844
    %s862 = sphi 0, %s862
    %s864 = sphi 0, %s862
    %s865 = sphi 0, %s864
    %s879 = sphi 0, %s865
    %s883 = sphi 0, %s883
    %s885 = sphi 0, %s883
    %s886 = sphi 0, %s885
    %s900 = sphi 0, %s886
    %s904 = sphi 0, %s904
    %s906 = sphi 0, %s904
    %s907 = sphi 0, %s906
    %s921 = sphi 0, %s907
    %s925 = sphi 0, %s925
    %s927 = sphi 0, %s925
    %s928 = sphi 0, %s927
    %s942 = sphi 0, %s928
    %s946 = sphi 0, %s946
    %s948 = sphi 0, %s946
    %s949 = sphi 0, %s948
    %s963 = sphi 0, %s949
    %s967 = sphi 0, %s967
    %s969 = sphi 0, %s967
    %s970 = sphi 0, %s969
    %s984 = sphi 0, %s970
    %s988 = sphi 0, %s988
    %s990 = sphi 0, %s988
    %s991 = sphi 0, %s990
    %s1005 = sphi 0, %s991
    %s1009 = sphi 0, %s1009
    %s1011 = sphi 0, %s1009
    %s1012 = sphi 0, %s1011
    %s1026 = sphi 0, %s1012
    %s1030 = sphi 0, %s1030
    %s1032 = sphi 0, %s1030
    %s1033 = sphi 0, %s1032
    %s1047 = sphi 0, %s1033
    %s1053 = sphi 0, %s1055
    %s1056 = sphi 0, %s1053
    %s1057 = sphi 0, %s1056
    %s1073 = sphi 0, %s1057
    %s1079 = sphi 0, %s1081
    %s1082 = sphi 0, %s1079
    %s1083 = sphi 0, %s1082
    %s1099 = sphi 0, %s1083
  $region4: #{meta_actor_daniel_forward.1} parent=0 // loop_header_branch
    %103 = sbr.rel (%p101) target = $region8
  $region5: #{meta_actor_daniel_forward.1} parent=0 // loop_body
    %s105 = ssub.s32 %s100, 1
    %s106 = ssub.s32 %s100, 2
    %s107 = sadd.s32 %s100, 1
    %s108 = ssub.s32 %s100, %s107
    %p109 = scmp.eq.s32.totalorder %s108, 0
    %s111 = sadd.s32 %s110, 1
    %s112 = scalar_select %p109, %s110, %s111
    %p115 = pneg %p109
    %p116 = scmp.eq.s32.totalorder %s100, 1
    %p117 = por %p115, %p116
    %p118 = scmp.ne.s32.totalorder %s110, %s113
    %p119 = scmp.eq.s32.totalorder %s100, 0
    %p120 = por %p118, %p119
    %p121 = scmp.ne.s32.totalorder %s110, %s113
    %p122 = scmp.eq.s32.totalorder %s105, 1
    %p123 = por %p121, %p122
    %p124 = scmp.ne.s32.totalorder %s113, %s114
    %p125 = scmp.eq.s32.totalorder %s105, 0
    %p126 = por %p124, %p125
    %p127 = scmp.ne.s32.totalorder %s113, %s114
    %p128 = scmp.eq.s32.totalorder %s106, 1
    %p129 = por %p127, %p128
    %p131 = scmp.ne.s32.totalorder %s114, %s130
    %p132 = scmp.eq.s32.totalorder %s106, 0
    %p133 = por %p131, %p132
    %s134 = ssub.s32 %s100, %s107
    %p135 = scmp.eq.s32.totalorder %s134, 0
    %s137 = sadd.s32 %s136, 1
    %s138 = scalar_select %p135, %s136, %s137
    %p141 = pneg %p135
    %p142 = scmp.eq.s32.totalorder %s100, 1
    %p143 = por %p141, %p142
    %p144 = scmp.ne.s32.totalorder %s136, %s139
    %p145 = scmp.eq.s32.totalorder %s100, 0
    %p146 = por %p144, %p145
    %p147 = scmp.ne.s32.totalorder %s136, %s139
    %p148 = scmp.eq.s32.totalorder %s105, 1
    %p149 = por %p147, %p148
    %p150 = scmp.ne.s32.totalorder %s139, %s140
    %p151 = scmp.eq.s32.totalorder %s105, 0
    %p152 = por %p150, %p151
    %p153 = scmp.ne.s32.totalorder %s139, %s140
    %p154 = scmp.eq.s32.totalorder %s106, 1
    %p155 = por %p153, %p154
    %p157 = scmp.ne.s32.totalorder %s140, %s156
    %p158 = scmp.eq.s32.totalorder %s106, 0
    %p159 = por %p157, %p158
    %s160 = ssub.s32 %s100, %s107
    %p161 = scmp.eq.s32.totalorder %s160, 0
    %s163 = sadd.s32 %s162, 1
    %s164 = scalar_select %p161, %s162, %s163
    %p167 = pneg %p161
    %p168 = scmp.eq.s32.totalorder %s100, 1
    %p169 = por %p167, %p168
    %p170 = scmp.ne.s32.totalorder %s162, %s165
    %p171 = scmp.eq.s32.totalorder %s100, 0
    %p172 = por %p170, %p171
    %p173 = scmp.ne.s32.totalorder %s162, %s165
    %p174 = scmp.eq.s32.totalorder %s105, 1
    %p175 = por %p173, %p174
    %p176 = scmp.ne.s32.totalorder %s165, %s166
    %p177 = scmp.eq.s32.totalorder %s105, 0
    %p178 = por %p176, %p177
    %p179 = scmp.ne.s32.totalorder %s165, %s166
    %p180 = scmp.eq.s32.totalorder %s106, 1
    %p181 = por %p179, %p180
    %p183 = scmp.ne.s32.totalorder %s166, %s182
    %p184 = scmp.eq.s32.totalorder %s106, 0
    %p185 = por %p183, %p184
    %s186 = ssub.s32 %s100, %s107
    %p187 = scmp.eq.s32.totalorder %s186, 0
    %s189 = sadd.s32 %s188, 1
    %s190 = scalar_select %p187, %s188, %s189
    %p193 = pneg %p187
    %p194 = scmp.eq.s32.totalorder %s100, 1
    %p195 = por %p193, %p194
    %p196 = scmp.ne.s32.totalorder %s188, %s191
    %p197 = scmp.eq.s32.totalorder %s100, 0
    %p198 = por %p196, %p197
    %p199 = scmp.ne.s32.totalorder %s188, %s191
    %p200 = scmp.eq.s32.totalorder %s105, 1
    %p201 = por %p199, %p200
    %p202 = scmp.ne.s32.totalorder %s191, %s192
    %p203 = scmp.eq.s32.totalorder %s105, 0
    %p204 = por %p202, %p203
    %p205 = scmp.ne.s32.totalorder %s191, %s192
    %p206 = scmp.eq.s32.totalorder %s106, 1
    %p207 = por %p205, %p206
    %p209 = scmp.ne.s32.totalorder %s192, %s208
    %p210 = scmp.eq.s32.totalorder %s106, 0
    %p211 = por %p209, %p210
    %s212 = ssub.s32 %s100, %s107
    %p213 = scmp.eq.s32.totalorder %s212, 0
    %s215 = sadd.s32 %s214, 1
    %s216 = scalar_select %p213, %s214, %s215
    %p219 = pneg %p213
    %p220 = scmp.eq.s32.totalorder %s100, 1
    %p221 = por %p219, %p220
    %p222 = scmp.ne.s32.totalorder %s214, %s217
    %p223 = scmp.eq.s32.totalorder %s100, 0
    %p224 = por %p222, %p223
    %p225 = scmp.ne.s32.totalorder %s214, %s217
    %p226 = scmp.eq.s32.totalorder %s105, 1
    %p227 = por %p225, %p226
    %p228 = scmp.ne.s32.totalorder %s217, %s218
    %p229 = scmp.eq.s32.totalorder %s105, 0
    %p230 = por %p228, %p229
    %p231 = scmp.ne.s32.totalorder %s217, %s218
    %p232 = scmp.eq.s32.totalorder %s106, 1
    %p233 = por %p231, %p232
    %p235 = scmp.ne.s32.totalorder %s218, %s234
    %p236 = scmp.eq.s32.totalorder %s106, 0
    %p237 = por %p235, %p236
    %s238 = ssub.s32 %s100, %s107
    %p239 = scmp.eq.s32.totalorder %s238, 0
    %s241 = sadd.s32 %s240, 1
    %s242 = scalar_select %p239, %s240, %s241
    %p245 = pneg %p239
    %p246 = scmp.eq.s32.totalorder %s100, 1
    %p247 = por %p245, %p246
    %p248 = scmp.ne.s32.totalorder %s240, %s243
    %p249 = scmp.eq.s32.totalorder %s100, 0
    %p250 = por %p248, %p249
    %p251 = scmp.ne.s32.totalorder %s240, %s243
    %p252 = scmp.eq.s32.totalorder %s105, 1
    %p253 = por %p251, %p252
    %p254 = scmp.ne.s32.totalorder %s243, %s244
    %p255 = scmp.eq.s32.totalorder %s105, 0
    %p256 = por %p254, %p255
    %p257 = scmp.ne.s32.totalorder %s243, %s244
    %p258 = scmp.eq.s32.totalorder %s106, 1
    %p259 = por %p257, %p258
    %p261 = scmp.ne.s32.totalorder %s244, %s260
    %p262 = scmp.eq.s32.totalorder %s106, 0
    %p263 = por %p261, %p262
    %s264 = ssub.s32 %s100, %s107
    %p265 = scmp.eq.s32.totalorder %s264, 0
    %s267 = sadd.s32 %s266, 1
    %s268 = scalar_select %p265, %s266, %s267
    %p271 = pneg %p265
    %p272 = scmp.eq.s32.totalorder %s100, 1
    %p273 = por %p271, %p272
    %p274 = scmp.ne.s32.totalorder %s266, %s269
    %p275 = scmp.eq.s32.totalorder %s100, 0
    %p276 = por %p274, %p275
    %p277 = scmp.ne.s32.totalorder %s266, %s269
    %p278 = scmp.eq.s32.totalorder %s105, 1
    %p279 = por %p277, %p278
    %p280 = scmp.ne.s32.totalorder %s269, %s270
    %p281 = scmp.eq.s32.totalorder %s105, 0
    %p282 = por %p280, %p281
    %p283 = scmp.ne.s32.totalorder %s269, %s270
    %p284 = scmp.eq.s32.totalorder %s106, 1
    %p285 = por %p283, %p284
    %p287 = scmp.ne.s32.totalorder %s270, %s286
    %p288 = scmp.eq.s32.totalorder %s106, 0
    %p289 = por %p287, %p288
    %s290 = ssub.s32 %s100, %s107
    %p291 = scmp.eq.s32.totalorder %s290, 0
    %s293 = sadd.s32 %s292, 1
    %s294 = scalar_select %p291, %s292, %s293
    %p297 = pneg %p291
    %p298 = scmp.eq.s32.totalorder %s100, 1
    %p299 = por %p297, %p298
    %p300 = scmp.ne.s32.totalorder %s292, %s295
    %p301 = scmp.eq.s32.totalorder %s100, 0
    %p302 = por %p300, %p301
    %p303 = scmp.ne.s32.totalorder %s292, %s295
    %p304 = scmp.eq.s32.totalorder %s105, 1
    %p305 = por %p303, %p304
    %p306 = scmp.ne.s32.totalorder %s295, %s296
    %p307 = scmp.eq.s32.totalorder %s105, 0
    %p308 = por %p306, %p307
    %p309 = scmp.ne.s32.totalorder %s295, %s296
    %p310 = scmp.eq.s32.totalorder %s106, 1
    %p311 = por %p309, %p310
    %p313 = scmp.ne.s32.totalorder %s296, %s312
    %p314 = scmp.eq.s32.totalorder %s106, 0
    %p315 = por %p313, %p314
    %s317 = sadd.s32 %s316, 1
    %p320 = scmp.eq.s32.totalorder %s100, 1
    %p321 = scmp.ne.s32.totalorder %s316, %s318
    %p322 = scmp.eq.s32.totalorder %s100, 0
    %p323 = por %p321, %p322
    %p324 = scmp.ne.s32.totalorder %s316, %s318
    %p325 = scmp.eq.s32.totalorder %s105, 1
    %p326 = por %p324, %p325
    %p327 = scmp.ne.s32.totalorder %s318, %s319
    %p328 = scmp.eq.s32.totalorder %s105, 0
    %p329 = por %p327, %p328
    %p330 = scmp.ne.s32.totalorder %s318, %s319
    %p331 = scmp.eq.s32.totalorder %s106, 1
    %p332 = por %p330, %p331
    %p334 = scmp.ne.s32.totalorder %s319, %s333
    %p335 = scmp.eq.s32.totalorder %s106, 0
    %p336 = por %p334, %p335
    %s338 = sadd.s32 %s337, 1
    %p341 = scmp.eq.s32.totalorder %s100, 1
    %p342 = scmp.ne.s32.totalorder %s337, %s339
    %p343 = scmp.eq.s32.totalorder %s100, 0
    %p344 = por %p342, %p343
    %p345 = scmp.ne.s32.totalorder %s337, %s339
    %p346 = scmp.eq.s32.totalorder %s105, 1
    %p347 = por %p345, %p346
    %p348 = scmp.ne.s32.totalorder %s339, %s340
    %p349 = scmp.eq.s32.totalorder %s105, 0
    %p350 = por %p348, %p349
    %p351 = scmp.ne.s32.totalorder %s339, %s340
    %p352 = scmp.eq.s32.totalorder %s106, 1
    %p353 = por %p351, %p352
    %p355 = scmp.ne.s32.totalorder %s340, %s354
    %p356 = scmp.eq.s32.totalorder %s106, 0
    %p357 = por %p355, %p356
    %s359 = sadd.s32 %s358, 1
    %p362 = scmp.eq.s32.totalorder %s100, 1
    %p363 = scmp.ne.s32.totalorder %s358, %s360
    %p364 = scmp.eq.s32.totalorder %s100, 0
    %p365 = por %p363, %p364
    %p366 = scmp.ne.s32.totalorder %s358, %s360
    %p367 = scmp.eq.s32.totalorder %s105, 1
    %p368 = por %p366, %p367
    %p369 = scmp.ne.s32.totalorder %s360, %s361
    %p370 = scmp.eq.s32.totalorder %s105, 0
    %p371 = por %p369, %p370
    %p372 = scmp.ne.s32.totalorder %s360, %s361
    %p373 = scmp.eq.s32.totalorder %s106, 1
    %p374 = por %p372, %p373
    %p376 = scmp.ne.s32.totalorder %s361, %s375
    %p377 = scmp.eq.s32.totalorder %s106, 0
    %p378 = por %p376, %p377
    %s380 = sadd.s32 %s379, 1
    %p383 = scmp.eq.s32.totalorder %s100, 1
    %p384 = scmp.ne.s32.totalorder %s379, %s381
    %p385 = scmp.eq.s32.totalorder %s100, 0
    %p386 = por %p384, %p385
    %p387 = scmp.ne.s32.totalorder %s379, %s381
    %p388 = scmp.eq.s32.totalorder %s105, 1
    %p389 = por %p387, %p388
    %p390 = scmp.ne.s32.totalorder %s381, %s382
    %p391 = scmp.eq.s32.totalorder %s105, 0
    %p392 = por %p390, %p391
    %p393 = scmp.ne.s32.totalorder %s381, %s382
    %p394 = scmp.eq.s32.totalorder %s106, 1
    %p395 = por %p393, %p394
    %p397 = scmp.ne.s32.totalorder %s382, %s396
    %p398 = scmp.eq.s32.totalorder %s106, 0
    %p399 = por %p397, %p398
    %s401 = sadd.s32 %s400, 1
    %p404 = scmp.eq.s32.totalorder %s100, 1
    %p405 = scmp.ne.s32.totalorder %s400, %s402
    %p406 = scmp.eq.s32.totalorder %s100, 0
    %p407 = por %p405, %p406
    %p408 = scmp.ne.s32.totalorder %s400, %s402
    %p409 = scmp.eq.s32.totalorder %s105, 1
    %p410 = por %p408, %p409
    %p411 = scmp.ne.s32.totalorder %s402, %s403
    %p412 = scmp.eq.s32.totalorder %s105, 0
    %p413 = por %p411, %p412
    %p414 = scmp.ne.s32.totalorder %s402, %s403
    %p415 = scmp.eq.s32.totalorder %s106, 1
    %p416 = por %p414, %p415
    %p418 = scmp.ne.s32.totalorder %s403, %s417
    %p419 = scmp.eq.s32.totalorder %s106, 0
    %p420 = por %p418, %p419
    %s422 = sadd.s32 %s421, 1
    %p425 = scmp.eq.s32.totalorder %s100, 1
    %p426 = scmp.ne.s32.totalorder %s421, %s423
    %p427 = scmp.eq.s32.totalorder %s100, 0
    %p428 = por %p426, %p427
    %p429 = scmp.ne.s32.totalorder %s421, %s423
    %p430 = scmp.eq.s32.totalorder %s105, 1
    %p431 = por %p429, %p430
    %p432 = scmp.ne.s32.totalorder %s423, %s424
    %p433 = scmp.eq.s32.totalorder %s105, 0
    %p434 = por %p432, %p433
    %p435 = scmp.ne.s32.totalorder %s423, %s424
    %p436 = scmp.eq.s32.totalorder %s106, 1
    %p437 = por %p435, %p436
    %p439 = scmp.ne.s32.totalorder %s424, %s438
    %p440 = scmp.eq.s32.totalorder %s106, 0
    %p441 = por %p439, %p440
    %s443 = sadd.s32 %s442, 1
    %p446 = scmp.eq.s32.totalorder %s100, 1
    %p447 = scmp.ne.s32.totalorder %s442, %s444
    %p448 = scmp.eq.s32.totalorder %s100, 0
    %p449 = por %p447, %p448
    %p450 = scmp.ne.s32.totalorder %s442, %s444
    %p451 = scmp.eq.s32.totalorder %s105, 1
    %p452 = por %p450, %p451
    %p453 = scmp.ne.s32.totalorder %s444, %s445
    %p454 = scmp.eq.s32.totalorder %s105, 0
    %p455 = por %p453, %p454
    %p456 = scmp.ne.s32.totalorder %s444, %s445
    %p457 = scmp.eq.s32.totalorder %s106, 1
    %p458 = por %p456, %p457
    %p460 = scmp.ne.s32.totalorder %s445, %s459
    %p461 = scmp.eq.s32.totalorder %s106, 0
    %p462 = por %p460, %p461
    %s464 = sadd.s32 %s463, 1
    %p467 = scmp.eq.s32.totalorder %s100, 1
    %p468 = scmp.ne.s32.totalorder %s463, %s465
    %p469 = scmp.eq.s32.totalorder %s100, 0
    %p470 = por %p468, %p469
    %p471 = scmp.ne.s32.totalorder %s463, %s465
    %p472 = scmp.eq.s32.totalorder %s105, 1
    %p473 = por %p471, %p472
    %p474 = scmp.ne.s32.totalorder %s465, %s466
    %p475 = scmp.eq.s32.totalorder %s105, 0
    %p476 = por %p474, %p475
    %p477 = scmp.ne.s32.totalorder %s465, %s466
    %p478 = scmp.eq.s32.totalorder %s106, 1
    %p479 = por %p477, %p478
    %p481 = scmp.ne.s32.totalorder %s466, %s480
    %p482 = scmp.eq.s32.totalorder %s106, 0
    %p483 = por %p481, %p482
    %s485 = sadd.s32 %s484, 1
    %p488 = scmp.eq.s32.totalorder %s100, 1
    %p489 = scmp.ne.s32.totalorder %s484, %s486
    %p490 = scmp.eq.s32.totalorder %s100, 0
    %p491 = por %p489, %p490
    %p492 = scmp.ne.s32.totalorder %s484, %s486
    %p493 = scmp.eq.s32.totalorder %s105, 1
    %p494 = por %p492, %p493
    %p495 = scmp.ne.s32.totalorder %s486, %s487
    %p496 = scmp.eq.s32.totalorder %s105, 0
    %p497 = por %p495, %p496
    %p498 = scmp.ne.s32.totalorder %s486, %s487
    %p499 = scmp.eq.s32.totalorder %s106, 1
    %p500 = por %p498, %p499
    %p502 = scmp.ne.s32.totalorder %s487, %s501
    %p503 = scmp.eq.s32.totalorder %s106, 0
    %p504 = por %p502, %p503
    %s506 = sadd.s32 %s505, 1
    %p509 = scmp.eq.s32.totalorder %s100, 1
    %p510 = scmp.ne.s32.totalorder %s505, %s507
    %p511 = scmp.eq.s32.totalorder %s100, 0
    %p512 = por %p510, %p511
    %p513 = scmp.ne.s32.totalorder %s505, %s507
    %p514 = scmp.eq.s32.totalorder %s105, 1
    %p515 = por %p513, %p514
    %p516 = scmp.ne.s32.totalorder %s507, %s508
    %p517 = scmp.eq.s32.totalorder %s105, 0
    %p518 = por %p516, %p517
    %p519 = scmp.ne.s32.totalorder %s507, %s508
    %p520 = scmp.eq.s32.totalorder %s106, 1
    %p521 = por %p519, %p520
    %p523 = scmp.ne.s32.totalorder %s508, %s522
    %p524 = scmp.eq.s32.totalorder %s106, 0
    %p525 = por %p523, %p524
    %s527 = sadd.s32 %s526, 1
    %p530 = scmp.eq.s32.totalorder %s100, 1
    %p531 = scmp.ne.s32.totalorder %s526, %s528
    %p532 = scmp.eq.s32.totalorder %s100, 0
    %p533 = por %p531, %p532
    %p534 = scmp.ne.s32.totalorder %s526, %s528
    %p535 = scmp.eq.s32.totalorder %s105, 1
    %p536 = por %p534, %p535
    %p537 = scmp.ne.s32.totalorder %s528, %s529
    %p538 = scmp.eq.s32.totalorder %s105, 0
    %p539 = por %p537, %p538
    %p540 = scmp.ne.s32.totalorder %s528, %s529
    %p541 = scmp.eq.s32.totalorder %s106, 1
    %p542 = por %p540, %p541
    %p544 = scmp.ne.s32.totalorder %s529, %s543
    %p545 = scmp.eq.s32.totalorder %s106, 0
    %p546 = por %p544, %p545
    %s548 = sadd.s32 %s547, 1
    %p551 = scmp.eq.s32.totalorder %s100, 1
    %p552 = scmp.ne.s32.totalorder %s547, %s549
    %p553 = scmp.eq.s32.totalorder %s100, 0
    %p554 = por %p552, %p553
    %p555 = scmp.ne.s32.totalorder %s547, %s549
    %p556 = scmp.eq.s32.totalorder %s105, 1
    %p557 = por %p555, %p556
    %p558 = scmp.ne.s32.totalorder %s549, %s550
    %p559 = scmp.eq.s32.totalorder %s105, 0
    %p560 = por %p558, %p559
    %p561 = scmp.ne.s32.totalorder %s549, %s550
    %p562 = scmp.eq.s32.totalorder %s106, 1
    %p563 = por %p561, %p562
    %p565 = scmp.ne.s32.totalorder %s550, %s564
    %p566 = scmp.eq.s32.totalorder %s106, 0
    %p567 = por %p565, %p566
    %s569 = sadd.s32 %s568, 1
    %p572 = scmp.eq.s32.totalorder %s100, 1
    %p573 = scmp.ne.s32.totalorder %s568, %s570
    %p574 = scmp.eq.s32.totalorder %s100, 0
    %p575 = por %p573, %p574
    %p576 = scmp.ne.s32.totalorder %s568, %s570
    %p577 = scmp.eq.s32.totalorder %s105, 1
    %p578 = por %p576, %p577
    %p579 = scmp.ne.s32.totalorder %s570, %s571
    %p580 = scmp.eq.s32.totalorder %s105, 0
    %p581 = por %p579, %p580
    %p582 = scmp.ne.s32.totalorder %s570, %s571
    %p583 = scmp.eq.s32.totalorder %s106, 1
    %p584 = por %p582, %p583
    %p586 = scmp.ne.s32.totalorder %s571, %s585
    %p587 = scmp.eq.s32.totalorder %s106, 0
    %p588 = por %p586, %p587
    %s590 = sadd.s32 %s589, 1
    %p593 = scmp.eq.s32.totalorder %s100, 1
    %p594 = scmp.ne.s32.totalorder %s589, %s591
    %p595 = scmp.eq.s32.totalorder %s100, 0
    %p596 = por %p594, %p595
    %p597 = scmp.ne.s32.totalorder %s589, %s591
    %p598 = scmp.eq.s32.totalorder %s105, 1
    %p599 = por %p597, %p598
    %p600 = scmp.ne.s32.totalorder %s591, %s592
    %p601 = scmp.eq.s32.totalorder %s105, 0
    %p602 = por %p600, %p601
    %p603 = scmp.ne.s32.totalorder %s591, %s592
    %p604 = scmp.eq.s32.totalorder %s106, 1
    %p605 = por %p603, %p604
    %p607 = scmp.ne.s32.totalorder %s592, %s606
    %p608 = scmp.eq.s32.totalorder %s106, 0
    %p609 = por %p607, %p608
    %s611 = sadd.s32 %s610, 1
    %p614 = scmp.eq.s32.totalorder %s100, 1
    %p615 = scmp.ne.s32.totalorder %s610, %s612
    %p616 = scmp.eq.s32.totalorder %s100, 0
    %p617 = por %p615, %p616
    %p618 = scmp.ne.s32.totalorder %s610, %s612
    %p619 = scmp.eq.s32.totalorder %s105, 1
    %p620 = por %p618, %p619
    %p621 = scmp.ne.s32.totalorder %s612, %s613
    %p622 = scmp.eq.s32.totalorder %s105, 0
    %p623 = por %p621, %p622
    %p624 = scmp.ne.s32.totalorder %s612, %s613
    %p625 = scmp.eq.s32.totalorder %s106, 1
    %p626 = por %p624, %p625
    %p628 = scmp.ne.s32.totalorder %s613, %s627
    %p629 = scmp.eq.s32.totalorder %s106, 0
    %p630 = por %p628, %p629
    %s632 = sadd.s32 %s631, 1
    %p635 = scmp.eq.s32.totalorder %s100, 1
    %p636 = scmp.ne.s32.totalorder %s631, %s633
    %p637 = scmp.eq.s32.totalorder %s100, 0
    %p638 = por %p636, %p637
    %p639 = scmp.ne.s32.totalorder %s631, %s633
    %p640 = scmp.eq.s32.totalorder %s105, 1
    %p641 = por %p639, %p640
    %p642 = scmp.ne.s32.totalorder %s633, %s634
    %p643 = scmp.eq.s32.totalorder %s105, 0
    %p644 = por %p642, %p643
    %p645 = scmp.ne.s32.totalorder %s633, %s634
    %p646 = scmp.eq.s32.totalorder %s106, 1
    %p647 = por %p645, %p646
    %p649 = scmp.ne.s32.totalorder %s634, %s648
    %p650 = scmp.eq.s32.totalorder %s106, 0
    %p651 = por %p649, %p650
    %s653 = sadd.s32 %s652, 1
    %p656 = scmp.eq.s32.totalorder %s100, 1
    %p657 = scmp.ne.s32.totalorder %s652, %s654
    %p658 = scmp.eq.s32.totalorder %s100, 0
    %p659 = por %p657, %p658
    %p660 = scmp.ne.s32.totalorder %s652, %s654
    %p661 = scmp.eq.s32.totalorder %s105, 1
    %p662 = por %p660, %p661
    %p663 = scmp.ne.s32.totalorder %s654, %s655
    %p664 = scmp.eq.s32.totalorder %s105, 0
    %p665 = por %p663, %p664
    %p666 = scmp.ne.s32.totalorder %s654, %s655
    %p667 = scmp.eq.s32.totalorder %s106, 1
    %p668 = por %p666, %p667
    %p670 = scmp.ne.s32.totalorder %s655, %s669
    %p671 = scmp.eq.s32.totalorder %s106, 0
    %p672 = por %p670, %p671
    %s674 = sadd.s32 %s673, 1
    %p677 = scmp.eq.s32.totalorder %s100, 1
    %p678 = scmp.ne.s32.totalorder %s673, %s675
    %p679 = scmp.eq.s32.totalorder %s100, 0
    %p680 = por %p678, %p679
    %p681 = scmp.ne.s32.totalorder %s673, %s675
    %p682 = scmp.eq.s32.totalorder %s105, 1
    %p683 = por %p681, %p682
    %p684 = scmp.ne.s32.totalorder %s675, %s676
    %p685 = scmp.eq.s32.totalorder %s105, 0
    %p686 = por %p684, %p685
    %p687 = scmp.ne.s32.totalorder %s675, %s676
    %p688 = scmp.eq.s32.totalorder %s106, 1
    %p689 = por %p687, %p688
    %p691 = scmp.ne.s32.totalorder %s676, %s690
    %p692 = scmp.eq.s32.totalorder %s106, 0
    %p693 = por %p691, %p692
    %s695 = sadd.s32 %s694, 1
    %p698 = scmp.eq.s32.totalorder %s100, 1
    %p699 = scmp.ne.s32.totalorder %s694, %s696
    %p700 = scmp.eq.s32.totalorder %s100, 0
    %p701 = por %p699, %p700
    %p702 = scmp.ne.s32.totalorder %s694, %s696
    %p703 = scmp.eq.s32.totalorder %s105, 1
    %p704 = por %p702, %p703
    %p705 = scmp.ne.s32.totalorder %s696, %s697
    %p706 = scmp.eq.s32.totalorder %s105, 0
    %p707 = por %p705, %p706
    %p708 = scmp.ne.s32.totalorder %s696, %s697
    %p709 = scmp.eq.s32.totalorder %s106, 1
    %p710 = por %p708, %p709
    %p712 = scmp.ne.s32.totalorder %s697, %s711
    %p713 = scmp.eq.s32.totalorder %s106, 0
    %p714 = por %p712, %p713
    %s716 = sadd.s32 %s715, 1
    %p719 = scmp.eq.s32.totalorder %s100, 1
    %p720 = scmp.ne.s32.totalorder %s715, %s717
    %p721 = scmp.eq.s32.totalorder %s100, 0
    %p722 = por %p720, %p721
    %p723 = scmp.ne.s32.totalorder %s715, %s717
    %p724 = scmp.eq.s32.totalorder %s105, 1
    %p725 = por %p723, %p724
    %p726 = scmp.ne.s32.totalorder %s717, %s718
    %p727 = scmp.eq.s32.totalorder %s105, 0
    %p728 = por %p726, %p727
    %p729 = scmp.ne.s32.totalorder %s717, %s718
    %p730 = scmp.eq.s32.totalorder %s106, 1
    %p731 = por %p729, %p730
    %p733 = scmp.ne.s32.totalorder %s718, %s732
    %p734 = scmp.eq.s32.totalorder %s106, 0
    %p735 = por %p733, %p734
    %s737 = sadd.s32 %s736, 1
    %p740 = scmp.eq.s32.totalorder %s100, 1
    %p741 = scmp.ne.s32.totalorder %s736, %s738
    %p742 = scmp.eq.s32.totalorder %s100, 0
    %p743 = por %p741, %p742
    %p744 = scmp.ne.s32.totalorder %s736, %s738
    %p745 = scmp.eq.s32.totalorder %s105, 1
    %p746 = por %p744, %p745
    %p747 = scmp.ne.s32.totalorder %s738, %s739
    %p748 = scmp.eq.s32.totalorder %s105, 0
    %p749 = por %p747, %p748
    %p750 = scmp.ne.s32.totalorder %s738, %s739
    %p751 = scmp.eq.s32.totalorder %s106, 1
    %p752 = por %p750, %p751
    %p754 = scmp.ne.s32.totalorder %s739, %s753
    %p755 = scmp.eq.s32.totalorder %s106, 0
    %p756 = por %p754, %p755
    %s758 = sadd.s32 %s757, 1
    %p761 = scmp.eq.s32.totalorder %s100, 1
    %p762 = scmp.ne.s32.totalorder %s757, %s759
    %p763 = scmp.eq.s32.totalorder %s100, 0
    %p764 = por %p762, %p763
    %p765 = scmp.ne.s32.totalorder %s757, %s759
    %p766 = scmp.eq.s32.totalorder %s105, 1
    %p767 = por %p765, %p766
    %p768 = scmp.ne.s32.totalorder %s759, %s760
    %p769 = scmp.eq.s32.totalorder %s105, 0
    %p770 = por %p768, %p769
    %p771 = scmp.ne.s32.totalorder %s759, %s760
    %p772 = scmp.eq.s32.totalorder %s106, 1
    %p773 = por %p771, %p772
    %p775 = scmp.ne.s32.totalorder %s760, %s774
    %p776 = scmp.eq.s32.totalorder %s106, 0
    %p777 = por %p775, %p776
    %s779 = sadd.s32 %s778, 1
    %p782 = scmp.eq.s32.totalorder %s100, 1
    %p783 = scmp.ne.s32.totalorder %s778, %s780
    %p784 = scmp.eq.s32.totalorder %s100, 0
    %p785 = por %p783, %p784
    %p786 = scmp.ne.s32.totalorder %s778, %s780
    %p787 = scmp.eq.s32.totalorder %s105, 1
    %p788 = por %p786, %p787
    %p789 = scmp.ne.s32.totalorder %s780, %s781
    %p790 = scmp.eq.s32.totalorder %s105, 0
    %p791 = por %p789, %p790
    %p792 = scmp.ne.s32.totalorder %s780, %s781
    %p793 = scmp.eq.s32.totalorder %s106, 1
    %p794 = por %p792, %p793
    %p796 = scmp.ne.s32.totalorder %s781, %s795
    %p797 = scmp.eq.s32.totalorder %s106, 0
    %p798 = por %p796, %p797
    %s800 = sadd.s32 %s799, 1
    %p803 = scmp.eq.s32.totalorder %s100, 1
    %p804 = scmp.ne.s32.totalorder %s799, %s801
    %p805 = scmp.eq.s32.totalorder %s100, 0
    %p806 = por %p804, %p805
    %p807 = scmp.ne.s32.totalorder %s799, %s801
    %p808 = scmp.eq.s32.totalorder %s105, 1
    %p809 = por %p807, %p808
    %p810 = scmp.ne.s32.totalorder %s801, %s802
    %p811 = scmp.eq.s32.totalorder %s105, 0
    %p812 = por %p810, %p811
    %p813 = scmp.ne.s32.totalorder %s801, %s802
    %p814 = scmp.eq.s32.totalorder %s106, 1
    %p815 = por %p813, %p814
    %p817 = scmp.ne.s32.totalorder %s802, %s816
    %p818 = scmp.eq.s32.totalorder %s106, 0
    %p819 = por %p817, %p818
    %s821 = sadd.s32 %s820, 1
    %p824 = scmp.eq.s32.totalorder %s100, 1
    %p825 = scmp.ne.s32.totalorder %s820, %s822
    %p826 = scmp.eq.s32.totalorder %s100, 0
    %p827 = por %p825, %p826
    %p828 = scmp.ne.s32.totalorder %s820, %s822
    %p829 = scmp.eq.s32.totalorder %s105, 1
    %p830 = por %p828, %p829
    %p831 = scmp.ne.s32.totalorder %s822, %s823
    %p832 = scmp.eq.s32.totalorder %s105, 0
    %p833 = por %p831, %p832
    %p834 = scmp.ne.s32.totalorder %s822, %s823
    %p835 = scmp.eq.s32.totalorder %s106, 1
    %p836 = por %p834, %p835
    %p838 = scmp.ne.s32.totalorder %s823, %s837
    %p839 = scmp.eq.s32.totalorder %s106, 0
    %p840 = por %p838, %p839
    %s842 = sadd.s32 %s841, 1
    %p845 = scmp.eq.s32.totalorder %s100, 1
    %p846 = scmp.ne.s32.totalorder %s841, %s843
    %p847 = scmp.eq.s32.totalorder %s100, 0
    %p848 = por %p846, %p847
    %p849 = scmp.ne.s32.totalorder %s841, %s843
    %p850 = scmp.eq.s32.totalorder %s105, 1
    %p851 = por %p849, %p850
    %p852 = scmp.ne.s32.totalorder %s843, %s844
    %p853 = scmp.eq.s32.totalorder %s105, 0
    %p854 = por %p852, %p853
    %p855 = scmp.ne.s32.totalorder %s843, %s844
    %p856 = scmp.eq.s32.totalorder %s106, 1
    %p857 = por %p855, %p856
    %p859 = scmp.ne.s32.totalorder %s844, %s858
    %p860 = scmp.eq.s32.totalorder %s106, 0
    %p861 = por %p859, %p860
    %s863 = sadd.s32 %s862, 1
    %p866 = scmp.eq.s32.totalorder %s100, 1
    %p867 = scmp.ne.s32.totalorder %s862, %s864
    %p868 = scmp.eq.s32.totalorder %s100, 0
    %p869 = por %p867, %p868
    %p870 = scmp.ne.s32.totalorder %s862, %s864
    %p871 = scmp.eq.s32.totalorder %s105, 1
    %p872 = por %p870, %p871
    %p873 = scmp.ne.s32.totalorder %s864, %s865
    %p874 = scmp.eq.s32.totalorder %s105, 0
    %p875 = por %p873, %p874
    %p876 = scmp.ne.s32.totalorder %s864, %s865
    %p877 = scmp.eq.s32.totalorder %s106, 1
    %p878 = por %p876, %p877
    %p880 = scmp.ne.s32.totalorder %s865, %s879
    %p881 = scmp.eq.s32.totalorder %s106, 0
    %p882 = por %p880, %p881
    %s884 = sadd.s32 %s883, 1
    %p887 = scmp.eq.s32.totalorder %s100, 1
    %p888 = scmp.ne.s32.totalorder %s883, %s885
    %p889 = scmp.eq.s32.totalorder %s100, 0
    %p890 = por %p888, %p889
    %p891 = scmp.ne.s32.totalorder %s883, %s885
    %p892 = scmp.eq.s32.totalorder %s105, 1
    %p893 = por %p891, %p892
    %p894 = scmp.ne.s32.totalorder %s885, %s886
    %p895 = scmp.eq.s32.totalorder %s105, 0
    %p896 = por %p894, %p895
    %p897 = scmp.ne.s32.totalorder %s885, %s886
    %p898 = scmp.eq.s32.totalorder %s106, 1
    %p899 = por %p897, %p898
    %p901 = scmp.ne.s32.totalorder %s886, %s900
    %p902 = scmp.eq.s32.totalorder %s106, 0
    %p903 = por %p901, %p902
    %s905 = sadd.s32 %s904, 1
    %p908 = scmp.eq.s32.totalorder %s100, 1
    %p909 = scmp.ne.s32.totalorder %s904, %s906
    %p910 = scmp.eq.s32.totalorder %s100, 0
    %p911 = por %p909, %p910
    %p912 = scmp.ne.s32.totalorder %s904, %s906
    %p913 = scmp.eq.s32.totalorder %s105, 1
    %p914 = por %p912, %p913
    %p915 = scmp.ne.s32.totalorder %s906, %s907
    %p916 = scmp.eq.s32.totalorder %s105, 0
    %p917 = por %p915, %p916
    %p918 = scmp.ne.s32.totalorder %s906, %s907
    %p919 = scmp.eq.s32.totalorder %s106, 1
    %p920 = por %p918, %p919
    %p922 = scmp.ne.s32.totalorder %s907, %s921
    %p923 = scmp.eq.s32.totalorder %s106, 0
    %p924 = por %p922, %p923
    %s926 = sadd.s32 %s925, 1
    %p929 = scmp.eq.s32.totalorder %s100, 1
    %p930 = scmp.ne.s32.totalorder %s925, %s927
    %p931 = scmp.eq.s32.totalorder %s100, 0
    %p932 = por %p930, %p931
    %p933 = scmp.ne.s32.totalorder %s925, %s927
    %p934 = scmp.eq.s32.totalorder %s105, 1
    %p935 = por %p933, %p934
    %p936 = scmp.ne.s32.totalorder %s927, %s928
    %p937 = scmp.eq.s32.totalorder %s105, 0
    %p938 = por %p936, %p937
    %p939 = scmp.ne.s32.totalorder %s927, %s928
    %p940 = scmp.eq.s32.totalorder %s106, 1
    %p941 = por %p939, %p940
    %p943 = scmp.ne.s32.totalorder %s928, %s942
    %p944 = scmp.eq.s32.totalorder %s106, 0
    %p945 = por %p943, %p944
    %s947 = sadd.s32 %s946, 1
    %p950 = scmp.eq.s32.totalorder %s100, 1
    %p951 = scmp.ne.s32.totalorder %s946, %s948
    %p952 = scmp.eq.s32.totalorder %s100, 0
    %p953 = por %p951, %p952
    %p954 = scmp.ne.s32.totalorder %s946, %s948
    %p955 = scmp.eq.s32.totalorder %s105, 1
    %p956 = por %p954, %p955
    %p957 = scmp.ne.s32.totalorder %s948, %s949
    %p958 = scmp.eq.s32.totalorder %s105, 0
    %p959 = por %p957, %p958
    %p960 = scmp.ne.s32.totalorder %s948, %s949
    %p961 = scmp.eq.s32.totalorder %s106, 1
    %p962 = por %p960, %p961
    %p964 = scmp.ne.s32.totalorder %s949, %s963
    %p965 = scmp.eq.s32.totalorder %s106, 0
    %p966 = por %p964, %p965
    %s968 = sadd.s32 %s967, 1
    %p971 = scmp.eq.s32.totalorder %s100, 1
    %p972 = scmp.ne.s32.totalorder %s967, %s969
    %p973 = scmp.eq.s32.totalorder %s100, 0
    %p974 = por %p972, %p973
    %p975 = scmp.ne.s32.totalorder %s967, %s969
    %p976 = scmp.eq.s32.totalorder %s105, 1
    %p977 = por %p975, %p976
    %p978 = scmp.ne.s32.totalorder %s969, %s970
    %p979 = scmp.eq.s32.totalorder %s105, 0
    %p980 = por %p978, %p979
    %p981 = scmp.ne.s32.totalorder %s969, %s970
    %p982 = scmp.eq.s32.totalorder %s106, 1
    %p983 = por %p981, %p982
    %p985 = scmp.ne.s32.totalorder %s970, %s984
    %p986 = scmp.eq.s32.totalorder %s106, 0
    %p987 = por %p985, %p986
    %s989 = sadd.s32 %s988, 1
    %p992 = scmp.eq.s32.totalorder %s100, 1
    %p993 = scmp.ne.s32.totalorder %s988, %s990
    %p994 = scmp.eq.s32.totalorder %s100, 0
    %p995 = por %p993, %p994
    %p996 = scmp.ne.s32.totalorder %s988, %s990
    %p997 = scmp.eq.s32.totalorder %s105, 1
    %p998 = por %p996, %p997
    %p999 = scmp.ne.s32.totalorder %s990, %s991
    %p1000 = scmp.eq.s32.totalorder %s105, 0
    %p1001 = por %p999, %p1000
    %p1002 = scmp.ne.s32.totalorder %s990, %s991
    %p1003 = scmp.eq.s32.totalorder %s106, 1
    %p1004 = por %p1002, %p1003
    %p1006 = scmp.ne.s32.totalorder %s991, %s1005
    %p1007 = scmp.eq.s32.totalorder %s106, 0
    %p1008 = por %p1006, %p1007
    %s1010 = sadd.s32 %s1009, 1
    %p1013 = scmp.eq.s32.totalorder %s100, 1
    %p1014 = scmp.ne.s32.totalorder %s1009, %s1011
    %p1015 = scmp.eq.s32.totalorder %s100, 0
    %p1016 = por %p1014, %p1015
    %p1017 = scmp.ne.s32.totalorder %s1009, %s1011
    %p1018 = scmp.eq.s32.totalorder %s105, 1
    %p1019 = por %p1017, %p1018
    %p1020 = scmp.ne.s32.totalorder %s1011, %s1012
    %p1021 = scmp.eq.s32.totalorder %s105, 0
    %p1022 = por %p1020, %p1021
    %p1023 = scmp.ne.s32.totalorder %s1011, %s1012
    %p1024 = scmp.eq.s32.totalorder %s106, 1
    %p1025 = por %p1023, %p1024
    %p1027 = scmp.ne.s32.totalorder %s1012, %s1026
    %p1028 = scmp.eq.s32.totalorder %s106, 0
    %p1029 = por %p1027, %p1028
    %s1031 = sadd.s32 %s1030, 1
    %p1034 = scmp.eq.s32.totalorder %s100, 1
    %p1035 = scmp.ne.s32.totalorder %s1030, %s1032
    %p1036 = scmp.eq.s32.totalorder %s100, 0
    %p1037 = por %p1035, %p1036
    %p1038 = scmp.ne.s32.totalorder %s1030, %s1032
    %p1039 = scmp.eq.s32.totalorder %s105, 1
    %p1040 = por %p1038, %p1039
    %p1041 = scmp.ne.s32.totalorder %s1032, %s1033
    %p1042 = scmp.eq.s32.totalorder %s105, 0
    %p1043 = por %p1041, %p1042
    %p1044 = scmp.ne.s32.totalorder %s1032, %s1033
    %p1045 = scmp.eq.s32.totalorder %s106, 1
    %p1046 = por %p1044, %p1045
    %p1048 = scmp.ne.s32.totalorder %s1033, %s1047
    %p1049 = scmp.eq.s32.totalorder %s106, 0
    %p1050 = por %p1048, %p1049
    %s1051 = ssub.s32 %s100, %s107
    %p1052 = scmp.eq.s32.totalorder %s1051, 0
    %s1054 = sadd.s32 %s1053, 1
    %s1055 = scalar_select %p1052, %s1053, %s1054
    %p1058 = pneg %p1052
    %p1059 = scmp.eq.s32.totalorder %s100, 1
    %p1060 = por %p1058, %p1059
    %p1061 = scmp.ne.s32.totalorder %s1053, %s1056
    %p1062 = scmp.eq.s32.totalorder %s100, 0
    %p1063 = por %p1061, %p1062
    %p1064 = scmp.ne.s32.totalorder %s1053, %s1056
    %p1065 = scmp.eq.s32.totalorder %s105, 1
    %p1066 = por %p1064, %p1065
    %p1067 = scmp.ne.s32.totalorder %s1056, %s1057
    %p1068 = scmp.eq.s32.totalorder %s105, 0
    %p1069 = por %p1067, %p1068
    %p1070 = scmp.ne.s32.totalorder %s1056, %s1057
    %p1071 = scmp.eq.s32.totalorder %s106, 1
    %p1072 = por %p1070, %p1071
    %p1074 = scmp.ne.s32.totalorder %s1057, %s1073
    %p1075 = scmp.eq.s32.totalorder %s106, 0
    %p1076 = por %p1074, %p1075
    %s1077 = ssub.s32 %s100, %s107
    %p1078 = scmp.eq.s32.totalorder %s1077, 0
    %s1080 = sadd.s32 %s1079, 1
    %s1081 = scalar_select %p1078, %s1079, %s1080
    %p1084 = pneg %p1078
    %p1085 = scmp.eq.s32.totalorder %s100, 1
    %p1086 = por %p1084, %p1085
    %p1087 = scmp.ne.s32.totalorder %s1079, %s1082
    %p1088 = scmp.eq.s32.totalorder %s100, 0
    %p1089 = por %p1087, %p1088
    %p1090 = scmp.ne.s32.totalorder %s1079, %s1082
    %p1091 = scmp.eq.s32.totalorder %s105, 1
    %p1092 = por %p1090, %p1091
    %p1093 = scmp.ne.s32.totalorder %s1082, %s1083
    %p1094 = scmp.eq.s32.totalorder %s105, 0
    %p1095 = por %p1093, %p1094
    %p1096 = scmp.ne.s32.totalorder %s1082, %s1083
    %p1097 = scmp.eq.s32.totalorder %s106, 1
    %p1098 = por %p1096, %p1097
    %p1100 = scmp.ne.s32.totalorder %s1083, %s1099
    %p1101 = scmp.eq.s32.totalorder %s106, 0
    %p1102 = por %p1100, %p1101
    %p1103 = scmp.le.s32.totalorder 1, %s100
    %p1104 = scmp.lt.s32.totalorder %s100, 3
    %p1105 = pnand %p1103, %p1104
    %p1106 = pneg %p1105
    // Predicated region
    $region9: #{meta_actor_daniel_forward.1} parent=5 // pred_check
      _
    $region10: #{meta_actor_daniel_forward.1} parent=5 // pred_check_branch
      %1108 = sbr.rel (%p1105) target = $region12
    $region11: #{meta_actor_daniel_forward.1} parent=5 // pred_region
      %s1109 = ssub.s32 %s100, 1
      // Predicated region
      $region13: #{meta_actor_daniel_forward.1} parent=11 // pred_check
        %p1110 = pneg %p329
      $region14: #{meta_actor_daniel_forward.1} parent=11 // pred_check_branch
        %1112 = sbr.rel (%p1110) target = $region16
      $region15: #{meta_actor_daniel_forward.1} parent=11 // pred_region
        _
      $region16: #{meta_actor_daniel_forward.1} parent=11 // pred_fallthru
        _
      // Predicated region
      $region17: #{meta_actor_daniel_forward.1} parent=11 // pred_check
        %p1113 = pneg %p350
      $region18: #{meta_actor_daniel_forward.1} parent=11 // pred_check_branch
        %1115 = sbr.rel (%p1113) target = $region20
      $region19: #{meta_actor_daniel_forward.1} parent=11 // pred_region
        _
      $region20: #{meta_actor_daniel_forward.1} parent=11 // pred_fallthru
        _
      // Predicated region
      $region21: #{meta_actor_daniel_forward.1} parent=11 // pred_check
        %p1116 = pneg %p371
      $region22: #{meta_actor_daniel_forward.1} parent=11 // pred_check_branch
        %1118 = sbr.rel (%p1116) target = $region24
      $region23: #{meta_actor_daniel_forward.1} parent=11 // pred_region
        _
      $region24: #{meta_actor_daniel_forward.1} parent=11 // pred_fallthru
        _
      // Predicated region
      $region25: #{meta_actor_daniel_forward.1} parent=11 // pred_check
        %p1119 = pneg %p392
      $region26: #{meta_actor_daniel_forward.1} parent=11 // pred_check_branch
        %1121 = sbr.rel (%p1119) target = $region28
      $region27: #{meta_actor_daniel_forward.1} parent=11 // pred_region
        _
      $region28: #{meta_actor_daniel_forward.1} parent=11 // pred_fallthru
        _
      // Predicated region
      $region29: #{meta_actor_daniel_forward.1} parent=11 // pred_check
        %p1122 = pneg %p413
      $region30: #{meta_actor_daniel_forward.1} parent=11 // pred_check_branch
        %1124 = sbr.rel (%p1122) target = $region32
      $region31: #{meta_actor_daniel_forward.1} parent=11 // pred_region
        _
      $region32: #{meta_actor_daniel_forward.1} parent=11 // pred_fallthru
        _
      // Predicated region
      $region33: #{meta_actor_daniel_forward.1} parent=11 // pred_check
        %p1125 = pneg %p434
      $region34: #{meta_actor_daniel_forward.1} parent=11 // pred_check_branch
        %1127 = sbr.rel (%p1125) target = $region36
      $region35: #{meta_actor_daniel_forward.1} parent=11 // pred_region
        _
      $region36: #{meta_actor_daniel_forward.1} parent=11 // pred_fallthru
        _
      // Predicated region
      $region37: #{meta_actor_daniel_forward.1} parent=11 // pred_check
        %p1128 = pneg %p455
      $region38: #{meta_actor_daniel_forward.1} parent=11 // pred_check_branch
        %1130 = sbr.rel (%p1128) target = $region40
      $region39: #{meta_actor_daniel_forward.1} parent=11 // pred_region
        _
      $region40: #{meta_actor_daniel_forward.1} parent=11 // pred_fallthru
        _
      // Predicated region
      $region41: #{meta_actor_daniel_forward.1} parent=11 // pred_check
        %p1131 = pneg %p476
      $region42: #{meta_actor_daniel_forward.1} parent=11 // pred_check_branch
        %1133 = sbr.rel (%p1131) target = $region44
      $region43: #{meta_actor_daniel_forward.1} parent=11 // pred_region
        _
      $region44: #{meta_actor_daniel_forward.1} parent=11 // pred_fallthru
        _
      // Predicated region
      $region45: #{meta_actor_daniel_forward.1} parent=11 // pred_check
        %p1134 = pneg %p497
      $region46: #{meta_actor_daniel_forward.1} parent=11 // pred_check_branch
        %1136 = sbr.rel (%p1134) target = $region48
      $region47: #{meta_actor_daniel_forward.1} parent=11 // pred_region
        _
      $region48: #{meta_actor_daniel_forward.1} parent=11 // pred_fallthru
        _
      // Predicated region
      $region49: #{meta_actor_daniel_forward.1} parent=11 // pred_check
        %p1137 = pneg %p518
      $region50: #{meta_actor_daniel_forward.1} parent=11 // pred_check_branch
        %1139 = sbr.rel (%p1137) target = $region52
      $region51: #{meta_actor_daniel_forward.1} parent=11 // pred_region
        _
      $region52: #{meta_actor_daniel_forward.1} parent=11 // pred_fallthru
        _
      // Predicated region
      $region53: #{meta_actor_daniel_forward.1} parent=11 // pred_check
        %p1140 = pneg %p539
      $region54: #{meta_actor_daniel_forward.1} parent=11 // pred_check_branch
        %1142 = sbr.rel (%p1140) target = $region56
      $region55: #{meta_actor_daniel_forward.1} parent=11 // pred_region
        _
      $region56: #{meta_actor_daniel_forward.1} parent=11 // pred_fallthru
        _
      // Predicated region
      $region57: #{meta_actor_daniel_forward.1} parent=11 // pred_check
        %p1143 = pneg %p560
      $region58: #{meta_actor_daniel_forward.1} parent=11 // pred_check_branch
        %1145 = sbr.rel (%p1143) target = $region60
      $region59: #{meta_actor_daniel_forward.1} parent=11 // pred_region
        _
      $region60: #{meta_actor_daniel_forward.1} parent=11 // pred_fallthru
        _
      // Predicated region
      $region61: #{meta_actor_daniel_forward.1} parent=11 // pred_check
        %p1146 = pneg %p581
      $region62: #{meta_actor_daniel_forward.1} parent=11 // pred_check_branch
        %1148 = sbr.rel (%p1146) target = $region64
      $region63: #{meta_actor_daniel_forward.1} parent=11 // pred_region
        _
      $region64: #{meta_actor_daniel_forward.1} parent=11 // pred_fallthru
        _
      // Predicated region
      $region65: #{meta_actor_daniel_forward.1} parent=11 // pred_check
        %p1149 = pneg %p602
      $region66: #{meta_actor_daniel_forward.1} parent=11 // pred_check_branch
        %1151 = sbr.rel (%p1149) target = $region68
      $region67: #{meta_actor_daniel_forward.1} parent=11 // pred_region
        _
      $region68: #{meta_actor_daniel_forward.1} parent=11 // pred_fallthru
        _
      // Predicated region
      $region69: #{meta_actor_daniel_forward.1} parent=11 // pred_check
        %p1152 = pneg %p623
      $region70: #{meta_actor_daniel_forward.1} parent=11 // pred_check_branch
        %1154 = sbr.rel (%p1152) target = $region72
      $region71: #{meta_actor_daniel_forward.1} parent=11 // pred_region
        _
      $region72: #{meta_actor_daniel_forward.1} parent=11 // pred_fallthru
        _
      // Predicated region
      $region73: #{meta_actor_daniel_forward.1} parent=11 // pred_check
        %p1155 = pneg %p644
      $region74: #{meta_actor_daniel_forward.1} parent=11 // pred_check_branch
        %1157 = sbr.rel (%p1155) target = $region76
      $region75: #{meta_actor_daniel_forward.1} parent=11 // pred_region
        _
      $region76: #{meta_actor_daniel_forward.1} parent=11 // pred_fallthru
        _
      // Predicated region
      $region77: #{meta_actor_daniel_forward.1} parent=11 // pred_check
        %p1158 = pneg %p665
      $region78: #{meta_actor_daniel_forward.1} parent=11 // pred_check_branch
        %1160 = sbr.rel (%p1158) target = $region80
      $region79: #{meta_actor_daniel_forward.1} parent=11 // pred_region
        _
      $region80: #{meta_actor_daniel_forward.1} parent=11 // pred_fallthru
        _
      // Predicated region
      $region81: #{meta_actor_daniel_forward.1} parent=11 // pred_check
        %p1161 = pneg %p686
      $region82: #{meta_actor_daniel_forward.1} parent=11 // pred_check_branch
        %1163 = sbr.rel (%p1161) target = $region84
      $region83: #{meta_actor_daniel_forward.1} parent=11 // pred_region
        _
      $region84: #{meta_actor_daniel_forward.1} parent=11 // pred_fallthru
        _
      // Predicated region
      $region85: #{meta_actor_daniel_forward.1} parent=11 // pred_check
        %p1164 = pneg %p707
      $region86: #{meta_actor_daniel_forward.1} parent=11 // pred_check_branch
        %1166 = sbr.rel (%p1164) target = $region88
      $region87: #{meta_actor_daniel_forward.1} parent=11 // pred_region
        _
      $region88: #{meta_actor_daniel_forward.1} parent=11 // pred_fallthru
        _
      // Predicated region
      $region89: #{meta_actor_daniel_forward.1} parent=11 // pred_check
        %p1167 = pneg %p728
      $region90: #{meta_actor_daniel_forward.1} parent=11 // pred_check_branch
        %1169 = sbr.rel (%p1167) target = $region92
      $region91: #{meta_actor_daniel_forward.1} parent=11 // pred_region
        _
      $region92: #{meta_actor_daniel_forward.1} parent=11 // pred_fallthru
        _
      // Predicated region
      $region93: #{meta_actor_daniel_forward.1} parent=11 // pred_check
        %p1170 = pneg %p749
      $region94: #{meta_actor_daniel_forward.1} parent=11 // pred_check_branch
        %1172 = sbr.rel (%p1170) target = $region96
      $region95: #{meta_actor_daniel_forward.1} parent=11 // pred_region
        _
      $region96: #{meta_actor_daniel_forward.1} parent=11 // pred_fallthru
        _
      // Predicated region
      $region97: #{meta_actor_daniel_forward.1} parent=11 // pred_check
        %p1173 = pneg %p770
      $region98: #{meta_actor_daniel_forward.1} parent=11 // pred_check_branch
        %1175 = sbr.rel (%p1173) target = $region100
      $region99: #{meta_actor_daniel_forward.1} parent=11 // pred_region
        _
      $region100: #{meta_actor_daniel_forward.1} parent=11 // pred_fallthru
        _
      // Predicated region
      $region101: #{meta_actor_daniel_forward.1} parent=11 // pred_check
        %p1176 = pneg %p791
      $region102: #{meta_actor_daniel_forward.1} parent=11 // pred_check_branch
        %1178 = sbr.rel (%p1176) target = $region104
      $region103: #{meta_actor_daniel_forward.1} parent=11 // pred_region
        _
      $region104: #{meta_actor_daniel_forward.1} parent=11 // pred_fallthru
        _
      // Predicated region
      $region105: #{meta_actor_daniel_forward.1} parent=11 // pred_check
        %p1179 = pneg %p812
      $region106: #{meta_actor_daniel_forward.1} parent=11 // pred_check_branch
        %1181 = sbr.rel (%p1179) target = $region108
      $region107: #{meta_actor_daniel_forward.1} parent=11 // pred_region
        _
      $region108: #{meta_actor_daniel_forward.1} parent=11 // pred_fallthru
        _
      // Predicated region
      $region109: #{meta_actor_daniel_forward.1} parent=11 // pred_check
        %p1182 = pneg %p833
      $region110: #{meta_actor_daniel_forward.1} parent=11 // pred_check_branch
        %1184 = sbr.rel (%p1182) target = $region112
      $region111: #{meta_actor_daniel_forward.1} parent=11 // pred_region
        _
      $region112: #{meta_actor_daniel_forward.1} parent=11 // pred_fallthru
        _
      // Predicated region
      $region113: #{meta_actor_daniel_forward.1} parent=11 // pred_check
        %p1185 = pneg %p854
      $region114: #{meta_actor_daniel_forward.1} parent=11 // pred_check_branch
        %1187 = sbr.rel (%p1185) target = $region116
      $region115: #{meta_actor_daniel_forward.1} parent=11 // pred_region
        _
      $region116: #{meta_actor_daniel_forward.1} parent=11 // pred_fallthru
        _
      // Predicated region
      $region117: #{meta_actor_daniel_forward.1} parent=11 // pred_check
        %p1188 = pneg %p875
      $region118: #{meta_actor_daniel_forward.1} parent=11 // pred_check_branch
        %1190 = sbr.rel (%p1188) target = $region120
      $region119: #{meta_actor_daniel_forward.1} parent=11 // pred_region
        _
      $region120: #{meta_actor_daniel_forward.1} parent=11 // pred_fallthru
        _
      // Predicated region
      $region121: #{meta_actor_daniel_forward.1} parent=11 // pred_check
        %p1191 = pneg %p896
      $region122: #{meta_actor_daniel_forward.1} parent=11 // pred_check_branch
        %1193 = sbr.rel (%p1191) target = $region124
      $region123: #{meta_actor_daniel_forward.1} parent=11 // pred_region
        _
      $region124: #{meta_actor_daniel_forward.1} parent=11 // pred_fallthru
        _
      // Predicated region
      $region125: #{meta_actor_daniel_forward.1} parent=11 // pred_check
        %p1194 = pneg %p917
      $region126: #{meta_actor_daniel_forward.1} parent=11 // pred_check_branch
        %1196 = sbr.rel (%p1194) target = $region128
      $region127: #{meta_actor_daniel_forward.1} parent=11 // pred_region
        _
      $region128: #{meta_actor_daniel_forward.1} parent=11 // pred_fallthru
        _
      // Predicated region
      $region129: #{meta_actor_daniel_forward.1} parent=11 // pred_check
        %p1197 = pneg %p938
      $region130: #{meta_actor_daniel_forward.1} parent=11 // pred_check_branch
        %1199 = sbr.rel (%p1197) target = $region132
      $region131: #{meta_actor_daniel_forward.1} parent=11 // pred_region
        _
      $region132: #{meta_actor_daniel_forward.1} parent=11 // pred_fallthru
        _
      // Predicated region
      $region133: #{meta_actor_daniel_forward.1} parent=11 // pred_check
        %p1200 = pneg %p959
      $region134: #{meta_actor_daniel_forward.1} parent=11 // pred_check_branch
        %1202 = sbr.rel (%p1200) target = $region136
      $region135: #{meta_actor_daniel_forward.1} parent=11 // pred_region
        _
      $region136: #{meta_actor_daniel_forward.1} parent=11 // pred_fallthru
        _
      // Predicated region
      $region137: #{meta_actor_daniel_forward.1} parent=11 // pred_check
        %p1203 = pneg %p980
      $region138: #{meta_actor_daniel_forward.1} parent=11 // pred_check_branch
        %1205 = sbr.rel (%p1203) target = $region140
      $region139: #{meta_actor_daniel_forward.1} parent=11 // pred_region
        _
      $region140: #{meta_actor_daniel_forward.1} parent=11 // pred_fallthru
        _
      // Predicated region
      $region141: #{meta_actor_daniel_forward.1} parent=11 // pred_check
        %p1206 = pneg %p1001
      $region142: #{meta_actor_daniel_forward.1} parent=11 // pred_check_branch
        %1208 = sbr.rel (%p1206) target = $region144
      $region143: #{meta_actor_daniel_forward.1} parent=11 // pred_region
        _
      $region144: #{meta_actor_daniel_forward.1} parent=11 // pred_fallthru
        _
      // Predicated region
      $region145: #{meta_actor_daniel_forward.1} parent=11 // pred_check
        %p1209 = pneg %p1022
      $region146: #{meta_actor_daniel_forward.1} parent=11 // pred_check_branch
        %1211 = sbr.rel (%p1209) target = $region148
      $region147: #{meta_actor_daniel_forward.1} parent=11 // pred_region
        _
      $region148: #{meta_actor_daniel_forward.1} parent=11 // pred_fallthru
        _
      // Predicated region
      $region149: #{meta_actor_daniel_forward.1} parent=11 // pred_check
        %p1212 = pneg %p1043
      $region150: #{meta_actor_daniel_forward.1} parent=11 // pred_check_branch
        %1214 = sbr.rel (%p1212) target = $region152
      $region151: #{meta_actor_daniel_forward.1} parent=11 // pred_region
        _
      $region152: #{meta_actor_daniel_forward.1} parent=11 // pred_fallthru
        _
    $region12: #{meta_actor_daniel_forward.1} parent=5 // pred_fallthru
      _
    %p1215 = scmp.lt.s32.totalorder %s100, 2
    // Predicated region
    $region153: #{meta_actor_daniel_forward.1} parent=5 // pred_check
      %p1216 = pneg %p1215
    $region154: #{meta_actor_daniel_forward.1} parent=5 // pred_check_branch
      %1218 = sbr.rel (%p1216) target = $region156
    $region155: #{meta_actor_daniel_forward.1} parent=5 // pred_region
      // Predicated region
      $region157: #{meta_actor_daniel_forward.1} parent=155 // pred_check
        %p1219 = pneg %p120
      $region158: #{meta_actor_daniel_forward.1} parent=155 // pred_check_branch
        %1221 = sbr.rel (%p1219) target = $region160
      $region159: #{meta_actor_daniel_forward.1} parent=155 // pred_region
        %p1222 = scmp.lt.s32.totalorder %s100, 1
        %s1223 = scalar_select %p1222, %s100, 1
        %s1224 = smul.addr %s1223, 2
        %s1225 = smul.addr %s1224, 8
        %s1226 = scalar_lea.vmem %s1, %s1225
      $region160: #{meta_actor_daniel_forward.1} parent=155 // pred_fallthru
        _
      // Predicated region
      $region161: #{meta_actor_daniel_forward.1} parent=155 // pred_check
        %p1227 = pneg %p146
      $region162: #{meta_actor_daniel_forward.1} parent=155 // pred_check_branch
        %1229 = sbr.rel (%p1227) target = $region164
      $region163: #{meta_actor_daniel_forward.1} parent=155 // pred_region
        %p1230 = scmp.lt.s32.totalorder %s100, 1
        %s1231 = scalar_select %p1230, %s100, 1
        %s1232 = smul.addr %s1231, 2
        %s1233 = smul.addr %s1232, 8
        %s1234 = scalar_lea.vmem %s3, %s1233
      $region164: #{meta_actor_daniel_forward.1} parent=155 // pred_fallthru
        _
      // Predicated region
      $region165: #{meta_actor_daniel_forward.1} parent=155 // pred_check
        %p1235 = pneg %p172
      $region166: #{meta_actor_daniel_forward.1} parent=155 // pred_check_branch
        %1237 = sbr.rel (%p1235) target = $region168
      $region167: #{meta_actor_daniel_forward.1} parent=155 // pred_region
        %p1238 = scmp.lt.s32.totalorder %s100, 1
        %s1239 = scalar_select %p1238, %s100, 1
        %s1240 = smul.addr %s1239, 4
        %s1241 = scalar_lea.vmem %s5, %s1240
      $region168: #{meta_actor_daniel_forward.1} parent=155 // pred_fallthru
        _
      // Predicated region
      $region169: #{meta_actor_daniel_forward.1} parent=155 // pred_check
        %p1242 = pneg %p198
      $region170: #{meta_actor_daniel_forward.1} parent=155 // pred_check_branch
        %1244 = sbr.rel (%p1242) target = $region172
      $region171: #{meta_actor_daniel_forward.1} parent=155 // pred_region
        %p1245 = scmp.lt.s32.totalorder %s100, 1
        %s1246 = scalar_select %p1245, %s100, 1
        %s1247 = smul.addr %s1246, 4
        %s1248 = scalar_lea.vmem %s7, %s1247
      $region172: #{meta_actor_daniel_forward.1} parent=155 // pred_fallthru
        _
      // Predicated region
      $region173: #{meta_actor_daniel_forward.1} parent=155 // pred_check
        %p1249 = pneg %p224
      $region174: #{meta_actor_daniel_forward.1} parent=155 // pred_check_branch
        %1251 = sbr.rel (%p1249) target = $region176
      $region175: #{meta_actor_daniel_forward.1} parent=155 // pred_region
        %p1252 = scmp.lt.s32.totalorder %s100, 1
        %s1253 = scalar_select %p1252, %s100, 1
        %s1254 = smul.addr %s1253, 2
        %s1255 = smul.addr %s1254, 8
        %s1256 = scalar_lea.vmem %s9, %s1255
      $region176: #{meta_actor_daniel_forward.1} parent=155 // pred_fallthru
        _
      // Predicated region
      $region177: #{meta_actor_daniel_forward.1} parent=155 // pred_check
        %p1257 = pneg %p250
      $region178: #{meta_actor_daniel_forward.1} parent=155 // pred_check_branch
        %1259 = sbr.rel (%p1257) target = $region180
      $region179: #{meta_actor_daniel_forward.1} parent=155 // pred_region
        %p1260 = scmp.lt.s32.totalorder %s100, 1
        %s1261 = scalar_select %p1260, %s100, 1
        %s1262 = smul.addr %s1261, 4
        %s1263 = scalar_lea.vmem %s11, %s1262
      $region180: #{meta_actor_daniel_forward.1} parent=155 // pred_fallthru
        _
      // Predicated region
      $region181: #{meta_actor_daniel_forward.1} parent=155 // pred_check
        %p1264 = pneg %p276
      $region182: #{meta_actor_daniel_forward.1} parent=155 // pred_check_branch
        %1266 = sbr.rel (%p1264) target = $region184
      $region183: #{meta_actor_daniel_forward.1} parent=155 // pred_region
        %p1267 = scmp.lt.s32.totalorder %s100, 1
        %s1268 = scalar_select %p1267, %s100, 1
        %s1269 = smul.addr %s1268, 2
        %s1270 = smul.addr %s1269, 8
        %s1271 = scalar_lea.vmem %s13, %s1270
      $region184: #{meta_actor_daniel_forward.1} parent=155 // pred_fallthru
        _
      // Predicated region
      $region185: #{meta_actor_daniel_forward.1} parent=155 // pred_check
        %p1272 = pneg %p302
      $region186: #{meta_actor_daniel_forward.1} parent=155 // pred_check_branch
        %1274 = sbr.rel (%p1272) target = $region188
      $region187: #{meta_actor_daniel_forward.1} parent=155 // pred_region
        %p1275 = scmp.lt.s32.totalorder %s100, 1
        %s1276 = scalar_select %p1275, %s100, 1
        %s1277 = smul.addr %s1276, 2
        %s1278 = smul.addr %s1277, 8
        %s1279 = scalar_lea.vmem %s15, %s1278
      $region188: #{meta_actor_daniel_forward.1} parent=155 // pred_fallthru
        _
    $region156: #{meta_actor_daniel_forward.1} parent=5 // pred_fallthru
      _
    %p1280 = scmp.le.s32.totalorder 1, %s100
    %p1281 = scmp.lt.s32.totalorder %s100, 3
    %p1282 = pnand %p1280, %p1281
    %p1283 = pneg %p1282
    // Predicated region
    $region189: #{meta_actor_daniel_forward.1} parent=5 // pred_check
      _
    $region190: #{meta_actor_daniel_forward.1} parent=5 // pred_check_branch
      %1285 = sbr.rel (%p1282) target = $region192
    $region191: #{meta_actor_daniel_forward.1} parent=5 // pred_region
      %s1286 = ssub.s32 %s100, 1
      %p1287 = scmp.lt.s32.totalorder %s105, 1
      %s1288 = scalar_select %p1287, %s105, 1
      %s1289 = smul.addr %s1288, 2
      %s1290 = smul.addr %s1289, 8
      %s1291 = scalar_lea.vmem %s1, %s1290
      %p1292 = pneg %p126
      %p1293 = pneg %p123
      %p1294 = scmp.lt.s32.totalorder %s105, 1
      %s1295 = scalar_select %p1294, %s105, 1
      %s1296 = smul.addr %s1295, 2
      %s1297 = smul.addr %s1296, 8
      %s1298 = scalar_lea.vmem %s3, %s1297
      %p1299 = pneg %p152
      %p1300 = pneg %p149
      %p1301 = scmp.lt.s32.totalorder %s105, 1
      %s1302 = scalar_select %p1301, %s105, 1
      %s1303 = smul.addr %s1302, 4
      %s1304 = scalar_lea.vmem %s5, %s1303
      %p1305 = pneg %p178
      %p1306 = pneg %p175
      %p1307 = scmp.lt.s32.totalorder %s105, 1
      %s1308 = scalar_select %p1307, %s105, 1
      %s1309 = smul.addr %s1308, 4
      %s1310 = scalar_lea.vmem %s7, %s1309
      %p1311 = pneg %p204
      %p1312 = pneg %p201
      %p1313 = scmp.lt.s32.totalorder %s105, 1
      %s1314 = scalar_select %p1313, %s105, 1
      %s1315 = smul.addr %s1314, 2
      %s1316 = smul.addr %s1315, 8
      %s1317 = scalar_lea.vmem %s9, %s1316
      %p1318 = pneg %p230
      %p1319 = pneg %p227
      %p1320 = scmp.lt.s32.totalorder %s105, 1
      %s1321 = scalar_select %p1320, %s105, 1
      %s1322 = smul.addr %s1321, 4
      %s1323 = scalar_lea.vmem %s11, %s1322
      %p1324 = pneg %p256
      %p1325 = pneg %p253
      %p1326 = scmp.lt.s32.totalorder %s105, 1
      %s1327 = scalar_select %p1326, %s105, 1
      %s1328 = smul.addr %s1327, 2
      %s1329 = smul.addr %s1328, 8
      %s1330 = scalar_lea.vmem %s13, %s1329
      %p1331 = pneg %p282
      %p1332 = pneg %p279
      %p1333 = scmp.lt.s32.totalorder %s105, 1
      %s1334 = scalar_select %p1333, %s105, 1
      %s1335 = smul.addr %s1334, 2
      %s1336 = smul.addr %s1335, 8
      %s1337 = scalar_lea.vmem %s15, %s1336
      %p1338 = pneg %p308
      %p1339 = pneg %p305
      %p1340 = pneg %p329
      %p1341 = pneg %p326
      %p1342 = pneg %p350
      %p1343 = pneg %p347
      %p1344 = pneg %p371
      %p1345 = pneg %p368
      %p1346 = pneg %p392
      %p1347 = pneg %p389
      %p1348 = pneg %p413
      %p1349 = pneg %p410
      %p1350 = pneg %p434
      %p1351 = pneg %p431
      %p1352 = pneg %p455
      %p1353 = pneg %p452
      %p1354 = pneg %p476
      %p1355 = pneg %p473
      %p1356 = pneg %p497
      %p1357 = pneg %p494
      %p1358 = pneg %p518
      %p1359 = pneg %p515
      %p1360 = pneg %p539
      %p1361 = pneg %p536
      %p1362 = pneg %p560
      %p1363 = pneg %p557
      %p1364 = pneg %p581
      %p1365 = pneg %p578
      %p1366 = pneg %p602
      %p1367 = pneg %p599
      %p1368 = pneg %p623
      %p1369 = pneg %p620
      %p1370 = pneg %p644
      %p1371 = pneg %p641
      %p1372 = pneg %p665
      %p1373 = pneg %p662
      %p1374 = pneg %p686
      %p1375 = pneg %p683
      %p1376 = pneg %p707
      %p1377 = pneg %p704
      %p1378 = pneg %p728
      %p1379 = pneg %p725
      %p1380 = pneg %p749
      %p1381 = pneg %p746
      %p1382 = pneg %p770
      %p1383 = pneg %p767
      %p1384 = pneg %p791
      %p1385 = pneg %p788
      %p1386 = pneg %p812
      %p1387 = pneg %p809
      %p1388 = pneg %p833
      %p1389 = pneg %p830
      %p1390 = pneg %p854
      %p1391 = pneg %p851
      %p1392 = pneg %p875
      %p1393 = pneg %p872
      %p1394 = pneg %p896
      %p1395 = pneg %p893
      %p1396 = pneg %p917
      %p1397 = pneg %p914
      %p1398 = pneg %p938
      %p1399 = pneg %p935
      %p1400 = pneg %p959
      %p1401 = pneg %p956
      %p1402 = pneg %p980
      %p1403 = pneg %p977
      %p1404 = pneg %p1001
      %p1405 = pneg %p998
      %p1406 = pneg %p1022
      %p1407 = pneg %p1019
      %p1408 = pneg %p1043
      %p1409 = pneg %p1040
      %p1410 = pneg %p1069
      %p1411 = pneg %p1066
      %p1412 = scmp.lt.s32.totalorder %s105, 1
      %s1413 = scalar_select %p1412, %s105, 1
      %s1414 = smul.addr %s1413, 2
      %s1415 = smul.addr %s1414, 8
      %s1416 = scalar_lea.vmem %s87, %s1415
      %p1417 = pneg %p1095
      %p1418 = pneg %p1092
      %p1419 = scmp.lt.s32.totalorder %s105, 1
      %s1420 = scalar_select %p1419, %s105, 1
      %s1421 = scalar_lea.vmem %s89, %s1420
      %p1422 = scmp.lt.s32.totalorder %s105, 1
      %s1423 = scalar_select %p1422, %s105, 1
      %s1424 = smul.addr %s1423, 2
      %s1425 = smul.addr %s1424, 8
      %s1426 = scalar_lea.vmem %s1, %s1425
      %p1427 = scmp.lt.s32.totalorder %s105, 1
      %s1428 = scalar_select %p1427, %s105, 1
      %s1429 = smul.addr %s1428, 2
      %s1430 = smul.addr %s1429, 8
      %s1431 = scalar_lea.vmem %s3, %s1430
      %p1432 = scmp.lt.s32.totalorder %s105, 1
      %s1433 = scalar_select %p1432, %s105, 1
      %s1434 = smul.addr %s1433, 4
      %s1435 = scalar_lea.vmem %s5, %s1434
      %p1436 = scmp.lt.s32.totalorder %s105, 1
      %s1437 = scalar_select %p1436, %s105, 1
      %s1438 = smul.addr %s1437, 4
      %s1439 = scalar_lea.vmem %s7, %s1438
      %p1440 = scmp.lt.s32.totalorder %s105, 1
      %s1441 = scalar_select %p1440, %s105, 1
      %s1442 = smul.addr %s1441, 2
      %s1443 = smul.addr %s1442, 8
      %s1444 = scalar_lea.vmem %s9, %s1443
      %p1445 = scmp.lt.s32.totalorder %s105, 1
      %s1446 = scalar_select %p1445, %s105, 1
      %s1447 = smul.addr %s1446, 4
      %s1448 = scalar_lea.vmem %s11, %s1447
      %p1449 = scmp.lt.s32.totalorder %s105, 1
      %s1450 = scalar_select %p1449, %s105, 1
      %s1451 = smul.addr %s1450, 2
      %s1452 = smul.addr %s1451, 8
      %s1453 = scalar_lea.vmem %s13, %s1452
      %p1454 = scmp.lt.s32.totalorder %s105, 1
      %s1455 = scalar_select %p1454, %s105, 1
      %s1456 = smul.addr %s1455, 2
      %s1457 = smul.addr %s1456, 8
      %s1458 = scalar_lea.vmem %s15, %s1457
      %p1459 = scmp.lt.s32.totalorder %s105, 1
      %s1460 = scalar_select %p1459, %s105, 1
      %s1461 = smul.addr %s1460, 2
      %s1462 = smul.addr %s1461, 8
      %s1463 = scalar_lea.vmem %s87, %s1462
      %p1464 = scmp.lt.s32.totalorder %s105, 1
      %s1465 = scalar_select %p1464, %s105, 1
      %s1466 = scalar_lea.vmem %s89, %s1465
      %v1467 = vld [vmem:[%s1448] sm:$0xf]
      %v1468 = vld [vmem:[%s1431] sm:$0xff]
      %v1469 = vld [vmem:[%s1431 + $0x8] sm:$0xff]
      %v1470 = vld [vmem:[%s1439] sm:$0xf]
      %v1471 = vlaneseq
      %v1472 = vshrl.u32 %v1471, 7
      %v1473 = vsub.s32 0, %v1472
      %v1474 = vrot.slane %v1470, %v1473
      %1476 = vbcast.lane.b32.xlu0 %v1474, 256
      %v1477 = vpop.permute.xlu0 %1476
      %v1478 = vlaneseq
      %v1479 = vshrl.u32 %v1478, 7
      %v1480 = vsub.s32 1, %v1479
      %v1481 = vrot.slane %v1470, %v1480
      %1483 = vbcast.lane.b32.xlu0 %v1481, 256
      %v1484 = vpop.permute.xlu0 %1483
      %v1485 = vlaneseq
      %v1486 = vshrl.u32 %v1485, 7
      %v1487 = vsub.s32 2, %v1486
      %v1488 = vrot.slane %v1470, %v1487
      %1490 = vbcast.lane.b32.xlu0 %v1488, 256
      %v1491 = vpop.permute.xlu0 %1490
      %v1492 = vlaneseq
      %v1493 = vshrl.u32 %v1492, 7
      %v1494 = vsub.s32 3, %v1493
      %v1495 = vrot.slane %v1470, %v1494
      %1497 = vbcast.lane.b32.xlu0 %v1495, 256
      %v1498 = vpop.permute.xlu0 %1497
      %v1499 = vld [vmem:[%s1444] sm:$0xff]
      %v1500 = vld [vmem:[%s1444 + $0x8] sm:$0xff]
      %v1501 = vld [vmem:[%s1426] sm:$0xff]
      %v1502 = vld [vmem:[%s1426 + $0x8] sm:$0xff]
      %v1503 = vld [vmem:[%s1435] sm:$0xf]
      %vm1504 = vcmask 130048
      %v1506 = vsel %vm1504, %v1467, 0
      %1508 = vmatprep.subr.mxu0 0.0
      %1509 = vmatpush1.msra.mxu0 0.0
      %1510 = vmatprep.subr.mxu0 0.0
      %1511 = vmatpush1.msra.mxu0 0.0
      %1512 = vmatprep.subr.mxu0 0.0
      %1513 = vmatpush1.msra.mxu0 0.0
      %1514 = vmatprep.subr.mxu0 0.0
      %1515 = vmatpush1.msra.mxu0 0.0
      %1516 = vmatprep.subr.mxu0 0.0
      %1517 = vmatpush1.msra.mxu0 0.0
      %1518 = vmatprep.subr.mxu0 0.0
      %1519 = vmatpush1.msra.mxu0 0.0
      %1520 = vmatprep.subr.mxu0 0.0
      %1521 = vmatpush1.msra.mxu0 0.0
      %1522 = vmatprep.subr.mxu0 0.0
      %1523 = vmatpush1.msra.mxu0 0.0
      %1524 = vmatprep.subr.mxu0 0.0
      %1525 = vmatpush1.msra.mxu0 0.0
      %1526 = vmatprep.subr.mxu0 0.0
      %1527 = vmatpush1.msra.mxu0 0.0
      %1528 = vmatprep.subr.mxu0 0.0
      %1529 = vmatpush1.msra.mxu0 0.0
      %1530 = vmatprep.subr.mxu0 0.0
      %1531 = vmatpush1.msra.mxu0 0.0
      %1532 = vmatprep.subr.mxu0 0.0
      %1533 = vmatpush1.msra.mxu0 0.0
      %1534 = vmatprep.subr.mxu0 0.0
      %1535 = vmatpush1.msra.mxu0 0.0
      %1536 = vmatprep.subr.mxu0 0.0
      %1537 = vmatpush1.msra.mxu0 %v1502
      %1538 = vmatprep.subr.mxu0 0.0
      %1539 = vmatpush1.msra.mxu0 %v1501
      %1540 = vmatprep.subr.mxu0 0.0
      %1541 = vmatpush2.msra.mxu0 0.0
      %1542 = vmatprep.subr.mxu0 0.0
      %1543 = vmatpush2.msra.mxu0 0.0
      %1544 = vmatprep.subr.mxu0 0.0
      %1545 = vmatpush2.msra.mxu0 0.0
      %1546 = vmatprep.subr.mxu0 0.0
      %1547 = vmatpush2.msra.mxu0 0.0
      %1548 = vmatprep.subr.mxu0 0.0
      %1549 = vmatpush2.msra.mxu0 0.0
      %1550 = vmatprep.subr.mxu0 0.0
      %1551 = vmatpush2.msra.mxu0 0.0
      %1552 = vmatprep.subr.mxu0 0.0
      %1553 = vmatpush2.msra.mxu0 0.0
      %1554 = vmatprep.subr.mxu0 0.0
      %1555 = vmatpush2.msra.mxu0 0.0
      %1556 = vmatprep.subr.mxu0 0.0
      %1557 = vmatpush2.msra.mxu0 0.0
      %1558 = vmatprep.subr.mxu0 0.0
      %1559 = vmatpush2.msra.mxu0 0.0
      %1560 = vmatprep.subr.mxu0 0.0
      %1561 = vmatpush2.msra.mxu0 0.0
      %1562 = vmatprep.subr.mxu0 0.0
      %1563 = vmatpush2.msra.mxu0 0.0
      %1564 = vmatprep.subr.mxu0 0.0
      %1565 = vmatpush2.msra.mxu0 0.0
      %1566 = vmatprep.subr.mxu0 0.0
      %1567 = vmatpush2.msra.mxu0 0.0
      %1568 = vmatprep.subr.mxu0 0.0
      %1569 = vmatpush2.msra.mxu0 0.0
      %1570 = vmatprep.subr.mxu0 0.0
      %1571 = vmatpush2.msra.mxu0 0.0
      %1572 = vmatprep.mubr.f32.mxu0 0.0
      %1573 = vmatmul.mubr.f32.gmra.mxu0 %v1506
      %v1574 = vpop.f32.mrf.mxu0
      %v1575 = vadd.f32 0.0, %v1574
      %v1576 = vpop.f32.mrf.mxu0
      %1577 = vdwg.mxu0
      %v1578 = vld [vmem:[%s17] sm:$0xff]
      %vm1579 = vcmask 64512
      %v1581 = vsel %vm1579, %v1501, 0
      %v1584 = vsel %vm1579, %v1502, 0
      %1586 = vmatprep.subr.mxu0 0.0
      %1587 = vmatpush1.msra.mxu0 0.0
      %1588 = vmatprep.subr.mxu0 0.0
      %1589 = vmatpush1.msra.mxu0 0.0
      %1590 = vmatprep.subr.mxu0 0.0
      %1591 = vmatpush1.msra.mxu0 0.0
      %1592 = vmatprep.subr.mxu0 0.0
      %1593 = vmatpush1.msra.mxu0 0.0
      %1594 = vmatprep.subr.mxu0 0.0
      %1595 = vmatpush1.msra.mxu0 0.0
      %1596 = vmatprep.subr.mxu0 0.0
      %1597 = vmatpush1.msra.mxu0 0.0
      %1598 = vmatprep.subr.mxu0 0.0
      %1599 = vmatpush1.msra.mxu0 0.0
      %1600 = vmatprep.subr.mxu0 0.0
      %1601 = vmatpush1.msra.mxu0 0.0
      %1602 = vmatprep.subr.mxu0 0.0
      %1603 = vmatpush1.msra.mxu0 0.0
      %1604 = vmatprep.subr.mxu0 0.0
      %1605 = vmatpush1.msra.mxu0 0.0
      %1606 = vmatprep.subr.mxu0 0.0
      %1607 = vmatpush1.msra.mxu0 0.0
      %1608 = vmatprep.subr.mxu0 0.0
      %1609 = vmatpush1.msra.mxu0 0.0
      %1610 = vmatprep.subr.mxu0 0.0
      %1611 = vmatpush1.msra.mxu0 0.0
      %1612 = vmatprep.subr.mxu0 0.0
      %1613 = vmatpush1.msra.mxu0 0.0
      %1614 = vmatprep.subr.mxu0 0.0
      %1615 = vmatpush1.msra.mxu0 0.0
      %1616 = vmatprep.subr.mxu0 0.0
      %1617 = vmatpush1.msra.mxu0 %v1578
      %1618 = vmatprep.subr.mxu0 0.0
      %1619 = vmatpush2.msra.mxu0 0.0
      %1620 = vmatprep.subr.mxu0 0.0
      %1621 = vmatpush2.msra.mxu0 0.0
      %1622 = vmatprep.subr.mxu0 0.0
      %1623 = vmatpush2.msra.mxu0 0.0
      %1624 = vmatprep.subr.mxu0 0.0
      %1625 = vmatpush2.msra.mxu0 0.0
      %1626 = vmatprep.subr.mxu0 0.0
      %1627 = vmatpush2.msra.mxu0 0.0
      %1628 = vmatprep.subr.mxu0 0.0
      %1629 = vmatpush2.msra.mxu0 0.0
      %1630 = vmatprep.subr.mxu0 0.0
      %1631 = vmatpush2.msra.mxu0 0.0
      %1632 = vmatprep.subr.mxu0 0.0
      %1633 = vmatpush2.msra.mxu0 0.0
      %1634 = vmatprep.subr.mxu0 0.0
      %1635 = vmatpush2.msra.mxu0 0.0
      %1636 = vmatprep.subr.mxu0 0.0
      %1637 = vmatpush2.msra.mxu0 0.0
      %1638 = vmatprep.subr.mxu0 0.0
      %1639 = vmatpush2.msra.mxu0 0.0
      %1640 = vmatprep.subr.mxu0 0.0
      %1641 = vmatpush2.msra.mxu0 0.0
      %1642 = vmatprep.subr.mxu0 0.0
      %1643 = vmatpush2.msra.mxu0 0.0
      %1644 = vmatprep.subr.mxu0 0.0
      %1645 = vmatpush2.msra.mxu0 0.0
      %1646 = vmatprep.subr.mxu0 0.0
      %1647 = vmatpush2.msra.mxu0 0.0
      %1648 = vmatprep.subr.mxu0 0.0
      %1649 = vmatpush2.msra.mxu0 0.0
      %1650 = vmatprep.mubr.f32.mxu0 0.0
      %1651 = vmatmul.mubr.f32.gmra.mxu0 %v1581
      %v1652 = vpop.f32.mrf.mxu0
      %v1653 = vadd.f32 0.0, %v1652
      %v1654 = vpop.f32.mrf.mxu0
      %1655 = vmatprep.mubr.f32.mxu0 0.0
      %1656 = vmatmul.mubr.f32.gmra.mxu0 %v1584
      %v1657 = vpop.f32.mrf.mxu0
      %v1658 = vadd.f32 0.0, %v1657
      %v1659 = vpop.f32.mrf.mxu0
      %1660 = vdwg.mxu0
      %v1661 = vld [vmem:[%s19] sm:$0xff]
      %v1662 = vld [vmem:[%s19 + $0x8] sm:$0xff]
      %v1663 = vld [vmem:[%s19 + $0x10] sm:$0xff]
      %v1664 = vld [vmem:[%s19 + $0x18] sm:$0xff]
      %vm1665 = vcmask 261120
      %v1667 = vsel %vm1665, %v1653, 0
      %v1670 = vsel %vm1665, %v1658, 0
      %1672 = vmatprep.subr.mxu0 0.0
      %1673 = vmatpush1.msra.mxu0 0.0
      %1674 = vmatprep.subr.mxu0 0.0
      %1675 = vmatpush1.msra.mxu0 0.0
      %1676 = vmatprep.subr.mxu0 0.0
      %1677 = vmatpush1.msra.mxu0 0.0
      %1678 = vmatprep.subr.mxu0 0.0
      %1679 = vmatpush1.msra.mxu0 0.0
      %1680 = vmatprep.subr.mxu0 0.0
      %1681 = vmatpush1.msra.mxu0 0.0
      %1682 = vmatprep.subr.mxu0 0.0
      %1683 = vmatpush1.msra.mxu0 0.0
      %1684 = vmatprep.subr.mxu0 0.0
      %1685 = vmatpush1.msra.mxu0 0.0
      %1686 = vmatprep.subr.mxu0 0.0
      %1687 = vmatpush1.msra.mxu0 0.0
      %1688 = vmatprep.subr.mxu0 0.0
      %1689 = vmatpush1.msra.mxu0 0.0
      %1690 = vmatprep.subr.mxu0 0.0
      %1691 = vmatpush1.msra.mxu0 0.0
      %1692 = vmatprep.subr.mxu0 0.0
      %1693 = vmatpush1.msra.mxu0 0.0
      %1694 = vmatprep.subr.mxu0 0.0
      %1695 = vmatpush1.msra.mxu0 0.0
      %1696 = vmatprep.subr.mxu0 0.0
      %1697 = vmatpush1.msra.mxu0 %v1664
      %1698 = vmatprep.subr.mxu0 0.0
      %1699 = vmatpush1.msra.mxu0 %v1663
      %1700 = vmatprep.subr.mxu0 0.0
      %1701 = vmatpush1.msra.mxu0 %v1662
      %1702 = vmatprep.subr.mxu0 0.0
      %1703 = vmatpush1.msra.mxu0 %v1661
      %1704 = vmatprep.subr.mxu0 0.0
      %1705 = vmatpush2.msra.mxu0 0.0
      %1706 = vmatprep.subr.mxu0 0.0
      %1707 = vmatpush2.msra.mxu0 0.0
      %1708 = vmatprep.subr.mxu0 0.0
      %1709 = vmatpush2.msra.mxu0 0.0
      %1710 = vmatprep.subr.mxu0 0.0
      %1711 = vmatpush2.msra.mxu0 0.0
      %1712 = vmatprep.subr.mxu0 0.0
      %1713 = vmatpush2.msra.mxu0 0.0
      %1714 = vmatprep.subr.mxu0 0.0
      %1715 = vmatpush2.msra.mxu0 0.0
      %1716 = vmatprep.subr.mxu0 0.0
      %1717 = vmatpush2.msra.mxu0 0.0
      %1718 = vmatprep.subr.mxu0 0.0
      %1719 = vmatpush2.msra.mxu0 0.0
      %1720 = vmatprep.subr.mxu0 0.0
      %1721 = vmatpush2.msra.mxu0 0.0
      %1722 = vmatprep.subr.mxu0 0.0
      %1723 = vmatpush2.msra.mxu0 0.0
      %1724 = vmatprep.subr.mxu0 0.0
      %1725 = vmatpush2.msra.mxu0 0.0
      %1726 = vmatprep.subr.mxu0 0.0
      %1727 = vmatpush2.msra.mxu0 0.0
      %1728 = vmatprep.subr.mxu0 0.0
      %1729 = vmatpush2.msra.mxu0 0.0
      %1730 = vmatprep.subr.mxu0 0.0
      %1731 = vmatpush2.msra.mxu0 0.0
      %1732 = vmatprep.subr.mxu0 0.0
      %1733 = vmatpush2.msra.mxu0 0.0
      %1734 = vmatprep.subr.mxu0 0.0
      %1735 = vmatpush2.msra.mxu0 0.0
      %1736 = vmatprep.mubr.f32.mxu0 0.0
      %1737 = vmatmul.mubr.f32.gmra.mxu0 %v1667
      %v1738 = vpop.f32.mrf.mxu0
      %v1739 = vadd.f32 0.0, %v1738
      %v1740 = vpop.f32.mrf.mxu0
      %1741 = vmatprep.mubr.f32.mxu0 0.0
      %1742 = vmatmul.mubr.f32.gmra.mxu0 %v1670
      %v1743 = vpop.f32.mrf.mxu0
      %v1744 = vadd.f32 0.0, %v1743
      %v1745 = vpop.f32.mrf.mxu0
      %1746 = vdwg.mxu0
      %v1747 = vld [vmem:[%s21] sm:$0xff]
      %v1748 = vld [vmem:[%s21 + $0x8] sm:$0xff]
      %v1749 = vld [vmem:[%s21 + $0x10] sm:$0xff]
      %v1750 = vld [vmem:[%s21 + $0x18] sm:$0xff]
      %1751 = vmatprep.subr.mxu0 0.0
      %1752 = vmatpush1.msra.mxu0 0.0
      %1753 = vmatprep.subr.mxu0 0.0
      %1754 = vmatpush1.msra.mxu0 0.0
      %1755 = vmatprep.subr.mxu0 0.0
      %1756 = vmatpush1.msra.mxu0 0.0
      %1757 = vmatprep.subr.mxu0 0.0
      %1758 = vmatpush1.msra.mxu0 0.0
      %1759 = vmatprep.subr.mxu0 0.0
      %1760 = vmatpush1.msra.mxu0 0.0
      %1761 = vmatprep.subr.mxu0 0.0
      %1762 = vmatpush1.msra.mxu0 0.0
      %1763 = vmatprep.subr.mxu0 0.0
      %1764 = vmatpush1.msra.mxu0 0.0
      %1765 = vmatprep.subr.mxu0 0.0
      %1766 = vmatpush1.msra.mxu0 0.0
      %1767 = vmatprep.subr.mxu0 0.0
      %1768 = vmatpush1.msra.mxu0 0.0
      %1769 = vmatprep.subr.mxu0 0.0
      %1770 = vmatpush1.msra.mxu0 0.0
      %1771 = vmatprep.subr.mxu0 0.0
      %1772 = vmatpush1.msra.mxu0 0.0
      %1773 = vmatprep.subr.mxu0 0.0
      %1774 = vmatpush1.msra.mxu0 0.0
      %1775 = vmatprep.subr.mxu0 0.0
      %1776 = vmatpush1.msra.mxu0 %v1750
      %1777 = vmatprep.subr.mxu0 0.0
      %1778 = vmatpush1.msra.mxu0 %v1749
      %1779 = vmatprep.subr.mxu0 0.0
      %1780 = vmatpush1.msra.mxu0 %v1748
      %1781 = vmatprep.subr.mxu0 0.0
      %1782 = vmatpush1.msra.mxu0 %v1747
      %1783 = vmatprep.subr.mxu0 0.0
      %1784 = vmatpush2.msra.mxu0 0.0
      %1785 = vmatprep.subr.mxu0 0.0
      %1786 = vmatpush2.msra.mxu0 0.0
      %1787 = vmatprep.subr.mxu0 0.0
      %1788 = vmatpush2.msra.mxu0 0.0
      %1789 = vmatprep.subr.mxu0 0.0
      %1790 = vmatpush2.msra.mxu0 0.0
      %1791 = vmatprep.subr.mxu0 0.0
      %1792 = vmatpush2.msra.mxu0 0.0
      %1793 = vmatprep.subr.mxu0 0.0
      %1794 = vmatpush2.msra.mxu0 0.0
      %1795 = vmatprep.subr.mxu0 0.0
      %1796 = vmatpush2.msra.mxu0 0.0
      %1797 = vmatprep.subr.mxu0 0.0
      %1798 = vmatpush2.msra.mxu0 0.0
      %1799 = vmatprep.subr.mxu0 0.0
      %1800 = vmatpush2.msra.mxu0 0.0
      %1801 = vmatprep.subr.mxu0 0.0
      %1802 = vmatpush2.msra.mxu0 0.0
      %1803 = vmatprep.subr.mxu0 0.0
      %1804 = vmatpush2.msra.mxu0 0.0
      %1805 = vmatprep.subr.mxu0 0.0
      %1806 = vmatpush2.msra.mxu0 0.0
      %1807 = vmatprep.subr.mxu0 0.0
      %1808 = vmatpush2.msra.mxu0 0.0
      %1809 = vmatprep.subr.mxu0 0.0
      %1810 = vmatpush2.msra.mxu0 0.0
      %1811 = vmatprep.subr.mxu0 0.0
      %1812 = vmatpush2.msra.mxu0 0.0
      %1813 = vmatprep.subr.mxu0 0.0
      %1814 = vmatpush2.msra.mxu0 0.0
      %1815 = vmatprep.mubr.f32.mxu0 0.0
      %1816 = vmatmul.mubr.f32.gmra.mxu0 %v1667
      %v1817 = vpop.f32.mrf.mxu0
      %v1818 = vadd.f32 0.0, %v1817
      %v1819 = vpop.f32.mrf.mxu0
      %1820 = vmatprep.mubr.f32.mxu0 0.0
      %1821 = vmatmul.mubr.f32.gmra.mxu0 %v1670
      %v1822 = vpop.f32.mrf.mxu0
      %v1823 = vadd.f32 0.0, %v1822
      %v1824 = vpop.f32.mrf.mxu0
      %1825 = vdwg.mxu0
      %v1826 = vrot.slane %v1653, 7
      %v1827 = vrot.slane %v1658, 7
      %v1828 = vlaneseq
      %v1829 = vshrl.u32 %v1828, 7
      %vm1830 = vcmp.lt.s32.totalorder %v1829, 1
      %v1831 = vsel %vm1830, %v1826, %v1827
      %v1832 = vsel %vm1830, %v1827, %v1826
      %v1833 = vrot.slane %v1653, 1
      %v1834 = vrot.slane %v1658, 1
      %vm1835 = vcmp.lt.s32.totalorder %v1829, 7
      %v1836 = vsel %vm1835, %v1833, %v1834
      %v1837 = vsel %vm1835, %v1834, %v1833
      %v1838 = vrot.slane %v1818, 7
      %v1839 = vrot.slane %v1823, 7
      %v1840 = vsel %vm1830, %v1838, %v1839
      %v1841 = vsel %vm1830, %v1839, %v1838
      %v1842 = vrot.slane %v1818, 1
      %v1843 = vrot.slane %v1823, 1
      %v1844 = vsel %vm1835, %v1842, %v1843
      %v1845 = vsel %vm1835, %v1843, %v1842
      %v1846 = vadd.f32 %v1739, %v1841
      %v1847 = vadd.f32 %v1744, %v1840
      %vm1848 = vcmp.gt.f32.partialorder %v1846, 0.0
      %vm1849 = vcmp.gt.f32.partialorder %v1847, 0.0
      %v1850 = vmul.f32 %v1846, 0.2
      %v1851 = vmul.f32 %v1847, 0.2
      %v1852 = vsel %vm1848, %v1846, %v1850
      %v1853 = vsel %vm1849, %v1847, %v1851
      %1855 = vset.pattern.permute.xlu0 0
      %1856 = vperm.xlu0 %1855, %v1468
      %v1857 = vpop.permute.xlu0 %1856
      %1860 = vset.pattern.permute.xlu0 0
      %1861 = vperm.xlu0 %1860, %v1469
      %v1862 = vpop.permute.xlu0 %1861
      %v1864 = vadd.f32 %v1852, %v1857
      %v1865 = vadd.f32 %v1853, %v1862
      %v1866 = vadd.f32 %v1739, %v1818
      %v1867 = vadd.f32 %v1744, %v1823
      %vm1868 = vcmp.gt.f32.partialorder %v1866, 0.0
      %vm1869 = vcmp.gt.f32.partialorder %v1867, 0.0
      %v1870 = vmul.f32 %v1866, 0.2
      %v1871 = vmul.f32 %v1867, 0.2
      %v1872 = vsel %vm1868, %v1866, %v1870
      %v1873 = vsel %vm1869, %v1867, %v1871
      %1874 = vset.pattern.permute.xlu0 1
      %1875 = vperm.xlu0 %1874, %v1468
      %v1876 = vpop.permute.xlu0 %1875
      %1878 = vset.pattern.permute.xlu0 1
      %1879 = vperm.xlu0 %1878, %v1469
      %v1880 = vpop.permute.xlu0 %1879
      %v1882 = vadd.f32 %v1872, %v1876
      %v1883 = vadd.f32 %v1873, %v1880
      %v1884 = vadd.f32 %v1739, %v1844
      %v1885 = vadd.f32 %v1744, %v1845
      %vm1886 = vcmp.gt.f32.partialorder %v1884, 0.0
      %vm1887 = vcmp.gt.f32.partialorder %v1885, 0.0
      %v1888 = vmul.f32 %v1884, 0.2
      %v1889 = vmul.f32 %v1885, 0.2
      %v1890 = vsel %vm1886, %v1884, %v1888
      %v1891 = vsel %vm1887, %v1885, %v1889
      %1892 = vset.pattern.permute.xlu0 2
      %1893 = vperm.xlu0 %1892, %v1468
      %v1894 = vpop.permute.xlu0 %1893
      %1896 = vset.pattern.permute.xlu0 2
      %1897 = vperm.xlu0 %1896, %v1469
      %v1898 = vpop.permute.xlu0 %1897
      %v1900 = vadd.f32 %v1890, %v1894
      %v1901 = vadd.f32 %v1891, %v1898
      %v1902 = vmax.f32 %v1864, %v1882
      %v1903 = vmax.f32 %v1865, %v1883
      %v1904 = vmax.f32 %v1902, %v1900
      %v1905 = vmax.f32 %v1903, %v1901
      %v1906 = vsub.f32 %v1864, %v1904
      %v1907 = vsub.f32 %v1865, %v1905
      %v1908 = vmul.f32 %v1906, 1.442695
      %v1909 = vpow.pop %v1908
      %v1910 = vmul.f32 %v1907, 1.442695
      %v1911 = vpow.pop %v1910
      %v1912 = vsub.f32 %v1882, %v1904
      %v1913 = vsub.f32 %v1883, %v1905
      %v1914 = vmul.f32 %v1912, 1.442695
      %v1915 = vpow.pop %v1914
      %v1916 = vmul.f32 %v1913, 1.442695
      %v1917 = vpow.pop %v1916
      %v1918 = vsub.f32 %v1900, %v1904
      %v1919 = vsub.f32 %v1901, %v1905
      %v1920 = vmul.f32 %v1918, 1.442695
      %v1921 = vpow.pop %v1920
      %v1922 = vmul.f32 %v1919, 1.442695
      %v1923 = vpow.pop %v1922
      %v1924 = vadd.f32 %v1909, %v1915
      %v1925 = vadd.f32 %v1911, %v1917
      %v1926 = vadd.f32 %v1924, %v1921
      %v1927 = vadd.f32 %v1925, %v1923
      %v1928 = vrcp.pop %v1926
      %v1929 = vrcp.pop %v1927
      %v1930 = vld [vmem:[%s23] sm:$0x3]
      %v1931 = vmul.f32 %v1909, %v1928
      %v1932 = vmul.f32 %v1911, %v1929
      %vm1933 = vcmask 15360
      %v1935 = vsel %vm1933, %v1931, 0
      %v1938 = vsel %vm1933, %v1932, 0
      %vm1940 = vcmask 1041408
      %v1942 = vsel %vm1940, %v1930, 0
      %1944 = vmatprep.subr.mxu0 0.0
      %1945 = vmatpush1.msra.mxu0 0.0
      %1946 = vmatprep.subr.mxu0 0.0
      %1947 = vmatpush1.msra.mxu0 0.0
      %1948 = vmatprep.subr.mxu0 0.0
      %1949 = vmatpush1.msra.mxu0 0.0
      %1950 = vmatprep.subr.mxu0 0.0
      %1951 = vmatpush1.msra.mxu0 0.0
      %1952 = vmatprep.subr.mxu0 0.0
      %1953 = vmatpush1.msra.mxu0 0.0
      %1954 = vmatprep.subr.mxu0 0.0
      %1955 = vmatpush1.msra.mxu0 0.0
      %1956 = vmatprep.subr.mxu0 0.0
      %1957 = vmatpush1.msra.mxu0 0.0
      %1958 = vmatprep.subr.mxu0 0.0
      %1959 = vmatpush1.msra.mxu0 0.0
      %1960 = vmatprep.subr.mxu0 0.0
      %1961 = vmatpush1.msra.mxu0 0.0
      %1962 = vmatprep.subr.mxu0 0.0
      %1963 = vmatpush1.msra.mxu0 0.0
      %1964 = vmatprep.subr.mxu0 0.0
      %1965 = vmatpush1.msra.mxu0 0.0
      %1966 = vmatprep.subr.mxu0 0.0
      %1967 = vmatpush1.msra.mxu0 0.0
      %1968 = vmatprep.subr.mxu0 0.0
      %1969 = vmatpush1.msra.mxu0 0.0
      %1970 = vmatprep.subr.mxu0 0.0
      %1971 = vmatpush1.msra.mxu0 0.0
      %1972 = vmatprep.subr.mxu0 0.0
      %1973 = vmatpush1.msra.mxu0 0.0
      %1974 = vmatprep.subr.mxu0 0.0
      %1975 = vmatpush1.msra.mxu0 %v1942
      %1976 = vmatprep.subr.mxu0 0.0
      %1977 = vmatpush2.msra.mxu0 0.0
      %1978 = vmatprep.subr.mxu0 0.0
      %1979 = vmatpush2.msra.mxu0 0.0
      %1980 = vmatprep.subr.mxu0 0.0
      %1981 = vmatpush2.msra.mxu0 0.0
      %1982 = vmatprep.subr.mxu0 0.0
      %1983 = vmatpush2.msra.mxu0 0.0
      %1984 = vmatprep.subr.mxu0 0.0
      %1985 = vmatpush2.msra.mxu0 0.0
      %1986 = vmatprep.subr.mxu0 0.0
      %1987 = vmatpush2.msra.mxu0 0.0
      %1988 = vmatprep.subr.mxu0 0.0
      %1989 = vmatpush2.msra.mxu0 0.0
      %1990 = vmatprep.subr.mxu0 0.0
      %1991 = vmatpush2.msra.mxu0 0.0
      %1992 = vmatprep.subr.mxu0 0.0
      %1993 = vmatpush2.msra.mxu0 0.0
      %1994 = vmatprep.subr.mxu0 0.0
      %1995 = vmatpush2.msra.mxu0 0.0
      %1996 = vmatprep.subr.mxu0 0.0
      %1997 = vmatpush2.msra.mxu0 0.0
      %1998 = vmatprep.subr.mxu0 0.0
      %1999 = vmatpush2.msra.mxu0 0.0
      %2000 = vmatprep.subr.mxu0 0.0
      %2001 = vmatpush2.msra.mxu0 0.0
      %2002 = vmatprep.subr.mxu0 0.0
      %2003 = vmatpush2.msra.mxu0 0.0
      %2004 = vmatprep.subr.mxu0 0.0
      %2005 = vmatpush2.msra.mxu0 0.0
      %2006 = vmatprep.subr.mxu0 0.0
      %2007 = vmatpush2.msra.mxu0 0.0
      %2008 = vmatprep.mubr.f32.mxu0 0.0
      %2009 = vmatmul.mubr.f32.gmra.mxu0 %v1935
      %v2010 = vpop.f32.mrf.mxu0
      %v2011 = vadd.f32 0.0, %v2010
      %v2012 = vpop.f32.mrf.mxu0
      %2013 = vmatprep.mubr.f32.mxu0 0.0
      %2014 = vmatmul.mubr.f32.gmra.mxu0 %v1938
      %v2015 = vpop.f32.mrf.mxu0
      %v2016 = vadd.f32 0.0, %v2015
      %v2017 = vpop.f32.mrf.mxu0
      %2018 = vdwg.mxu0
      %v2019 = vmul.f32 %v1915, %v1928
      %v2020 = vmul.f32 %v1917, %v1929
      %v2022 = vsel %vm1933, %v2019, 0
      %v2025 = vsel %vm1933, %v2020, 0
      %2027 = vmatprep.subr.mxu0 0.0
      %2028 = vmatpush1.msra.mxu0 0.0
      %2029 = vmatprep.subr.mxu0 0.0
      %2030 = vmatpush1.msra.mxu0 0.0
      %2031 = vmatprep.subr.mxu0 0.0
      %2032 = vmatpush1.msra.mxu0 0.0
      %2033 = vmatprep.subr.mxu0 0.0
      %2034 = vmatpush1.msra.mxu0 0.0
      %2035 = vmatprep.subr.mxu0 0.0
      %2036 = vmatpush1.msra.mxu0 0.0
      %2037 = vmatprep.subr.mxu0 0.0
      %2038 = vmatpush1.msra.mxu0 0.0
      %2039 = vmatprep.subr.mxu0 0.0
      %2040 = vmatpush1.msra.mxu0 0.0
      %2041 = vmatprep.subr.mxu0 0.0
      %2042 = vmatpush1.msra.mxu0 0.0
      %2043 = vmatprep.subr.mxu0 0.0
      %2044 = vmatpush1.msra.mxu0 0.0
      %2045 = vmatprep.subr.mxu0 0.0
      %2046 = vmatpush1.msra.mxu0 0.0
      %2047 = vmatprep.subr.mxu0 0.0
      %2048 = vmatpush1.msra.mxu0 0.0
      %2049 = vmatprep.subr.mxu0 0.0
      %2050 = vmatpush1.msra.mxu0 0.0
      %2051 = vmatprep.subr.mxu0 0.0
      %2052 = vmatpush1.msra.mxu0 0.0
      %2053 = vmatprep.subr.mxu0 0.0
      %2054 = vmatpush1.msra.mxu0 0.0
      %2055 = vmatprep.subr.mxu0 0.0
      %2056 = vmatpush1.msra.mxu0 0.0
      %2057 = vmatprep.subr.mxu0 0.0
      %2058 = vmatpush1.msra.mxu0 %v1942
      %2059 = vmatprep.subr.mxu0 0.0
      %2060 = vmatpush2.msra.mxu0 0.0
      %2061 = vmatprep.subr.mxu0 0.0
      %2062 = vmatpush2.msra.mxu0 0.0
      %2063 = vmatprep.subr.mxu0 0.0
      %2064 = vmatpush2.msra.mxu0 0.0
      %2065 = vmatprep.subr.mxu0 0.0
      %2066 = vmatpush2.msra.mxu0 0.0
      %2067 = vmatprep.subr.mxu0 0.0
      %2068 = vmatpush2.msra.mxu0 0.0
      %2069 = vmatprep.subr.mxu0 0.0
      %2070 = vmatpush2.msra.mxu0 0.0
      %2071 = vmatprep.subr.mxu0 0.0
      %2072 = vmatpush2.msra.mxu0 0.0
      %2073 = vmatprep.subr.mxu0 0.0
      %2074 = vmatpush2.msra.mxu0 0.0
      %2075 = vmatprep.subr.mxu0 0.0
      %2076 = vmatpush2.msra.mxu0 0.0
      %2077 = vmatprep.subr.mxu0 0.0
      %2078 = vmatpush2.msra.mxu0 0.0
      %2079 = vmatprep.subr.mxu0 0.0
      %2080 = vmatpush2.msra.mxu0 0.0
      %2081 = vmatprep.subr.mxu0 0.0
      %2082 = vmatpush2.msra.mxu0 0.0
      %2083 = vmatprep.subr.mxu0 0.0
      %2084 = vmatpush2.msra.mxu0 0.0
      %2085 = vmatprep.subr.mxu0 0.0
      %2086 = vmatpush2.msra.mxu0 0.0
      %2087 = vmatprep.subr.mxu0 0.0
      %2088 = vmatpush2.msra.mxu0 0.0
      %2089 = vmatprep.subr.mxu0 0.0
      %2090 = vmatpush2.msra.mxu0 0.0
      %2091 = vmatprep.mubr.f32.mxu0 0.0
      %2092 = vmatmul.mubr.f32.gmra.mxu0 %v2022
      %v2093 = vpop.f32.mrf.mxu0
      %v2094 = vadd.f32 0.0, %v2093
      %v2095 = vpop.f32.mrf.mxu0
      %2096 = vmatprep.mubr.f32.mxu0 0.0
      %2097 = vmatmul.mubr.f32.gmra.mxu0 %v2025
      %v2098 = vpop.f32.mrf.mxu0
      %v2099 = vadd.f32 0.0, %v2098
      %v2100 = vpop.f32.mrf.mxu0
      %2101 = vdwg.mxu0
      %v2102 = vmul.f32 %v1921, %v1928
      %v2103 = vmul.f32 %v1923, %v1929
      %v2105 = vsel %vm1933, %v2102, 0
      %v2108 = vsel %vm1933, %v2103, 0
      %2110 = vmatprep.subr.mxu0 0.0
      %2111 = vmatpush1.msra.mxu0 0.0
      %2112 = vmatprep.subr.mxu0 0.0
      %2113 = vmatpush1.msra.mxu0 0.0
      %2114 = vmatprep.subr.mxu0 0.0
      %2115 = vmatpush1.msra.mxu0 0.0
      %2116 = vmatprep.subr.mxu0 0.0
      %2117 = vmatpush1.msra.mxu0 0.0
      %2118 = vmatprep.subr.mxu0 0.0
      %2119 = vmatpush1.msra.mxu0 0.0
      %2120 = vmatprep.subr.mxu0 0.0
      %2121 = vmatpush1.msra.mxu0 0.0
      %2122 = vmatprep.subr.mxu0 0.0
      %2123 = vmatpush1.msra.mxu0 0.0
      %2124 = vmatprep.subr.mxu0 0.0
      %2125 = vmatpush1.msra.mxu0 0.0
      %2126 = vmatprep.subr.mxu0 0.0
      %2127 = vmatpush1.msra.mxu0 0.0
      %2128 = vmatprep.subr.mxu0 0.0
      %2129 = vmatpush1.msra.mxu0 0.0
      %2130 = vmatprep.subr.mxu0 0.0
      %2131 = vmatpush1.msra.mxu0 0.0
      %2132 = vmatprep.subr.mxu0 0.0
      %2133 = vmatpush1.msra.mxu0 0.0
      %2134 = vmatprep.subr.mxu0 0.0
      %2135 = vmatpush1.msra.mxu0 0.0
      %2136 = vmatprep.subr.mxu0 0.0
      %2137 = vmatpush1.msra.mxu0 0.0
      %2138 = vmatprep.subr.mxu0 0.0
      %2139 = vmatpush1.msra.mxu0 0.0
      %2140 = vmatprep.subr.mxu0 0.0
      %2141 = vmatpush1.msra.mxu0 %v1942
      %2142 = vmatprep.subr.mxu0 0.0
      %2143 = vmatpush2.msra.mxu0 0.0
      %2144 = vmatprep.subr.mxu0 0.0
      %2145 = vmatpush2.msra.mxu0 0.0
      %2146 = vmatprep.subr.mxu0 0.0
      %2147 = vmatpush2.msra.mxu0 0.0
      %2148 = vmatprep.subr.mxu0 0.0
      %2149 = vmatpush2.msra.mxu0 0.0
      %2150 = vmatprep.subr.mxu0 0.0
      %2151 = vmatpush2.msra.mxu0 0.0
      %2152 = vmatprep.subr.mxu0 0.0
      %2153 = vmatpush2.msra.mxu0 0.0
      %2154 = vmatprep.subr.mxu0 0.0
      %2155 = vmatpush2.msra.mxu0 0.0
      %2156 = vmatprep.subr.mxu0 0.0
      %2157 = vmatpush2.msra.mxu0 0.0
      %2158 = vmatprep.subr.mxu0 0.0
      %2159 = vmatpush2.msra.mxu0 0.0
      %2160 = vmatprep.subr.mxu0 0.0
      %2161 = vmatpush2.msra.mxu0 0.0
      %2162 = vmatprep.subr.mxu0 0.0
      %2163 = vmatpush2.msra.mxu0 0.0
      %2164 = vmatprep.subr.mxu0 0.0
      %2165 = vmatpush2.msra.mxu0 0.0
      %2166 = vmatprep.subr.mxu0 0.0
      %2167 = vmatpush2.msra.mxu0 0.0
      %2168 = vmatprep.subr.mxu0 0.0
      %2169 = vmatpush2.msra.mxu0 0.0
      %2170 = vmatprep.subr.mxu0 0.0
      %2171 = vmatpush2.msra.mxu0 0.0
      %2172 = vmatprep.subr.mxu0 0.0
      %2173 = vmatpush2.msra.mxu0 0.0
      %2174 = vmatprep.mubr.f32.mxu0 0.0
      %2175 = vmatmul.mubr.f32.gmra.mxu0 %v2105
      %v2176 = vpop.f32.mrf.mxu0
      %v2177 = vadd.f32 0.0, %v2176
      %v2178 = vpop.f32.mrf.mxu0
      %2179 = vmatprep.mubr.f32.mxu0 0.0
      %2180 = vmatmul.mubr.f32.gmra.mxu0 %v2108
      %v2181 = vpop.f32.mrf.mxu0
      %v2182 = vadd.f32 0.0, %v2181
      %v2183 = vpop.f32.mrf.mxu0
      %2184 = vdwg.mxu0
      %v2185 = vmul.f32 %v2011, %v1832
      %v2186 = vmul.f32 %v2016, %v1831
      %v2187 = vmul.f32 %v2094, %v1653
      %v2188 = vmul.f32 %v2099, %v1658
      %v2189 = vadd.f32 %v2185, %v2187
      %v2190 = vadd.f32 %v2186, %v2188
      %v2191 = vmul.f32 %v2177, %v1836
      %v2192 = vmul.f32 %v2182, %v1837
      %v2193 = vadd.f32 %v2189, %v2191
      %v2194 = vadd.f32 %v2190, %v2192
      %vm2195 = vcmp.gt.f32.partialorder %v2193, 0.0
      %vm2196 = vcmp.gt.f32.partialorder %v2194, 0.0
      %v2197 = vmul.f32 %v2193, 1.442695
      %v2198 = vpow.pop %v2197
      %v2199 = vmul.f32 %v2194, 1.442695
      %v2200 = vpow.pop %v2199
      %v2201 = vsub.f32 %v2198, 1.0
      %v2202 = vsub.f32 %v2200, 1.0
      %v2203 = vsel %vm2195, %v2193, %v2201
      %v2204 = vsel %vm2196, %v2194, %v2202
      %v2205 = vld [vmem:[%s25] sm:$0x3f]
      %vm2206 = vcmask 48128
      %v2208 = vsel %vm2206, %v1503, 0
      %vm2210 = vcmask 1045504
      %v2212 = vsel %vm2210, %v2205, 0
      %2214 = vmatprep.subr.mxu0 0.0
      %2215 = vmatpush1.msra.mxu0 0.0
      %2216 = vmatprep.subr.mxu0 0.0
      %2217 = vmatpush1.msra.mxu0 0.0
      %2218 = vmatprep.subr.mxu0 0.0
      %2219 = vmatpush1.msra.mxu0 0.0
      %2220 = vmatprep.subr.mxu0 0.0
      %2221 = vmatpush1.msra.mxu0 0.0
      %2222 = vmatprep.subr.mxu0 0.0
      %2223 = vmatpush1.msra.mxu0 0.0
      %2224 = vmatprep.subr.mxu0 0.0
      %2225 = vmatpush1.msra.mxu0 0.0
      %2226 = vmatprep.subr.mxu0 0.0
      %2227 = vmatpush1.msra.mxu0 0.0
      %2228 = vmatprep.subr.mxu0 0.0
      %2229 = vmatpush1.msra.mxu0 0.0
      %2230 = vmatprep.subr.mxu0 0.0
      %2231 = vmatpush1.msra.mxu0 0.0
      %2232 = vmatprep.subr.mxu0 0.0
      %2233 = vmatpush1.msra.mxu0 0.0
      %2234 = vmatprep.subr.mxu0 0.0
      %2235 = vmatpush1.msra.mxu0 0.0
      %2236 = vmatprep.subr.mxu0 0.0
      %2237 = vmatpush1.msra.mxu0 0.0
      %2238 = vmatprep.subr.mxu0 0.0
      %2239 = vmatpush1.msra.mxu0 0.0
      %2240 = vmatprep.subr.mxu0 0.0
      %2241 = vmatpush1.msra.mxu0 0.0
      %2242 = vmatprep.subr.mxu0 0.0
      %2243 = vmatpush1.msra.mxu0 0.0
      %2244 = vmatprep.subr.mxu0 0.0
      %2245 = vmatpush1.msra.mxu0 %v2212
      %2246 = vmatprep.subr.mxu0 0.0
      %2247 = vmatpush2.msra.mxu0 0.0
      %2248 = vmatprep.subr.mxu0 0.0
      %2249 = vmatpush2.msra.mxu0 0.0
      %2250 = vmatprep.subr.mxu0 0.0
      %2251 = vmatpush2.msra.mxu0 0.0
      %2252 = vmatprep.subr.mxu0 0.0
      %2253 = vmatpush2.msra.mxu0 0.0
      %2254 = vmatprep.subr.mxu0 0.0
      %2255 = vmatpush2.msra.mxu0 0.0
      %2256 = vmatprep.subr.mxu0 0.0
      %2257 = vmatpush2.msra.mxu0 0.0
      %2258 = vmatprep.subr.mxu0 0.0
      %2259 = vmatpush2.msra.mxu0 0.0
      %2260 = vmatprep.subr.mxu0 0.0
      %2261 = vmatpush2.msra.mxu0 0.0
      %2262 = vmatprep.subr.mxu0 0.0
      %2263 = vmatpush2.msra.mxu0 0.0
      %2264 = vmatprep.subr.mxu0 0.0
      %2265 = vmatpush2.msra.mxu0 0.0
      %2266 = vmatprep.subr.mxu0 0.0
      %2267 = vmatpush2.msra.mxu0 0.0
      %2268 = vmatprep.subr.mxu0 0.0
      %2269 = vmatpush2.msra.mxu0 0.0
      %2270 = vmatprep.subr.mxu0 0.0
      %2271 = vmatpush2.msra.mxu0 0.0
      %2272 = vmatprep.subr.mxu0 0.0
      %2273 = vmatpush2.msra.mxu0 0.0
      %2274 = vmatprep.subr.mxu0 0.0
      %2275 = vmatpush2.msra.mxu0 0.0
      %2276 = vmatprep.subr.mxu0 0.0
      %2277 = vmatpush2.msra.mxu0 0.0
      %2278 = vmatprep.mubr.f32.mxu0 0.0
      %2279 = vmatmul.mubr.f32.gmra.mxu0 %v2208
      %v2280 = vpop.f32.mrf.mxu0
      %v2281 = vadd.f32 0.0, %v2280
      %v2282 = vpop.f32.mrf.mxu0
      %2283 = vdwg.mxu0
      %v2284 = vld [vmem:[%s27] sm:$0xff]
      %v2285 = vld [vmem:[%s27 + $0x8] sm:$0xff]
      %v2286 = vld [vmem:[%s27 + $0x10] sm:$0xff]
      %v2287 = vld [vmem:[%s27 + $0x18] sm:$0xff]
      %v2289 = vsel %vm1665, %v2281, 0
      %2291 = vmatprep.subr.mxu0 0.0
      %2292 = vmatpush1.msra.mxu0 0.0
      %2293 = vmatprep.subr.mxu0 0.0
      %2294 = vmatpush1.msra.mxu0 0.0
      %2295 = vmatprep.subr.mxu0 0.0
      %2296 = vmatpush1.msra.mxu0 0.0
      %2297 = vmatprep.subr.mxu0 0.0
      %2298 = vmatpush1.msra.mxu0 0.0
      %2299 = vmatprep.subr.mxu0 0.0
      %2300 = vmatpush1.msra.mxu0 0.0
      %2301 = vmatprep.subr.mxu0 0.0
      %2302 = vmatpush1.msra.mxu0 0.0
      %2303 = vmatprep.subr.mxu0 0.0
      %2304 = vmatpush1.msra.mxu0 0.0
      %2305 = vmatprep.subr.mxu0 0.0
      %2306 = vmatpush1.msra.mxu0 0.0
      %2307 = vmatprep.subr.mxu0 0.0
      %2308 = vmatpush1.msra.mxu0 0.0
      %2309 = vmatprep.subr.mxu0 0.0
      %2310 = vmatpush1.msra.mxu0 0.0
      %2311 = vmatprep.subr.mxu0 0.0
      %2312 = vmatpush1.msra.mxu0 0.0
      %2313 = vmatprep.subr.mxu0 0.0
      %2314 = vmatpush1.msra.mxu0 0.0
      %2315 = vmatprep.subr.mxu0 0.0
      %2316 = vmatpush1.msra.mxu0 %v2287
      %2317 = vmatprep.subr.mxu0 0.0
      %2318 = vmatpush1.msra.mxu0 %v2286
      %2319 = vmatprep.subr.mxu0 0.0
      %2320 = vmatpush1.msra.mxu0 %v2285
      %2321 = vmatprep.subr.mxu0 0.0
      %2322 = vmatpush1.msra.mxu0 %v2284
      %2323 = vmatprep.subr.mxu0 0.0
      %2324 = vmatpush2.msra.mxu0 0.0
      %2325 = vmatprep.subr.mxu0 0.0
      %2326 = vmatpush2.msra.mxu0 0.0
      %2327 = vmatprep.subr.mxu0 0.0
      %2328 = vmatpush2.msra.mxu0 0.0
      %2329 = vmatprep.subr.mxu0 0.0
      %2330 = vmatpush2.msra.mxu0 0.0
      %2331 = vmatprep.subr.mxu0 0.0
      %2332 = vmatpush2.msra.mxu0 0.0
      %2333 = vmatprep.subr.mxu0 0.0
      %2334 = vmatpush2.msra.mxu0 0.0
      %2335 = vmatprep.subr.mxu0 0.0
      %2336 = vmatpush2.msra.mxu0 0.0
      %2337 = vmatprep.subr.mxu0 0.0
      %2338 = vmatpush2.msra.mxu0 0.0
      %2339 = vmatprep.subr.mxu0 0.0
      %2340 = vmatpush2.msra.mxu0 0.0
      %2341 = vmatprep.subr.mxu0 0.0
      %2342 = vmatpush2.msra.mxu0 0.0
      %2343 = vmatprep.subr.mxu0 0.0
      %2344 = vmatpush2.msra.mxu0 0.0
      %2345 = vmatprep.subr.mxu0 0.0
      %2346 = vmatpush2.msra.mxu0 0.0
      %2347 = vmatprep.subr.mxu0 0.0
      %2348 = vmatpush2.msra.mxu0 0.0
      %2349 = vmatprep.subr.mxu0 0.0
      %2350 = vmatpush2.msra.mxu0 0.0
      %2351 = vmatprep.subr.mxu0 0.0
      %2352 = vmatpush2.msra.mxu0 0.0
      %2353 = vmatprep.subr.mxu0 0.0
      %2354 = vmatpush2.msra.mxu0 0.0
      %2355 = vmatprep.mubr.f32.mxu0 0.0
      %2356 = vmatmul.mubr.f32.gmra.mxu0 %v2289
      %v2357 = vpop.f32.mrf.mxu0
      %v2358 = vadd.f32 0.0, %v2357
      %v2359 = vpop.f32.mrf.mxu0
      %2360 = vdwg.mxu0
      %v2361 = vld [vmem:[%s29] sm:$0xff]
      %v2362 = vld [vmem:[%s29 + $0x8] sm:$0xff]
      %v2363 = vld [vmem:[%s29 + $0x10] sm:$0xff]
      %v2364 = vld [vmem:[%s29 + $0x18] sm:$0xff]
      %2365 = vmatprep.subr.mxu0 0.0
      %2366 = vmatpush1.msra.mxu0 0.0
      %2367 = vmatprep.subr.mxu0 0.0
      %2368 = vmatpush1.msra.mxu0 0.0
      %2369 = vmatprep.subr.mxu0 0.0
      %2370 = vmatpush1.msra.mxu0 0.0
      %2371 = vmatprep.subr.mxu0 0.0
      %2372 = vmatpush1.msra.mxu0 0.0
      %2373 = vmatprep.subr.mxu0 0.0
      %2374 = vmatpush1.msra.mxu0 0.0
      %2375 = vmatprep.subr.mxu0 0.0
      %2376 = vmatpush1.msra.mxu0 0.0
      %2377 = vmatprep.subr.mxu0 0.0
      %2378 = vmatpush1.msra.mxu0 0.0
      %2379 = vmatprep.subr.mxu0 0.0
      %2380 = vmatpush1.msra.mxu0 0.0
      %2381 = vmatprep.subr.mxu0 0.0
      %2382 = vmatpush1.msra.mxu0 0.0
      %2383 = vmatprep.subr.mxu0 0.0
      %2384 = vmatpush1.msra.mxu0 0.0
      %2385 = vmatprep.subr.mxu0 0.0
      %2386 = vmatpush1.msra.mxu0 0.0
      %2387 = vmatprep.subr.mxu0 0.0
      %2388 = vmatpush1.msra.mxu0 0.0
      %2389 = vmatprep.subr.mxu0 0.0
      %2390 = vmatpush1.msra.mxu0 %v2364
      %2391 = vmatprep.subr.mxu0 0.0
      %2392 = vmatpush1.msra.mxu0 %v2363
      %2393 = vmatprep.subr.mxu0 0.0
      %2394 = vmatpush1.msra.mxu0 %v2362
      %2395 = vmatprep.subr.mxu0 0.0
      %2396 = vmatpush1.msra.mxu0 %v2361
      %2397 = vmatprep.subr.mxu0 0.0
      %2398 = vmatpush2.msra.mxu0 0.0
      %2399 = vmatprep.subr.mxu0 0.0
      %2400 = vmatpush2.msra.mxu0 0.0
      %2401 = vmatprep.subr.mxu0 0.0
      %2402 = vmatpush2.msra.mxu0 0.0
      %2403 = vmatprep.subr.mxu0 0.0
      %2404 = vmatpush2.msra.mxu0 0.0
      %2405 = vmatprep.subr.mxu0 0.0
      %2406 = vmatpush2.msra.mxu0 0.0
      %2407 = vmatprep.subr.mxu0 0.0
      %2408 = vmatpush2.msra.mxu0 0.0
      %2409 = vmatprep.subr.mxu0 0.0
      %2410 = vmatpush2.msra.mxu0 0.0
      %2411 = vmatprep.subr.mxu0 0.0
      %2412 = vmatpush2.msra.mxu0 0.0
      %2413 = vmatprep.subr.mxu0 0.0
      %2414 = vmatpush2.msra.mxu0 0.0
      %2415 = vmatprep.subr.mxu0 0.0
      %2416 = vmatpush2.msra.mxu0 0.0
      %2417 = vmatprep.subr.mxu0 0.0
      %2418 = vmatpush2.msra.mxu0 0.0
      %2419 = vmatprep.subr.mxu0 0.0
      %2420 = vmatpush2.msra.mxu0 0.0
      %2421 = vmatprep.subr.mxu0 0.0
      %2422 = vmatpush2.msra.mxu0 0.0
      %2423 = vmatprep.subr.mxu0 0.0
      %2424 = vmatpush2.msra.mxu0 0.0
      %2425 = vmatprep.subr.mxu0 0.0
      %2426 = vmatpush2.msra.mxu0 0.0
      %2427 = vmatprep.subr.mxu0 0.0
      %2428 = vmatpush2.msra.mxu0 0.0
      %2429 = vmatprep.mubr.f32.mxu0 0.0
      %2430 = vmatmul.mubr.f32.gmra.mxu0 %v2289
      %v2431 = vpop.f32.mrf.mxu0
      %v2432 = vadd.f32 0.0, %v2431
      %v2433 = vpop.f32.mrf.mxu0
      %2434 = vdwg.mxu0
      %v2435 = vld [vmem:[%s31] sm:$0xff]
      %v2437 = vsel %vm1579, %v1575, 0
      %2439 = vmatprep.subr.mxu0 0.0
      %2440 = vmatpush1.msra.mxu0 0.0
      %2441 = vmatprep.subr.mxu0 0.0
      %2442 = vmatpush1.msra.mxu0 0.0
      %2443 = vmatprep.subr.mxu0 0.0
      %2444 = vmatpush1.msra.mxu0 0.0
      %2445 = vmatprep.subr.mxu0 0.0
      %2446 = vmatpush1.msra.mxu0 0.0
      %2447 = vmatprep.subr.mxu0 0.0
      %2448 = vmatpush1.msra.mxu0 0.0
      %2449 = vmatprep.subr.mxu0 0.0
      %2450 = vmatpush1.msra.mxu0 0.0
      %2451 = vmatprep.subr.mxu0 0.0
      %2452 = vmatpush1.msra.mxu0 0.0
      %2453 = vmatprep.subr.mxu0 0.0
      %2454 = vmatpush1.msra.mxu0 0.0
      %2455 = vmatprep.subr.mxu0 0.0
      %2456 = vmatpush1.msra.mxu0 0.0
      %2457 = vmatprep.subr.mxu0 0.0
      %2458 = vmatpush1.msra.mxu0 0.0
      %2459 = vmatprep.subr.mxu0 0.0
      %2460 = vmatpush1.msra.mxu0 0.0
      %2461 = vmatprep.subr.mxu0 0.0
      %2462 = vmatpush1.msra.mxu0 0.0
      %2463 = vmatprep.subr.mxu0 0.0
      %2464 = vmatpush1.msra.mxu0 0.0
      %2465 = vmatprep.subr.mxu0 0.0
      %2466 = vmatpush1.msra.mxu0 0.0
      %2467 = vmatprep.subr.mxu0 0.0
      %2468 = vmatpush1.msra.mxu0 0.0
      %2469 = vmatprep.subr.mxu0 0.0
      %2470 = vmatpush1.msra.mxu0 %v2435
      %2471 = vmatprep.subr.mxu0 0.0
      %2472 = vmatpush2.msra.mxu0 0.0
      %2473 = vmatprep.subr.mxu0 0.0
      %2474 = vmatpush2.msra.mxu0 0.0
      %2475 = vmatprep.subr.mxu0 0.0
      %2476 = vmatpush2.msra.mxu0 0.0
      %2477 = vmatprep.subr.mxu0 0.0
      %2478 = vmatpush2.msra.mxu0 0.0
      %2479 = vmatprep.subr.mxu0 0.0
      %2480 = vmatpush2.msra.mxu0 0.0
      %2481 = vmatprep.subr.mxu0 0.0
      %2482 = vmatpush2.msra.mxu0 0.0
      %2483 = vmatprep.subr.mxu0 0.0
      %2484 = vmatpush2.msra.mxu0 0.0
      %2485 = vmatprep.subr.mxu0 0.0
      %2486 = vmatpush2.msra.mxu0 0.0
      %2487 = vmatprep.subr.mxu0 0.0
      %2488 = vmatpush2.msra.mxu0 0.0
      %2489 = vmatprep.subr.mxu0 0.0
      %2490 = vmatpush2.msra.mxu0 0.0
      %2491 = vmatprep.subr.mxu0 0.0
      %2492 = vmatpush2.msra.mxu0 0.0
      %2493 = vmatprep.subr.mxu0 0.0
      %2494 = vmatpush2.msra.mxu0 0.0
      %2495 = vmatprep.subr.mxu0 0.0
      %2496 = vmatpush2.msra.mxu0 0.0
      %2497 = vmatprep.subr.mxu0 0.0
      %2498 = vmatpush2.msra.mxu0 0.0
      %2499 = vmatprep.subr.mxu0 0.0
      %2500 = vmatpush2.msra.mxu0 0.0
      %2501 = vmatprep.subr.mxu0 0.0
      %2502 = vmatpush2.msra.mxu0 0.0
      %2503 = vmatprep.mubr.f32.mxu0 0.0
      %2504 = vmatmul.mubr.f32.gmra.mxu0 %v2437
      %v2505 = vpop.f32.mrf.mxu0
      %v2506 = vadd.f32 0.0, %v2505
      %v2507 = vpop.f32.mrf.mxu0
      %2508 = vdwg.mxu0
      %vm2509 = vcmask 31744
      %v2511 = vsel %vm2509, %v1499, 0
      %v2514 = vsel %vm2509, %v1500, 0
      %vm2516 = vcmask 1043456
      %v2518 = vsel %vm2516, %v2506, 0
      %2520 = vmatprep.subr.mxu0 0.0
      %2521 = vmatpush1.msra.mxu0 0.0
      %2522 = vmatprep.subr.mxu0 0.0
      %2523 = vmatpush1.msra.mxu0 0.0
      %2524 = vmatprep.subr.mxu0 0.0
      %2525 = vmatpush1.msra.mxu0 0.0
      %2526 = vmatprep.subr.mxu0 0.0
      %2527 = vmatpush1.msra.mxu0 0.0
      %2528 = vmatprep.subr.mxu0 0.0
      %2529 = vmatpush1.msra.mxu0 0.0
      %2530 = vmatprep.subr.mxu0 0.0
      %2531 = vmatpush1.msra.mxu0 0.0
      %2532 = vmatprep.subr.mxu0 0.0
      %2533 = vmatpush1.msra.mxu0 0.0
      %2534 = vmatprep.subr.mxu0 0.0
      %2535 = vmatpush1.msra.mxu0 0.0
      %2536 = vmatprep.subr.mxu0 0.0
      %2537 = vmatpush1.msra.mxu0 0.0
      %2538 = vmatprep.subr.mxu0 0.0
      %2539 = vmatpush1.msra.mxu0 0.0
      %2540 = vmatprep.subr.mxu0 0.0
      %2541 = vmatpush1.msra.mxu0 0.0
      %2542 = vmatprep.subr.mxu0 0.0
      %2543 = vmatpush1.msra.mxu0 0.0
      %2544 = vmatprep.subr.mxu0 0.0
      %2545 = vmatpush1.msra.mxu0 0.0
      %2546 = vmatprep.subr.mxu0 0.0
      %2547 = vmatpush1.msra.mxu0 0.0
      %2548 = vmatprep.subr.mxu0 0.0
      %2549 = vmatpush1.msra.mxu0 0.0
      %2550 = vmatprep.subr.mxu0 0.0
      %2551 = vmatpush1.msra.mxu0 %v2518
      %2552 = vmatprep.subr.mxu0 0.0
      %2553 = vmatpush2.msra.mxu0 0.0
      %2554 = vmatprep.subr.mxu0 0.0
      %2555 = vmatpush2.msra.mxu0 0.0
      %2556 = vmatprep.subr.mxu0 0.0
      %2557 = vmatpush2.msra.mxu0 0.0
      %2558 = vmatprep.subr.mxu0 0.0
      %2559 = vmatpush2.msra.mxu0 0.0
      %2560 = vmatprep.subr.mxu0 0.0
      %2561 = vmatpush2.msra.mxu0 0.0
      %2562 = vmatprep.subr.mxu0 0.0
      %2563 = vmatpush2.msra.mxu0 0.0
      %2564 = vmatprep.subr.mxu0 0.0
      %2565 = vmatpush2.msra.mxu0 0.0
      %2566 = vmatprep.subr.mxu0 0.0
      %2567 = vmatpush2.msra.mxu0 0.0
      %2568 = vmatprep.subr.mxu0 0.0
      %2569 = vmatpush2.msra.mxu0 0.0
      %2570 = vmatprep.subr.mxu0 0.0
      %2571 = vmatpush2.msra.mxu0 0.0
      %2572 = vmatprep.subr.mxu0 0.0
      %2573 = vmatpush2.msra.mxu0 0.0
      %2574 = vmatprep.subr.mxu0 0.0
      %2575 = vmatpush2.msra.mxu0 0.0
      %2576 = vmatprep.subr.mxu0 0.0
      %2577 = vmatpush2.msra.mxu0 0.0
      %2578 = vmatprep.subr.mxu0 0.0
      %2579 = vmatpush2.msra.mxu0 0.0
      %2580 = vmatprep.subr.mxu0 0.0
      %2581 = vmatpush2.msra.mxu0 0.0
      %2582 = vmatprep.subr.mxu0 0.0
      %2583 = vmatpush2.msra.mxu0 0.0
      %2584 = vmatprep.mubr.f32.mxu0 0.0
      %2585 = vmatmul.mubr.f32.gmra.mxu0 %v2511
      %v2586 = vpop.f32.mrf.mxu0
      %v2587 = vadd.f32 0.0, %v2586
      %v2588 = vpop.f32.mrf.mxu0
      %2589 = vmatprep.mubr.f32.mxu0 0.0
      %2590 = vmatmul.mubr.f32.gmra.mxu0 %v2514
      %v2591 = vpop.f32.mrf.mxu0
      %v2592 = vadd.f32 0.0, %v2591
      %v2593 = vpop.f32.mrf.mxu0
      %2594 = vdwg.mxu0
      %v2597 = vcombine.high %v2587, %v2587
      %v2598 = vcombine.high %v2592, %v2592
      %v2603 = vunpack.c.l.s4 1966171168
      %v2604 = vunpack.c.0.s8 %v2603
      %v2605 = vlaneseq
      %v2606 = vshrl.u32 %v2605, 7
      %v2607 = vsub.s32 %v2604, %v2606
      %v2608 = vrot.slane %v2358, %v2607
      %v2609 = vcombine.high %v2608, %v2608
      %v2611 = vunpack.c.l.s4 1966171168
      %v2612 = vunpack.c.0.s8 %v2611
      %v2613 = vlaneseq
      %v2614 = vshrl.u32 %v2613, 7
      %v2615 = vsub.s32 %v2612, %v2614
      %v2616 = vrot.slane %v2608, %v2615
      %v2618 = vunpack.c.l.s4 1966171168
      %v2619 = vunpack.c.0.s8 %v2618
      %v2620 = vlaneseq
      %v2621 = vshrl.u32 %v2620, 7
      %v2622 = vsub.s32 %v2619, %v2621
      %v2623 = vrot.slane %v2609, %v2622
      %v2624 = vcombine.high %v2616, %v2616
      %v2625 = vcombine.high %v2623, %v2623
      %v2626 = vlaneseq
      %v2627 = vshrl.u32 %v2626, 7
      %v2628 = vsub.s32 0, %v2627
      %v2629 = vrot.slane %v2616, %v2628
      %v2630 = vlaneseq
      %v2631 = vshrl.u32 %v2630, 7
      %v2632 = vsub.s32 0, %v2631
      %v2633 = vrot.slane %v2623, %v2632
      %v2634 = vlaneseq
      %v2635 = vshrl.u32 %v2634, 7
      %v2636 = vsub.s32 0, %v2635
      %v2637 = vrot.slane %v2624, %v2636
      %v2638 = vlaneseq
      %v2639 = vshrl.u32 %v2638, 7
      %v2640 = vsub.s32 0, %v2639
      %v2641 = vrot.slane %v2625, %v2640
      %v2646 = vadd.f32 %v2629, %v2432
      %v2647 = vadd.f32 %v2633, %v2432
      %v2648 = vadd.f32 %v2637, %v2432
      %v2649 = vadd.f32 %v2641, %v2432
      %v2650 = vadd.f32 %v2646, %v2587
      %v2651 = vadd.f32 %v2647, %v2597
      %v2652 = vadd.f32 %v2648, %v2592
      %v2653 = vadd.f32 %v2649, %v2598
      %vm2654 = vcmp.gt.f32.partialorder %v2650, 0.0
      %vm2655 = vcmp.gt.f32.partialorder %v2651, 0.0
      %vm2656 = vcmp.gt.f32.partialorder %v2652, 0.0
      %vm2657 = vcmp.gt.f32.partialorder %v2653, 0.0
      %v2658 = vmul.f32 %v2650, 0.2
      %v2659 = vmul.f32 %v2651, 0.2
      %v2660 = vmul.f32 %v2652, 0.2
      %v2661 = vmul.f32 %v2653, 0.2
      %v2662 = vsel %vm2654, %v2650, %v2658
      %v2663 = vsel %vm2655, %v2651, %v2659
      %v2664 = vsel %vm2656, %v2652, %v2660
      %v2665 = vsel %vm2657, %v2653, %v2661
      %v2666 = vadd.f32 %v2662, %v1477
      %v2667 = vadd.f32 %v2663, %v1484
      %v2668 = vadd.f32 %v2664, %v1491
      %v2669 = vadd.f32 %v2665, %v1498
      %vm2670 = vcmask 11264
      %v2671 = vsel %vm2670, %v2666, -inf
      %v2672 = vrot.slane %v2671, 4
      %v2673 = vmax.f32 %v2671, %v2672
      %v2674 = vrot.slane %v2673, 2
      %v2675 = vmax.f32 %v2673, %v2674
      %v2676 = vrot.slane %v2675, 1
      %v2677 = vmax.f32 %v2675, %v2676
      %v2678 = vsel %vm2670, %v2667, -inf
      %v2679 = vrot.slane %v2678, 4
      %v2680 = vmax.f32 %v2678, %v2679
      %v2681 = vrot.slane %v2680, 2
      %v2682 = vmax.f32 %v2680, %v2681
      %v2683 = vrot.slane %v2682, 1
      %v2684 = vmax.f32 %v2682, %v2683
      %v2685 = vsel %vm2670, %v2668, -inf
      %v2686 = vrot.slane %v2685, 4
      %v2687 = vmax.f32 %v2685, %v2686
      %v2688 = vrot.slane %v2687, 2
      %v2689 = vmax.f32 %v2687, %v2688
      %v2690 = vrot.slane %v2689, 1
      %v2691 = vmax.f32 %v2689, %v2690
      %v2692 = vsel %vm2670, %v2669, -inf
      %v2693 = vrot.slane %v2692, 4
      %v2694 = vmax.f32 %v2692, %v2693
      %v2695 = vrot.slane %v2694, 2
      %v2696 = vmax.f32 %v2694, %v2695
      %v2697 = vrot.slane %v2696, 1
      %v2698 = vmax.f32 %v2696, %v2697
      %v2699 = vsub.f32 %v2666, %v2677
      %v2700 = vsub.f32 %v2667, %v2684
      %v2701 = vsub.f32 %v2668, %v2691
      %v2702 = vsub.f32 %v2669, %v2698
      %v2703 = vmul.f32 %v2699, 1.442695
      %v2704 = vpow.pop %v2703
      %v2705 = vmul.f32 %v2700, 1.442695
      %v2706 = vpow.pop %v2705
      %v2707 = vmul.f32 %v2701, 1.442695
      %v2708 = vpow.pop %v2707
      %v2709 = vmul.f32 %v2702, 1.442695
      %v2710 = vpow.pop %v2709
      %v2711 = vsel %vm2670, %v2704, 0.0
      %v2712 = vrot.slane %v2711, 4
      %v2713 = vadd.f32 %v2711, %v2712
      %v2714 = vrot.slane %v2713, 2
      %v2715 = vadd.f32 %v2713, %v2714
      %v2716 = vrot.slane %v2715, 1
      %v2717 = vadd.f32 %v2715, %v2716
      %v2718 = vsel %vm2670, %v2706, 0.0
      %v2719 = vrot.slane %v2718, 4
      %v2720 = vadd.f32 %v2718, %v2719
      %v2721 = vrot.slane %v2720, 2
      %v2722 = vadd.f32 %v2720, %v2721
      %v2723 = vrot.slane %v2722, 1
      %v2724 = vadd.f32 %v2722, %v2723
      %v2725 = vsel %vm2670, %v2708, 0.0
      %v2726 = vrot.slane %v2725, 4
      %v2727 = vadd.f32 %v2725, %v2726
      %v2728 = vrot.slane %v2727, 2
      %v2729 = vadd.f32 %v2727, %v2728
      %v2730 = vrot.slane %v2729, 1
      %v2731 = vadd.f32 %v2729, %v2730
      %v2732 = vsel %vm2670, %v2710, 0.0
      %v2733 = vrot.slane %v2732, 4
      %v2734 = vadd.f32 %v2732, %v2733
      %v2735 = vrot.slane %v2734, 2
      %v2736 = vadd.f32 %v2734, %v2735
      %v2737 = vrot.slane %v2736, 1
      %v2738 = vadd.f32 %v2736, %v2737
      %v2739 = vrcp.pop %v2717
      %v2740 = vrcp.pop %v2724
      %v2741 = vrcp.pop %v2731
      %v2742 = vrcp.pop %v2738
      %v2743 = vmul.f32 %v2704, %v2739
      %v2744 = vmul.f32 %v2706, %v2740
      %v2745 = vmul.f32 %v2708, %v2741
      %v2746 = vmul.f32 %v2710, %v2742
      %v2747 = vld [vmem:[%s33] sm:$0x3]
      %v2752 = vcombine.low %v2743, %v2744
      %v2753 = vcombine.low %v2745, %v2746
      %v2754 = vsel %vm1933, %v2752, 0
      %v2756 = vsel %vm1933, %v2753, 0
      %v2759 = vsel %vm1940, %v2747, 0
      %2761 = vmatprep.subr.mxu0 0.0
      %2762 = vmatpush1.msra.mxu0 0.0
      %2763 = vmatprep.subr.mxu0 0.0
      %2764 = vmatpush1.msra.mxu0 0.0
      %2765 = vmatprep.subr.mxu0 0.0
      %2766 = vmatpush1.msra.mxu0 0.0
      %2767 = vmatprep.subr.mxu0 0.0
      %2768 = vmatpush1.msra.mxu0 0.0
      %2769 = vmatprep.subr.mxu0 0.0
      %2770 = vmatpush1.msra.mxu0 0.0
      %2771 = vmatprep.subr.mxu0 0.0
      %2772 = vmatpush1.msra.mxu0 0.0
      %2773 = vmatprep.subr.mxu0 0.0
      %2774 = vmatpush1.msra.mxu0 0.0
      %2775 = vmatprep.subr.mxu0 0.0
      %2776 = vmatpush1.msra.mxu0 0.0
      %2777 = vmatprep.subr.mxu0 0.0
      %2778 = vmatpush1.msra.mxu0 0.0
      %2779 = vmatprep.subr.mxu0 0.0
      %2780 = vmatpush1.msra.mxu0 0.0
      %2781 = vmatprep.subr.mxu0 0.0
      %2782 = vmatpush1.msra.mxu0 0.0
      %2783 = vmatprep.subr.mxu0 0.0
      %2784 = vmatpush1.msra.mxu0 0.0
      %2785 = vmatprep.subr.mxu0 0.0
      %2786 = vmatpush1.msra.mxu0 0.0
      %2787 = vmatprep.subr.mxu0 0.0
      %2788 = vmatpush1.msra.mxu0 0.0
      %2789 = vmatprep.subr.mxu0 0.0
      %2790 = vmatpush1.msra.mxu0 0.0
      %2791 = vmatprep.subr.mxu0 0.0
      %2792 = vmatpush1.msra.mxu0 %v2759
      %2793 = vmatprep.subr.mxu0 0.0
      %2794 = vmatpush2.msra.mxu0 0.0
      %2795 = vmatprep.subr.mxu0 0.0
      %2796 = vmatpush2.msra.mxu0 0.0
      %2797 = vmatprep.subr.mxu0 0.0
      %2798 = vmatpush2.msra.mxu0 0.0
      %2799 = vmatprep.subr.mxu0 0.0
      %2800 = vmatpush2.msra.mxu0 0.0
      %2801 = vmatprep.subr.mxu0 0.0
      %2802 = vmatpush2.msra.mxu0 0.0
      %2803 = vmatprep.subr.mxu0 0.0
      %2804 = vmatpush2.msra.mxu0 0.0
      %2805 = vmatprep.subr.mxu0 0.0
      %2806 = vmatpush2.msra.mxu0 0.0
      %2807 = vmatprep.subr.mxu0 0.0
      %2808 = vmatpush2.msra.mxu0 0.0
      %2809 = vmatprep.subr.mxu0 0.0
      %2810 = vmatpush2.msra.mxu0 0.0
      %2811 = vmatprep.subr.mxu0 0.0
      %2812 = vmatpush2.msra.mxu0 0.0
      %2813 = vmatprep.subr.mxu0 0.0
      %2814 = vmatpush2.msra.mxu0 0.0
      %2815 = vmatprep.subr.mxu0 0.0
      %2816 = vmatpush2.msra.mxu0 0.0
      %2817 = vmatprep.subr.mxu0 0.0
      %2818 = vmatpush2.msra.mxu0 0.0
      %2819 = vmatprep.subr.mxu0 0.0
      %2820 = vmatpush2.msra.mxu0 0.0
      %2821 = vmatprep.subr.mxu0 0.0
      %2822 = vmatpush2.msra.mxu0 0.0
      %2823 = vmatprep.subr.mxu0 0.0
      %2824 = vmatpush2.msra.mxu0 0.0
      %2825 = vmatprep.mubr.f32.mxu0 0.0
      %2826 = vmatmul.mubr.f32.gmra.mxu0 %v2754
      %v2827 = vpop.f32.mrf.mxu0
      %v2828 = vadd.f32 0.0, %v2827
      %v2829 = vpop.f32.mrf.mxu0
      %2830 = vmatprep.mubr.f32.mxu0 0.0
      %2831 = vmatmul.mubr.f32.gmra.mxu0 %v2756
      %v2832 = vpop.f32.mrf.mxu0
      %v2833 = vadd.f32 0.0, %v2832
      %v2834 = vpop.f32.mrf.mxu0
      %2835 = vdwg.mxu0
      %v2838 = vcombine.high %v2828, %v2828
      %v2839 = vcombine.high %v2833, %v2833
      %v2842 = vmul.f32 %v2828, %v2281
      %v2843 = vmul.f32 %v2838, %v2281
      %v2844 = vmul.f32 %v2833, %v2281
      %v2845 = vmul.f32 %v2839, %v2281
      %vm2846 = vcmask 257024
      %v2847 = vsel %vm2846, %v2842, 0.0
      %v2848 = vrot.slane %v2847, 4
      %v2849 = vadd.f32 %v2847, %v2848
      %v2850 = vrot.slane %v2849, 2
      %v2851 = vadd.f32 %v2849, %v2850
      %v2852 = vrot.slane %v2851, 1
      %v2853 = vadd.f32 %v2851, %v2852
      %v2854 = vsel %vm2846, %v2843, 0.0
      %v2855 = vrot.slane %v2854, 4
      %v2856 = vadd.f32 %v2854, %v2855
      %v2857 = vrot.slane %v2856, 2
      %v2858 = vadd.f32 %v2856, %v2857
      %v2859 = vrot.slane %v2858, 1
      %v2860 = vadd.f32 %v2858, %v2859
      %v2861 = vsel %vm2846, %v2844, 0.0
      %v2862 = vrot.slane %v2861, 4
      %v2863 = vadd.f32 %v2861, %v2862
      %v2864 = vrot.slane %v2863, 2
      %v2865 = vadd.f32 %v2863, %v2864
      %v2866 = vrot.slane %v2865, 1
      %v2867 = vadd.f32 %v2865, %v2866
      %v2868 = vsel %vm2846, %v2845, 0.0
      %v2869 = vrot.slane %v2868, 4
      %v2870 = vadd.f32 %v2868, %v2869
      %v2871 = vrot.slane %v2870, 2
      %v2872 = vadd.f32 %v2870, %v2871
      %v2873 = vrot.slane %v2872, 1
      %v2874 = vadd.f32 %v2872, %v2873
      %vm2875 = vcmp.gt.f32.partialorder %v2853, 0.0
      %vm2876 = vcmp.gt.f32.partialorder %v2860, 0.0
      %vm2877 = vcmp.gt.f32.partialorder %v2867, 0.0
      %vm2878 = vcmp.gt.f32.partialorder %v2874, 0.0
      %v2879 = vmul.f32 %v2853, 1.442695
      %v2880 = vpow.pop %v2879
      %v2881 = vmul.f32 %v2860, 1.442695
      %v2882 = vpow.pop %v2881
      %v2883 = vmul.f32 %v2867, 1.442695
      %v2884 = vpow.pop %v2883
      %v2885 = vmul.f32 %v2874, 1.442695
      %v2886 = vpow.pop %v2885
      %v2887 = vsub.f32 %v2880, 1.0
      %v2888 = vsub.f32 %v2882, 1.0
      %v2889 = vsub.f32 %v2884, 1.0
      %v2890 = vsub.f32 %v2886, 1.0
      %v2891 = vsel %vm2875, %v2853, %v2887
      %v2892 = vsel %vm2876, %v2860, %v2888
      %v2893 = vsel %vm2877, %v2867, %v2889
      %v2894 = vsel %vm2878, %v2874, %v2890
      %2895 = vmatprep.subr.mxu0 0.0
      %2896 = vmatpush1.msra.mxu0 0.0
      %2897 = vmatprep.subr.mxu0 0.0
      %2898 = vmatpush1.msra.mxu0 0.0
      %2899 = vmatprep.subr.mxu0 0.0
      %2900 = vmatpush1.msra.mxu0 0.0
      %2901 = vmatprep.subr.mxu0 0.0
      %2902 = vmatpush1.msra.mxu0 0.0
      %2903 = vmatprep.subr.mxu0 0.0
      %2904 = vmatpush1.msra.mxu0 0.0
      %2905 = vmatprep.subr.mxu0 0.0
      %2906 = vmatpush1.msra.mxu0 0.0
      %2907 = vmatprep.subr.mxu0 0.0
      %2908 = vmatpush1.msra.mxu0 0.0
      %2909 = vmatprep.subr.mxu0 0.0
      %2910 = vmatpush1.msra.mxu0 0.0
      %2911 = vmatprep.subr.mxu0 0.0
      %2912 = vmatpush1.msra.mxu0 0.0
      %2913 = vmatprep.subr.mxu0 0.0
      %2914 = vmatpush1.msra.mxu0 0.0
      %2915 = vmatprep.subr.mxu0 0.0
      %2916 = vmatpush1.msra.mxu0 0.0
      %2917 = vmatprep.subr.mxu0 0.0
      %2918 = vmatpush1.msra.mxu0 0.0
      %2919 = vmatprep.subr.mxu0 0.0
      %2920 = vmatpush1.msra.mxu0 0.0
      %2921 = vmatprep.subr.mxu0 0.0
      %2922 = vmatpush1.msra.mxu0 0.0
      %2923 = vmatprep.subr.mxu0 0.0
      %2924 = vmatpush1.msra.mxu0 %v2204
      %2925 = vmatprep.subr.mxu0 0.0
      %2926 = vmatpush1.msra.mxu0 %v2203
      %2927 = vmatprep.subr.mxu0 0.0
      %2928 = vmatpush2.msra.mxu0 0.0
      %2929 = vmatprep.subr.mxu0 0.0
      %2930 = vmatpush2.msra.mxu0 0.0
      %2931 = vmatprep.subr.mxu0 0.0
      %2932 = vmatpush2.msra.mxu0 0.0
      %2933 = vmatprep.subr.mxu0 0.0
      %2934 = vmatpush2.msra.mxu0 0.0
      %2935 = vmatprep.subr.mxu0 0.0
      %2936 = vmatpush2.msra.mxu0 0.0
      %2937 = vmatprep.subr.mxu0 0.0
      %2938 = vmatpush2.msra.mxu0 0.0
      %2939 = vmatprep.subr.mxu0 0.0
      %2940 = vmatpush2.msra.mxu0 0.0
      %2941 = vmatprep.subr.mxu0 0.0
      %2942 = vmatpush2.msra.mxu0 0.0
      %2943 = vmatprep.subr.mxu0 0.0
      %2944 = vmatpush2.msra.mxu0 0.0
      %2945 = vmatprep.subr.mxu0 0.0
      %2946 = vmatpush2.msra.mxu0 0.0
      %2947 = vmatprep.subr.mxu0 0.0
      %2948 = vmatpush2.msra.mxu0 0.0
      %2949 = vmatprep.subr.mxu0 0.0
      %2950 = vmatpush2.msra.mxu0 0.0
      %2951 = vmatprep.subr.mxu0 0.0
      %2952 = vmatpush2.msra.mxu0 0.0
      %2953 = vmatprep.subr.mxu0 0.0
      %2954 = vmatpush2.msra.mxu0 0.0
      %2955 = vmatprep.subr.mxu0 0.0
      %2956 = vmatpush2.msra.mxu0 0.0
      %2957 = vmatprep.subr.mxu0 0.0
      %2958 = vmatpush2.msra.mxu0 0.0
      %2959 = vmatprep.mubr.f32.mxu0 0.0
      %2960 = vmatmul.mubr.f32.gmra.mxu0 %v1506
      %v2961 = vpop.f32.mrf.mxu0
      %v2962 = vadd.f32 0.0, %v2961
      %v2963 = vpop.f32.mrf.mxu0
      %2964 = vdwg.mxu0
      %v2965 = vld [vmem:[%s35] sm:$0xff]
      %v2966 = vld [vmem:[%s35 + $0x8] sm:$0xff]
      %v2967 = vld [vmem:[%s35 + $0x10] sm:$0xff]
      %v2968 = vld [vmem:[%s35 + $0x18] sm:$0xff]
      %v2970 = vsel %vm1665, %v2203, 0
      %v2973 = vsel %vm1665, %v2204, 0
      %2975 = vmatprep.subr.mxu0 0.0
      %2976 = vmatpush1.msra.mxu0 0.0
      %2977 = vmatprep.subr.mxu0 0.0
      %2978 = vmatpush1.msra.mxu0 0.0
      %2979 = vmatprep.subr.mxu0 0.0
      %2980 = vmatpush1.msra.mxu0 0.0
      %2981 = vmatprep.subr.mxu0 0.0
      %2982 = vmatpush1.msra.mxu0 0.0
      %2983 = vmatprep.subr.mxu0 0.0
      %2984 = vmatpush1.msra.mxu0 0.0
      %2985 = vmatprep.subr.mxu0 0.0
      %2986 = vmatpush1.msra.mxu0 0.0
      %2987 = vmatprep.subr.mxu0 0.0
      %2988 = vmatpush1.msra.mxu0 0.0
      %2989 = vmatprep.subr.mxu0 0.0
      %2990 = vmatpush1.msra.mxu0 0.0
      %2991 = vmatprep.subr.mxu0 0.0
      %2992 = vmatpush1.msra.mxu0 0.0
      %2993 = vmatprep.subr.mxu0 0.0
      %2994 = vmatpush1.msra.mxu0 0.0
      %2995 = vmatprep.subr.mxu0 0.0
      %2996 = vmatpush1.msra.mxu0 0.0
      %2997 = vmatprep.subr.mxu0 0.0
      %2998 = vmatpush1.msra.mxu0 0.0
      %2999 = vmatprep.subr.mxu0 0.0
      %3000 = vmatpush1.msra.mxu0 %v2968
      %3001 = vmatprep.subr.mxu0 0.0
      %3002 = vmatpush1.msra.mxu0 %v2967
      %3003 = vmatprep.subr.mxu0 0.0
      %3004 = vmatpush1.msra.mxu0 %v2966
      %3005 = vmatprep.subr.mxu0 0.0
      %3006 = vmatpush1.msra.mxu0 %v2965
      %3007 = vmatprep.subr.mxu0 0.0
      %3008 = vmatpush2.msra.mxu0 0.0
      %3009 = vmatprep.subr.mxu0 0.0
      %3010 = vmatpush2.msra.mxu0 0.0
      %3011 = vmatprep.subr.mxu0 0.0
      %3012 = vmatpush2.msra.mxu0 0.0
      %3013 = vmatprep.subr.mxu0 0.0
      %3014 = vmatpush2.msra.mxu0 0.0
      %3015 = vmatprep.subr.mxu0 0.0
      %3016 = vmatpush2.msra.mxu0 0.0
      %3017 = vmatprep.subr.mxu0 0.0
      %3018 = vmatpush2.msra.mxu0 0.0
      %3019 = vmatprep.subr.mxu0 0.0
      %3020 = vmatpush2.msra.mxu0 0.0
      %3021 = vmatprep.subr.mxu0 0.0
      %3022 = vmatpush2.msra.mxu0 0.0
      %3023 = vmatprep.subr.mxu0 0.0
      %3024 = vmatpush2.msra.mxu0 0.0
      %3025 = vmatprep.subr.mxu0 0.0
      %3026 = vmatpush2.msra.mxu0 0.0
      %3027 = vmatprep.subr.mxu0 0.0
      %3028 = vmatpush2.msra.mxu0 0.0
      %3029 = vmatprep.subr.mxu0 0.0
      %3030 = vmatpush2.msra.mxu0 0.0
      %3031 = vmatprep.subr.mxu0 0.0
      %3032 = vmatpush2.msra.mxu0 0.0
      %3033 = vmatprep.subr.mxu0 0.0
      %3034 = vmatpush2.msra.mxu0 0.0
      %3035 = vmatprep.subr.mxu0 0.0
      %3036 = vmatpush2.msra.mxu0 0.0
      %3037 = vmatprep.subr.mxu0 0.0
      %3038 = vmatpush2.msra.mxu0 0.0
      %3039 = vmatprep.mubr.f32.mxu0 0.0
      %3040 = vmatmul.mubr.f32.gmra.mxu0 %v2970
      %v3041 = vpop.f32.mrf.mxu0
      %v3042 = vadd.f32 0.0, %v3041
      %v3043 = vpop.f32.mrf.mxu0
      %3044 = vmatprep.mubr.f32.mxu0 0.0
      %3045 = vmatmul.mubr.f32.gmra.mxu0 %v2973
      %v3046 = vpop.f32.mrf.mxu0
      %v3047 = vadd.f32 0.0, %v3046
      %v3048 = vpop.f32.mrf.mxu0
      %3049 = vdwg.mxu0
      %v3050 = vld [vmem:[%s37] sm:$0xff]
      %v3051 = vld [vmem:[%s37 + $0x8] sm:$0xff]
      %v3053 = vsel %vm1504, %v3042, 0
      %v3056 = vsel %vm1504, %v3047, 0
      %3058 = vmatprep.subr.mxu0 0.0
      %3059 = vmatpush1.msra.mxu0 0.0
      %3060 = vmatprep.subr.mxu0 0.0
      %3061 = vmatpush1.msra.mxu0 0.0
      %3062 = vmatprep.subr.mxu0 0.0
      %3063 = vmatpush1.msra.mxu0 0.0
      %3064 = vmatprep.subr.mxu0 0.0
      %3065 = vmatpush1.msra.mxu0 0.0
      %3066 = vmatprep.subr.mxu0 0.0
      %3067 = vmatpush1.msra.mxu0 0.0
      %3068 = vmatprep.subr.mxu0 0.0
      %3069 = vmatpush1.msra.mxu0 0.0
      %3070 = vmatprep.subr.mxu0 0.0
      %3071 = vmatpush1.msra.mxu0 0.0
      %3072 = vmatprep.subr.mxu0 0.0
      %3073 = vmatpush1.msra.mxu0 0.0
      %3074 = vmatprep.subr.mxu0 0.0
      %3075 = vmatpush1.msra.mxu0 0.0
      %3076 = vmatprep.subr.mxu0 0.0
      %3077 = vmatpush1.msra.mxu0 0.0
      %3078 = vmatprep.subr.mxu0 0.0
      %3079 = vmatpush1.msra.mxu0 0.0
      %3080 = vmatprep.subr.mxu0 0.0
      %3081 = vmatpush1.msra.mxu0 0.0
      %3082 = vmatprep.subr.mxu0 0.0
      %3083 = vmatpush1.msra.mxu0 0.0
      %3084 = vmatprep.subr.mxu0 0.0
      %3085 = vmatpush1.msra.mxu0 0.0
      %3086 = vmatprep.subr.mxu0 0.0
      %3087 = vmatpush1.msra.mxu0 %v3051
      %3088 = vmatprep.subr.mxu0 0.0
      %3089 = vmatpush1.msra.mxu0 %v3050
      %3090 = vmatprep.subr.mxu0 0.0
      %3091 = vmatpush2.msra.mxu0 0.0
      %3092 = vmatprep.subr.mxu0 0.0
      %3093 = vmatpush2.msra.mxu0 0.0
      %3094 = vmatprep.subr.mxu0 0.0
      %3095 = vmatpush2.msra.mxu0 0.0
      %3096 = vmatprep.subr.mxu0 0.0
      %3097 = vmatpush2.msra.mxu0 0.0
      %3098 = vmatprep.subr.mxu0 0.0
      %3099 = vmatpush2.msra.mxu0 0.0
      %3100 = vmatprep.subr.mxu0 0.0
      %3101 = vmatpush2.msra.mxu0 0.0
      %3102 = vmatprep.subr.mxu0 0.0
      %3103 = vmatpush2.msra.mxu0 0.0
      %3104 = vmatprep.subr.mxu0 0.0
      %3105 = vmatpush2.msra.mxu0 0.0
      %3106 = vmatprep.subr.mxu0 0.0
      %3107 = vmatpush2.msra.mxu0 0.0
      %3108 = vmatprep.subr.mxu0 0.0
      %3109 = vmatpush2.msra.mxu0 0.0
      %3110 = vmatprep.subr.mxu0 0.0
      %3111 = vmatpush2.msra.mxu0 0.0
      %3112 = vmatprep.subr.mxu0 0.0
      %3113 = vmatpush2.msra.mxu0 0.0
      %3114 = vmatprep.subr.mxu0 0.0
      %3115 = vmatpush2.msra.mxu0 0.0
      %3116 = vmatprep.subr.mxu0 0.0
      %3117 = vmatpush2.msra.mxu0 0.0
      %3118 = vmatprep.subr.mxu0 0.0
      %3119 = vmatpush2.msra.mxu0 0.0
      %3120 = vmatprep.subr.mxu0 0.0
      %3121 = vmatpush2.msra.mxu0 0.0
      %3122 = vmatprep.mubr.f32.mxu0 0.0
      %3123 = vmatmul.mubr.f32.gmra.mxu0 %v3053
      %v3124 = vpop.f32.mrf.mxu0
      %v3125 = vadd.f32 0.0, %v3124
      %v3126 = vpop.f32.mrf.mxu0
      %3127 = vmatprep.mubr.f32.mxu0 0.0
      %3128 = vmatmul.mubr.f32.gmra.mxu0 %v3056
      %v3129 = vpop.f32.mrf.mxu0
      %v3130 = vadd.f32 0.0, %v3129
      %v3131 = vpop.f32.mrf.mxu0
      %3132 = vdwg.mxu0
      %v3133 = vld [vmem:[%s39] sm:$0xff]
      %v3134 = vld [vmem:[%s39 + $0x8] sm:$0xff]
      %3135 = vmatprep.subr.mxu0 0.0
      %3136 = vmatpush1.msra.mxu0 0.0
      %3137 = vmatprep.subr.mxu0 0.0
      %3138 = vmatpush1.msra.mxu0 0.0
      %3139 = vmatprep.subr.mxu0 0.0
      %3140 = vmatpush1.msra.mxu0 0.0
      %3141 = vmatprep.subr.mxu0 0.0
      %3142 = vmatpush1.msra.mxu0 0.0
      %3143 = vmatprep.subr.mxu0 0.0
      %3144 = vmatpush1.msra.mxu0 0.0
      %3145 = vmatprep.subr.mxu0 0.0
      %3146 = vmatpush1.msra.mxu0 0.0
      %3147 = vmatprep.subr.mxu0 0.0
      %3148 = vmatpush1.msra.mxu0 0.0
      %3149 = vmatprep.subr.mxu0 0.0
      %3150 = vmatpush1.msra.mxu0 0.0
      %3151 = vmatprep.subr.mxu0 0.0
      %3152 = vmatpush1.msra.mxu0 0.0
      %3153 = vmatprep.subr.mxu0 0.0
      %3154 = vmatpush1.msra.mxu0 0.0
      %3155 = vmatprep.subr.mxu0 0.0
      %3156 = vmatpush1.msra.mxu0 0.0
      %3157 = vmatprep.subr.mxu0 0.0
      %3158 = vmatpush1.msra.mxu0 0.0
      %3159 = vmatprep.subr.mxu0 0.0
      %3160 = vmatpush1.msra.mxu0 0.0
      %3161 = vmatprep.subr.mxu0 0.0
      %3162 = vmatpush1.msra.mxu0 0.0
      %3163 = vmatprep.subr.mxu0 0.0
      %3164 = vmatpush1.msra.mxu0 %v3134
      %3165 = vmatprep.subr.mxu0 0.0
      %3166 = vmatpush1.msra.mxu0 %v3133
      %3167 = vmatprep.subr.mxu0 0.0
      %3168 = vmatpush2.msra.mxu0 0.0
      %3169 = vmatprep.subr.mxu0 0.0
      %3170 = vmatpush2.msra.mxu0 0.0
      %3171 = vmatprep.subr.mxu0 0.0
      %3172 = vmatpush2.msra.mxu0 0.0
      %3173 = vmatprep.subr.mxu0 0.0
      %3174 = vmatpush2.msra.mxu0 0.0
      %3175 = vmatprep.subr.mxu0 0.0
      %3176 = vmatpush2.msra.mxu0 0.0
      %3177 = vmatprep.subr.mxu0 0.0
      %3178 = vmatpush2.msra.mxu0 0.0
      %3179 = vmatprep.subr.mxu0 0.0
      %3180 = vmatpush2.msra.mxu0 0.0
      %3181 = vmatprep.subr.mxu0 0.0
      %3182 = vmatpush2.msra.mxu0 0.0
      %3183 = vmatprep.subr.mxu0 0.0
      %3184 = vmatpush2.msra.mxu0 0.0
      %3185 = vmatprep.subr.mxu0 0.0
      %3186 = vmatpush2.msra.mxu0 0.0
      %3187 = vmatprep.subr.mxu0 0.0
      %3188 = vmatpush2.msra.mxu0 0.0
      %3189 = vmatprep.subr.mxu0 0.0
      %3190 = vmatpush2.msra.mxu0 0.0
      %3191 = vmatprep.subr.mxu0 0.0
      %3192 = vmatpush2.msra.mxu0 0.0
      %3193 = vmatprep.subr.mxu0 0.0
      %3194 = vmatpush2.msra.mxu0 0.0
      %3195 = vmatprep.subr.mxu0 0.0
      %3196 = vmatpush2.msra.mxu0 0.0
      %3197 = vmatprep.subr.mxu0 0.0
      %3198 = vmatpush2.msra.mxu0 0.0
      %3199 = vmatprep.mubr.f32.mxu0 0.0
      %3200 = vmatmul.mubr.f32.gmra.mxu0 %v3053
      %v3201 = vpop.f32.mrf.mxu0
      %v3202 = vadd.f32 0.0, %v3201
      %v3203 = vpop.f32.mrf.mxu0
      %3204 = vmatprep.mubr.f32.mxu0 0.0
      %3205 = vmatmul.mubr.f32.gmra.mxu0 %v3056
      %v3206 = vpop.f32.mrf.mxu0
      %v3207 = vadd.f32 0.0, %v3206
      %v3208 = vpop.f32.mrf.mxu0
      %3209 = vdwg.mxu0
      %v3210 = vrot.slane %v3042, 7
      %v3211 = vrot.slane %v3047, 7
      %v3212 = vsel %vm1830, %v3210, %v3211
      %v3213 = vsel %vm1830, %v3211, %v3210
      %v3214 = vrot.slane %v3042, 1
      %v3215 = vrot.slane %v3047, 1
      %v3216 = vsel %vm1835, %v3214, %v3215
      %v3217 = vsel %vm1835, %v3215, %v3214
      %v3218 = vrot.slane %v3202, 7
      %v3219 = vrot.slane %v3207, 7
      %v3220 = vsel %vm1830, %v3218, %v3219
      %v3221 = vsel %vm1830, %v3219, %v3218
      %v3222 = vrot.slane %v3202, 1
      %v3223 = vrot.slane %v3207, 1
      %v3224 = vsel %vm1835, %v3222, %v3223
      %v3225 = vsel %vm1835, %v3223, %v3222
      %v3226 = vadd.f32 %v3125, %v3221
      %v3227 = vadd.f32 %v3130, %v3220
      %vm3228 = vcmp.gt.f32.partialorder %v3226, 0.0
      %vm3229 = vcmp.gt.f32.partialorder %v3227, 0.0
      %v3230 = vmul.f32 %v3226, 0.2
      %v3231 = vmul.f32 %v3227, 0.2
      %v3232 = vsel %vm3228, %v3226, %v3230
      %v3233 = vsel %vm3229, %v3227, %v3231
      %v3234 = vadd.f32 %v3232, %v1857
      %v3235 = vadd.f32 %v3233, %v1862
      %v3236 = vadd.f32 %v3125, %v3202
      %v3237 = vadd.f32 %v3130, %v3207
      %vm3238 = vcmp.gt.f32.partialorder %v3236, 0.0
      %vm3239 = vcmp.gt.f32.partialorder %v3237, 0.0
      %v3240 = vmul.f32 %v3236, 0.2
      %v3241 = vmul.f32 %v3237, 0.2
      %v3242 = vsel %vm3238, %v3236, %v3240
      %v3243 = vsel %vm3239, %v3237, %v3241
      %v3244 = vadd.f32 %v3242, %v1876
      %v3245 = vadd.f32 %v3243, %v1880
      %v3246 = vadd.f32 %v3125, %v3224
      %v3247 = vadd.f32 %v3130, %v3225
      %vm3248 = vcmp.gt.f32.partialorder %v3246, 0.0
      %vm3249 = vcmp.gt.f32.partialorder %v3247, 0.0
      %v3250 = vmul.f32 %v3246, 0.2
      %v3251 = vmul.f32 %v3247, 0.2
      %v3252 = vsel %vm3248, %v3246, %v3250
      %v3253 = vsel %vm3249, %v3247, %v3251
      %v3254 = vadd.f32 %v3252, %v1894
      %v3255 = vadd.f32 %v3253, %v1898
      %v3256 = vmax.f32 %v3234, %v3244
      %v3257 = vmax.f32 %v3235, %v3245
      %v3258 = vmax.f32 %v3256, %v3254
      %v3259 = vmax.f32 %v3257, %v3255
      %v3260 = vsub.f32 %v3234, %v3258
      %v3261 = vsub.f32 %v3235, %v3259
      %v3262 = vmul.f32 %v3260, 1.442695
      %v3263 = vpow.pop %v3262
      %v3264 = vmul.f32 %v3261, 1.442695
      %v3265 = vpow.pop %v3264
      %v3266 = vsub.f32 %v3244, %v3258
      %v3267 = vsub.f32 %v3245, %v3259
      %v3268 = vmul.f32 %v3266, 1.442695
      %v3269 = vpow.pop %v3268
      %v3270 = vmul.f32 %v3267, 1.442695
      %v3271 = vpow.pop %v3270
      %v3272 = vsub.f32 %v3254, %v3258
      %v3273 = vsub.f32 %v3255, %v3259
      %v3274 = vmul.f32 %v3272, 1.442695
      %v3275 = vpow.pop %v3274
      %v3276 = vmul.f32 %v3273, 1.442695
      %v3277 = vpow.pop %v3276
      %v3278 = vadd.f32 %v3263, %v3269
      %v3279 = vadd.f32 %v3265, %v3271
      %v3280 = vadd.f32 %v3278, %v3275
      %v3281 = vadd.f32 %v3279, %v3277
      %v3282 = vrcp.pop %v3280
      %v3283 = vrcp.pop %v3281
      %v3284 = vld [vmem:[%s41] sm:$0x3]
      %v3285 = vmul.f32 %v3263, %v3282
      %v3286 = vmul.f32 %v3265, %v3283
      %v3288 = vsel %vm1933, %v3285, 0
      %v3291 = vsel %vm1933, %v3286, 0
      %v3294 = vsel %vm1940, %v3284, 0
      %3296 = vmatprep.subr.mxu0 0.0
      %3297 = vmatpush1.msra.mxu0 0.0
      %3298 = vmatprep.subr.mxu0 0.0
      %3299 = vmatpush1.msra.mxu0 0.0
      %3300 = vmatprep.subr.mxu0 0.0
      %3301 = vmatpush1.msra.mxu0 0.0
      %3302 = vmatprep.subr.mxu0 0.0
      %3303 = vmatpush1.msra.mxu0 0.0
      %3304 = vmatprep.subr.mxu0 0.0
      %3305 = vmatpush1.msra.mxu0 0.0
      %3306 = vmatprep.subr.mxu0 0.0
      %3307 = vmatpush1.msra.mxu0 0.0
      %3308 = vmatprep.subr.mxu0 0.0
      %3309 = vmatpush1.msra.mxu0 0.0
      %3310 = vmatprep.subr.mxu0 0.0
      %3311 = vmatpush1.msra.mxu0 0.0
      %3312 = vmatprep.subr.mxu0 0.0
      %3313 = vmatpush1.msra.mxu0 0.0
      %3314 = vmatprep.subr.mxu0 0.0
      %3315 = vmatpush1.msra.mxu0 0.0
      %3316 = vmatprep.subr.mxu0 0.0
      %3317 = vmatpush1.msra.mxu0 0.0
      %3318 = vmatprep.subr.mxu0 0.0
      %3319 = vmatpush1.msra.mxu0 0.0
      %3320 = vmatprep.subr.mxu0 0.0
      %3321 = vmatpush1.msra.mxu0 0.0
      %3322 = vmatprep.subr.mxu0 0.0
      %3323 = vmatpush1.msra.mxu0 0.0
      %3324 = vmatprep.subr.mxu0 0.0
      %3325 = vmatpush1.msra.mxu0 0.0
      %3326 = vmatprep.subr.mxu0 0.0
      %3327 = vmatpush1.msra.mxu0 %v3294
      %3328 = vmatprep.subr.mxu0 0.0
      %3329 = vmatpush2.msra.mxu0 0.0
      %3330 = vmatprep.subr.mxu0 0.0
      %3331 = vmatpush2.msra.mxu0 0.0
      %3332 = vmatprep.subr.mxu0 0.0
      %3333 = vmatpush2.msra.mxu0 0.0
      %3334 = vmatprep.subr.mxu0 0.0
      %3335 = vmatpush2.msra.mxu0 0.0
      %3336 = vmatprep.subr.mxu0 0.0
      %3337 = vmatpush2.msra.mxu0 0.0
      %3338 = vmatprep.subr.mxu0 0.0
      %3339 = vmatpush2.msra.mxu0 0.0
      %3340 = vmatprep.subr.mxu0 0.0
      %3341 = vmatpush2.msra.mxu0 0.0
      %3342 = vmatprep.subr.mxu0 0.0
      %3343 = vmatpush2.msra.mxu0 0.0
      %3344 = vmatprep.subr.mxu0 0.0
      %3345 = vmatpush2.msra.mxu0 0.0
      %3346 = vmatprep.subr.mxu0 0.0
      %3347 = vmatpush2.msra.mxu0 0.0
      %3348 = vmatprep.subr.mxu0 0.0
      %3349 = vmatpush2.msra.mxu0 0.0
      %3350 = vmatprep.subr.mxu0 0.0
      %3351 = vmatpush2.msra.mxu0 0.0
      %3352 = vmatprep.subr.mxu0 0.0
      %3353 = vmatpush2.msra.mxu0 0.0
      %3354 = vmatprep.subr.mxu0 0.0
      %3355 = vmatpush2.msra.mxu0 0.0
      %3356 = vmatprep.subr.mxu0 0.0
      %3357 = vmatpush2.msra.mxu0 0.0
      %3358 = vmatprep.subr.mxu0 0.0
      %3359 = vmatpush2.msra.mxu0 0.0
      %3360 = vmatprep.mubr.f32.mxu0 0.0
      %3361 = vmatmul.mubr.f32.gmra.mxu0 %v3288
      %v3362 = vpop.f32.mrf.mxu0
      %v3363 = vadd.f32 0.0, %v3362
      %v3364 = vpop.f32.mrf.mxu0
      %3365 = vmatprep.mubr.f32.mxu0 0.0
      %3366 = vmatmul.mubr.f32.gmra.mxu0 %v3291
      %v3367 = vpop.f32.mrf.mxu0
      %v3368 = vadd.f32 0.0, %v3367
      %v3369 = vpop.f32.mrf.mxu0
      %3370 = vdwg.mxu0
      %v3371 = vmul.f32 %v3269, %v3282
      %v3372 = vmul.f32 %v3271, %v3283
      %v3374 = vsel %vm1933, %v3371, 0
      %v3377 = vsel %vm1933, %v3372, 0
      %3379 = vmatprep.subr.mxu0 0.0
      %3380 = vmatpush1.msra.mxu0 0.0
      %3381 = vmatprep.subr.mxu0 0.0
      %3382 = vmatpush1.msra.mxu0 0.0
      %3383 = vmatprep.subr.mxu0 0.0
      %3384 = vmatpush1.msra.mxu0 0.0
      %3385 = vmatprep.subr.mxu0 0.0
      %3386 = vmatpush1.msra.mxu0 0.0
      %3387 = vmatprep.subr.mxu0 0.0
      %3388 = vmatpush1.msra.mxu0 0.0
      %3389 = vmatprep.subr.mxu0 0.0
      %3390 = vmatpush1.msra.mxu0 0.0
      %3391 = vmatprep.subr.mxu0 0.0
      %3392 = vmatpush1.msra.mxu0 0.0
      %3393 = vmatprep.subr.mxu0 0.0
      %3394 = vmatpush1.msra.mxu0 0.0
      %3395 = vmatprep.subr.mxu0 0.0
      %3396 = vmatpush1.msra.mxu0 0.0
      %3397 = vmatprep.subr.mxu0 0.0
      %3398 = vmatpush1.msra.mxu0 0.0
      %3399 = vmatprep.subr.mxu0 0.0
      %3400 = vmatpush1.msra.mxu0 0.0
      %3401 = vmatprep.subr.mxu0 0.0
      %3402 = vmatpush1.msra.mxu0 0.0
      %3403 = vmatprep.subr.mxu0 0.0
      %3404 = vmatpush1.msra.mxu0 0.0
      %3405 = vmatprep.subr.mxu0 0.0
      %3406 = vmatpush1.msra.mxu0 0.0
      %3407 = vmatprep.subr.mxu0 0.0
      %3408 = vmatpush1.msra.mxu0 0.0
      %3409 = vmatprep.subr.mxu0 0.0
      %3410 = vmatpush1.msra.mxu0 %v3294
      %3411 = vmatprep.subr.mxu0 0.0
      %3412 = vmatpush2.msra.mxu0 0.0
      %3413 = vmatprep.subr.mxu0 0.0
      %3414 = vmatpush2.msra.mxu0 0.0
      %3415 = vmatprep.subr.mxu0 0.0
      %3416 = vmatpush2.msra.mxu0 0.0
      %3417 = vmatprep.subr.mxu0 0.0
      %3418 = vmatpush2.msra.mxu0 0.0
      %3419 = vmatprep.subr.mxu0 0.0
      %3420 = vmatpush2.msra.mxu0 0.0
      %3421 = vmatprep.subr.mxu0 0.0
      %3422 = vmatpush2.msra.mxu0 0.0
      %3423 = vmatprep.subr.mxu0 0.0
      %3424 = vmatpush2.msra.mxu0 0.0
      %3425 = vmatprep.subr.mxu0 0.0
      %3426 = vmatpush2.msra.mxu0 0.0
      %3427 = vmatprep.subr.mxu0 0.0
      %3428 = vmatpush2.msra.mxu0 0.0
      %3429 = vmatprep.subr.mxu0 0.0
      %3430 = vmatpush2.msra.mxu0 0.0
      %3431 = vmatprep.subr.mxu0 0.0
      %3432 = vmatpush2.msra.mxu0 0.0
      %3433 = vmatprep.subr.mxu0 0.0
      %3434 = vmatpush2.msra.mxu0 0.0
      %3435 = vmatprep.subr.mxu0 0.0
      %3436 = vmatpush2.msra.mxu0 0.0
      %3437 = vmatprep.subr.mxu0 0.0
      %3438 = vmatpush2.msra.mxu0 0.0
      %3439 = vmatprep.subr.mxu0 0.0
      %3440 = vmatpush2.msra.mxu0 0.0
      %3441 = vmatprep.subr.mxu0 0.0
      %3442 = vmatpush2.msra.mxu0 0.0
      %3443 = vmatprep.mubr.f32.mxu0 0.0
      %3444 = vmatmul.mubr.f32.gmra.mxu0 %v3374
      %v3445 = vpop.f32.mrf.mxu0
      %v3446 = vadd.f32 0.0, %v3445
      %v3447 = vpop.f32.mrf.mxu0
      %3448 = vmatprep.mubr.f32.mxu0 0.0
      %3449 = vmatmul.mubr.f32.gmra.mxu0 %v3377
      %v3450 = vpop.f32.mrf.mxu0
      %v3451 = vadd.f32 0.0, %v3450
      %v3452 = vpop.f32.mrf.mxu0
      %3453 = vdwg.mxu0
      %v3454 = vmul.f32 %v3275, %v3282
      %v3455 = vmul.f32 %v3277, %v3283
      %v3457 = vsel %vm1933, %v3454, 0
      %v3460 = vsel %vm1933, %v3455, 0
      %3462 = vmatprep.subr.mxu0 0.0
      %3463 = vmatpush1.msra.mxu0 0.0
      %3464 = vmatprep.subr.mxu0 0.0
      %3465 = vmatpush1.msra.mxu0 0.0
      %3466 = vmatprep.subr.mxu0 0.0
      %3467 = vmatpush1.msra.mxu0 0.0
      %3468 = vmatprep.subr.mxu0 0.0
      %3469 = vmatpush1.msra.mxu0 0.0
      %3470 = vmatprep.subr.mxu0 0.0
      %3471 = vmatpush1.msra.mxu0 0.0
      %3472 = vmatprep.subr.mxu0 0.0
      %3473 = vmatpush1.msra.mxu0 0.0
      %3474 = vmatprep.subr.mxu0 0.0
      %3475 = vmatpush1.msra.mxu0 0.0
      %3476 = vmatprep.subr.mxu0 0.0
      %3477 = vmatpush1.msra.mxu0 0.0
      %3478 = vmatprep.subr.mxu0 0.0
      %3479 = vmatpush1.msra.mxu0 0.0
      %3480 = vmatprep.subr.mxu0 0.0
      %3481 = vmatpush1.msra.mxu0 0.0
      %3482 = vmatprep.subr.mxu0 0.0
      %3483 = vmatpush1.msra.mxu0 0.0
      %3484 = vmatprep.subr.mxu0 0.0
      %3485 = vmatpush1.msra.mxu0 0.0
      %3486 = vmatprep.subr.mxu0 0.0
      %3487 = vmatpush1.msra.mxu0 0.0
      %3488 = vmatprep.subr.mxu0 0.0
      %3489 = vmatpush1.msra.mxu0 0.0
      %3490 = vmatprep.subr.mxu0 0.0
      %3491 = vmatpush1.msra.mxu0 0.0
      %3492 = vmatprep.subr.mxu0 0.0
      %3493 = vmatpush1.msra.mxu0 %v3294
      %3494 = vmatprep.subr.mxu0 0.0
      %3495 = vmatpush2.msra.mxu0 0.0
      %3496 = vmatprep.subr.mxu0 0.0
      %3497 = vmatpush2.msra.mxu0 0.0
      %3498 = vmatprep.subr.mxu0 0.0
      %3499 = vmatpush2.msra.mxu0 0.0
      %3500 = vmatprep.subr.mxu0 0.0
      %3501 = vmatpush2.msra.mxu0 0.0
      %3502 = vmatprep.subr.mxu0 0.0
      %3503 = vmatpush2.msra.mxu0 0.0
      %3504 = vmatprep.subr.mxu0 0.0
      %3505 = vmatpush2.msra.mxu0 0.0
      %3506 = vmatprep.subr.mxu0 0.0
      %3507 = vmatpush2.msra.mxu0 0.0
      %3508 = vmatprep.subr.mxu0 0.0
      %3509 = vmatpush2.msra.mxu0 0.0
      %3510 = vmatprep.subr.mxu0 0.0
      %3511 = vmatpush2.msra.mxu0 0.0
      %3512 = vmatprep.subr.mxu0 0.0
      %3513 = vmatpush2.msra.mxu0 0.0
      %3514 = vmatprep.subr.mxu0 0.0
      %3515 = vmatpush2.msra.mxu0 0.0
      %3516 = vmatprep.subr.mxu0 0.0
      %3517 = vmatpush2.msra.mxu0 0.0
      %3518 = vmatprep.subr.mxu0 0.0
      %3519 = vmatpush2.msra.mxu0 0.0
      %3520 = vmatprep.subr.mxu0 0.0
      %3521 = vmatpush2.msra.mxu0 0.0
      %3522 = vmatprep.subr.mxu0 0.0
      %3523 = vmatpush2.msra.mxu0 0.0
      %3524 = vmatprep.subr.mxu0 0.0
      %3525 = vmatpush2.msra.mxu0 0.0
      %3526 = vmatprep.mubr.f32.mxu0 0.0
      %3527 = vmatmul.mubr.f32.gmra.mxu0 %v3457
      %v3528 = vpop.f32.mrf.mxu0
      %v3529 = vadd.f32 0.0, %v3528
      %v3530 = vpop.f32.mrf.mxu0
      %3531 = vmatprep.mubr.f32.mxu0 0.0
      %3532 = vmatmul.mubr.f32.gmra.mxu0 %v3460
      %v3533 = vpop.f32.mrf.mxu0
      %v3534 = vadd.f32 0.0, %v3533
      %v3535 = vpop.f32.mrf.mxu0
      %3536 = vdwg.mxu0
      %v3537 = vmul.f32 %v3363, %v3213
      %v3538 = vmul.f32 %v3368, %v3212
      %v3539 = vmul.f32 %v3446, %v3042
      %v3540 = vmul.f32 %v3451, %v3047
      %v3541 = vadd.f32 %v3537, %v3539
      %v3542 = vadd.f32 %v3538, %v3540
      %v3543 = vmul.f32 %v3529, %v3216
      %v3544 = vmul.f32 %v3534, %v3217
      %v3545 = vadd.f32 %v3541, %v3543
      %v3546 = vadd.f32 %v3542, %v3544
      %v3547 = vld [vmem:[%s43] sm:$0xff]
      %v3548 = vld [vmem:[%s43 + $0x8] sm:$0xff]
      %v3550 = vsel %vm1504, %v3545, 0
      %v3553 = vsel %vm1504, %v3546, 0
      %3555 = vmatprep.subr.mxu0 0.0
      %3556 = vmatpush1.msra.mxu0 0.0
      %3557 = vmatprep.subr.mxu0 0.0
      %3558 = vmatpush1.msra.mxu0 0.0
      %3559 = vmatprep.subr.mxu0 0.0
      %3560 = vmatpush1.msra.mxu0 0.0
      %3561 = vmatprep.subr.mxu0 0.0
      %3562 = vmatpush1.msra.mxu0 0.0
      %3563 = vmatprep.subr.mxu0 0.0
      %3564 = vmatpush1.msra.mxu0 0.0
      %3565 = vmatprep.subr.mxu0 0.0
      %3566 = vmatpush1.msra.mxu0 0.0
      %3567 = vmatprep.subr.mxu0 0.0
      %3568 = vmatpush1.msra.mxu0 0.0
      %3569 = vmatprep.subr.mxu0 0.0
      %3570 = vmatpush1.msra.mxu0 0.0
      %3571 = vmatprep.subr.mxu0 0.0
      %3572 = vmatpush1.msra.mxu0 0.0
      %3573 = vmatprep.subr.mxu0 0.0
      %3574 = vmatpush1.msra.mxu0 0.0
      %3575 = vmatprep.subr.mxu0 0.0
      %3576 = vmatpush1.msra.mxu0 0.0
      %3577 = vmatprep.subr.mxu0 0.0
      %3578 = vmatpush1.msra.mxu0 0.0
      %3579 = vmatprep.subr.mxu0 0.0
      %3580 = vmatpush1.msra.mxu0 0.0
      %3581 = vmatprep.subr.mxu0 0.0
      %3582 = vmatpush1.msra.mxu0 0.0
      %3583 = vmatprep.subr.mxu0 0.0
      %3584 = vmatpush1.msra.mxu0 %v3548
      %3585 = vmatprep.subr.mxu0 0.0
      %3586 = vmatpush1.msra.mxu0 %v3547
      %3587 = vmatprep.subr.mxu0 0.0
      %3588 = vmatpush2.msra.mxu0 0.0
      %3589 = vmatprep.subr.mxu0 0.0
      %3590 = vmatpush2.msra.mxu0 0.0
      %3591 = vmatprep.subr.mxu0 0.0
      %3592 = vmatpush2.msra.mxu0 0.0
      %3593 = vmatprep.subr.mxu0 0.0
      %3594 = vmatpush2.msra.mxu0 0.0
      %3595 = vmatprep.subr.mxu0 0.0
      %3596 = vmatpush2.msra.mxu0 0.0
      %3597 = vmatprep.subr.mxu0 0.0
      %3598 = vmatpush2.msra.mxu0 0.0
      %3599 = vmatprep.subr.mxu0 0.0
      %3600 = vmatpush2.msra.mxu0 0.0
      %3601 = vmatprep.subr.mxu0 0.0
      %3602 = vmatpush2.msra.mxu0 0.0
      %3603 = vmatprep.subr.mxu0 0.0
      %3604 = vmatpush2.msra.mxu0 0.0
      %3605 = vmatprep.subr.mxu0 0.0
      %3606 = vmatpush2.msra.mxu0 0.0
      %3607 = vmatprep.subr.mxu0 0.0
      %3608 = vmatpush2.msra.mxu0 0.0
      %3609 = vmatprep.subr.mxu0 0.0
      %3610 = vmatpush2.msra.mxu0 0.0
      %3611 = vmatprep.subr.mxu0 0.0
      %3612 = vmatpush2.msra.mxu0 0.0
      %3613 = vmatprep.subr.mxu0 0.0
      %3614 = vmatpush2.msra.mxu0 0.0
      %3615 = vmatprep.subr.mxu0 0.0
      %3616 = vmatpush2.msra.mxu0 0.0
      %3617 = vmatprep.subr.mxu0 0.0
      %3618 = vmatpush2.msra.mxu0 0.0
      %3619 = vmatprep.mubr.f32.mxu0 0.0
      %3620 = vmatmul.mubr.f32.gmra.mxu0 %v3550
      %v3621 = vpop.f32.mrf.mxu0
      %v3622 = vadd.f32 0.0, %v3621
      %v3623 = vpop.f32.mrf.mxu0
      %3624 = vmatprep.mubr.f32.mxu0 0.0
      %3625 = vmatmul.mubr.f32.gmra.mxu0 %v3553
      %v3626 = vpop.f32.mrf.mxu0
      %v3627 = vadd.f32 0.0, %v3626
      %v3628 = vpop.f32.mrf.mxu0
      %3629 = vdwg.mxu0
      %vm3630 = vcmp.gt.f32.partialorder %v3622, 0.0
      %vm3631 = vcmp.gt.f32.partialorder %v3627, 0.0
      %v3632 = vmul.f32 %v3622, 1.442695
      %v3633 = vpow.pop %v3632
      %v3634 = vmul.f32 %v3627, 1.442695
      %v3635 = vpow.pop %v3634
      %v3636 = vsub.f32 %v3633, 1.0
      %v3637 = vsub.f32 %v3635, 1.0
      %v3638 = vsel %vm3630, %v3622, %v3636
      %v3639 = vsel %vm3631, %v3627, %v3637
      %v3640 = vld [vmem:[%s45] sm:$0xff]
      %v3641 = vld [vmem:[%s45 + $0x8] sm:$0xff]
      %v3642 = vld [vmem:[%s45 + $0x10] sm:$0xff]
      %v3643 = vld [vmem:[%s45 + $0x18] sm:$0xff]
      %vm3648 = vcmask 1041409
      %v3649 = vsel %vm3648, %v2892, %v2891
      %vm3650 = vcmask 1042434
      %v3651 = vsel %vm3650, %v2893, %v3649
      %vm3652 = vcmask 1043459
      %v3653 = vsel %vm3652, %v2894, %v3651
      %v3654 = vsel %vm1665, %v3653, 0
      %3656 = vmatprep.subr.mxu0 0.0
      %3657 = vmatpush1.msra.mxu0 0.0
      %3658 = vmatprep.subr.mxu0 0.0
      %3659 = vmatpush1.msra.mxu0 0.0
      %3660 = vmatprep.subr.mxu0 0.0
      %3661 = vmatpush1.msra.mxu0 0.0
      %3662 = vmatprep.subr.mxu0 0.0
      %3663 = vmatpush1.msra.mxu0 0.0
      %3664 = vmatprep.subr.mxu0 0.0
      %3665 = vmatpush1.msra.mxu0 0.0
      %3666 = vmatprep.subr.mxu0 0.0
      %3667 = vmatpush1.msra.mxu0 0.0
      %3668 = vmatprep.subr.mxu0 0.0
      %3669 = vmatpush1.msra.mxu0 0.0
      %3670 = vmatprep.subr.mxu0 0.0
      %3671 = vmatpush1.msra.mxu0 0.0
      %3672 = vmatprep.subr.mxu0 0.0
      %3673 = vmatpush1.msra.mxu0 0.0
      %3674 = vmatprep.subr.mxu0 0.0
      %3675 = vmatpush1.msra.mxu0 0.0
      %3676 = vmatprep.subr.mxu0 0.0
      %3677 = vmatpush1.msra.mxu0 0.0
      %3678 = vmatprep.subr.mxu0 0.0
      %3679 = vmatpush1.msra.mxu0 0.0
      %3680 = vmatprep.subr.mxu0 0.0
      %3681 = vmatpush1.msra.mxu0 %v3643
      %3682 = vmatprep.subr.mxu0 0.0
      %3683 = vmatpush1.msra.mxu0 %v3642
      %3684 = vmatprep.subr.mxu0 0.0
      %3685 = vmatpush1.msra.mxu0 %v3641
      %3686 = vmatprep.subr.mxu0 0.0
      %3687 = vmatpush1.msra.mxu0 %v3640
      %3688 = vmatprep.subr.mxu0 0.0
      %3689 = vmatpush2.msra.mxu0 0.0
      %3690 = vmatprep.subr.mxu0 0.0
      %3691 = vmatpush2.msra.mxu0 0.0
      %3692 = vmatprep.subr.mxu0 0.0
      %3693 = vmatpush2.msra.mxu0 0.0
      %3694 = vmatprep.subr.mxu0 0.0
      %3695 = vmatpush2.msra.mxu0 0.0
      %3696 = vmatprep.subr.mxu0 0.0
      %3697 = vmatpush2.msra.mxu0 0.0
      %3698 = vmatprep.subr.mxu0 0.0
      %3699 = vmatpush2.msra.mxu0 0.0
      %3700 = vmatprep.subr.mxu0 0.0
      %3701 = vmatpush2.msra.mxu0 0.0
      %3702 = vmatprep.subr.mxu0 0.0
      %3703 = vmatpush2.msra.mxu0 0.0
      %3704 = vmatprep.subr.mxu0 0.0
      %3705 = vmatpush2.msra.mxu0 0.0
      %3706 = vmatprep.subr.mxu0 0.0
      %3707 = vmatpush2.msra.mxu0 0.0
      %3708 = vmatprep.subr.mxu0 0.0
      %3709 = vmatpush2.msra.mxu0 0.0
      %3710 = vmatprep.subr.mxu0 0.0
      %3711 = vmatpush2.msra.mxu0 0.0
      %3712 = vmatprep.subr.mxu0 0.0
      %3713 = vmatpush2.msra.mxu0 0.0
      %3714 = vmatprep.subr.mxu0 0.0
      %3715 = vmatpush2.msra.mxu0 0.0
      %3716 = vmatprep.subr.mxu0 0.0
      %3717 = vmatpush2.msra.mxu0 0.0
      %3718 = vmatprep.subr.mxu0 0.0
      %3719 = vmatpush2.msra.mxu0 0.0
      %3720 = vmatprep.mubr.f32.mxu0 0.0
      %3721 = vmatmul.mubr.f32.gmra.mxu0 %v3654
      %v3722 = vpop.f32.mrf.mxu0
      %v3723 = vadd.f32 0.0, %v3722
      %v3724 = vpop.f32.mrf.mxu0
      %3725 = vdwg.mxu0
      %v3726 = vld [vmem:[%s47] sm:$0xff]
      %v3727 = vld [vmem:[%s47 + $0x8] sm:$0xff]
      %v3729 = vsel %vm1504, %v3723, 0
      %3731 = vmatprep.subr.mxu0 0.0
      %3732 = vmatpush1.msra.mxu0 0.0
      %3733 = vmatprep.subr.mxu0 0.0
      %3734 = vmatpush1.msra.mxu0 0.0
      %3735 = vmatprep.subr.mxu0 0.0
      %3736 = vmatpush1.msra.mxu0 0.0
      %3737 = vmatprep.subr.mxu0 0.0
      %3738 = vmatpush1.msra.mxu0 0.0
      %3739 = vmatprep.subr.mxu0 0.0
      %3740 = vmatpush1.msra.mxu0 0.0
      %3741 = vmatprep.subr.mxu0 0.0
      %3742 = vmatpush1.msra.mxu0 0.0
      %3743 = vmatprep.subr.mxu0 0.0
      %3744 = vmatpush1.msra.mxu0 0.0
      %3745 = vmatprep.subr.mxu0 0.0
      %3746 = vmatpush1.msra.mxu0 0.0
      %3747 = vmatprep.subr.mxu0 0.0
      %3748 = vmatpush1.msra.mxu0 0.0
      %3749 = vmatprep.subr.mxu0 0.0
      %3750 = vmatpush1.msra.mxu0 0.0
      %3751 = vmatprep.subr.mxu0 0.0
      %3752 = vmatpush1.msra.mxu0 0.0
      %3753 = vmatprep.subr.mxu0 0.0
      %3754 = vmatpush1.msra.mxu0 0.0
      %3755 = vmatprep.subr.mxu0 0.0
      %3756 = vmatpush1.msra.mxu0 0.0
      %3757 = vmatprep.subr.mxu0 0.0
      %3758 = vmatpush1.msra.mxu0 0.0
      %3759 = vmatprep.subr.mxu0 0.0
      %3760 = vmatpush1.msra.mxu0 %v3727
      %3761 = vmatprep.subr.mxu0 0.0
      %3762 = vmatpush1.msra.mxu0 %v3726
      %3763 = vmatprep.subr.mxu0 0.0
      %3764 = vmatpush2.msra.mxu0 0.0
      %3765 = vmatprep.subr.mxu0 0.0
      %3766 = vmatpush2.msra.mxu0 0.0
      %3767 = vmatprep.subr.mxu0 0.0
      %3768 = vmatpush2.msra.mxu0 0.0
      %3769 = vmatprep.subr.mxu0 0.0
      %3770 = vmatpush2.msra.mxu0 0.0
      %3771 = vmatprep.subr.mxu0 0.0
      %3772 = vmatpush2.msra.mxu0 0.0
      %3773 = vmatprep.subr.mxu0 0.0
      %3774 = vmatpush2.msra.mxu0 0.0
      %3775 = vmatprep.subr.mxu0 0.0
      %3776 = vmatpush2.msra.mxu0 0.0
      %3777 = vmatprep.subr.mxu0 0.0
      %3778 = vmatpush2.msra.mxu0 0.0
      %3779 = vmatprep.subr.mxu0 0.0
      %3780 = vmatpush2.msra.mxu0 0.0
      %3781 = vmatprep.subr.mxu0 0.0
      %3782 = vmatpush2.msra.mxu0 0.0
      %3783 = vmatprep.subr.mxu0 0.0
      %3784 = vmatpush2.msra.mxu0 0.0
      %3785 = vmatprep.subr.mxu0 0.0
      %3786 = vmatpush2.msra.mxu0 0.0
      %3787 = vmatprep.subr.mxu0 0.0
      %3788 = vmatpush2.msra.mxu0 0.0
      %3789 = vmatprep.subr.mxu0 0.0
      %3790 = vmatpush2.msra.mxu0 0.0
      %3791 = vmatprep.subr.mxu0 0.0
      %3792 = vmatpush2.msra.mxu0 0.0
      %3793 = vmatprep.subr.mxu0 0.0
      %3794 = vmatpush2.msra.mxu0 0.0
      %3795 = vmatprep.mubr.f32.mxu0 0.0
      %3796 = vmatmul.mubr.f32.gmra.mxu0 %v3729
      %v3797 = vpop.f32.mrf.mxu0
      %v3798 = vadd.f32 0.0, %v3797
      %v3799 = vpop.f32.mrf.mxu0
      %3800 = vdwg.mxu0
      %v3801 = vld [vmem:[%s49] sm:$0xff]
      %v3802 = vld [vmem:[%s49 + $0x8] sm:$0xff]
      %3803 = vmatprep.subr.mxu0 0.0
      %3804 = vmatpush1.msra.mxu0 0.0
      %3805 = vmatprep.subr.mxu0 0.0
      %3806 = vmatpush1.msra.mxu0 0.0
      %3807 = vmatprep.subr.mxu0 0.0
      %3808 = vmatpush1.msra.mxu0 0.0
      %3809 = vmatprep.subr.mxu0 0.0
      %3810 = vmatpush1.msra.mxu0 0.0
      %3811 = vmatprep.subr.mxu0 0.0
      %3812 = vmatpush1.msra.mxu0 0.0
      %3813 = vmatprep.subr.mxu0 0.0
      %3814 = vmatpush1.msra.mxu0 0.0
      %3815 = vmatprep.subr.mxu0 0.0
      %3816 = vmatpush1.msra.mxu0 0.0
      %3817 = vmatprep.subr.mxu0 0.0
      %3818 = vmatpush1.msra.mxu0 0.0
      %3819 = vmatprep.subr.mxu0 0.0
      %3820 = vmatpush1.msra.mxu0 0.0
      %3821 = vmatprep.subr.mxu0 0.0
      %3822 = vmatpush1.msra.mxu0 0.0
      %3823 = vmatprep.subr.mxu0 0.0
      %3824 = vmatpush1.msra.mxu0 0.0
      %3825 = vmatprep.subr.mxu0 0.0
      %3826 = vmatpush1.msra.mxu0 0.0
      %3827 = vmatprep.subr.mxu0 0.0
      %3828 = vmatpush1.msra.mxu0 0.0
      %3829 = vmatprep.subr.mxu0 0.0
      %3830 = vmatpush1.msra.mxu0 0.0
      %3831 = vmatprep.subr.mxu0 0.0
      %3832 = vmatpush1.msra.mxu0 %v3802
      %3833 = vmatprep.subr.mxu0 0.0
      %3834 = vmatpush1.msra.mxu0 %v3801
      %3835 = vmatprep.subr.mxu0 0.0
      %3836 = vmatpush2.msra.mxu0 0.0
      %3837 = vmatprep.subr.mxu0 0.0
      %3838 = vmatpush2.msra.mxu0 0.0
      %3839 = vmatprep.subr.mxu0 0.0
      %3840 = vmatpush2.msra.mxu0 0.0
      %3841 = vmatprep.subr.mxu0 0.0
      %3842 = vmatpush2.msra.mxu0 0.0
      %3843 = vmatprep.subr.mxu0 0.0
      %3844 = vmatpush2.msra.mxu0 0.0
      %3845 = vmatprep.subr.mxu0 0.0
      %3846 = vmatpush2.msra.mxu0 0.0
      %3847 = vmatprep.subr.mxu0 0.0
      %3848 = vmatpush2.msra.mxu0 0.0
      %3849 = vmatprep.subr.mxu0 0.0
      %3850 = vmatpush2.msra.mxu0 0.0
      %3851 = vmatprep.subr.mxu0 0.0
      %3852 = vmatpush2.msra.mxu0 0.0
      %3853 = vmatprep.subr.mxu0 0.0
      %3854 = vmatpush2.msra.mxu0 0.0
      %3855 = vmatprep.subr.mxu0 0.0
      %3856 = vmatpush2.msra.mxu0 0.0
      %3857 = vmatprep.subr.mxu0 0.0
      %3858 = vmatpush2.msra.mxu0 0.0
      %3859 = vmatprep.subr.mxu0 0.0
      %3860 = vmatpush2.msra.mxu0 0.0
      %3861 = vmatprep.subr.mxu0 0.0
      %3862 = vmatpush2.msra.mxu0 0.0
      %3863 = vmatprep.subr.mxu0 0.0
      %3864 = vmatpush2.msra.mxu0 0.0
      %3865 = vmatprep.subr.mxu0 0.0
      %3866 = vmatpush2.msra.mxu0 0.0
      %3867 = vmatprep.mubr.f32.mxu0 0.0
      %3868 = vmatmul.mubr.f32.gmra.mxu0 %v3729
      %v3869 = vpop.f32.mrf.mxu0
      %v3870 = vadd.f32 0.0, %v3869
      %v3871 = vpop.f32.mrf.mxu0
      %3872 = vdwg.mxu0
      %v3873 = vld [vmem:[%s51] sm:$0xff]
      %v3874 = vld [vmem:[%s51 + $0x8] sm:$0xff]
      %v3875 = vld [vmem:[%s51 + $0x10] sm:$0xff]
      %v3876 = vld [vmem:[%s51 + $0x18] sm:$0xff]
      %v3878 = vsel %vm1665, %v2962, 0
      %3880 = vmatprep.subr.mxu0 0.0
      %3881 = vmatpush1.msra.mxu0 0.0
      %3882 = vmatprep.subr.mxu0 0.0
      %3883 = vmatpush1.msra.mxu0 0.0
      %3884 = vmatprep.subr.mxu0 0.0
      %3885 = vmatpush1.msra.mxu0 0.0
      %3886 = vmatprep.subr.mxu0 0.0
      %3887 = vmatpush1.msra.mxu0 0.0
      %3888 = vmatprep.subr.mxu0 0.0
      %3889 = vmatpush1.msra.mxu0 0.0
      %3890 = vmatprep.subr.mxu0 0.0
      %3891 = vmatpush1.msra.mxu0 0.0
      %3892 = vmatprep.subr.mxu0 0.0
      %3893 = vmatpush1.msra.mxu0 0.0
      %3894 = vmatprep.subr.mxu0 0.0
      %3895 = vmatpush1.msra.mxu0 0.0
      %3896 = vmatprep.subr.mxu0 0.0
      %3897 = vmatpush1.msra.mxu0 0.0
      %3898 = vmatprep.subr.mxu0 0.0
      %3899 = vmatpush1.msra.mxu0 0.0
      %3900 = vmatprep.subr.mxu0 0.0
      %3901 = vmatpush1.msra.mxu0 0.0
      %3902 = vmatprep.subr.mxu0 0.0
      %3903 = vmatpush1.msra.mxu0 0.0
      %3904 = vmatprep.subr.mxu0 0.0
      %3905 = vmatpush1.msra.mxu0 %v3876
      %3906 = vmatprep.subr.mxu0 0.0
      %3907 = vmatpush1.msra.mxu0 %v3875
      %3908 = vmatprep.subr.mxu0 0.0
      %3909 = vmatpush1.msra.mxu0 %v3874
      %3910 = vmatprep.subr.mxu0 0.0
      %3911 = vmatpush1.msra.mxu0 %v3873
      %3912 = vmatprep.subr.mxu0 0.0
      %3913 = vmatpush2.msra.mxu0 0.0
      %3914 = vmatprep.subr.mxu0 0.0
      %3915 = vmatpush2.msra.mxu0 0.0
      %3916 = vmatprep.subr.mxu0 0.0
      %3917 = vmatpush2.msra.mxu0 0.0
      %3918 = vmatprep.subr.mxu0 0.0
      %3919 = vmatpush2.msra.mxu0 0.0
      %3920 = vmatprep.subr.mxu0 0.0
      %3921 = vmatpush2.msra.mxu0 0.0
      %3922 = vmatprep.subr.mxu0 0.0
      %3923 = vmatpush2.msra.mxu0 0.0
      %3924 = vmatprep.subr.mxu0 0.0
      %3925 = vmatpush2.msra.mxu0 0.0
      %3926 = vmatprep.subr.mxu0 0.0
      %3927 = vmatpush2.msra.mxu0 0.0
      %3928 = vmatprep.subr.mxu0 0.0
      %3929 = vmatpush2.msra.mxu0 0.0
      %3930 = vmatprep.subr.mxu0 0.0
      %3931 = vmatpush2.msra.mxu0 0.0
      %3932 = vmatprep.subr.mxu0 0.0
      %3933 = vmatpush2.msra.mxu0 0.0
      %3934 = vmatprep.subr.mxu0 0.0
      %3935 = vmatpush2.msra.mxu0 0.0
      %3936 = vmatprep.subr.mxu0 0.0
      %3937 = vmatpush2.msra.mxu0 0.0
      %3938 = vmatprep.subr.mxu0 0.0
      %3939 = vmatpush2.msra.mxu0 0.0
      %3940 = vmatprep.subr.mxu0 0.0
      %3941 = vmatpush2.msra.mxu0 0.0
      %3942 = vmatprep.subr.mxu0 0.0
      %3943 = vmatpush2.msra.mxu0 0.0
      %3944 = vmatprep.mubr.f32.mxu0 0.0
      %3945 = vmatmul.mubr.f32.gmra.mxu0 %v3878
      %v3946 = vpop.f32.mrf.mxu0
      %v3947 = vadd.f32 0.0, %v3946
      %v3948 = vpop.f32.mrf.mxu0
      %3949 = vdwg.mxu0
      %v3951 = vsel %vm2516, %v3947, 0
      %3953 = vmatprep.subr.mxu0 0.0
      %3954 = vmatpush1.msra.mxu0 0.0
      %3955 = vmatprep.subr.mxu0 0.0
      %3956 = vmatpush1.msra.mxu0 0.0
      %3957 = vmatprep.subr.mxu0 0.0
      %3958 = vmatpush1.msra.mxu0 0.0
      %3959 = vmatprep.subr.mxu0 0.0
      %3960 = vmatpush1.msra.mxu0 0.0
      %3961 = vmatprep.subr.mxu0 0.0
      %3962 = vmatpush1.msra.mxu0 0.0
      %3963 = vmatprep.subr.mxu0 0.0
      %3964 = vmatpush1.msra.mxu0 0.0
      %3965 = vmatprep.subr.mxu0 0.0
      %3966 = vmatpush1.msra.mxu0 0.0
      %3967 = vmatprep.subr.mxu0 0.0
      %3968 = vmatpush1.msra.mxu0 0.0
      %3969 = vmatprep.subr.mxu0 0.0
      %3970 = vmatpush1.msra.mxu0 0.0
      %3971 = vmatprep.subr.mxu0 0.0
      %3972 = vmatpush1.msra.mxu0 0.0
      %3973 = vmatprep.subr.mxu0 0.0
      %3974 = vmatpush1.msra.mxu0 0.0
      %3975 = vmatprep.subr.mxu0 0.0
      %3976 = vmatpush1.msra.mxu0 0.0
      %3977 = vmatprep.subr.mxu0 0.0
      %3978 = vmatpush1.msra.mxu0 0.0
      %3979 = vmatprep.subr.mxu0 0.0
      %3980 = vmatpush1.msra.mxu0 0.0
      %3981 = vmatprep.subr.mxu0 0.0
      %3982 = vmatpush1.msra.mxu0 0.0
      %3983 = vmatprep.subr.mxu0 0.0
      %3984 = vmatpush1.msra.mxu0 %v3951
      %3985 = vmatprep.subr.mxu0 0.0
      %3986 = vmatpush2.msra.mxu0 0.0
      %3987 = vmatprep.subr.mxu0 0.0
      %3988 = vmatpush2.msra.mxu0 0.0
      %3989 = vmatprep.subr.mxu0 0.0
      %3990 = vmatpush2.msra.mxu0 0.0
      %3991 = vmatprep.subr.mxu0 0.0
      %3992 = vmatpush2.msra.mxu0 0.0
      %3993 = vmatprep.subr.mxu0 0.0
      %3994 = vmatpush2.msra.mxu0 0.0
      %3995 = vmatprep.subr.mxu0 0.0
      %3996 = vmatpush2.msra.mxu0 0.0
      %3997 = vmatprep.subr.mxu0 0.0
      %3998 = vmatpush2.msra.mxu0 0.0
      %3999 = vmatprep.subr.mxu0 0.0
      %4000 = vmatpush2.msra.mxu0 0.0
      %4001 = vmatprep.subr.mxu0 0.0
      %4002 = vmatpush2.msra.mxu0 0.0
      %4003 = vmatprep.subr.mxu0 0.0
      %4004 = vmatpush2.msra.mxu0 0.0
      %4005 = vmatprep.subr.mxu0 0.0
      %4006 = vmatpush2.msra.mxu0 0.0
      %4007 = vmatprep.subr.mxu0 0.0
      %4008 = vmatpush2.msra.mxu0 0.0
      %4009 = vmatprep.subr.mxu0 0.0
      %4010 = vmatpush2.msra.mxu0 0.0
      %4011 = vmatprep.subr.mxu0 0.0
      %4012 = vmatpush2.msra.mxu0 0.0
      %4013 = vmatprep.subr.mxu0 0.0
      %4014 = vmatpush2.msra.mxu0 0.0
      %4015 = vmatprep.subr.mxu0 0.0
      %4016 = vmatpush2.msra.mxu0 0.0
      %4017 = vmatprep.mubr.f32.mxu0 0.0
      %4018 = vmatmul.mubr.f32.gmra.mxu0 %v2511
      %v4019 = vpop.f32.mrf.mxu0
      %v4020 = vadd.f32 0.0, %v4019
      %v4021 = vpop.f32.mrf.mxu0
      %4022 = vmatprep.mubr.f32.mxu0 0.0
      %4023 = vmatmul.mubr.f32.gmra.mxu0 %v2514
      %v4024 = vpop.f32.mrf.mxu0
      %v4025 = vadd.f32 0.0, %v4024
      %v4026 = vpop.f32.mrf.mxu0
      %4027 = vdwg.mxu0
      %v4030 = vcombine.high %v4020, %v4020
      %v4031 = vcombine.high %v4025, %v4025
      %v4036 = vunpack.c.l.s4 1966171168
      %v4037 = vunpack.c.0.s8 %v4036
      %v4038 = vlaneseq
      %v4039 = vshrl.u32 %v4038, 7
      %v4040 = vsub.s32 %v4037, %v4039
      %v4041 = vrot.slane %v3798, %v4040
      %v4042 = vcombine.high %v4041, %v4041
      %v4044 = vunpack.c.l.s4 1966171168
      %v4045 = vunpack.c.0.s8 %v4044
      %v4046 = vlaneseq
      %v4047 = vshrl.u32 %v4046, 7
      %v4048 = vsub.s32 %v4045, %v4047
      %v4049 = vrot.slane %v4041, %v4048
      %v4051 = vunpack.c.l.s4 1966171168
      %v4052 = vunpack.c.0.s8 %v4051
      %v4053 = vlaneseq
      %v4054 = vshrl.u32 %v4053, 7
      %v4055 = vsub.s32 %v4052, %v4054
      %v4056 = vrot.slane %v4042, %v4055
      %v4057 = vcombine.high %v4049, %v4049
      %v4058 = vcombine.high %v4056, %v4056
      %v4059 = vlaneseq
      %v4060 = vshrl.u32 %v4059, 7
      %v4061 = vsub.s32 0, %v4060
      %v4062 = vrot.slane %v4049, %v4061
      %v4063 = vlaneseq
      %v4064 = vshrl.u32 %v4063, 7
      %v4065 = vsub.s32 0, %v4064
      %v4066 = vrot.slane %v4056, %v4065
      %v4067 = vlaneseq
      %v4068 = vshrl.u32 %v4067, 7
      %v4069 = vsub.s32 0, %v4068
      %v4070 = vrot.slane %v4057, %v4069
      %v4071 = vlaneseq
      %v4072 = vshrl.u32 %v4071, 7
      %v4073 = vsub.s32 0, %v4072
      %v4074 = vrot.slane %v4058, %v4073
      %v4079 = vadd.f32 %v4062, %v3870
      %v4080 = vadd.f32 %v4066, %v3870
      %v4081 = vadd.f32 %v4070, %v3870
      %v4082 = vadd.f32 %v4074, %v3870
      %v4083 = vadd.f32 %v4079, %v4020
      %v4084 = vadd.f32 %v4080, %v4030
      %v4085 = vadd.f32 %v4081, %v4025
      %v4086 = vadd.f32 %v4082, %v4031
      %vm4087 = vcmp.gt.f32.partialorder %v4083, 0.0
      %vm4088 = vcmp.gt.f32.partialorder %v4084, 0.0
      %vm4089 = vcmp.gt.f32.partialorder %v4085, 0.0
      %vm4090 = vcmp.gt.f32.partialorder %v4086, 0.0
      %v4091 = vmul.f32 %v4083, 0.2
      %v4092 = vmul.f32 %v4084, 0.2
      %v4093 = vmul.f32 %v4085, 0.2
      %v4094 = vmul.f32 %v4086, 0.2
      %v4095 = vsel %vm4087, %v4083, %v4091
      %v4096 = vsel %vm4088, %v4084, %v4092
      %v4097 = vsel %vm4089, %v4085, %v4093
      %v4098 = vsel %vm4090, %v4086, %v4094
      %v4099 = vadd.f32 %v4095, %v1477
      %v4100 = vadd.f32 %v4096, %v1484
      %v4101 = vadd.f32 %v4097, %v1491
      %v4102 = vadd.f32 %v4098, %v1498
      %v4103 = vsel %vm2670, %v4099, -inf
      %v4104 = vrot.slane %v4103, 4
      %v4105 = vmax.f32 %v4103, %v4104
      %v4106 = vrot.slane %v4105, 2
      %v4107 = vmax.f32 %v4105, %v4106
      %v4108 = vrot.slane %v4107, 1
      %v4109 = vmax.f32 %v4107, %v4108
      %v4110 = vsel %vm2670, %v4100, -inf
      %v4111 = vrot.slane %v4110, 4
      %v4112 = vmax.f32 %v4110, %v4111
      %v4113 = vrot.slane %v4112, 2
      %v4114 = vmax.f32 %v4112, %v4113
      %v4115 = vrot.slane %v4114, 1
      %v4116 = vmax.f32 %v4114, %v4115
      %v4117 = vsel %vm2670, %v4101, -inf
      %v4118 = vrot.slane %v4117, 4
      %v4119 = vmax.f32 %v4117, %v4118
      %v4120 = vrot.slane %v4119, 2
      %v4121 = vmax.f32 %v4119, %v4120
      %v4122 = vrot.slane %v4121, 1
      %v4123 = vmax.f32 %v4121, %v4122
      %v4124 = vsel %vm2670, %v4102, -inf
      %v4125 = vrot.slane %v4124, 4
      %v4126 = vmax.f32 %v4124, %v4125
      %v4127 = vrot.slane %v4126, 2
      %v4128 = vmax.f32 %v4126, %v4127
      %v4129 = vrot.slane %v4128, 1
      %v4130 = vmax.f32 %v4128, %v4129
      %v4131 = vsub.f32 %v4099, %v4109
      %v4132 = vsub.f32 %v4100, %v4116
      %v4133 = vsub.f32 %v4101, %v4123
      %v4134 = vsub.f32 %v4102, %v4130
      %v4135 = vmul.f32 %v4131, 1.442695
      %v4136 = vpow.pop %v4135
      %v4137 = vmul.f32 %v4132, 1.442695
      %v4138 = vpow.pop %v4137
      %v4139 = vmul.f32 %v4133, 1.442695
      %v4140 = vpow.pop %v4139
      %v4141 = vmul.f32 %v4134, 1.442695
      %v4142 = vpow.pop %v4141
      %v4143 = vsel %vm2670, %v4136, 0.0
      %v4144 = vrot.slane %v4143, 4
      %v4145 = vadd.f32 %v4143, %v4144
      %v4146 = vrot.slane %v4145, 2
      %v4147 = vadd.f32 %v4145, %v4146
      %v4148 = vrot.slane %v4147, 1
      %v4149 = vadd.f32 %v4147, %v4148
      %v4150 = vsel %vm2670, %v4138, 0.0
      %v4151 = vrot.slane %v4150, 4
      %v4152 = vadd.f32 %v4150, %v4151
      %v4153 = vrot.slane %v4152, 2
      %v4154 = vadd.f32 %v4152, %v4153
      %v4155 = vrot.slane %v4154, 1
      %v4156 = vadd.f32 %v4154, %v4155
      %v4157 = vsel %vm2670, %v4140, 0.0
      %v4158 = vrot.slane %v4157, 4
      %v4159 = vadd.f32 %v4157, %v4158
      %v4160 = vrot.slane %v4159, 2
      %v4161 = vadd.f32 %v4159, %v4160
      %v4162 = vrot.slane %v4161, 1
      %v4163 = vadd.f32 %v4161, %v4162
      %v4164 = vsel %vm2670, %v4142, 0.0
      %v4165 = vrot.slane %v4164, 4
      %v4166 = vadd.f32 %v4164, %v4165
      %v4167 = vrot.slane %v4166, 2
      %v4168 = vadd.f32 %v4166, %v4167
      %v4169 = vrot.slane %v4168, 1
      %v4170 = vadd.f32 %v4168, %v4169
      %v4171 = vrcp.pop %v4149
      %v4172 = vrcp.pop %v4156
      %v4173 = vrcp.pop %v4163
      %v4174 = vrcp.pop %v4170
      %v4175 = vmul.f32 %v4136, %v4171
      %v4176 = vmul.f32 %v4138, %v4172
      %v4177 = vmul.f32 %v4140, %v4173
      %v4178 = vmul.f32 %v4142, %v4174
      %v4179 = vld [vmem:[%s53] sm:$0x3]
      %v4184 = vcombine.low %v4175, %v4176
      %v4185 = vcombine.low %v4177, %v4178
      %v4186 = vsel %vm1933, %v4184, 0
      %v4188 = vsel %vm1933, %v4185, 0
      %v4191 = vsel %vm1940, %v4179, 0
      %4193 = vmatprep.subr.mxu0 0.0
      %4194 = vmatpush1.msra.mxu0 0.0
      %4195 = vmatprep.subr.mxu0 0.0
      %4196 = vmatpush1.msra.mxu0 0.0
      %4197 = vmatprep.subr.mxu0 0.0
      %4198 = vmatpush1.msra.mxu0 0.0
      %4199 = vmatprep.subr.mxu0 0.0
      %4200 = vmatpush1.msra.mxu0 0.0
      %4201 = vmatprep.subr.mxu0 0.0
      %4202 = vmatpush1.msra.mxu0 0.0
      %4203 = vmatprep.subr.mxu0 0.0
      %4204 = vmatpush1.msra.mxu0 0.0
      %4205 = vmatprep.subr.mxu0 0.0
      %4206 = vmatpush1.msra.mxu0 0.0
      %4207 = vmatprep.subr.mxu0 0.0
      %4208 = vmatpush1.msra.mxu0 0.0
      %4209 = vmatprep.subr.mxu0 0.0
      %4210 = vmatpush1.msra.mxu0 0.0
      %4211 = vmatprep.subr.mxu0 0.0
      %4212 = vmatpush1.msra.mxu0 0.0
      %4213 = vmatprep.subr.mxu0 0.0
      %4214 = vmatpush1.msra.mxu0 0.0
      %4215 = vmatprep.subr.mxu0 0.0
      %4216 = vmatpush1.msra.mxu0 0.0
      %4217 = vmatprep.subr.mxu0 0.0
      %4218 = vmatpush1.msra.mxu0 0.0
      %4219 = vmatprep.subr.mxu0 0.0
      %4220 = vmatpush1.msra.mxu0 0.0
      %4221 = vmatprep.subr.mxu0 0.0
      %4222 = vmatpush1.msra.mxu0 0.0
      %4223 = vmatprep.subr.mxu0 0.0
      %4224 = vmatpush1.msra.mxu0 %v4191
      %4225 = vmatprep.subr.mxu0 0.0
      %4226 = vmatpush2.msra.mxu0 0.0
      %4227 = vmatprep.subr.mxu0 0.0
      %4228 = vmatpush2.msra.mxu0 0.0
      %4229 = vmatprep.subr.mxu0 0.0
      %4230 = vmatpush2.msra.mxu0 0.0
      %4231 = vmatprep.subr.mxu0 0.0
      %4232 = vmatpush2.msra.mxu0 0.0
      %4233 = vmatprep.subr.mxu0 0.0
      %4234 = vmatpush2.msra.mxu0 0.0
      %4235 = vmatprep.subr.mxu0 0.0
      %4236 = vmatpush2.msra.mxu0 0.0
      %4237 = vmatprep.subr.mxu0 0.0
      %4238 = vmatpush2.msra.mxu0 0.0
      %4239 = vmatprep.subr.mxu0 0.0
      %4240 = vmatpush2.msra.mxu0 0.0
      %4241 = vmatprep.subr.mxu0 0.0
      %4242 = vmatpush2.msra.mxu0 0.0
      %4243 = vmatprep.subr.mxu0 0.0
      %4244 = vmatpush2.msra.mxu0 0.0
      %4245 = vmatprep.subr.mxu0 0.0
      %4246 = vmatpush2.msra.mxu0 0.0
      %4247 = vmatprep.subr.mxu0 0.0
      %4248 = vmatpush2.msra.mxu0 0.0
      %4249 = vmatprep.subr.mxu0 0.0
      %4250 = vmatpush2.msra.mxu0 0.0
      %4251 = vmatprep.subr.mxu0 0.0
      %4252 = vmatpush2.msra.mxu0 0.0
      %4253 = vmatprep.subr.mxu0 0.0
      %4254 = vmatpush2.msra.mxu0 0.0
      %4255 = vmatprep.subr.mxu0 0.0
      %4256 = vmatpush2.msra.mxu0 0.0
      %4257 = vmatprep.mubr.f32.mxu0 0.0
      %4258 = vmatmul.mubr.f32.gmra.mxu0 %v4186
      %v4259 = vpop.f32.mrf.mxu0
      %v4260 = vadd.f32 0.0, %v4259
      %v4261 = vpop.f32.mrf.mxu0
      %4262 = vmatprep.mubr.f32.mxu0 0.0
      %4263 = vmatmul.mubr.f32.gmra.mxu0 %v4188
      %v4264 = vpop.f32.mrf.mxu0
      %v4265 = vadd.f32 0.0, %v4264
      %v4266 = vpop.f32.mrf.mxu0
      %4267 = vdwg.mxu0
      %v4270 = vcombine.high %v4260, %v4260
      %v4271 = vcombine.high %v4265, %v4265
      %v4274 = vmul.f32 %v4260, %v3723
      %v4275 = vmul.f32 %v4270, %v3723
      %v4276 = vmul.f32 %v4265, %v3723
      %v4277 = vmul.f32 %v4271, %v3723
      %vm4278 = vcmask 125952
      %v4279 = vsel %vm4278, %v4274, 0.0
      %v4280 = vrot.slane %v4279, 4
      %v4281 = vadd.f32 %v4279, %v4280
      %v4282 = vrot.slane %v4281, 2
      %v4283 = vadd.f32 %v4281, %v4282
      %v4284 = vrot.slane %v4283, 1
      %v4285 = vadd.f32 %v4283, %v4284
      %v4286 = vsel %vm4278, %v4275, 0.0
      %v4287 = vrot.slane %v4286, 4
      %v4288 = vadd.f32 %v4286, %v4287
      %v4289 = vrot.slane %v4288, 2
      %v4290 = vadd.f32 %v4288, %v4289
      %v4291 = vrot.slane %v4290, 1
      %v4292 = vadd.f32 %v4290, %v4291
      %v4293 = vsel %vm4278, %v4276, 0.0
      %v4294 = vrot.slane %v4293, 4
      %v4295 = vadd.f32 %v4293, %v4294
      %v4296 = vrot.slane %v4295, 2
      %v4297 = vadd.f32 %v4295, %v4296
      %v4298 = vrot.slane %v4297, 1
      %v4299 = vadd.f32 %v4297, %v4298
      %v4300 = vsel %vm4278, %v4277, 0.0
      %v4301 = vrot.slane %v4300, 4
      %v4302 = vadd.f32 %v4300, %v4301
      %v4303 = vrot.slane %v4302, 2
      %v4304 = vadd.f32 %v4302, %v4303
      %v4305 = vrot.slane %v4304, 1
      %v4306 = vadd.f32 %v4304, %v4305
      %v4307 = vld [vmem:[%s55] sm:$0xff]
      %v4308 = vld [vmem:[%s55 + $0x8] sm:$0xff]
      %v4313 = vsel %vm3648, %v4292, %v4285
      %v4314 = vsel %vm3650, %v4299, %v4313
      %v4315 = vsel %vm3652, %v4306, %v4314
      %v4316 = vsel %vm1504, %v4315, 0
      %4318 = vmatprep.subr.mxu0 0.0
      %4319 = vmatpush1.msra.mxu0 0.0
      %4320 = vmatprep.subr.mxu0 0.0
      %4321 = vmatpush1.msra.mxu0 0.0
      %4322 = vmatprep.subr.mxu0 0.0
      %4323 = vmatpush1.msra.mxu0 0.0
      %4324 = vmatprep.subr.mxu0 0.0
      %4325 = vmatpush1.msra.mxu0 0.0
      %4326 = vmatprep.subr.mxu0 0.0
      %4327 = vmatpush1.msra.mxu0 0.0
      %4328 = vmatprep.subr.mxu0 0.0
      %4329 = vmatpush1.msra.mxu0 0.0
      %4330 = vmatprep.subr.mxu0 0.0
      %4331 = vmatpush1.msra.mxu0 0.0
      %4332 = vmatprep.subr.mxu0 0.0
      %4333 = vmatpush1.msra.mxu0 0.0
      %4334 = vmatprep.subr.mxu0 0.0
      %4335 = vmatpush1.msra.mxu0 0.0
      %4336 = vmatprep.subr.mxu0 0.0
      %4337 = vmatpush1.msra.mxu0 0.0
      %4338 = vmatprep.subr.mxu0 0.0
      %4339 = vmatpush1.msra.mxu0 0.0
      %4340 = vmatprep.subr.mxu0 0.0
      %4341 = vmatpush1.msra.mxu0 0.0
      %4342 = vmatprep.subr.mxu0 0.0
      %4343 = vmatpush1.msra.mxu0 0.0
      %4344 = vmatprep.subr.mxu0 0.0
      %4345 = vmatpush1.msra.mxu0 0.0
      %4346 = vmatprep.subr.mxu0 0.0
      %4347 = vmatpush1.msra.mxu0 %v4308
      %4348 = vmatprep.subr.mxu0 0.0
      %4349 = vmatpush1.msra.mxu0 %v4307
      %4350 = vmatprep.subr.mxu0 0.0
      %4351 = vmatpush2.msra.mxu0 0.0
      %4352 = vmatprep.subr.mxu0 0.0
      %4353 = vmatpush2.msra.mxu0 0.0
      %4354 = vmatprep.subr.mxu0 0.0
      %4355 = vmatpush2.msra.mxu0 0.0
      %4356 = vmatprep.subr.mxu0 0.0
      %4357 = vmatpush2.msra.mxu0 0.0
      %4358 = vmatprep.subr.mxu0 0.0
      %4359 = vmatpush2.msra.mxu0 0.0
      %4360 = vmatprep.subr.mxu0 0.0
      %4361 = vmatpush2.msra.mxu0 0.0
      %4362 = vmatprep.subr.mxu0 0.0
      %4363 = vmatpush2.msra.mxu0 0.0
      %4364 = vmatprep.subr.mxu0 0.0
      %4365 = vmatpush2.msra.mxu0 0.0
      %4366 = vmatprep.subr.mxu0 0.0
      %4367 = vmatpush2.msra.mxu0 0.0
      %4368 = vmatprep.subr.mxu0 0.0
      %4369 = vmatpush2.msra.mxu0 0.0
      %4370 = vmatprep.subr.mxu0 0.0
      %4371 = vmatpush2.msra.mxu0 0.0
      %4372 = vmatprep.subr.mxu0 0.0
      %4373 = vmatpush2.msra.mxu0 0.0
      %4374 = vmatprep.subr.mxu0 0.0
      %4375 = vmatpush2.msra.mxu0 0.0
      %4376 = vmatprep.subr.mxu0 0.0
      %4377 = vmatpush2.msra.mxu0 0.0
      %4378 = vmatprep.subr.mxu0 0.0
      %4379 = vmatpush2.msra.mxu0 0.0
      %4380 = vmatprep.subr.mxu0 0.0
      %4381 = vmatpush2.msra.mxu0 0.0
      %4382 = vmatprep.mubr.f32.mxu0 0.0
      %4383 = vmatmul.mubr.f32.gmra.mxu0 %v4316
      %v4384 = vpop.f32.mrf.mxu0
      %v4385 = vadd.f32 0.0, %v4384
      %v4386 = vpop.f32.mrf.mxu0
      %4387 = vdwg.mxu0
      %vm4388 = vcmp.gt.f32.partialorder %v4385, 0.0
      %v4389 = vmul.f32 %v4385, 1.442695
      %v4390 = vpow.pop %v4389
      %v4391 = vsub.f32 %v4390, 1.0
      %v4392 = vsel %vm4388, %v4385, %v4391
      %v4393 = vand.u32 2147483647, %v3638
      %v4394 = vand.u32 2147483647, %v3639
      %v4395 = vsel %vm1579, %v4393, 0.0
      %4396 = vadd.xlane.f32.xlu0 %v4395
      %v4397 = vpop.xlane.xlu0 %4396
      %v4398 = vsel %vm1579, %v4394, 0.0
      %4399 = vadd.xlane.f32.xlu0 %v4398
      %v4400 = vpop.xlane.xlu0 %4399
      %vm4401 = vcmp.gt.f32.partialorder %v4397, 0.0
      %vm4402 = vcmp.gt.f32.partialorder %v4400, 0.0
      %v4403 = vsel %vm4401, 1, 0
      %v4404 = vsel %vm4402, 1, 0
      %v4405 = vcvt.s32.f32 %v4403
      %v4406 = vcvt.s32.f32 %v4404
      %v4407 = vand.u32 2147483647, %v4392
      %vm4408 = vcmask 60416
      %v4409 = vsel %vm4408, %v4407, 0.0
      %4410 = vadd.xlane.f32.xlu0 %v4409
      %v4411 = vpop.xlane.xlu0 %4410
      %vm4412 = vcmp.gt.f32.partialorder %v4411, 0.0
      %v4413 = vsel %vm4412, 1, 0
      %v4414 = vcvt.s32.f32 %v4413
      %v4415 = vmul.f32 %v3638, %v4405
      %v4416 = vmul.f32 %v3639, %v4406
      %v4417 = vsel %vm1579, %v4415, 0.0
      %v4418 = vsel %vm1579, %v4416, 0.0
      %v4419 = vadd.f32 %v4417, %v4418
      %v4420 = vrot.slane %v4419, 4
      %v4421 = vadd.f32 %v4419, %v4420
      %v4422 = vrot.slane %v4421, 2
      %v4423 = vadd.f32 %v4421, %v4422
      %v4424 = vrot.slane %v4423, 1
      %v4425 = vadd.f32 %v4423, %v4424
      %v4426 = vadd.f32 %v4405, %v4406
      %v4427 = vrot.slane %v4426, 4
      %v4428 = vadd.f32 %v4426, %v4427
      %v4429 = vrot.slane %v4428, 2
      %v4430 = vadd.f32 %v4428, %v4429
      %v4431 = vrot.slane %v4430, 1
      %v4432 = vadd.f32 %v4430, %v4431
      %v4433 = vmax.f32 %v4432, 1.0
      %v4434 = vrcp.pop %v4433
      %v4435 = vmul.f32 %v4425, %v4434
      %v4436 = vmul.f32 %v4392, %v4414
      %v4437 = vsel %vm4408, %v4436, 0.0
      %v4438 = vrot.slane %v4437, 4
      %v4439 = vadd.f32 %v4437, %v4438
      %v4440 = vrot.slane %v4439, 2
      %v4441 = vadd.f32 %v4439, %v4440
      %v4442 = vrot.slane %v4441, 1
      %v4443 = vadd.f32 %v4441, %v4442
      %v4444 = vsel %vm2516, %v4414, 0.0
      %v4445 = vrot.slane %v4444, 4
      %v4446 = vadd.f32 %v4444, %v4445
      %v4447 = vrot.slane %v4446, 2
      %v4448 = vadd.f32 %v4446, %v4447
      %v4449 = vrot.slane %v4448, 1
      %v4450 = vadd.f32 %v4448, %v4449
      %v4451 = vmax.f32 %v4450, 1.0
      %v4452 = vrcp.pop %v4451
      %v4453 = vmul.f32 %v4443, %v4452
      %4455 = vrot.lane.b32.xlu0 %v4453, 8
      %v4456 = vpop.permute.xlu0 %4455
      %v4458 = vsel %vm1579, %v4435, %v4456
      %4459 = vmatprep.subr.mxu0 0.0
      %4460 = vmatpush1.msra.mxu0 0.0
      %4461 = vmatprep.subr.mxu0 0.0
      %4462 = vmatpush1.msra.mxu0 0.0
      %4463 = vmatprep.subr.mxu0 0.0
      %4464 = vmatpush1.msra.mxu0 0.0
      %4465 = vmatprep.subr.mxu0 0.0
      %4466 = vmatpush1.msra.mxu0 0.0
      %4467 = vmatprep.subr.mxu0 0.0
      %4468 = vmatpush1.msra.mxu0 0.0
      %4469 = vmatprep.subr.mxu0 0.0
      %4470 = vmatpush1.msra.mxu0 0.0
      %4471 = vmatprep.subr.mxu0 0.0
      %4472 = vmatpush1.msra.mxu0 0.0
      %4473 = vmatprep.subr.mxu0 0.0
      %4474 = vmatpush1.msra.mxu0 0.0
      %4475 = vmatprep.subr.mxu0 0.0
      %4476 = vmatpush1.msra.mxu0 0.0
      %4477 = vmatprep.subr.mxu0 0.0
      %4478 = vmatpush1.msra.mxu0 0.0
      %4479 = vmatprep.subr.mxu0 0.0
      %4480 = vmatpush1.msra.mxu0 0.0
      %4481 = vmatprep.subr.mxu0 0.0
      %4482 = vmatpush1.msra.mxu0 0.0
      %4483 = vmatprep.subr.mxu0 0.0
      %4484 = vmatpush1.msra.mxu0 0.0
      %4485 = vmatprep.subr.mxu0 0.0
      %4486 = vmatpush1.msra.mxu0 0.0
      %4487 = vmatprep.subr.mxu0 0.0
      %4488 = vmatpush1.msra.mxu0 %v3639
      %4489 = vmatprep.subr.mxu0 0.0
      %4490 = vmatpush1.msra.mxu0 %v3638
      %4491 = vmatprep.subr.mxu0 0.0
      %4492 = vmatpush2.msra.mxu0 0.0
      %4493 = vmatprep.subr.mxu0 0.0
      %4494 = vmatpush2.msra.mxu0 0.0
      %4495 = vmatprep.subr.mxu0 0.0
      %4496 = vmatpush2.msra.mxu0 0.0
      %4497 = vmatprep.subr.mxu0 0.0
      %4498 = vmatpush2.msra.mxu0 0.0
      %4499 = vmatprep.subr.mxu0 0.0
      %4500 = vmatpush2.msra.mxu0 0.0
      %4501 = vmatprep.subr.mxu0 0.0
      %4502 = vmatpush2.msra.mxu0 0.0
      %4503 = vmatprep.subr.mxu0 0.0
      %4504 = vmatpush2.msra.mxu0 0.0
      %4505 = vmatprep.subr.mxu0 0.0
      %4506 = vmatpush2.msra.mxu0 0.0
      %4507 = vmatprep.subr.mxu0 0.0
      %4508 = vmatpush2.msra.mxu0 0.0
      %4509 = vmatprep.subr.mxu0 0.0
      %4510 = vmatpush2.msra.mxu0 0.0
      %4511 = vmatprep.subr.mxu0 0.0
      %4512 = vmatpush2.msra.mxu0 0.0
      %4513 = vmatprep.subr.mxu0 0.0
      %4514 = vmatpush2.msra.mxu0 0.0
      %4515 = vmatprep.subr.mxu0 0.0
      %4516 = vmatpush2.msra.mxu0 0.0
      %4517 = vmatprep.subr.mxu0 0.0
      %4518 = vmatpush2.msra.mxu0 0.0
      %4519 = vmatprep.subr.mxu0 0.0
      %4520 = vmatpush2.msra.mxu0 0.0
      %4521 = vmatprep.subr.mxu0 0.0
      %4522 = vmatpush2.msra.mxu0 0.0
      %4523 = vmatprep.mubr.f32.mxu0 0.0
      %4524 = vmatmul.mubr.f32.gmra.mxu0 %v1506
      %v4525 = vpop.f32.mrf.mxu0
      %v4526 = vadd.f32 0.0, %v4525
      %v4527 = vpop.f32.mrf.mxu0
      %4528 = vdwg.mxu0
      %v4529 = vld [vmem:[%s57] sm:$0xff]
      %v4531 = vsel %vm1579, %v4526, 0
      %4533 = vmatprep.subr.mxu0 0.0
      %4534 = vmatpush1.msra.mxu0 0.0
      %4535 = vmatprep.subr.mxu0 0.0
      %4536 = vmatpush1.msra.mxu0 0.0
      %4537 = vmatprep.subr.mxu0 0.0
      %4538 = vmatpush1.msra.mxu0 0.0
      %4539 = vmatprep.subr.mxu0 0.0
      %4540 = vmatpush1.msra.mxu0 0.0
      %4541 = vmatprep.subr.mxu0 0.0
      %4542 = vmatpush1.msra.mxu0 0.0
      %4543 = vmatprep.subr.mxu0 0.0
      %4544 = vmatpush1.msra.mxu0 0.0
      %4545 = vmatprep.subr.mxu0 0.0
      %4546 = vmatpush1.msra.mxu0 0.0
      %4547 = vmatprep.subr.mxu0 0.0
      %4548 = vmatpush1.msra.mxu0 0.0
      %4549 = vmatprep.subr.mxu0 0.0
      %4550 = vmatpush1.msra.mxu0 0.0
      %4551 = vmatprep.subr.mxu0 0.0
      %4552 = vmatpush1.msra.mxu0 0.0
      %4553 = vmatprep.subr.mxu0 0.0
      %4554 = vmatpush1.msra.mxu0 0.0
      %4555 = vmatprep.subr.mxu0 0.0
      %4556 = vmatpush1.msra.mxu0 0.0
      %4557 = vmatprep.subr.mxu0 0.0
      %4558 = vmatpush1.msra.mxu0 0.0
      %4559 = vmatprep.subr.mxu0 0.0
      %4560 = vmatpush1.msra.mxu0 0.0
      %4561 = vmatprep.subr.mxu0 0.0
      %4562 = vmatpush1.msra.mxu0 0.0
      %4563 = vmatprep.subr.mxu0 0.0
      %4564 = vmatpush1.msra.mxu0 %v4529
      %4565 = vmatprep.subr.mxu0 0.0
      %4566 = vmatpush2.msra.mxu0 0.0
      %4567 = vmatprep.subr.mxu0 0.0
      %4568 = vmatpush2.msra.mxu0 0.0
      %4569 = vmatprep.subr.mxu0 0.0
      %4570 = vmatpush2.msra.mxu0 0.0
      %4571 = vmatprep.subr.mxu0 0.0
      %4572 = vmatpush2.msra.mxu0 0.0
      %4573 = vmatprep.subr.mxu0 0.0
      %4574 = vmatpush2.msra.mxu0 0.0
      %4575 = vmatprep.subr.mxu0 0.0
      %4576 = vmatpush2.msra.mxu0 0.0
      %4577 = vmatprep.subr.mxu0 0.0
      %4578 = vmatpush2.msra.mxu0 0.0
      %4579 = vmatprep.subr.mxu0 0.0
      %4580 = vmatpush2.msra.mxu0 0.0
      %4581 = vmatprep.subr.mxu0 0.0
      %4582 = vmatpush2.msra.mxu0 0.0
      %4583 = vmatprep.subr.mxu0 0.0
      %4584 = vmatpush2.msra.mxu0 0.0
      %4585 = vmatprep.subr.mxu0 0.0
      %4586 = vmatpush2.msra.mxu0 0.0
      %4587 = vmatprep.subr.mxu0 0.0
      %4588 = vmatpush2.msra.mxu0 0.0
      %4589 = vmatprep.subr.mxu0 0.0
      %4590 = vmatpush2.msra.mxu0 0.0
      %4591 = vmatprep.subr.mxu0 0.0
      %4592 = vmatpush2.msra.mxu0 0.0
      %4593 = vmatprep.subr.mxu0 0.0
      %4594 = vmatpush2.msra.mxu0 0.0
      %4595 = vmatprep.subr.mxu0 0.0
      %4596 = vmatpush2.msra.mxu0 0.0
      %4597 = vmatprep.mubr.f32.mxu0 0.0
      %4598 = vmatmul.mubr.f32.gmra.mxu0 %v4531
      %v4599 = vpop.f32.mrf.mxu0
      %v4600 = vadd.f32 0.0, %v4599
      %v4601 = vpop.f32.mrf.mxu0
      %4602 = vdwg.mxu0
      %v4603 = vld [vmem:[%s59] sm:$0xff]
      %v4605 = vsel %vm1579, %v4392, 0
      %4607 = vmatprep.subr.mxu0 0.0
      %4608 = vmatpush1.msra.mxu0 0.0
      %4609 = vmatprep.subr.mxu0 0.0
      %4610 = vmatpush1.msra.mxu0 0.0
      %4611 = vmatprep.subr.mxu0 0.0
      %4612 = vmatpush1.msra.mxu0 0.0
      %4613 = vmatprep.subr.mxu0 0.0
      %4614 = vmatpush1.msra.mxu0 0.0
      %4615 = vmatprep.subr.mxu0 0.0
      %4616 = vmatpush1.msra.mxu0 0.0
      %4617 = vmatprep.subr.mxu0 0.0
      %4618 = vmatpush1.msra.mxu0 0.0
      %4619 = vmatprep.subr.mxu0 0.0
      %4620 = vmatpush1.msra.mxu0 0.0
      %4621 = vmatprep.subr.mxu0 0.0
      %4622 = vmatpush1.msra.mxu0 0.0
      %4623 = vmatprep.subr.mxu0 0.0
      %4624 = vmatpush1.msra.mxu0 0.0
      %4625 = vmatprep.subr.mxu0 0.0
      %4626 = vmatpush1.msra.mxu0 0.0
      %4627 = vmatprep.subr.mxu0 0.0
      %4628 = vmatpush1.msra.mxu0 0.0
      %4629 = vmatprep.subr.mxu0 0.0
      %4630 = vmatpush1.msra.mxu0 0.0
      %4631 = vmatprep.subr.mxu0 0.0
      %4632 = vmatpush1.msra.mxu0 0.0
      %4633 = vmatprep.subr.mxu0 0.0
      %4634 = vmatpush1.msra.mxu0 0.0
      %4635 = vmatprep.subr.mxu0 0.0
      %4636 = vmatpush1.msra.mxu0 0.0
      %4637 = vmatprep.subr.mxu0 0.0
      %4638 = vmatpush1.msra.mxu0 %v4603
      %4639 = vmatprep.subr.mxu0 0.0
      %4640 = vmatpush2.msra.mxu0 0.0
      %4641 = vmatprep.subr.mxu0 0.0
      %4642 = vmatpush2.msra.mxu0 0.0
      %4643 = vmatprep.subr.mxu0 0.0
      %4644 = vmatpush2.msra.mxu0 0.0
      %4645 = vmatprep.subr.mxu0 0.0
      %4646 = vmatpush2.msra.mxu0 0.0
      %4647 = vmatprep.subr.mxu0 0.0
      %4648 = vmatpush2.msra.mxu0 0.0
      %4649 = vmatprep.subr.mxu0 0.0
      %4650 = vmatpush2.msra.mxu0 0.0
      %4651 = vmatprep.subr.mxu0 0.0
      %4652 = vmatpush2.msra.mxu0 0.0
      %4653 = vmatprep.subr.mxu0 0.0
      %4654 = vmatpush2.msra.mxu0 0.0
      %4655 = vmatprep.subr.mxu0 0.0
      %4656 = vmatpush2.msra.mxu0 0.0
      %4657 = vmatprep.subr.mxu0 0.0
      %4658 = vmatpush2.msra.mxu0 0.0
      %4659 = vmatprep.subr.mxu0 0.0
      %4660 = vmatpush2.msra.mxu0 0.0
      %4661 = vmatprep.subr.mxu0 0.0
      %4662 = vmatpush2.msra.mxu0 0.0
      %4663 = vmatprep.subr.mxu0 0.0
      %4664 = vmatpush2.msra.mxu0 0.0
      %4665 = vmatprep.subr.mxu0 0.0
      %4666 = vmatpush2.msra.mxu0 0.0
      %4667 = vmatprep.subr.mxu0 0.0
      %4668 = vmatpush2.msra.mxu0 0.0
      %4669 = vmatprep.subr.mxu0 0.0
      %4670 = vmatpush2.msra.mxu0 0.0
      %4671 = vmatprep.mubr.f32.mxu0 0.0
      %4672 = vmatmul.mubr.f32.gmra.mxu0 %v4605
      %v4673 = vpop.f32.mrf.mxu0
      %v4674 = vadd.f32 0.0, %v4673
      %v4675 = vpop.f32.mrf.mxu0
      %4676 = vdwg.mxu0
      %v4677 = vld [vmem:[%s61] sm:$0xff]
      %v4678 = vld [vmem:[%s61 + $0x8] sm:$0xff]
      %v4680 = vsel %vm1504, %v4458, 0
      %4682 = vmatprep.subr.mxu0 0.0
      %4683 = vmatpush1.msra.mxu0 0.0
      %4684 = vmatprep.subr.mxu0 0.0
      %4685 = vmatpush1.msra.mxu0 0.0
      %4686 = vmatprep.subr.mxu0 0.0
      %4687 = vmatpush1.msra.mxu0 0.0
      %4688 = vmatprep.subr.mxu0 0.0
      %4689 = vmatpush1.msra.mxu0 0.0
      %4690 = vmatprep.subr.mxu0 0.0
      %4691 = vmatpush1.msra.mxu0 0.0
      %4692 = vmatprep.subr.mxu0 0.0
      %4693 = vmatpush1.msra.mxu0 0.0
      %4694 = vmatprep.subr.mxu0 0.0
      %4695 = vmatpush1.msra.mxu0 0.0
      %4696 = vmatprep.subr.mxu0 0.0
      %4697 = vmatpush1.msra.mxu0 0.0
      %4698 = vmatprep.subr.mxu0 0.0
      %4699 = vmatpush1.msra.mxu0 0.0
      %4700 = vmatprep.subr.mxu0 0.0
      %4701 = vmatpush1.msra.mxu0 0.0
      %4702 = vmatprep.subr.mxu0 0.0
      %4703 = vmatpush1.msra.mxu0 0.0
      %4704 = vmatprep.subr.mxu0 0.0
      %4705 = vmatpush1.msra.mxu0 0.0
      %4706 = vmatprep.subr.mxu0 0.0
      %4707 = vmatpush1.msra.mxu0 0.0
      %4708 = vmatprep.subr.mxu0 0.0
      %4709 = vmatpush1.msra.mxu0 0.0
      %4710 = vmatprep.subr.mxu0 0.0
      %4711 = vmatpush1.msra.mxu0 %v4678
      %4712 = vmatprep.subr.mxu0 0.0
      %4713 = vmatpush1.msra.mxu0 %v4677
      %4714 = vmatprep.subr.mxu0 0.0
      %4715 = vmatpush2.msra.mxu0 0.0
      %4716 = vmatprep.subr.mxu0 0.0
      %4717 = vmatpush2.msra.mxu0 0.0
      %4718 = vmatprep.subr.mxu0 0.0
      %4719 = vmatpush2.msra.mxu0 0.0
      %4720 = vmatprep.subr.mxu0 0.0
      %4721 = vmatpush2.msra.mxu0 0.0
      %4722 = vmatprep.subr.mxu0 0.0
      %4723 = vmatpush2.msra.mxu0 0.0
      %4724 = vmatprep.subr.mxu0 0.0
      %4725 = vmatpush2.msra.mxu0 0.0
      %4726 = vmatprep.subr.mxu0 0.0
      %4727 = vmatpush2.msra.mxu0 0.0
      %4728 = vmatprep.subr.mxu0 0.0
      %4729 = vmatpush2.msra.mxu0 0.0
      %4730 = vmatprep.subr.mxu0 0.0
      %4731 = vmatpush2.msra.mxu0 0.0
      %4732 = vmatprep.subr.mxu0 0.0
      %4733 = vmatpush2.msra.mxu0 0.0
      %4734 = vmatprep.subr.mxu0 0.0
      %4735 = vmatpush2.msra.mxu0 0.0
      %4736 = vmatprep.subr.mxu0 0.0
      %4737 = vmatpush2.msra.mxu0 0.0
      %4738 = vmatprep.subr.mxu0 0.0
      %4739 = vmatpush2.msra.mxu0 0.0
      %4740 = vmatprep.subr.mxu0 0.0
      %4741 = vmatpush2.msra.mxu0 0.0
      %4742 = vmatprep.subr.mxu0 0.0
      %4743 = vmatpush2.msra.mxu0 0.0
      %4744 = vmatprep.subr.mxu0 0.0
      %4745 = vmatpush2.msra.mxu0 0.0
      %4746 = vmatprep.mubr.f32.mxu0 0.0
      %4747 = vmatmul.mubr.f32.gmra.mxu0 %v4680
      %v4748 = vpop.f32.mrf.mxu0
      %v4749 = vadd.f32 0.0, %v4748
      %v4750 = vpop.f32.mrf.mxu0
      %4751 = vdwg.mxu0
      %v4752 = vld [vmem:[%s1453] sm:$0xff]
      %v4753 = vld [vmem:[%s1453 + $0x8] sm:$0xff]
      %v4754 = vld [vmem:[%s63] sm:$0xff]
      %v4756 = vsel %vm1579, %v4752, 0
      %v4759 = vsel %vm1579, %v4753, 0
      %4761 = vmatprep.subr.mxu0 0.0
      %4762 = vmatpush1.msra.mxu0 0.0
      %4763 = vmatprep.subr.mxu0 0.0
      %4764 = vmatpush1.msra.mxu0 0.0
      %4765 = vmatprep.subr.mxu0 0.0
      %4766 = vmatpush1.msra.mxu0 0.0
      %4767 = vmatprep.subr.mxu0 0.0
      %4768 = vmatpush1.msra.mxu0 0.0
      %4769 = vmatprep.subr.mxu0 0.0
      %4770 = vmatpush1.msra.mxu0 0.0
      %4771 = vmatprep.subr.mxu0 0.0
      %4772 = vmatpush1.msra.mxu0 0.0
      %4773 = vmatprep.subr.mxu0 0.0
      %4774 = vmatpush1.msra.mxu0 0.0
      %4775 = vmatprep.subr.mxu0 0.0
      %4776 = vmatpush1.msra.mxu0 0.0
      %4777 = vmatprep.subr.mxu0 0.0
      %4778 = vmatpush1.msra.mxu0 0.0
      %4779 = vmatprep.subr.mxu0 0.0
      %4780 = vmatpush1.msra.mxu0 0.0
      %4781 = vmatprep.subr.mxu0 0.0
      %4782 = vmatpush1.msra.mxu0 0.0
      %4783 = vmatprep.subr.mxu0 0.0
      %4784 = vmatpush1.msra.mxu0 0.0
      %4785 = vmatprep.subr.mxu0 0.0
      %4786 = vmatpush1.msra.mxu0 0.0
      %4787 = vmatprep.subr.mxu0 0.0
      %4788 = vmatpush1.msra.mxu0 0.0
      %4789 = vmatprep.subr.mxu0 0.0
      %4790 = vmatpush1.msra.mxu0 0.0
      %4791 = vmatprep.subr.mxu0 0.0
      %4792 = vmatpush1.msra.mxu0 %v4754
      %4793 = vmatprep.subr.mxu0 0.0
      %4794 = vmatpush2.msra.mxu0 0.0
      %4795 = vmatprep.subr.mxu0 0.0
      %4796 = vmatpush2.msra.mxu0 0.0
      %4797 = vmatprep.subr.mxu0 0.0
      %4798 = vmatpush2.msra.mxu0 0.0
      %4799 = vmatprep.subr.mxu0 0.0
      %4800 = vmatpush2.msra.mxu0 0.0
      %4801 = vmatprep.subr.mxu0 0.0
      %4802 = vmatpush2.msra.mxu0 0.0
      %4803 = vmatprep.subr.mxu0 0.0
      %4804 = vmatpush2.msra.mxu0 0.0
      %4805 = vmatprep.subr.mxu0 0.0
      %4806 = vmatpush2.msra.mxu0 0.0
      %4807 = vmatprep.subr.mxu0 0.0
      %4808 = vmatpush2.msra.mxu0 0.0
      %4809 = vmatprep.subr.mxu0 0.0
      %4810 = vmatpush2.msra.mxu0 0.0
      %4811 = vmatprep.subr.mxu0 0.0
      %4812 = vmatpush2.msra.mxu0 0.0
      %4813 = vmatprep.subr.mxu0 0.0
      %4814 = vmatpush2.msra.mxu0 0.0
      %4815 = vmatprep.subr.mxu0 0.0
      %4816 = vmatpush2.msra.mxu0 0.0
      %4817 = vmatprep.subr.mxu0 0.0
      %4818 = vmatpush2.msra.mxu0 0.0
      %4819 = vmatprep.subr.mxu0 0.0
      %4820 = vmatpush2.msra.mxu0 0.0
      %4821 = vmatprep.subr.mxu0 0.0
      %4822 = vmatpush2.msra.mxu0 0.0
      %4823 = vmatprep.subr.mxu0 0.0
      %4824 = vmatpush2.msra.mxu0 0.0
      %4825 = vmatprep.mubr.f32.mxu0 0.0
      %4826 = vmatmul.mubr.f32.gmra.mxu0 %v4756
      %v4827 = vpop.f32.mrf.mxu0
      %v4828 = vadd.f32 0.0, %v4827
      %v4829 = vpop.f32.mrf.mxu0
      %4830 = vmatprep.mubr.f32.mxu0 0.0
      %4831 = vmatmul.mubr.f32.gmra.mxu0 %v4759
      %v4832 = vpop.f32.mrf.mxu0
      %v4833 = vadd.f32 0.0, %v4832
      %v4834 = vpop.f32.mrf.mxu0
      %4835 = vdwg.mxu0
      %v4838 = vunpack.c.l.s4 1966171168
      %v4839 = vunpack.c.0.s8 %v4838
      %v4840 = vlaneseq
      %v4841 = vshrl.u32 %v4840, 7
      %v4842 = vsub.s32 %v4839, %v4841
      %v4843 = vrot.slane %v4600, %v4842
      %v4844 = vcombine.high %v4843, %v4843
      %v4846 = vunpack.c.l.s4 1966171168
      %v4847 = vunpack.c.0.s8 %v4846
      %v4848 = vlaneseq
      %v4849 = vshrl.u32 %v4848, 7
      %v4850 = vsub.s32 %v4847, %v4849
      %v4851 = vrot.slane %v4843, %v4850
      %v4853 = vunpack.c.l.s4 1966171168
      %v4854 = vunpack.c.0.s8 %v4853
      %v4855 = vlaneseq
      %v4856 = vshrl.u32 %v4855, 7
      %v4857 = vsub.s32 %v4854, %v4856
      %v4858 = vrot.slane %v4844, %v4857
      %v4859 = vcombine.high %v4851, %v4851
      %v4860 = vcombine.high %v4858, %v4858
      %v4861 = vlaneseq
      %v4862 = vshrl.u32 %v4861, 7
      %v4863 = vsub.s32 0, %v4862
      %v4864 = vrot.slane %v4851, %v4863
      %v4865 = vlaneseq
      %v4866 = vshrl.u32 %v4865, 7
      %v4867 = vsub.s32 0, %v4866
      %v4868 = vrot.slane %v4858, %v4867
      %v4869 = vlaneseq
      %v4870 = vshrl.u32 %v4869, 7
      %v4871 = vsub.s32 0, %v4870
      %v4872 = vrot.slane %v4859, %v4871
      %v4873 = vlaneseq
      %v4874 = vshrl.u32 %v4873, 7
      %v4875 = vsub.s32 0, %v4874
      %v4876 = vrot.slane %v4860, %v4875
      %v4881 = vlaneseq
      %v4882 = vshrl.u32 %v4881, 7
      %v4883 = vsub.s32 0, %v4882
      %v4884 = vrot.slane %v4749, %v4883
      %v4885 = vadd.f32 %v4864, %v4674
      %v4886 = vadd.f32 %v4868, %v4674
      %v4887 = vadd.f32 %v4872, %v4674
      %v4888 = vadd.f32 %v4876, %v4674
      %v4890 = vcombine.high %v4884, %v4884
      %v4892 = vadd.f32 %v4885, %v4884
      %v4893 = vadd.f32 %v4886, %v4890
      %v4894 = vadd.f32 %v4887, %v4884
      %v4895 = vadd.f32 %v4888, %v4890
      %v4898 = vcombine.high %v4828, %v4828
      %v4899 = vcombine.high %v4833, %v4833
      %v4902 = vadd.f32 %v4892, %v4828
      %v4903 = vadd.f32 %v4893, %v4898
      %v4904 = vadd.f32 %v4894, %v4833
      %v4905 = vadd.f32 %v4895, %v4899
      %v4906 = vld [vmem:[%s65] sm:$0x1]
      %v4908 = vlaneseq
      %v4909 = vshrl.u32 %v4908, 7
      %v4910 = vsub.s32 0, %v4909
      %v4911 = vrot.slane %v4906, %v4910
      %v4913 = vcombine.high %v4911, %v4911
      %v4915 = vadd.f32 %v4902, %v4911
      %v4916 = vadd.f32 %v4903, %v4913
      %v4917 = vadd.f32 %v4904, %v4911
      %v4918 = vadd.f32 %v4905, %v4913
      %v4919 = vtanh.pop %v4915
      %v4920 = vtanh.pop %v4916
      %v4921 = vtanh.pop %v4917
      %v4922 = vtanh.pop %v4918
      %v4923 = vld [vmem:[%s67] sm:$0xff]
      %v4924 = vld [vmem:[%s67 + $0x8] sm:$0xff]
      %v4925 = vld [vmem:[%s67 + $0x10] sm:$0xff]
      %v4926 = vld [vmem:[%s67 + $0x18] sm:$0xff]
      %v4927 = vld [vmem:[%s69] sm:$0x1]
      %v4929 = vlaneseq
      %v4930 = vshrl.u32 %v4929, 7
      %v4931 = vsub.s32 0, %v4930
      %v4932 = vrot.slane %v4927, %v4931
      %v4938 = vcombine.low %v4919, %v4920
      %v4939 = vcombine.low %v4921, %v4922
      %v4940 = vsel %vm1665, %v4938, 0
      %v4942 = vsel %vm1665, %v4939, 0
      %4944 = vmatprep.subr.mxu0 0.0
      %4945 = vmatpush1.msra.mxu0 0.0
      %4946 = vmatprep.subr.mxu0 0.0
      %4947 = vmatpush1.msra.mxu0 0.0
      %4948 = vmatprep.subr.mxu0 0.0
      %4949 = vmatpush1.msra.mxu0 0.0
      %4950 = vmatprep.subr.mxu0 0.0
      %4951 = vmatpush1.msra.mxu0 0.0
      %4952 = vmatprep.subr.mxu0 0.0
      %4953 = vmatpush1.msra.mxu0 0.0
      %4954 = vmatprep.subr.mxu0 0.0
      %4955 = vmatpush1.msra.mxu0 0.0
      %4956 = vmatprep.subr.mxu0 0.0
      %4957 = vmatpush1.msra.mxu0 0.0
      %4958 = vmatprep.subr.mxu0 0.0
      %4959 = vmatpush1.msra.mxu0 0.0
      %4960 = vmatprep.subr.mxu0 0.0
      %4961 = vmatpush1.msra.mxu0 0.0
      %4962 = vmatprep.subr.mxu0 0.0
      %4963 = vmatpush1.msra.mxu0 0.0
      %4964 = vmatprep.subr.mxu0 0.0
      %4965 = vmatpush1.msra.mxu0 0.0
      %4966 = vmatprep.subr.mxu0 0.0
      %4967 = vmatpush1.msra.mxu0 0.0
      %4968 = vmatprep.subr.mxu0 0.0
      %4969 = vmatpush1.msra.mxu0 %v4926
      %4970 = vmatprep.subr.mxu0 0.0
      %4971 = vmatpush1.msra.mxu0 %v4925
      %4972 = vmatprep.subr.mxu0 0.0
      %4973 = vmatpush1.msra.mxu0 %v4924
      %4974 = vmatprep.subr.mxu0 0.0
      %4975 = vmatpush1.msra.mxu0 %v4923
      %4976 = vmatprep.subr.mxu0 0.0
      %4977 = vmatpush2.msra.mxu0 0.0
      %4978 = vmatprep.subr.mxu0 0.0
      %4979 = vmatpush2.msra.mxu0 0.0
      %4980 = vmatprep.subr.mxu0 0.0
      %4981 = vmatpush2.msra.mxu0 0.0
      %4982 = vmatprep.subr.mxu0 0.0
      %4983 = vmatpush2.msra.mxu0 0.0
      %4984 = vmatprep.subr.mxu0 0.0
      %4985 = vmatpush2.msra.mxu0 0.0
      %4986 = vmatprep.subr.mxu0 0.0
      %4987 = vmatpush2.msra.mxu0 0.0
      %4988 = vmatprep.subr.mxu0 0.0
      %4989 = vmatpush2.msra.mxu0 0.0
      %4990 = vmatprep.subr.mxu0 0.0
      %4991 = vmatpush2.msra.mxu0 0.0
      %4992 = vmatprep.subr.mxu0 0.0
      %4993 = vmatpush2.msra.mxu0 0.0
      %4994 = vmatprep.subr.mxu0 0.0
      %4995 = vmatpush2.msra.mxu0 0.0
      %4996 = vmatprep.subr.mxu0 0.0
      %4997 = vmatpush2.msra.mxu0 0.0
      %4998 = vmatprep.subr.mxu0 0.0
      %4999 = vmatpush2.msra.mxu0 0.0
      %5000 = vmatprep.subr.mxu0 0.0
      %5001 = vmatpush2.msra.mxu0 0.0
      %5002 = vmatprep.subr.mxu0 0.0
      %5003 = vmatpush2.msra.mxu0 0.0
      %5004 = vmatprep.subr.mxu0 0.0
      %5005 = vmatpush2.msra.mxu0 0.0
      %5006 = vmatprep.subr.mxu0 0.0
      %5007 = vmatpush2.msra.mxu0 0.0
      %5008 = vmatprep.mubr.f32.mxu0 0.0
      %5009 = vmatmul.mubr.f32.gmra.mxu0 %v4940
      %v5010 = vpop.f32.mrf.mxu0
      %v5011 = vadd.f32 %v4932, %v5010
      %v5012 = vpop.f32.mrf.mxu0
      %5013 = vmatprep.mubr.f32.mxu0 0.0
      %5014 = vmatmul.mubr.f32.gmra.mxu0 %v4942
      %v5015 = vpop.f32.mrf.mxu0
      %v5016 = vadd.f32 %v4932, %v5015
      %v5017 = vpop.f32.mrf.mxu0
      %5018 = vdwg.mxu0
      %v5019 = vtanh.pop %v5011
      %v5020 = vtanh.pop %v5016
      %v5021 = vld [vmem:[%s71] sm:$0xff]
      %v5022 = vld [vmem:[%s71 + $0x8] sm:$0xff]
      %v5023 = vld [vmem:[%s71 + $0x10] sm:$0xff]
      %v5024 = vld [vmem:[%s71 + $0x18] sm:$0xff]
      %v5025 = vld [vmem:[#allocation2] sm:$0x1]
      %v5027 = vlaneseq
      %v5028 = vshrl.u32 %v5027, 7
      %v5029 = vsub.s32 0, %v5028
      %v5030 = vrot.slane %v5025, %v5029
      %v5033 = vsel %vm1665, %v5019, 0
      %v5036 = vsel %vm1665, %v5020, 0
      %5038 = vmatprep.subr.mxu0 0.0
      %5039 = vmatpush1.msra.mxu0 0.0
      %5040 = vmatprep.subr.mxu0 0.0
      %5041 = vmatpush1.msra.mxu0 0.0
      %5042 = vmatprep.subr.mxu0 0.0
      %5043 = vmatpush1.msra.mxu0 0.0
      %5044 = vmatprep.subr.mxu0 0.0
      %5045 = vmatpush1.msra.mxu0 0.0
      %5046 = vmatprep.subr.mxu0 0.0
      %5047 = vmatpush1.msra.mxu0 0.0
      %5048 = vmatprep.subr.mxu0 0.0
      %5049 = vmatpush1.msra.mxu0 0.0
      %5050 = vmatprep.subr.mxu0 0.0
      %5051 = vmatpush1.msra.mxu0 0.0
      %5052 = vmatprep.subr.mxu0 0.0
      %5053 = vmatpush1.msra.mxu0 0.0
      %5054 = vmatprep.subr.mxu0 0.0
      %5055 = vmatpush1.msra.mxu0 0.0
      %5056 = vmatprep.subr.mxu0 0.0
      %5057 = vmatpush1.msra.mxu0 0.0
      %5058 = vmatprep.subr.mxu0 0.0
      %5059 = vmatpush1.msra.mxu0 0.0
      %5060 = vmatprep.subr.mxu0 0.0
      %5061 = vmatpush1.msra.mxu0 0.0
      %5062 = vmatprep.subr.mxu0 0.0
      %5063 = vmatpush1.msra.mxu0 %v5024
      %5064 = vmatprep.subr.mxu0 0.0
      %5065 = vmatpush1.msra.mxu0 %v5023
      %5066 = vmatprep.subr.mxu0 0.0
      %5067 = vmatpush1.msra.mxu0 %v5022
      %5068 = vmatprep.subr.mxu0 0.0
      %5069 = vmatpush1.msra.mxu0 %v5021
      %5070 = vmatprep.subr.mxu0 0.0
      %5071 = vmatpush2.msra.mxu0 0.0
      %5072 = vmatprep.subr.mxu0 0.0
      %5073 = vmatpush2.msra.mxu0 0.0
      %5074 = vmatprep.subr.mxu0 0.0
      %5075 = vmatpush2.msra.mxu0 0.0
      %5076 = vmatprep.subr.mxu0 0.0
      %5077 = vmatpush2.msra.mxu0 0.0
      %5078 = vmatprep.subr.mxu0 0.0
      %5079 = vmatpush2.msra.mxu0 0.0
      %5080 = vmatprep.subr.mxu0 0.0
      %5081 = vmatpush2.msra.mxu0 0.0
      %5082 = vmatprep.subr.mxu0 0.0
      %5083 = vmatpush2.msra.mxu0 0.0
      %5084 = vmatprep.subr.mxu0 0.0
      %5085 = vmatpush2.msra.mxu0 0.0
      %5086 = vmatprep.subr.mxu0 0.0
      %5087 = vmatpush2.msra.mxu0 0.0
      %5088 = vmatprep.subr.mxu0 0.0
      %5089 = vmatpush2.msra.mxu0 0.0
      %5090 = vmatprep.subr.mxu0 0.0
      %5091 = vmatpush2.msra.mxu0 0.0
      %5092 = vmatprep.subr.mxu0 0.0
      %5093 = vmatpush2.msra.mxu0 0.0
      %5094 = vmatprep.subr.mxu0 0.0
      %5095 = vmatpush2.msra.mxu0 0.0
      %5096 = vmatprep.subr.mxu0 0.0
      %5097 = vmatpush2.msra.mxu0 0.0
      %5098 = vmatprep.subr.mxu0 0.0
      %5099 = vmatpush2.msra.mxu0 0.0
      %5100 = vmatprep.subr.mxu0 0.0
      %5101 = vmatpush2.msra.mxu0 0.0
      %5102 = vmatprep.mubr.f32.mxu0 0.0
      %5103 = vmatmul.mubr.f32.gmra.mxu0 %v5033
      %v5104 = vpop.f32.mrf.mxu0
      %v5105 = vadd.f32 %v5030, %v5104
      %v5106 = vpop.f32.mrf.mxu0
      %5107 = vmatprep.mubr.f32.mxu0 0.0
      %5108 = vmatmul.mubr.f32.gmra.mxu0 %v5036
      %v5109 = vpop.f32.mrf.mxu0
      %v5110 = vadd.f32 %v5030, %v5109
      %v5111 = vpop.f32.mrf.mxu0
      %5112 = vdwg.mxu0
      %v5113 = vld [vmem:[%s1458] sm:$0xff]
      %v5114 = vld [vmem:[%s1458 + $0x8] sm:$0xff]
      %v5115 = vadd.f32 %v5105, %v5113
      %v5116 = vadd.f32 %v5110, %v5114
      %vm5117 = vcmask 7168
      %v5118 = vsel %vm5117, %v5115, -inf
      %v5119 = vsel %vm5117, %v5116, -inf
      %v5120 = vmax.f32 %v5118, %v5119
      %v5121 = vrot.slane %v5120, 4
      %v5122 = vmax.f32 %v5120, %v5121
      %v5123 = vrot.slane %v5122, 2
      %v5124 = vmax.f32 %v5122, %v5123
      %v5125 = vrot.slane %v5124, 1
      %v5126 = vmax.f32 %v5124, %v5125
      %v5127 = vsub.f32 %v5115, %v5126
      %v5128 = vsub.f32 %v5116, %v5126
      %v5129 = vmul.f32 %v5127, 1.442695
      %v5130 = vpow.pop %v5129
      %v5131 = vmul.f32 %v5128, 1.442695
      %v5132 = vpow.pop %v5131
      %v5133 = vsel %vm5117, %v5130, 0.0
      %v5134 = vsel %vm5117, %v5132, 0.0
      %v5135 = vadd.f32 %v5133, %v5134
      %v5136 = vrot.slane %v5135, 4
      %v5137 = vadd.f32 %v5135, %v5136
      %v5138 = vrot.slane %v5137, 2
      %v5139 = vadd.f32 %v5137, %v5138
      %v5140 = vrot.slane %v5139, 1
      %v5141 = vadd.f32 %v5139, %v5140
      %v5142 = vrcp.pop %v5141
      %v5143 = vmul.f32 %v5130, %v5142
      %v5144 = vmul.f32 %v5132, %v5142
      %5145 = vst.msk [vmem:[%s1463] sm:$0xff] %vm5117, %v5143
      %5146 = vst.msk [vmem:[%s1463 + $0x8] sm:$0xff] %vm5117, %v5144
      %v5147 = vld [vmem:[%s75] sm:$0xff]
      %v5148 = vld [vmem:[%s75 + $0x8] sm:$0xff]
      %v5149 = vld [vmem:[%s77] sm:$0x1]
      %5150 = vmatprep.subr.mxu0 0.0
      %5151 = vmatpush1.msra.mxu0 0.0
      %5152 = vmatprep.subr.mxu0 0.0
      %5153 = vmatpush1.msra.mxu0 0.0
      %5154 = vmatprep.subr.mxu0 0.0
      %5155 = vmatpush1.msra.mxu0 0.0
      %5156 = vmatprep.subr.mxu0 0.0
      %5157 = vmatpush1.msra.mxu0 0.0
      %5158 = vmatprep.subr.mxu0 0.0
      %5159 = vmatpush1.msra.mxu0 0.0
      %5160 = vmatprep.subr.mxu0 0.0
      %5161 = vmatpush1.msra.mxu0 0.0
      %5162 = vmatprep.subr.mxu0 0.0
      %5163 = vmatpush1.msra.mxu0 0.0
      %5164 = vmatprep.subr.mxu0 0.0
      %5165 = vmatpush1.msra.mxu0 0.0
      %5166 = vmatprep.subr.mxu0 0.0
      %5167 = vmatpush1.msra.mxu0 0.0
      %5168 = vmatprep.subr.mxu0 0.0
      %5169 = vmatpush1.msra.mxu0 0.0
      %5170 = vmatprep.subr.mxu0 0.0
      %5171 = vmatpush1.msra.mxu0 0.0
      %5172 = vmatprep.subr.mxu0 0.0
      %5173 = vmatpush1.msra.mxu0 0.0
      %5174 = vmatprep.subr.mxu0 0.0
      %5175 = vmatpush1.msra.mxu0 0.0
      %5176 = vmatprep.subr.mxu0 0.0
      %5177 = vmatpush1.msra.mxu0 0.0
      %5178 = vmatprep.subr.mxu0 0.0
      %5179 = vmatpush1.msra.mxu0 %v5148
      %5180 = vmatprep.subr.mxu0 0.0
      %5181 = vmatpush1.msra.mxu0 %v5147
      %5182 = vmatprep.subr.mxu0 0.0
      %5183 = vmatpush2.msra.mxu0 0.0
      %5184 = vmatprep.subr.mxu0 0.0
      %5185 = vmatpush2.msra.mxu0 0.0
      %5186 = vmatprep.subr.mxu0 0.0
      %5187 = vmatpush2.msra.mxu0 0.0
      %5188 = vmatprep.subr.mxu0 0.0
      %5189 = vmatpush2.msra.mxu0 0.0
      %5190 = vmatprep.subr.mxu0 0.0
      %5191 = vmatpush2.msra.mxu0 0.0
      %5192 = vmatprep.subr.mxu0 0.0
      %5193 = vmatpush2.msra.mxu0 0.0
      %5194 = vmatprep.subr.mxu0 0.0
      %5195 = vmatpush2.msra.mxu0 0.0
      %5196 = vmatprep.subr.mxu0 0.0
      %5197 = vmatpush2.msra.mxu0 0.0
      %5198 = vmatprep.subr.mxu0 0.0
      %5199 = vmatpush2.msra.mxu0 0.0
      %5200 = vmatprep.subr.mxu0 0.0
      %5201 = vmatpush2.msra.mxu0 0.0
      %5202 = vmatprep.subr.mxu0 0.0
      %5203 = vmatpush2.msra.mxu0 0.0
      %5204 = vmatprep.subr.mxu0 0.0
      %5205 = vmatpush2.msra.mxu0 0.0
      %5206 = vmatprep.subr.mxu0 0.0
      %5207 = vmatpush2.msra.mxu0 0.0
      %5208 = vmatprep.subr.mxu0 0.0
      %5209 = vmatpush2.msra.mxu0 0.0
      %5210 = vmatprep.subr.mxu0 0.0
      %5211 = vmatpush2.msra.mxu0 0.0
      %5212 = vmatprep.subr.mxu0 0.0
      %5213 = vmatpush2.msra.mxu0 0.0
      %5214 = vmatprep.mubr.f32.mxu0 0.0
      %5215 = vmatmul.mubr.f32.gmra.mxu0 %v4680
      %v5216 = vpop.f32.mrf.mxu0
      %v5217 = vadd.f32 %v5149, %v5216
      %v5218 = vpop.f32.mrf.mxu0
      %5219 = vdwg.mxu0
      %v5220 = vtanh.pop %v5217
      %v5221 = vld [vmem:[%s79] sm:$0xff]
      %v5222 = vld [vmem:[%s79 + $0x8] sm:$0xff]
      %v5223 = vld [vmem:[%s79 + $0x10] sm:$0xff]
      %v5224 = vld [vmem:[%s79 + $0x18] sm:$0xff]
      %v5225 = vld [vmem:[%s81] sm:$0x1]
      %v5227 = vsel %vm1665, %v5220, 0
      %5229 = vmatprep.subr.mxu0 0.0
      %5230 = vmatpush1.msra.mxu0 0.0
      %5231 = vmatprep.subr.mxu0 0.0
      %5232 = vmatpush1.msra.mxu0 0.0
      %5233 = vmatprep.subr.mxu0 0.0
      %5234 = vmatpush1.msra.mxu0 0.0
      %5235 = vmatprep.subr.mxu0 0.0
      %5236 = vmatpush1.msra.mxu0 0.0
      %5237 = vmatprep.subr.mxu0 0.0
      %5238 = vmatpush1.msra.mxu0 0.0
      %5239 = vmatprep.subr.mxu0 0.0
      %5240 = vmatpush1.msra.mxu0 0.0
      %5241 = vmatprep.subr.mxu0 0.0
      %5242 = vmatpush1.msra.mxu0 0.0
      %5243 = vmatprep.subr.mxu0 0.0
      %5244 = vmatpush1.msra.mxu0 0.0
      %5245 = vmatprep.subr.mxu0 0.0
      %5246 = vmatpush1.msra.mxu0 0.0
      %5247 = vmatprep.subr.mxu0 0.0
      %5248 = vmatpush1.msra.mxu0 0.0
      %5249 = vmatprep.subr.mxu0 0.0
      %5250 = vmatpush1.msra.mxu0 0.0
      %5251 = vmatprep.subr.mxu0 0.0
      %5252 = vmatpush1.msra.mxu0 0.0
      %5253 = vmatprep.subr.mxu0 0.0
      %5254 = vmatpush1.msra.mxu0 %v5224
      %5255 = vmatprep.subr.mxu0 0.0
      %5256 = vmatpush1.msra.mxu0 %v5223
      %5257 = vmatprep.subr.mxu0 0.0
      %5258 = vmatpush1.msra.mxu0 %v5222
      %5259 = vmatprep.subr.mxu0 0.0
      %5260 = vmatpush1.msra.mxu0 %v5221
      %5261 = vmatprep.subr.mxu0 0.0
      %5262 = vmatpush2.msra.mxu0 0.0
      %5263 = vmatprep.subr.mxu0 0.0
      %5264 = vmatpush2.msra.mxu0 0.0
      %5265 = vmatprep.subr.mxu0 0.0
      %5266 = vmatpush2.msra.mxu0 0.0
      %5267 = vmatprep.subr.mxu0 0.0
      %5268 = vmatpush2.msra.mxu0 0.0
      %5269 = vmatprep.subr.mxu0 0.0
      %5270 = vmatpush2.msra.mxu0 0.0
      %5271 = vmatprep.subr.mxu0 0.0
      %5272 = vmatpush2.msra.mxu0 0.0
      %5273 = vmatprep.subr.mxu0 0.0
      %5274 = vmatpush2.msra.mxu0 0.0
      %5275 = vmatprep.subr.mxu0 0.0
      %5276 = vmatpush2.msra.mxu0 0.0
      %5277 = vmatprep.subr.mxu0 0.0
      %5278 = vmatpush2.msra.mxu0 0.0
      %5279 = vmatprep.subr.mxu0 0.0
      %5280 = vmatpush2.msra.mxu0 0.0
      %5281 = vmatprep.subr.mxu0 0.0
      %5282 = vmatpush2.msra.mxu0 0.0
      %5283 = vmatprep.subr.mxu0 0.0
      %5284 = vmatpush2.msra.mxu0 0.0
      %5285 = vmatprep.subr.mxu0 0.0
      %5286 = vmatpush2.msra.mxu0 0.0
      %5287 = vmatprep.subr.mxu0 0.0
      %5288 = vmatpush2.msra.mxu0 0.0
      %5289 = vmatprep.subr.mxu0 0.0
      %5290 = vmatpush2.msra.mxu0 0.0
      %5291 = vmatprep.subr.mxu0 0.0
      %5292 = vmatpush2.msra.mxu0 0.0
      %5293 = vmatprep.mubr.f32.mxu0 0.0
      %5294 = vmatmul.mubr.f32.gmra.mxu0 %v5227
      %v5295 = vpop.f32.mrf.mxu0
      %v5296 = vadd.f32 %v5225, %v5295
      %v5297 = vpop.f32.mrf.mxu0
      %5298 = vdwg.mxu0
      %v5299 = vtanh.pop %v5296
      %v5300 = vld [vmem:[%s83] sm:$0xff]
      %v5301 = vld [vmem:[%s83 + $0x8] sm:$0xff]
      %v5302 = vld [vmem:[%s83 + $0x10] sm:$0xff]
      %v5303 = vld [vmem:[%s83 + $0x18] sm:$0xff]
      %v5304 = vld [vmem:[#allocation3] sm:$0x1]
      %v5306 = vsel %vm1665, %v5299, 0
      %5308 = vmatprep.subr.mxu0 0.0
      %5309 = vmatpush1.msra.mxu0 0.0
      %5310 = vmatprep.subr.mxu0 0.0
      %5311 = vmatpush1.msra.mxu0 0.0
      %5312 = vmatprep.subr.mxu0 0.0
      %5313 = vmatpush1.msra.mxu0 0.0
      %5314 = vmatprep.subr.mxu0 0.0
      %5315 = vmatpush1.msra.mxu0 0.0
      %5316 = vmatprep.subr.mxu0 0.0
      %5317 = vmatpush1.msra.mxu0 0.0
      %5318 = vmatprep.subr.mxu0 0.0
      %5319 = vmatpush1.msra.mxu0 0.0
      %5320 = vmatprep.subr.mxu0 0.0
      %5321 = vmatpush1.msra.mxu0 0.0
      %5322 = vmatprep.subr.mxu0 0.0
      %5323 = vmatpush1.msra.mxu0 0.0
      %5324 = vmatprep.subr.mxu0 0.0
      %5325 = vmatpush1.msra.mxu0 0.0
      %5326 = vmatprep.subr.mxu0 0.0
      %5327 = vmatpush1.msra.mxu0 0.0
      %5328 = vmatprep.subr.mxu0 0.0
      %5329 = vmatpush1.msra.mxu0 0.0
      %5330 = vmatprep.subr.mxu0 0.0
      %5331 = vmatpush1.msra.mxu0 0.0
      %5332 = vmatprep.subr.mxu0 0.0
      %5333 = vmatpush1.msra.mxu0 %v5303
      %5334 = vmatprep.subr.mxu0 0.0
      %5335 = vmatpush1.msra.mxu0 %v5302
      %5336 = vmatprep.subr.mxu0 0.0
      %5337 = vmatpush1.msra.mxu0 %v5301
      %5338 = vmatprep.subr.mxu0 0.0
      %5339 = vmatpush1.msra.mxu0 %v5300
      %5340 = vmatprep.subr.mxu0 0.0
      %5341 = vmatpush2.msra.mxu0 0.0
      %5342 = vmatprep.subr.mxu0 0.0
      %5343 = vmatpush2.msra.mxu0 0.0
      %5344 = vmatprep.subr.mxu0 0.0
      %5345 = vmatpush2.msra.mxu0 0.0
      %5346 = vmatprep.subr.mxu0 0.0
      %5347 = vmatpush2.msra.mxu0 0.0
      %5348 = vmatprep.subr.mxu0 0.0
      %5349 = vmatpush2.msra.mxu0 0.0
      %5350 = vmatprep.subr.mxu0 0.0
      %5351 = vmatpush2.msra.mxu0 0.0
      %5352 = vmatprep.subr.mxu0 0.0
      %5353 = vmatpush2.msra.mxu0 0.0
      %5354 = vmatprep.subr.mxu0 0.0
      %5355 = vmatpush2.msra.mxu0 0.0
      %5356 = vmatprep.subr.mxu0 0.0
      %5357 = vmatpush2.msra.mxu0 0.0
      %5358 = vmatprep.subr.mxu0 0.0
      %5359 = vmatpush2.msra.mxu0 0.0
      %5360 = vmatprep.subr.mxu0 0.0
      %5361 = vmatpush2.msra.mxu0 0.0
      %5362 = vmatprep.subr.mxu0 0.0
      %5363 = vmatpush2.msra.mxu0 0.0
      %5364 = vmatprep.subr.mxu0 0.0
      %5365 = vmatpush2.msra.mxu0 0.0
      %5366 = vmatprep.subr.mxu0 0.0
      %5367 = vmatpush2.msra.mxu0 0.0
      %5368 = vmatprep.subr.mxu0 0.0
      %5369 = vmatpush2.msra.mxu0 0.0
      %5370 = vmatprep.subr.mxu0 0.0
      %5371 = vmatpush2.msra.mxu0 0.0
      %5372 = vmatprep.mubr.f32.mxu0 0.0
      %5373 = vmatmul.mubr.f32.gmra.mxu0 %v5306
      %v5374 = vpop.f32.mrf.mxu0
      %v5375 = vadd.f32 %v5304, %v5374
      %v5376 = vpop.f32.mrf.mxu0
      %5377 = vdwg.mxu0
      %vm5378 = vcmask 0
      %5379 = vst.msk [vmem:[%s1466] sm:$0x1] %vm5378, %v5375
      %p5380 = scmp.lt.s32.totalorder %s105, 1
      %s5381 = scalar_select %p5380, %s105, 1
      %s5382 = smul.addr %s5381, 2
      %s5383 = smul.addr %s5382, 8
      %s5384 = scalar_lea.vmem %s87, %s5383
      %p5385 = scmp.lt.s32.totalorder %s105, 1
      %s5386 = scalar_select %p5385, %s105, 1
      %s5387 = scalar_lea.vmem %s89, %s5386
      // Predicated region
      $region193: #{meta_actor_daniel_forward.1} parent=191 // pred_check
        %p5388 = pneg %p1066
      $region194: #{meta_actor_daniel_forward.1} parent=191 // pred_check_branch
        %5390 = sbr.rel (%p5388) target = $region196
      $region195: #{meta_actor_daniel_forward.1} parent=191 // pred_region
        _
      $region196: #{meta_actor_daniel_forward.1} parent=191 // pred_fallthru
        _
      // Predicated region
      $region197: #{meta_actor_daniel_forward.1} parent=191 // pred_check
        %p5391 = pneg %p1092
      $region198: #{meta_actor_daniel_forward.1} parent=191 // pred_check_branch
        %5393 = sbr.rel (%p5391) target = $region200
      $region199: #{meta_actor_daniel_forward.1} parent=191 // pred_region
        _
      $region200: #{meta_actor_daniel_forward.1} parent=191 // pred_fallthru
        _
    $region192: #{meta_actor_daniel_forward.1} parent=5 // pred_fallthru
      _
    %p5394 = scmp.le.s32.totalorder 2, %s100
    // Predicated region
    $region201: #{meta_actor_daniel_forward.1} parent=5 // pred_check
      %p5395 = pneg %p5394
    $region202: #{meta_actor_daniel_forward.1} parent=5 // pred_check_branch
      %5397 = sbr.rel (%p5395) target = $region204
    $region203: #{meta_actor_daniel_forward.1} parent=5 // pred_region
      %s5398 = ssub.s32 %s100, 2
      // Predicated region
      $region205: #{meta_actor_daniel_forward.1} parent=203 // pred_check
        %p5399 = pneg %p1072
      $region206: #{meta_actor_daniel_forward.1} parent=203 // pred_check_branch
        %5401 = sbr.rel (%p5399) target = $region208
      $region207: #{meta_actor_daniel_forward.1} parent=203 // pred_region
        %p5402 = scmp.lt.s32.totalorder %s106, 1
        %s5403 = scalar_select %p5402, %s106, 1
        %s5404 = smul.addr %s5403, 2
        %s5405 = smul.addr %s5404, 8
        %s5406 = scalar_lea.vmem %s87, %s5405
      $region208: #{meta_actor_daniel_forward.1} parent=203 // pred_fallthru
        _
      // Predicated region
      $region209: #{meta_actor_daniel_forward.1} parent=203 // pred_check
        %p5407 = pneg %p1098
      $region210: #{meta_actor_daniel_forward.1} parent=203 // pred_check_branch
        %5409 = sbr.rel (%p5407) target = $region212
      $region211: #{meta_actor_daniel_forward.1} parent=203 // pred_region
        %p5410 = scmp.lt.s32.totalorder %s106, 1
        %s5411 = scalar_select %p5410, %s106, 1
        %s5412 = scalar_lea.vmem %s89, %s5411
      $region212: #{meta_actor_daniel_forward.1} parent=203 // pred_fallthru
        _
    $region204: #{meta_actor_daniel_forward.1} parent=5 // pred_fallthru
      _
  $region6: #{meta_actor_daniel_forward.1} parent=0 // loop_footer
    %s104 = sadd.s32 1, %s100
  $region7: #{meta_actor_daniel_forward.1} parent=0 // loop_footer_branch
    %99 = sbr.rel target = $region3
  $region8: #{meta_actor_daniel_forward.1} parent=0 // loop_exit
    _

</llo_original>
